<compile_context>
chip_gen: v5e
topology: v5e:2x2
jax: 0.10.0
libtpu: 0.0.40
codegen_flags: <defaults>
</compile_context>

<pallas_src>
import jax
import jax.numpy as jnp
from jax import lax
from jax.experimental import pallas as pl
from jax.experimental.pallas import tpu as pltpu

EPS = 1e-5  # nn.BatchNorm2d default eps


def _round_up(x, m):
    return (x + m - 1) // m * m


# ----------------------------------------------------------------------------
# Pallas kernels
# ----------------------------------------------------------------------------
def _matmul_kernel(a_ref, b_ref, o_ref):
    # Full-K block per grid step: one MXU dot, bf16 operands, f32 accumulation.
    o_ref[...] = jnp.dot(a_ref[...], b_ref[...],
                         preferred_element_type=jnp.float32).astype(o_ref.dtype)


def pallas_matmul(a, b, tm=512, tn=512):
    """(M, K) @ (K, N) -> f32.  bf16 operands, f32 MXU accumulation.

    K is never tiled (it is at most 512 in this network), so there is no
    reduction grid axis and no accumulator scratch.  Dimensions are only
    padded when a tiled dim is misaligned or M is below one sublane group.
    """
    M, K = a.shape
    K2, N = b.shape
    assert K == K2, (a.shape, b.shape)
    a = a.astype(jnp.bfloat16)
    b = b.astype(jnp.bfloat16)

    Mp = _round_up(M, 8) if M < 8 else (M if M <= tm else _round_up(M, tm))
    bm = min(Mp, tm)
    Np = N if N <= tn else _round_up(N, tn)
    bn = min(Np, tn)
    if Mp != M:
        a = jnp.pad(a, ((0, Mp - M), (0, 0)))
    if Np != N:
        b = jnp.pad(b, ((0, 0), (0, Np - N)))

    out = pl.pallas_call(
        _matmul_kernel,
        out_shape=jax.ShapeDtypeStruct((Mp, Np), jnp.float32),
        grid=(Mp // bm, Np // bn),
        in_specs=[pl.BlockSpec((bm, K), lambda i, j: (i, 0)),
                  pl.BlockSpec((K, bn), lambda i, j: (0, j))],
        out_specs=pl.BlockSpec((bm, bn), lambda i, j: (i, j)),
        compiler_params=pltpu.CompilerParams(
            dimension_semantics=("parallel", "parallel"),
            vmem_limit_bytes=32 * 1024 * 1024),
    )(a, b)
    if (Mp, Np) != (M, N):
        out = out[:M, :N]
    return out


def _bn_relu_kernel(x_ref, o_ref):
    # x: (rows, C) == flattened (N*H*W, C).  Training-mode BatchNorm2d with
    # default gamma=1, beta=0: per-channel batch mean / biased variance.
    x = x_ref[...].astype(jnp.float32)
    mean = jnp.mean(x, axis=0, keepdims=True)
    xc = x - mean
    var = jnp.mean(xc * xc, axis=0, keepdims=True)   # two-pass form, >= 0
    inv = lax.rsqrt(var + EPS)
    o_ref[...] = jnp.maximum(xc * inv, 0.0).astype(o_ref.dtype)


def pallas_bn_relu(x2d, out_dtype=jnp.bfloat16):
    # Whole activation is <= 512 KiB here -> one resident VMEM block.
    return pl.pallas_call(
        _bn_relu_kernel,
        out_shape=jax.ShapeDtypeStruct(x2d.shape, out_dtype),
    )(x2d)


def _tanh_kernel(x_ref, o_ref):
    o_ref[...] = jnp.tanh(x_ref[...].astype(jnp.float32)).astype(o_ref.dtype)


def pallas_tanh(x2d):
    return pl.pallas_call(
        _tanh_kernel,
        out_shape=jax.ShapeDtypeStruct(x2d.shape, jnp.float32),
    )(x2d)


# ----------------------------------------------------------------------------
# Layer wrappers (data-movement glue in plain JAX; all compute in Pallas)
# ----------------------------------------------------------------------------
def latent_to_image(x_nchw, wm1):
    """ConvTranspose2d(100, 512, k=4, s=1, p=0) on (N,100,1,1) -> NHWC (N,4,4,512)."""
    N, Ci = x_nchw.shape[0], x_nchw.shape[1]
    xm = x_nchw.reshape(N, Ci).astype(jnp.bfloat16)
    Kp = wm1.shape[0]
    if Kp != Ci:                       # weight rows were pre-padded 100 -> 128
        xm = jnp.pad(xm, ((0, 0), (0, Kp - Ci)))
    out = pallas_matmul(xm, wm1)       # (N, 16*512)
    return out.reshape(N, 4, 4, 512)


# Per-output-parity taps of the k=4, s=2, p=1 transposed conv in scatter form:
# out[2r+ph] = sum_i z[row-offset into 1-zero-padded z, kernel tap].
_PARITY_TAPS = {0: ((1, 1), (0, 3)),   # even outputs: kh=1 (ih=r),  kh=3 (ih=r-1)
                1: ((1, 2), (2, 0))}   # odd outputs:  kh=2 (ih=r),  kh=0 (ih=r+1)


def conv_transpose_s2_nhwc(x, wm, co):
    """ConvTranspose2d(Ci, co, k=4, s=2, p=1, bias=False), NHWC -> NHWC (N,2H,2W,co)."""
    N, H, W, Ci = x.shape
    z = pallas_matmul(x.reshape(N * H * W, Ci), wm)       # (N*H*W, >=16*co) f32
    z = z[:, :16 * co].reshape(N, H, W, 4, 4, co)
    zp = jnp.pad(z, ((0, 0), (1, 1), (1, 1), (0, 0), (0, 0), (0, 0)))

    parity_rows = []
    for ph in (0, 1):
        row = []
        for pw in (0, 1):
            acc = None
            for rh, kh in _PARITY_TAPS[ph]:
                for rw, kw in _PARITY_TAPS[pw]:
                    t = zp[:, rh:rh + H, rw:rw + W, kh, kw, :]
                    acc = t if acc is None else acc + t
            row.append(acc)                                # (N, H, W, co)
        parity_rows.append(jnp.stack(row, axis=3))         # (N, H, W, 2, co)
    y = jnp.stack(parity_rows, axis=2)                     # (N, H, 2, W, 2, co)
    return y.reshape(N, 2 * H, 2 * W, co)                  # depth-to-space


def bn_relu_nhwc(x):
    N, H, W, C = x.shape
    y = pallas_bn_relu(x.reshape(N * H * W, C))
    return y.reshape(N, H, W, C)


# ----------------------------------------------------------------------------
# Parameters
# ----------------------------------------------------------------------------
def init_generator_params(key):
    """Raw ConvTranspose2d weights, PyTorch layout (C_in, C_out, kH, kW)."""
    ks = jax.random.split(key, 5)
    shapes = [(100, 512, 4, 4), (512, 256, 4, 4), (256, 128, 4, 4),
              (128, 64, 4, 4), (64, 3, 4, 4)]
    return [0.02 * jax.random.normal(k, s, jnp.float32) for k, s in zip(ks, shapes)]


def prepare_generator_params(params):
    """One-time weight prep: (Ci, Co, 4, 4) -> bf16 GEMM matrices (Ci, 16*Co).

    Layer 1's K (=100) is zero-padded to 128 and layer 5's N (=48) to 128 so
    every GEMM block is lane-aligned and stores are lane-dense.
    """
    mats = []
    for idx, w in enumerate(params):
        ci, co = w.shape[0], w.shape[1]
        wm = w.transpose(0, 2, 3, 1).reshape(ci, 16 * co)   # [ci, kh, kw, co]
        if idx == 0 and ci % 128 != 0:
            wm = jnp.pad(wm, ((0, _round_up(ci, 128) - ci), (0, 0)))
        if wm.shape[1] % 128 != 0:
            wm = jnp.pad(wm, ((0, 0), (0, _round_up(wm.shape[1], 128) - wm.shape[1])))
        mats.append(wm.astype(jnp.bfloat16))
    return mats


# ----------------------------------------------------------------------------
# Generator forward
# ----------------------------------------------------------------------------
def generator_forward(x, prepared):
    wm1, wm2, wm3, wm4, wm5 = prepared
    x = latent_to_image(x, wm1)                 # (N, 4, 4, 512)
    x = bn_relu_nhwc(x)
    x = conv_transpose_s2_nhwc(x, wm2, 256)     # (N, 8, 8, 256)
    x = bn_relu_nhwc(x)
    x = conv_transpose_s2_nhwc(x, wm3, 128)     # (N, 16, 16, 128)
    x = bn_relu_nhwc(x)
    x = conv_transpose_s2_nhwc(x, wm4, 64)      # (N, 32, 32, 64)
    x = bn_relu_nhwc(x)
    x = conv_transpose_s2_nhwc(x, wm5, 3)       # (N, 64, 64, 3)
    N, H, W, C = x.shape
    flat = x.reshape(-1, 128) if x.size % 128 == 0 else x.reshape(N * H * W, C)
    y = pallas_tanh(flat).reshape(N, H, W, C)   # lane-dense tanh
    return y.transpose(0, 3, 1, 2)              # external interface is NCHW


if __name__ == "__main__":
    key = jax.random.PRNGKey(0)
    k_param, k_x = jax.random.split(key)
    params = init_generator_params(k_param)
    prepared = prepare_generator_params(params)   # one-time weight packing (bf16)
    x = jax.random.normal(k_x, (2, 100, 1, 1), jnp.float32)  # latent (N,100,1,1)

    fwd = jax.jit(generator_forward)
    out = jax.block_until_ready(fwd(x, prepared))

    assert out.shape == (2, 3, 64, 64), out.shape
    assert bool(jnp.all(jnp.isfinite(out)))
    assert bool(jnp.all(jnp.abs(out) <= 1.0 + 1e-6))  # tanh range
    print("KERNEL_OK")
</pallas_src>

<mosaic_0001>
module attributes {stable_mosaic.version = 11 : i64} {
  func.func @_matmul_kernel(%arg0: i32, %arg1: i32, %arg2: memref<8x128xbf16, #tpu.memory_space<vmem>>, %arg3: memref<128x512xbf16, #tpu.memory_space<vmem>>, %arg4: memref<8x512xf32, #tpu.memory_space<vmem>>) attributes {dimension_semantics = [#tpu.dimension_semantics<parallel>, #tpu.dimension_semantics<parallel>], iteration_bounds = array<i64: 1, 16>, scalar_prefetch = 0 : i64, scratch_operands = 0 : i64, tpu.core_type = #tpu.core_type<tc>, window_params = [{transform_indices = @transform_0, window_bounds = array<i64: 8, 128>}, {transform_indices = @transform_1, window_bounds = array<i64: 128, 512>}, {transform_indices = @transform_2, window_bounds = array<i64: 8, 512>}]} {
    %c0 = arith.constant 0 : index
    %c0_0 = arith.constant 0 : index
    %0 = vector.load %arg2[%c0, %c0_0] : memref<8x128xbf16, #tpu.memory_space<vmem>>, vector<8x128xbf16>
    %c0_1 = arith.constant 0 : index
    %c0_2 = arith.constant 0 : index
    %1 = vector.load %arg3[%c0_1, %c0_2] : memref<128x512xbf16, #tpu.memory_space<vmem>>, vector<128x512xbf16>
    %cst = arith.constant dense<0.000000e+00> : vector<8x512xf32>
    %2 = tpu.matmul %0, %1, %cst {dimension_numbers = #tpu.dot_dimension_numbers<[1], [0], [0], [1], [0, 0, 1, 1], [], []>} : vector<8x128xbf16>, vector<128x512xbf16>, vector<8x512xf32> -> vector<8x512xf32>
    %c0_3 = arith.constant 0 : index
    %c0_4 = arith.constant 0 : index
    %3 = vector.load %arg4[%c0_3, %c0_4] : memref<8x512xf32, #tpu.memory_space<vmem>>, vector<8x512xf32>
    tpu.vector_store %arg4[%c0_3, %c0_4], %2 {strides = array<i32>} : memref<8x512xf32, #tpu.memory_space<vmem>>, vector<8x512xf32>,
    return
  }
  func.func @transform_0(%arg0: i32, %arg1: i32) -> (i32, i32) {
    %c0_i32 = arith.constant 0 : i32
    %c0_i32_0 = arith.constant 0 : i32
    return %arg0, %c0_i32 : i32, i32
  }
  func.func @transform_1(%arg0: i32, %arg1: i32) -> (i32, i32) {
    %c0_i32 = arith.constant 0 : i32
    %c0_i32_0 = arith.constant 0 : i32
    return %c0_i32, %arg1 : i32, i32
  }
  func.func @transform_2(%arg0: i32, %arg1: i32) -> (i32, i32) {
    %c0_i32 = arith.constant 0 : i32
    return %arg0, %arg1 : i32, i32
  }
}

module attributes {stable_mosaic.version = 11 : i64} {
  func.func @_bn_relu_kernel(%arg0: memref<32x512xf32, #tpu.memory_space<vmem>>, %arg1: memref<32x512xbf16, #tpu.memory_space<vmem>>) attributes {dimension_semantics = [], scalar_prefetch = 0 : i64, scratch_operands = 0 : i64, tpu.core_type = #tpu.core_type<tc>} {
    %c0 = arith.constant 0 : index
    %c0_0 = arith.constant 0 : index
    %0 = vector.load %arg0[%c0, %c0_0] : memref<32x512xf32, #tpu.memory_space<vmem>>, vector<32x512xf32>
    %cst = arith.constant dense<0.000000e+00> : vector<512xf32>
    %1 = vector.multi_reduction <add>, %0, %cst [0] : vector<32x512xf32> to vector<512xf32>
    %2 = vector.shape_cast %1 : vector<512xf32> to vector<1x512xf32>
    %cst_1 = arith.constant 3.200000e+01 : f32
    %3 = vector.broadcast %cst_1 : f32 to vector<1x512xf32>
    %4 = arith.divf %2, %3 : vector<1x512xf32>
    %5 = vector.broadcast %4 : vector<1x512xf32> to vector<32x512xf32>
    %6 = arith.subf %0, %5 : vector<32x512xf32>
    %7 = arith.mulf %6, %6 : vector<32x512xf32>
    %cst_2 = arith.constant dense<0.000000e+00> : vector<512xf32>
    %8 = vector.multi_reduction <add>, %7, %cst_2 [0] : vector<32x512xf32> to vector<512xf32>
    %9 = vector.shape_cast %8 : vector<512xf32> to vector<1x512xf32>
    %cst_3 = arith.constant 3.200000e+01 : f32
    %10 = vector.broadcast %cst_3 : f32 to vector<1x512xf32>
    %11 = arith.divf %9, %10 : vector<1x512xf32>
    %cst_4 = arith.constant 9.99999974E-6 : f32
    %12 = vector.broadcast %cst_4 : f32 to vector<1x512xf32>
    %13 = arith.addf %11, %12 : vector<1x512xf32>
    %14 = math.rsqrt %13 : vector<1x512xf32>
    %15 = vector.broadcast %14 : vector<1x512xf32> to vector<32x512xf32>
    %16 = arith.mulf %6, %15 : vector<32x512xf32>
    %cst_5 = arith.constant 0.000000e+00 : f32
    %17 = vector.broadcast %cst_5 : f32 to vector<32x512xf32>
    %18 = arith.maximumf %16, %17 : vector<32x512xf32>
    %19 = arith.truncf %18 : vector<32x512xf32> to vector<32x512xbf16>
    %c0_6 = arith.constant 0 : index
    %c0_7 = arith.constant 0 : index
    %20 = vector.load %arg1[%c0_6, %c0_7] : memref<32x512xbf16, #tpu.memory_space<vmem>>, vector<32x512xbf16>
    tpu.vector_store %arg1[%c0_6, %c0_7], %19 {strides = array<i32>} : memref<32x512xbf16, #tpu.memory_space<vmem>>, vector<32x512xbf16>,
    return
  }
}

module attributes {stable_mosaic.version = 11 : i64} {
  func.func @_matmul_kernel(%arg0: i32, %arg1: i32, %arg2: memref<32x512xbf16, #tpu.memory_space<vmem>>, %arg3: memref<512x512xbf16, #tpu.memory_space<vmem>>, %arg4: memref<32x512xf32, #tpu.memory_space<vmem>>) attributes {dimension_semantics = [#tpu.dimension_semantics<parallel>, #tpu.dimension_semantics<parallel>], iteration_bounds = array<i64: 1, 8>, scalar_prefetch = 0 : i64, scratch_operands = 0 : i64, tpu.core_type = #tpu.core_type<tc>, window_params = [{transform_indices = @transform_0, window_bounds = array<i64: 32, 512>}, {transform_indices = @transform_1, window_bounds = array<i64: 512, 512>}, {transform_indices = @transform_2, window_bounds = array<i64: 32, 512>}]} {
    %c0 = arith.constant 0 : index
    %c0_0 = arith.constant 0 : index
    %0 = vector.load %arg2[%c0, %c0_0] : memref<32x512xbf16, #tpu.memory_space<vmem>>, vector<32x512xbf16>
    %c0_1 = arith.constant 0 : index
    %c0_2 = arith.constant 0 : index
    %1 = vector.load %arg3[%c0_1, %c0_2] : memref<512x512xbf16, #tpu.memory_space<vmem>>, vector<512x512xbf16>
    %cst = arith.constant dense<0.000000e+00> : vector<32x512xf32>
    %2 = tpu.matmul %0, %1, %cst {dimension_numbers = #tpu.dot_dimension_numbers<[1], [0], [0], [1], [0, 0, 1, 1], [], []>} : vector<32x512xbf16>, vector<512x512xbf16>, vector<32x512xf32> -> vector<32x512xf32>
    %c0_3 = arith.constant 0 : index
    %c0_4 = arith.constant 0 : index
    %3 = vector.load %arg4[%c0_3, %c0_4] : memref<32x512xf32, #tpu.memory_space<vmem>>, vector<32x512xf32>
    tpu.vector_store %arg4[%c0_3, %c0_4], %2 {strides = array<i32>} : memref<32x512xf32, #tpu.memory_space<vmem>>, vector<32x512xf32>,
    return
  }
  func.func @transform_0(%arg0: i32, %arg1: i32) -> (i32, i32) {
    %c0_i32 = arith.constant 0 : i32
    %c0_i32_0 = arith.constant 0 : i32
    return %arg0, %c0_i32 : i32, i32
  }
  func.func @transform_1(%arg0: i32, %arg1: i32) -> (i32, i32) {
    %c0_i32 = arith.constant 0 : i32
    %c0_i32_0 = arith.constant 0 : i32
    return %c0_i32, %arg1 : i32, i32
  }
  func.func @transform_2(%arg0: i32, %arg1: i32) -> (i32, i32) {
    %c0_i32 = arith.constant 0 : i32
    return %arg0, %arg1 : i32, i32
  }
}

module attributes {stable_mosaic.version = 11 : i64} {
  func.func @_matmul_kernel(%arg0: i32, %arg1: i32, %arg2: memref<128x256xbf16, #tpu.memory_space<vmem>>, %arg3: memref<256x512xbf16, #tpu.memory_space<vmem>>, %arg4: memref<128x512xf32, #tpu.memory_space<vmem>>) attributes {dimension_semantics = [#tpu.dimension_semantics<parallel>, #tpu.dimension_semantics<parallel>], iteration_bounds = array<i64: 1, 4>, scalar_prefetch = 0 : i64, scratch_operands = 0 : i64, tpu.core_type = #tpu.core_type<tc>, window_params = [{transform_indices = @transform_0, window_bounds = array<i64: 128, 256>}, {transform_indices = @transform_1, window_bounds = array<i64: 256, 512>}, {transform_indices = @transform_2, window_bounds = array<i64: 128, 512>}]} {
    %c0 = arith.constant 0 : index
    %c0_0 = arith.constant 0 : index
    %0 = vector.load %arg2[%c0, %c0_0] : memref<128x256xbf16, #tpu.memory_space<vmem>>, vector<128x256xbf16>
    %c0_1 = arith.constant 0 : index
    %c0_2 = arith.constant 0 : index
    %1 = vector.load %arg3[%c0_1, %c0_2] : memref<256x512xbf16, #tpu.memory_space<vmem>>, vector<256x512xbf16>
    %cst = arith.constant dense<0.000000e+00> : vector<128x512xf32>
    %2 = tpu.matmul %0, %1, %cst {dimension_numbers = #tpu.dot_dimension_numbers<[1], [0], [0], [1], [0, 0, 1, 1], [], []>} : vector<128x256xbf16>, vector<256x512xbf16>, vector<128x512xf32> -> vector<128x512xf32>
    %c0_3 = arith.constant 0 : index
    %c0_4 = arith.constant 0 : index
    %3 = vector.load %arg4[%c0_3, %c0_4] : memref<128x512xf32, #tpu.memory_space<vmem>>, vector<128x512xf32>
    tpu.vector_store %arg4[%c0_3, %c0_4], %2 {strides = array<i32>} : memref<128x512xf32, #tpu.memory_space<vmem>>, vector<128x512xf32>,
    return
  }
  func.func @transform_0(%arg0: i32, %arg1: i32) -> (i32, i32) {
    %c0_i32 = arith.constant 0 : i32
    %c0_i32_0 = arith.constant 0 : i32
    return %arg0, %c0_i32 : i32, i32
  }
  func.func @transform_1(%arg0: i32, %arg1: i32) -> (i32, i32) {
    %c0_i32 = arith.constant 0 : i32
    %c0_i32_0 = arith.constant 0 : i32
    return %c0_i32, %arg1 : i32, i32
  }
  func.func @transform_2(%arg0: i32, %arg1: i32) -> (i32, i32) {
    %c0_i32 = arith.constant 0 : i32
    return %arg0, %arg1 : i32, i32
  }
}

module attributes {stable_mosaic.version = 11 : i64} {
  func.func @_bn_relu_kernel(%arg0: memref<128x256xf32, #tpu.memory_space<vmem>>, %arg1: memref<128x256xbf16, #tpu.memory_space<vmem>>) attributes {dimension_semantics = [], scalar_prefetch = 0 : i64, scratch_operands = 0 : i64, tpu.core_type = #tpu.core_type<tc>} {
    %c0 = arith.constant 0 : index
    %c0_0 = arith.constant 0 : index
    %0 = vector.load %arg0[%c0, %c0_0] : memref<128x256xf32, #tpu.memory_space<vmem>>, vector<128x256xf32>
    %cst = arith.constant dense<0.000000e+00> : vector<256xf32>
    %1 = vector.multi_reduction <add>, %0, %cst [0] : vector<128x256xf32> to vector<256xf32>
    %2 = vector.shape_cast %1 : vector<256xf32> to vector<1x256xf32>
    %cst_1 = arith.constant 1.280000e+02 : f32
    %3 = vector.broadcast %cst_1 : f32 to vector<1x256xf32>
    %4 = arith.divf %2, %3 : vector<1x256xf32>
    %5 = vector.broadcast %4 : vector<1x256xf32> to vector<128x256xf32>
    %6 = arith.subf %0, %5 : vector<128x256xf32>
    %7 = arith.mulf %6, %6 : vector<128x256xf32>
    %cst_2 = arith.constant dense<0.000000e+00> : vector<256xf32>
    %8 = vector.multi_reduction <add>, %7, %cst_2 [0] : vector<128x256xf32> to vector<256xf32>
    %9 = vector.shape_cast %8 : vector<256xf32> to vector<1x256xf32>
    %cst_3 = arith.constant 1.280000e+02 : f32
    %10 = vector.broadcast %cst_3 : f32 to vector<1x256xf32>
    %11 = arith.divf %9, %10 : vector<1x256xf32>
    %cst_4 = arith.constant 9.99999974E-6 : f32
    %12 = vector.broadcast %cst_4 : f32 to vector<1x256xf32>
    %13 = arith.addf %11, %12 : vector<1x256xf32>
    %14 = math.rsqrt %13 : vector<1x256xf32>
    %15 = vector.broadcast %14 : vector<1x256xf32> to vector<128x256xf32>
    %16 = arith.mulf %6, %15 : vector<128x256xf32>
    %cst_5 = arith.constant 0.000000e+00 : f32
    %17 = vector.broadcast %cst_5 : f32 to vector<128x256xf32>
    %18 = arith.maximumf %16, %17 : vector<128x256xf32>
    %19 = arith.truncf %18 : vector<128x256xf32> to vector<128x256xbf16>
    %c0_6 = arith.constant 0 : index
    %c0_7 = arith.constant 0 : index
    %20 = vector.load %arg1[%c0_6, %c0_7] : memref<128x256xbf16, #tpu.memory_space<vmem>>, vector<128x256xbf16>
    tpu.vector_store %arg1[%c0_6, %c0_7], %19 {strides = array<i32>} : memref<128x256xbf16, #tpu.memory_space<vmem>>, vector<128x256xbf16>,
    return
  }
}

module attributes {stable_mosaic.version = 11 : i64} {
  func.func @_bn_relu_kernel(%arg0: memref<512x128xf32, #tpu.memory_space<vmem>>, %arg1: memref<512x128xbf16, #tpu.memory_space<vmem>>) attributes {dimension_semantics = [], scalar_prefetch = 0 : i64, scratch_operands = 0 : i64, tpu.core_type = #tpu.core_type<tc>} {
    %c0 = arith.constant 0 : index
    %c0_0 = arith.constant 0 : index
    %0 = vector.load %arg0[%c0, %c0_0] : memref<512x128xf32, #tpu.memory_space<vmem>>, vector<512x128xf32>
    %cst = arith.constant dense<0.000000e+00> : vector<128xf32>
    %1 = vector.multi_reduction <add>, %0, %cst [0] : vector<512x128xf32> to vector<128xf32>
    %2 = vector.shape_cast %1 : vector<128xf32> to vector<1x128xf32>
    %cst_1 = arith.constant 5.120000e+02 : f32
    %3 = vector.broadcast %cst_1 : f32 to vector<1x128xf32>
    %4 = arith.divf %2, %3 : vector<1x128xf32>
    %5 = vector.broadcast %4 : vector<1x128xf32> to vector<512x128xf32>
    %6 = arith.subf %0, %5 : vector<512x128xf32>
    %7 = arith.mulf %6, %6 : vector<512x128xf32>
    %cst_2 = arith.constant dense<0.000000e+00> : vector<128xf32>
    %8 = vector.multi_reduction <add>, %7, %cst_2 [0] : vector<512x128xf32> to vector<128xf32>
    %9 = vector.shape_cast %8 : vector<128xf32> to vector<1x128xf32>
    %cst_3 = arith.constant 5.120000e+02 : f32
    %10 = vector.broadcast %cst_3 : f32 to vector<1x128xf32>
    %11 = arith.divf %9, %10 : vector<1x128xf32>
    %cst_4 = arith.constant 9.99999974E-6 : f32
    %12 = vector.broadcast %cst_4 : f32 to vector<1x128xf32>
    %13 = arith.addf %11, %12 : vector<1x128xf32>
    %14 = math.rsqrt %13 : vector<1x128xf32>
    %15 = vector.broadcast %14 : vector<1x128xf32> to vector<512x128xf32>
    %16 = arith.mulf %6, %15 : vector<512x128xf32>
    %cst_5 = arith.constant 0.000000e+00 : f32
    %17 = vector.broadcast %cst_5 : f32 to vector<512x128xf32>
    %18 = arith.maximumf %16, %17 : vector<512x128xf32>
    %19 = arith.truncf %18 : vector<512x128xf32> to vector<512x128xbf16>
    %c0_6 = arith.constant 0 : index
    %c0_7 = arith.constant 0 : index
    %20 = vector.load %arg1[%c0_6, %c0_7] : memref<512x128xbf16, #tpu.memory_space<vmem>>, vector<512x128xbf16>
    tpu.vector_store %arg1[%c0_6, %c0_7], %19 {strides = array<i32>} : memref<512x128xbf16, #tpu.memory_space<vmem>>, vector<512x128xbf16>,
    return
  }
}

module attributes {stable_mosaic.version = 11 : i64} {
  func.func @_matmul_kernel(%arg0: i32, %arg1: i32, %arg2: memref<512x128xbf16, #tpu.memory_space<vmem>>, %arg3: memref<128x512xbf16, #tpu.memory_space<vmem>>, %arg4: memref<512x512xf32, #tpu.memory_space<vmem>>) attributes {dimension_semantics = [#tpu.dimension_semantics<parallel>, #tpu.dimension_semantics<parallel>], iteration_bounds = array<i64: 1, 2>, scalar_prefetch = 0 : i64, scratch_operands = 0 : i64, tpu.core_type = #tpu.core_type<tc>, window_params = [{transform_indices = @transform_0, window_bounds = array<i64: 512, 128>}, {transform_indices = @transform_1, window_bounds = array<i64: 128, 512>}, {transform_indices = @transform_2, window_bounds = array<i64: 512, 512>}]} {
    %c0 = arith.constant 0 : index
    %c0_0 = arith.constant 0 : index
    %0 = vector.load %arg2[%c0, %c0_0] : memref<512x128xbf16, #tpu.memory_space<vmem>>, vector<512x128xbf16>
    %c0_1 = arith.constant 0 : index
    %c0_2 = arith.constant 0 : index
    %1 = vector.load %arg3[%c0_1, %c0_2] : memref<128x512xbf16, #tpu.memory_space<vmem>>, vector<128x512xbf16>
    %cst = arith.constant dense<0.000000e+00> : vector<512x512xf32>
    %2 = tpu.matmul %0, %1, %cst {dimension_numbers = #tpu.dot_dimension_numbers<[1], [0], [0], [1], [0, 0, 1, 1], [], []>} : vector<512x128xbf16>, vector<128x512xbf16>, vector<512x512xf32> -> vector<512x512xf32>
    %c0_3 = arith.constant 0 : index
    %c0_4 = arith.constant 0 : index
    %3 = vector.load %arg4[%c0_3, %c0_4] : memref<512x512xf32, #tpu.memory_space<vmem>>, vector<512x512xf32>
    tpu.vector_store %arg4[%c0_3, %c0_4], %2 {strides = array<i32>} : memref<512x512xf32, #tpu.memory_space<vmem>>, vector<512x512xf32>,
    return
  }
  func.func @transform_0(%arg0: i32, %arg1: i32) -> (i32, i32) {
    %c0_i32 = arith.constant 0 : i32
    %c0_i32_0 = arith.constant 0 : i32
    return %arg0, %c0_i32 : i32, i32
  }
  func.func @transform_1(%arg0: i32, %arg1: i32) -> (i32, i32) {
    %c0_i32 = arith.constant 0 : i32
    %c0_i32_0 = arith.constant 0 : i32
    return %c0_i32, %arg1 : i32, i32
  }
  func.func @transform_2(%arg0: i32, %arg1: i32) -> (i32, i32) {
    %c0_i32 = arith.constant 0 : i32
    return %arg0, %arg1 : i32, i32
  }
}

module attributes {stable_mosaic.version = 11 : i64} {
  func.func @_bn_relu_kernel(%arg0: memref<2048x64xf32, #tpu.memory_space<vmem>>, %arg1: memref<2048x64xbf16, #tpu.memory_space<vmem>>) attributes {dimension_semantics = [], scalar_prefetch = 0 : i64, scratch_operands = 0 : i64, tpu.core_type = #tpu.core_type<tc>} {
    %c0 = arith.constant 0 : index
    %c0_0 = arith.constant 0 : index
    %0 = vector.load %arg0[%c0, %c0_0] : memref<2048x64xf32, #tpu.memory_space<vmem>>, vector<2048x64xf32>
    %cst = arith.constant dense<0.000000e+00> : vector<64xf32>
    %1 = vector.multi_reduction <add>, %0, %cst [0] : vector<2048x64xf32> to vector<64xf32>
    %2 = vector.shape_cast %1 : vector<64xf32> to vector<1x64xf32>
    %cst_1 = arith.constant 2.048000e+03 : f32
    %3 = vector.broadcast %cst_1 : f32 to vector<1x64xf32>
    %4 = arith.divf %2, %3 : vector<1x64xf32>
    %5 = vector.broadcast %4 : vector<1x64xf32> to vector<2048x64xf32>
    %6 = arith.subf %0, %5 : vector<2048x64xf32>
    %7 = arith.mulf %6, %6 : vector<2048x64xf32>
    %cst_2 = arith.constant dense<0.000000e+00> : vector<64xf32>
    %8 = vector.multi_reduction <add>, %7, %cst_2 [0] : vector<2048x64xf32> to vector<64xf32>
    %9 = vector.shape_cast %8 : vector<64xf32> to vector<1x64xf32>
    %cst_3 = arith.constant 2.048000e+03 : f32
    %10 = vector.broadcast %cst_3 : f32 to vector<1x64xf32>
    %11 = arith.divf %9, %10 : vector<1x64xf32>
    %cst_4 = arith.constant 9.99999974E-6 : f32
    %12 = vector.broadcast %cst_4 : f32 to vector<1x64xf32>
    %13 = arith.addf %11, %12 : vector<1x64xf32>
    %14 = math.rsqrt %13 : vector<1x64xf32>
    %15 = vector.broadcast %14 : vector<1x64xf32> to vector<2048x64xf32>
    %16 = arith.mulf %6, %15 : vector<2048x64xf32>
    %cst_5 = arith.constant 0.000000e+00 : f32
    %17 = vector.broadcast %cst_5 : f32 to vector<2048x64xf32>
    %18 = arith.maximumf %16, %17 : vector<2048x64xf32>
    %19 = arith.truncf %18 : vector<2048x64xf32> to vector<2048x64xbf16>
    %c0_6 = arith.constant 0 : index
    %c0_7 = arith.constant 0 : index
    %20 = vector.load %arg1[%c0_6, %c0_7] : memref<2048x64xbf16, #tpu.memory_space<vmem>>, vector<2048x64xbf16>
    tpu.vector_store %arg1[%c0_6, %c0_7], %19 {strides = array<i32>} : memref<2048x64xbf16, #tpu.memory_space<vmem>>, vector<2048x64xbf16>,
    return
  }
}

module attributes {stable_mosaic.version = 11 : i64} {
  func.func @_matmul_kernel(%arg0: i32, %arg1: i32, %arg2: memref<512x64xbf16, #tpu.memory_space<vmem>>, %arg3: memref<64x128xbf16, #tpu.memory_space<vmem>>, %arg4: memref<512x128xf32, #tpu.memory_space<vmem>>) attributes {dimension_semantics = [#tpu.dimension_semantics<parallel>, #tpu.dimension_semantics<parallel>], iteration_bounds = array<i64: 4, 1>, scalar_prefetch = 0 : i64, scratch_operands = 0 : i64, tpu.core_type = #tpu.core_type<tc>, window_params = [{transform_indices = @transform_0, window_bounds = array<i64: 512, 64>}, {transform_indices = @transform_1, window_bounds = array<i64: 64, 128>}, {transform_indices = @transform_2, window_bounds = array<i64: 512, 128>}]} {
    %c0 = arith.constant 0 : index
    %c0_0 = arith.constant 0 : index
    %0 = vector.load %arg2[%c0, %c0_0] : memref<512x64xbf16, #tpu.memory_space<vmem>>, vector<512x64xbf16>
    %c0_1 = arith.constant 0 : index
    %c0_2 = arith.constant 0 : index
    %1 = vector.load %arg3[%c0_1, %c0_2] : memref<64x128xbf16, #tpu.memory_space<vmem>>, vector<64x128xbf16>
    %cst = arith.constant dense<0.000000e+00> : vector<512x128xf32>
    %2 = tpu.matmul %0, %1, %cst {dimension_numbers = #tpu.dot_dimension_numbers<[1], [0], [0], [1], [0, 0, 1, 1], [], []>} : vector<512x64xbf16>, vector<64x128xbf16>, vector<512x128xf32> -> vector<512x128xf32>
    %c0_3 = arith.constant 0 : index
    %c0_4 = arith.constant 0 : index
    %3 = vector.load %arg4[%c0_3, %c0_4] : memref<512x128xf32, #tpu.memory_space<vmem>>, vector<512x128xf32>
    tpu.vector_store %arg4[%c0_3, %c0_4], %2 {strides = array<i32>} : memref<512x128xf32, #tpu.memory_space<vmem>>, vector<512x128xf32>,
    return
  }
  func.func @transform_0(%arg0: i32, %arg1: i32) -> (i32, i32) {
    %c0_i32 = arith.constant 0 : i32
    %c0_i32_0 = arith.constant 0 : i32
    return %arg0, %c0_i32 : i32, i32
  }
  func.func @transform_1(%arg0: i32, %arg1: i32) -> (i32, i32) {
    %c0_i32 = arith.constant 0 : i32
    %c0_i32_0 = arith.constant 0 : i32
    return %c0_i32, %arg1 : i32, i32
  }
  func.func @transform_2(%arg0: i32, %arg1: i32) -> (i32, i32) {
    %c0_i32 = arith.constant 0 : i32
    return %arg0, %arg1 : i32, i32
  }
}

module attributes {stable_mosaic.version = 11 : i64} {
  func.func @_tanh_kernel(%arg0: memref<192x128xf32, #tpu.memory_space<vmem>>, %arg1: memref<192x128xf32, #tpu.memory_space<vmem>>) attributes {dimension_semantics = [], scalar_prefetch = 0 : i64, scratch_operands = 0 : i64, tpu.core_type = #tpu.core_type<tc>} {
    %c0 = arith.constant 0 : index
    %c0_0 = arith.constant 0 : index
    %0 = vector.load %arg0[%c0, %c0_0] : memref<192x128xf32, #tpu.memory_space<vmem>>, vector<192x128xf32>
    %1 = math.tanh %0 : vector<192x128xf32>
    %c0_1 = arith.constant 0 : index
    %c0_2 = arith.constant 0 : index
    %2 = vector.load %arg1[%c0_1, %c0_2] : memref<192x128xf32, #tpu.memory_space<vmem>>, vector<192x128xf32>
    tpu.vector_store %arg1[%c0_1, %c0_2], %1 {strides = array<i32>} : memref<192x128xf32, #tpu.memory_space<vmem>>, vector<192x128xf32>,
    return
  }
}

</mosaic_0001>

<llo_original>
// kernel: generator_forward.11
$region0: #{generator_forward.11}
  #allocation0 [shape = 'u32[]', space=smem, size = 0x4, offset = 0x4, fixed_abs, tag = 'smem constant byte address 0x4 - core index']
  #allocation1 [shape = 'u32[72,128]{1,0:T(1,128)}', space=vmem, size = 0x9000, scoped, tag = 'internal scratch']
  %s0 = inlined_call_operand.vmem [shape: f32[32,512], index: 0, kind: input, shape index: {}]
  %s1 = inlined_call_operand.vmem [shape: bf16[32,512], index: 1, kind: output, shape index: {}]
  %s2 = sld [smem:[#allocation0]]
  $region14: #{generator_forward.11} parent=0
    _
  %s4 = ssub.s32 1, %s2
  %s5 = scalar_select 0, %s4, %s2
  // Predicated region
  $region2: #{generator_forward.11} parent=0 // pred_check
    _
  $region3: #{generator_forward.11} parent=0 // pred_check_branch
    %7 = sbr.rel (0) target = $region5
  $region4: #{generator_forward.11} parent=0 // pred_region
    _
  $region5: #{generator_forward.11} parent=0 // pred_fallthru
    _
  %v8 = vld [vmem:[%s0] sm:$0xff]
  %v9 = vld [vmem:[%s0 + $0x8] sm:$0xff]
  %v10 = vld [vmem:[%s0 + $0x10] sm:$0xff]
  %v11 = vld [vmem:[%s0 + $0x18] sm:$0xff]
  %v12 = vld [vmem:[%s0 + $0x20] sm:$0xff]
  %v13 = vld [vmem:[%s0 + $0x28] sm:$0xff]
  %v14 = vld [vmem:[%s0 + $0x30] sm:$0xff]
  %v15 = vld [vmem:[%s0 + $0x38] sm:$0xff]
  %v16 = vld [vmem:[%s0 + $0x40] sm:$0xff]
  %v17 = vld [vmem:[%s0 + $0x48] sm:$0xff]
  %v18 = vld [vmem:[%s0 + $0x50] sm:$0xff]
  %v19 = vld [vmem:[%s0 + $0x58] sm:$0xff]
  %v20 = vld [vmem:[%s0 + $0x60] sm:$0xff]
  %v21 = vld [vmem:[%s0 + $0x68] sm:$0xff]
  %v22 = vld [vmem:[%s0 + $0x70] sm:$0xff]
  %v23 = vld [vmem:[%s0 + $0x78] sm:$0xff]
  %v24 = vadd.f32 %v8, %v12
  %v25 = vadd.f32 %v24, %v16
  %v26 = vadd.f32 %v25, %v20
  %v27 = vrot.slane %v26, 4
  %v28 = vadd.f32 %v26, %v27
  %v29 = vrot.slane %v28, 2
  %v30 = vadd.f32 %v28, %v29
  %v31 = vrot.slane %v30, 1
  %v32 = vadd.f32 %v30, %v31
  %v33 = vadd.f32 %v9, %v13
  %v34 = vadd.f32 %v33, %v17
  %v35 = vadd.f32 %v34, %v21
  %v36 = vrot.slane %v35, 4
  %v37 = vadd.f32 %v35, %v36
  %v38 = vrot.slane %v37, 2
  %v39 = vadd.f32 %v37, %v38
  %v40 = vrot.slane %v39, 1
  %v41 = vadd.f32 %v39, %v40
  %v42 = vadd.f32 %v10, %v14
  %v43 = vadd.f32 %v42, %v18
  %v44 = vadd.f32 %v43, %v22
  %v45 = vrot.slane %v44, 4
  %v46 = vadd.f32 %v44, %v45
  %v47 = vrot.slane %v46, 2
  %v48 = vadd.f32 %v46, %v47
  %v49 = vrot.slane %v48, 1
  %v50 = vadd.f32 %v48, %v49
  %v51 = vadd.f32 %v11, %v15
  %v52 = vadd.f32 %v51, %v19
  %v53 = vadd.f32 %v52, %v23
  %v54 = vrot.slane %v53, 4
  %v55 = vadd.f32 %v53, %v54
  %v56 = vrot.slane %v55, 2
  %v57 = vadd.f32 %v55, %v56
  %v58 = vrot.slane %v57, 1
  %v59 = vadd.f32 %v57, %v58
  %v60 = vrcp.pop 32.0
  %v61 = vmul.f32 32.0, %v60
  %v62 = vsub.f32 1.0, %v61
  %v63 = vmul.f32 %v60, %v62
  %v64 = vadd.f32 %v60, %v63
  %vm65 = vweird.f32 %v60
  %v66 = vsel %vm65, %v60, %v64
  %v67 = vmul.f32 %v32, %v66
  %v68 = vmul.f32 %v41, %v66
  %v69 = vmul.f32 %v50, %v66
  %v70 = vmul.f32 %v59, %v66
  %v71 = vsub.f32 %v8, %v67
  %v72 = vsub.f32 %v9, %v68
  %v73 = vsub.f32 %v10, %v69
  %v74 = vsub.f32 %v11, %v70
  %v75 = vsub.f32 %v12, %v67
  %v76 = vsub.f32 %v13, %v68
  %v77 = vsub.f32 %v14, %v69
  %v78 = vsub.f32 %v15, %v70
  %v79 = vsub.f32 %v16, %v67
  %v80 = vsub.f32 %v17, %v68
  %v81 = vsub.f32 %v18, %v69
  %v82 = vsub.f32 %v19, %v70
  %v83 = vsub.f32 %v20, %v67
  %v84 = vsub.f32 %v21, %v68
  %v85 = vsub.f32 %v22, %v69
  %v86 = vsub.f32 %v23, %v70
  %v87 = vmul.f32 %v71, %v71
  %v88 = vmul.f32 %v72, %v72
  %v89 = vmul.f32 %v73, %v73
  %v90 = vmul.f32 %v74, %v74
  %v91 = vmul.f32 %v75, %v75
  %v92 = vmul.f32 %v76, %v76
  %v93 = vmul.f32 %v77, %v77
  %v94 = vmul.f32 %v78, %v78
  %v95 = vmul.f32 %v79, %v79
  %v96 = vmul.f32 %v80, %v80
  %v97 = vmul.f32 %v81, %v81
  %v98 = vmul.f32 %v82, %v82
  %v99 = vmul.f32 %v83, %v83
  %v100 = vmul.f32 %v84, %v84
  %v101 = vmul.f32 %v85, %v85
  %v102 = vmul.f32 %v86, %v86
  %v103 = vadd.f32 %v87, %v91
  %v104 = vadd.f32 %v103, %v95
  %v105 = vadd.f32 %v104, %v99
  %v106 = vrot.slane %v105, 4
  %v107 = vadd.f32 %v105, %v106
  %v108 = vrot.slane %v107, 2
  %v109 = vadd.f32 %v107, %v108
  %v110 = vrot.slane %v109, 1
  %v111 = vadd.f32 %v109, %v110
  %v112 = vadd.f32 %v88, %v92
  %v113 = vadd.f32 %v112, %v96
  %v114 = vadd.f32 %v113, %v100
  %v115 = vrot.slane %v114, 4
  %v116 = vadd.f32 %v114, %v115
  %v117 = vrot.slane %v116, 2
  %v118 = vadd.f32 %v116, %v117
  %v119 = vrot.slane %v118, 1
  %v120 = vadd.f32 %v118, %v119
  %v121 = vadd.f32 %v89, %v93
  %v122 = vadd.f32 %v121, %v97
  %v123 = vadd.f32 %v122, %v101
  %v124 = vrot.slane %v123, 4
  %v125 = vadd.f32 %v123, %v124
  %v126 = vrot.slane %v125, 2
  %v127 = vadd.f32 %v125, %v126
  %v128 = vrot.slane %v127, 1
  %v129 = vadd.f32 %v127, %v128
  %v130 = vadd.f32 %v90, %v94
  %v131 = vadd.f32 %v130, %v98
  %v132 = vadd.f32 %v131, %v102
  %v133 = vrot.slane %v132, 4
  %v134 = vadd.f32 %v132, %v133
  %v135 = vrot.slane %v134, 2
  %v136 = vadd.f32 %v134, %v135
  %v137 = vrot.slane %v136, 1
  %v138 = vadd.f32 %v136, %v137
  %v139 = vmul.f32 %v111, %v66
  %v140 = vmul.f32 %v120, %v66
  %v141 = vmul.f32 %v129, %v66
  %v142 = vmul.f32 %v138, %v66
  %v143 = vadd.f32 %v139, 1e-05
  %v144 = vadd.f32 %v140, 1e-05
  %v145 = vadd.f32 %v141, 1e-05
  %v146 = vadd.f32 %v142, 1e-05
  %v147 = vrsqrt.pop %v143
  %v148 = vmul.f32 %v147, %v143
  %v149 = vmul.f32 %v148, %v147
  %v150 = vmul.f32 0.5, %v149
  %v151 = vsub.f32 1.5, %v150
  %v152 = vmul.f32 %v147, %v151
  %vm153 = vweird.f32 %v143
  %vm154 = vweird.f32 %v147
  %vm155 = vmor %vm153, %vm154
  %v156 = vsel %vm155, %v147, %v152
  %v157 = vrsqrt.pop %v144
  %v158 = vmul.f32 %v157, %v144
  %v159 = vmul.f32 %v158, %v157
  %v160 = vmul.f32 0.5, %v159
  %v161 = vsub.f32 1.5, %v160
  %v162 = vmul.f32 %v157, %v161
  %vm163 = vweird.f32 %v144
  %vm164 = vweird.f32 %v157
  %vm165 = vmor %vm163, %vm164
  %v166 = vsel %vm165, %v157, %v162
  %v167 = vrsqrt.pop %v145
  %v168 = vmul.f32 %v167, %v145
  %v169 = vmul.f32 %v168, %v167
  %v170 = vmul.f32 0.5, %v169
  %v171 = vsub.f32 1.5, %v170
  %v172 = vmul.f32 %v167, %v171
  %vm173 = vweird.f32 %v145
  %vm174 = vweird.f32 %v167
  %vm175 = vmor %vm173, %vm174
  %v176 = vsel %vm175, %v167, %v172
  %v177 = vrsqrt.pop %v146
  %v178 = vmul.f32 %v177, %v146
  %v179 = vmul.f32 %v178, %v177
  %v180 = vmul.f32 0.5, %v179
  %v181 = vsub.f32 1.5, %v180
  %v182 = vmul.f32 %v177, %v181
  %vm183 = vweird.f32 %v146
  %vm184 = vweird.f32 %v177
  %vm185 = vmor %vm183, %vm184
  %v186 = vsel %vm185, %v177, %v182
  %v187 = vmul.f32 %v71, %v156
  %v188 = vmul.f32 %v72, %v166
  %v189 = vmul.f32 %v73, %v176
  %v190 = vmul.f32 %v74, %v186
  %v191 = vmul.f32 %v75, %v156
  %v192 = vmul.f32 %v76, %v166
  %v193 = vmul.f32 %v77, %v176
  %v194 = vmul.f32 %v78, %v186
  %v195 = vmul.f32 %v79, %v156
  %v196 = vmul.f32 %v80, %v166
  %v197 = vmul.f32 %v81, %v176
  %v198 = vmul.f32 %v82, %v186
  %v199 = vmul.f32 %v83, %v156
  %v200 = vmul.f32 %v84, %v166
  %v201 = vmul.f32 %v85, %v176
  %v202 = vmul.f32 %v86, %v186
  %v203 = vmax.f32 %v187, 0.0
  %v204 = vmax.f32 %v188, 0.0
  %v205 = vmax.f32 %v189, 0.0
  %v206 = vmax.f32 %v190, 0.0
  %v207 = vmax.f32 %v191, 0.0
  %v208 = vmax.f32 %v192, 0.0
  %v209 = vmax.f32 %v193, 0.0
  %v210 = vmax.f32 %v194, 0.0
  %v211 = vmax.f32 %v195, 0.0
  %v212 = vmax.f32 %v196, 0.0
  %v213 = vmax.f32 %v197, 0.0
  %v214 = vmax.f32 %v198, 0.0
  %v215 = vmax.f32 %v199, 0.0
  %v216 = vmax.f32 %v200, 0.0
  %v217 = vmax.f32 %v201, 0.0
  %v218 = vmax.f32 %v202, 0.0
  %v219 = vpack.c.bf16 %v204, %v203
  %v220 = vpack.c.bf16 %v206, %v205
  %v221 = vpack.c.bf16 %v208, %v207
  %v222 = vpack.c.bf16 %v210, %v209
  %v223 = vpack.c.bf16 %v212, %v211
  %v224 = vpack.c.bf16 %v214, %v213
  %v225 = vpack.c.bf16 %v216, %v215
  %v226 = vpack.c.bf16 %v218, %v217
  %227 = vst [vmem:[%s1] sm:$0xff] %v219
  %228 = vst [vmem:[%s1 + $0x8] sm:$0xff] %v220
  %229 = vst [vmem:[%s1 + $0x10] sm:$0xff] %v221
  %230 = vst [vmem:[%s1 + $0x18] sm:$0xff] %v222
  %231 = vst [vmem:[%s1 + $0x20] sm:$0xff] %v223
  %232 = vst [vmem:[%s1 + $0x28] sm:$0xff] %v224
  %233 = vst [vmem:[%s1 + $0x30] sm:$0xff] %v225
  %234 = vst [vmem:[%s1 + $0x38] sm:$0xff] %v226
  // Predicated region
  $region6: #{generator_forward.11} parent=0 // pred_check
    _
  $region7: #{generator_forward.11} parent=0 // pred_check_branch
    %236 = sbr.rel (0) target = $region9
  $region8: #{generator_forward.11} parent=0 // pred_region
    _
  $region9: #{generator_forward.11} parent=0 // pred_fallthru
    _
  // Predicated region
  $region10: #{generator_forward.11} parent=0 // pred_check
    _
  $region11: #{generator_forward.11} parent=0 // pred_check_branch
    %238 = sbr.rel (0) target = $region13
  $region12: #{generator_forward.11} parent=0 // pred_region
    _
  $region13: #{generator_forward.11} parent=0 // pred_fallthru
    _

// kernel: generator_forward.10
$region0: #{generator_forward.10}
  #allocation0 [shape = 'u32[]', space=smem, size = 0x4, offset = 0x4, fixed_abs, tag = 'smem constant byte address 0x4 - core index']
  #allocation1 [shape = 'u32[72,128]{1,0:T(1,128)}', space=vmem, size = 0x9000, scoped, tag = 'internal scratch']
  %s0 = inlined_call_operand.vmem [shape: bf16[8,128], index: 0, kind: input, shape index: {}]
  %s1 = inlined_call_operand.hbm [shape: bf16[128,8192], index: 1, kind: input, shape index: {}]
  %s2 = inlined_call_operand.vmem [shape: f32[8,8192], index: 2, kind: output, shape index: {}]
  %s3 = sld [smem:[#allocation0]]
  $region45: #{generator_forward.10} parent=0
    _
  %s5 = ssub.s32 1, %s3
  %s6 = scalar_select 0, %s5, %s3
  $region1: #{generator_forward.10} parent=0
    #allocation2 [shape = 'u8[262144]{0}', space=vmem, size = 0x40000, scoped, tag = 'input window, operand 1']
    #allocation3 [shape = 's32[2]{0}', space=sflag, size = 0x8, scoped, tag = 'scoped memory for generator_forward.10']
    %7 = vsyncpa [#allocation3], 0
    %s8 = scalar_lea.sflag [#allocation3], 1
    %9 = vsyncpa %s8, 0
    loop: start=0, step=1, limit=18
    $region2: #{generator_forward.10} parent=1 // loop_pre_header
      _
    $region3: #{generator_forward.10} parent=1 // loop_header
      %s11 = sphi 0, %s15
      %p12 = scmp.ge.s32.totalorder %s11, 18
      %s18 = sphi 0, %s30
      %s19 = sphi 0, %s26
      %s20 = sphi 0, %s18
      %s21 = sphi 0, %s19
      %s22 = sphi 0, %s20
      %s23 = sphi 0, %s21
      %s33 = sphi 0, %s35
      %s36 = sphi 0, %s33
      %s37 = sphi 0, %s36
      %s53 = sphi 0, %s37
      %s59 = sphi 0, %s61
      %s62 = sphi 0, %s59
      %s63 = sphi 0, %s62
      %s79 = sphi 0, %s63
      %s87 = sphi 0, %s89
      %s90 = sphi 0, %s87
      %s91 = sphi 0, %s90
      %s107 = sphi 0, %s91
    $region4: #{generator_forward.10} parent=1 // loop_header_branch
      %14 = sbr.rel (%p12) target = $region8
    $region5: #{generator_forward.10} parent=1 // loop_body
      %s16 = ssub.s32 %s11, 1
      %s17 = ssub.s32 %s11, 2
      %s24 = sadd.s32 1, %s19
      %p25 = scmp.ge.s32.totalorder %s24, 16
      %s26 = scalar_select %p25, 0, %s24
      %s27 = sadd.s32 1, %s18
      %s28 = scalar_select %p25, %s27, %s18
      %p29 = scmp.ge.s32.totalorder %s28, 1
      %s30 = scalar_select %p29, 0, %s28
      %s31 = ssub.s32 %s18, %s30
      %p32 = scmp.eq.s32.totalorder %s31, 0
      %s34 = sadd.s32 %s33, 1
      %s35 = scalar_select %p32, %s33, %s34
      %p38 = pneg %p32
      %p39 = scmp.eq.s32.totalorder %s11, 15
      %p40 = por %p38, %p39
      %p41 = scmp.ne.s32.totalorder %s33, %s36
      %p42 = scmp.eq.s32.totalorder %s11, 0
      %p43 = por %p41, %p42
      %p44 = scmp.ne.s32.totalorder %s33, %s36
      %p45 = scmp.eq.s32.totalorder %s16, 15
      %p46 = por %p44, %p45
      %p47 = scmp.ne.s32.totalorder %s36, %s37
      %p48 = scmp.eq.s32.totalorder %s16, 0
      %p49 = por %p47, %p48
      %p50 = scmp.ne.s32.totalorder %s36, %s37
      %p51 = scmp.eq.s32.totalorder %s17, 15
      %p52 = por %p50, %p51
      %p54 = scmp.ne.s32.totalorder %s37, %s53
      %p55 = scmp.eq.s32.totalorder %s17, 0
      %p56 = por %p54, %p55
      %s57 = ssub.s32 %s19, %s26
      %p58 = scmp.eq.s32.totalorder %s57, 0
      %s60 = sadd.s32 %s59, 1
      %s61 = scalar_select %p58, %s59, %s60
      %p64 = pneg %p58
      %p65 = scmp.eq.s32.totalorder %s11, 15
      %p66 = por %p64, %p65
      %p67 = scmp.ne.s32.totalorder %s59, %s62
      %p68 = scmp.eq.s32.totalorder %s11, 0
      %p69 = por %p67, %p68
      %p70 = scmp.ne.s32.totalorder %s59, %s62
      %p71 = scmp.eq.s32.totalorder %s16, 15
      %p72 = por %p70, %p71
      %p73 = scmp.ne.s32.totalorder %s62, %s63
      %p74 = scmp.eq.s32.totalorder %s16, 0
      %p75 = por %p73, %p74
      %p76 = scmp.ne.s32.totalorder %s62, %s63
      %p77 = scmp.eq.s32.totalorder %s17, 15
      %p78 = por %p76, %p77
      %p80 = scmp.ne.s32.totalorder %s63, %s79
      %p81 = scmp.eq.s32.totalorder %s17, 0
      %p82 = por %p80, %p81
      %s83 = ssub.s32 %s18, %s30
      %s84 = ssub.s32 %s19, %s26
      %s85 = sor.u32 %s83, %s84
      %p86 = scmp.eq.s32.totalorder %s85, 0
      %s88 = sadd.s32 %s87, 1
      %s89 = scalar_select %p86, %s87, %s88
      %p92 = pneg %p86
      %p93 = scmp.eq.s32.totalorder %s11, 15
      %p94 = por %p92, %p93
      %p95 = scmp.ne.s32.totalorder %s87, %s90
      %p96 = scmp.eq.s32.totalorder %s11, 0
      %p97 = por %p95, %p96
      %p98 = scmp.ne.s32.totalorder %s87, %s90
      %p99 = scmp.eq.s32.totalorder %s16, 15
      %p100 = por %p98, %p99
      %p101 = scmp.ne.s32.totalorder %s90, %s91
      %p102 = scmp.eq.s32.totalorder %s16, 0
      %p103 = por %p101, %p102
      %p104 = scmp.ne.s32.totalorder %s90, %s91
      %p105 = scmp.eq.s32.totalorder %s17, 15
      %p106 = por %p104, %p105
      %p108 = scmp.ne.s32.totalorder %s91, %s107
      %p109 = scmp.eq.s32.totalorder %s17, 0
      %p110 = por %p108, %p109
      %p111 = scmp.le.s32.totalorder 1, %s11
      %p112 = scmp.lt.s32.totalorder %s11, 17
      %p113 = pnand %p111, %p112
      %p114 = pneg %p113
      // Predicated region
      $region9: #{generator_forward.10} parent=5 // pred_check
        _
      $region10: #{generator_forward.10} parent=5 // pred_check_branch
        %116 = sbr.rel (%p113) target = $region12
      $region11: #{generator_forward.10} parent=5 // pred_region
        %s117 = ssub.s32 %s11, 1
        // Predicated region
        $region13: #{generator_forward.10} parent=11 // pred_check
          %p118 = pneg %p49
        $region14: #{generator_forward.10} parent=11 // pred_check_branch
          %120 = sbr.rel (%p118) target = $region16
        $region15: #{generator_forward.10} parent=11 // pred_region
          %p121 = scmp.lt.s32.totalorder %s20, 0
          %s122 = scalar_select %p121, %s20, 0
          %s123 = smul.addr %s122, 4
          %s124 = scalar_lea.vmem %s0, %s123
        $region16: #{generator_forward.10} parent=11 // pred_fallthru
          _
      $region12: #{generator_forward.10} parent=5 // pred_fallthru
        _
      %p125 = scmp.lt.s32.totalorder %s11, 16
      // Predicated region
      $region17: #{generator_forward.10} parent=5 // pred_check
        %p126 = pneg %p125
      $region18: #{generator_forward.10} parent=5 // pred_check_branch
        %128 = sbr.rel (%p126) target = $region20
      $region19: #{generator_forward.10} parent=5 // pred_region
        // Predicated region
        $region21: #{generator_forward.10} parent=19 // pred_check
          %p129 = pneg %p69
        $region22: #{generator_forward.10} parent=19 // pred_check_branch
          %131 = sbr.rel (%p129) target = $region24
        $region23: #{generator_forward.10} parent=19 // pred_region
          %s132 = sand.u32 %s59, 1
          %s133 = scalar_lea.sflag [#allocation3], %s132
          %s134 = sand.u32 %s59, 1
          %s135 = smul.addr %s134, 256
          %s136 = scalar_lea.vmem [#allocation2], %s135
          %s137 = smul.u32 4, %s19
          %139 = vsyncadd %s133, 0
          %s140 = smul.addr %s137, 4
          %s141 = scalar_lea.hbm %s1, %s140
          %s142 = sshll.u32 %s141, 4
          %s143 = int_to_ptr.hbm [resolvable:$true] %s142
          %s144 = sshll.u32 %s136, 4
          %s145 = int_to_ptr.vmem [resolvable:$true] %s144
          %150 = dma.hbm_to_vmem [thread:$0]  %s143, 4096, %s145, %s133, 4096, 256, 16
        $region24: #{generator_forward.10} parent=19 // pred_fallthru
          _
      $region20: #{generator_forward.10} parent=5 // pred_fallthru
        _
      %p151 = scmp.le.s32.totalorder 1, %s11
      %p152 = scmp.lt.s32.totalorder %s11, 17
      %p153 = pnand %p151, %p152
      %p154 = pneg %p153
      // Predicated region
      $region25: #{generator_forward.10} parent=5 // pred_check
        _
      $region26: #{generator_forward.10} parent=5 // pred_check_branch
        %156 = sbr.rel (%p153) target = $region28
      $region27: #{generator_forward.10} parent=5 // pred_region
        %s157 = ssub.s32 %s11, 1
        %s158 = sand.u32 %s62, 1
        %s159 = scalar_lea.sflag [#allocation3], %s158
        %s160 = sand.u32 %s62, 1
        %s161 = smul.addr %s160, 256
        %s162 = scalar_lea.vmem [#allocation2], %s161
        // Predicated region
        $region29: #{generator_forward.10} parent=27 // pred_check
          %p163 = pneg %p75
        $region30: #{generator_forward.10} parent=27 // pred_check_branch
          %165 = sbr.rel (%p163) target = $region32
        $region31: #{generator_forward.10} parent=27 // pred_region
          %167 = dma.done %s159, 4096
        $region32: #{generator_forward.10} parent=27 // pred_fallthru
          _
        %p168 = scmp.lt.s32.totalorder %s20, 0
        %s169 = scalar_select %p168, %s20, 0
        %s170 = smul.addr %s169, 4
        %s171 = scalar_lea.vmem %s0, %s170
        %p172 = pneg %p49
        %p173 = pneg %p46
        %s174 = sand.u32 %s62, 1
        %s175 = scalar_lea.sflag [#allocation3], %s174
        %s176 = sand.u32 %s62, 1
        %s177 = smul.addr %s176, 256
        %s178 = scalar_lea.vmem [#allocation2], %s177
        %p179 = pneg %p75
        %p180 = pneg %p72
        %p181 = pneg %p103
        %p182 = pneg %p100
        %s183 = smul.u32 4, %s21
        %p184 = scmp.lt.s32.totalorder %s20, 0
        %s185 = scalar_select %p184, %s20, 0
        %p186 = scmp.lt.s32.totalorder %s183, 63
        %s187 = scalar_select %p186, %s183, 63
        %s188 = smul.addr %s185, 64
        %s189 = sadd.s32 %s187, %s188
        %s190 = smul.addr %s189, 8
        %s191 = scalar_lea.vmem %s2, %s190
        %p192 = scmp.lt.s32.totalorder %s20, 0
        %s193 = scalar_select %p192, %s20, 0
        %s194 = smul.addr %s193, 4
        %s195 = scalar_lea.vmem %s0, %s194
        %s196 = smul.u32 4, %s21
        %s197 = smul.u32 4, %s21
        %p198 = scmp.lt.s32.totalorder %s20, 0
        %s199 = scalar_select %p198, %s20, 0
        %p200 = scmp.lt.s32.totalorder %s197, 63
        %s201 = scalar_select %p200, %s197, 63
        %s202 = smul.addr %s199, 64
        %s203 = sadd.s32 %s201, %s202
        %s204 = smul.addr %s203, 8
        %s205 = scalar_lea.vmem %s2, %s204
        %s206 = smul.u32 4, %s21
        %v207 = vld [vmem:[%s195] sm:$0xf]
        %v208 = vld [vmem:[%s162] sm:$0xff]
        %v209 = vld [vmem:[%s162 + $0x8] sm:$0xff]
        %v210 = vld [vmem:[%s162 + $0x10] sm:$0xff]
        %v211 = vld [vmem:[%s162 + $0x18] sm:$0xff]
        %v212 = vld [vmem:[%s162 + $0x20] sm:$0xff]
        %v213 = vld [vmem:[%s162 + $0x28] sm:$0xff]
        %v214 = vld [vmem:[%s162 + $0x30] sm:$0xff]
        %v215 = vld [vmem:[%s162 + $0x38] sm:$0xff]
        %v216 = vld [vmem:[%s162 + $0x40] sm:$0xff]
        %v217 = vld [vmem:[%s162 + $0x48] sm:$0xff]
        %v218 = vld [vmem:[%s162 + $0x50] sm:$0xff]
        %v219 = vld [vmem:[%s162 + $0x58] sm:$0xff]
        %v220 = vld [vmem:[%s162 + $0x60] sm:$0xff]
        %v221 = vld [vmem:[%s162 + $0x68] sm:$0xff]
        %v222 = vld [vmem:[%s162 + $0x70] sm:$0xff]
        %v223 = vld [vmem:[%s162 + $0x78] sm:$0xff]
        %v224 = vld [vmem:[%s162 + $0x80] sm:$0xff]
        %v225 = vld [vmem:[%s162 + $0x88] sm:$0xff]
        %v226 = vld [vmem:[%s162 + $0x90] sm:$0xff]
        %v227 = vld [vmem:[%s162 + $0x98] sm:$0xff]
        %v228 = vld [vmem:[%s162 + $0xa0] sm:$0xff]
        %v229 = vld [vmem:[%s162 + $0xa8] sm:$0xff]
        %v230 = vld [vmem:[%s162 + $0xb0] sm:$0xff]
        %v231 = vld [vmem:[%s162 + $0xb8] sm:$0xff]
        %v232 = vld [vmem:[%s162 + $0xc0] sm:$0xff]
        %v233 = vld [vmem:[%s162 + $0xc8] sm:$0xff]
        %v234 = vld [vmem:[%s162 + $0xd0] sm:$0xff]
        %v235 = vld [vmem:[%s162 + $0xd8] sm:$0xff]
        %v236 = vld [vmem:[%s162 + $0xe0] sm:$0xff]
        %v237 = vld [vmem:[%s162 + $0xe8] sm:$0xff]
        %v238 = vld [vmem:[%s162 + $0xf0] sm:$0xff]
        %v239 = vld [vmem:[%s162 + $0xf8] sm:$0xff]
        %v272 = vunpack.c.l.b16 %v208
        %v273 = vunpack.c.h.b16 %v208
        %v274 = vunpack.c.l.b16 %v209
        %v275 = vunpack.c.h.b16 %v209
        %v276 = vunpack.c.l.b16 %v210
        %v277 = vunpack.c.h.b16 %v210
        %v278 = vunpack.c.l.b16 %v211
        %v279 = vunpack.c.h.b16 %v211
        %v280 = vunpack.c.l.b16 %v212
        %v281 = vunpack.c.h.b16 %v212
        %v282 = vunpack.c.l.b16 %v213
        %v283 = vunpack.c.h.b16 %v213
        %v284 = vunpack.c.l.b16 %v214
        %v285 = vunpack.c.h.b16 %v214
        %v286 = vunpack.c.l.b16 %v215
        %v287 = vunpack.c.h.b16 %v215
        %v288 = vunpack.c.l.b16 %v216
        %v289 = vunpack.c.h.b16 %v216
        %v290 = vunpack.c.l.b16 %v217
        %v291 = vunpack.c.h.b16 %v217
        %v292 = vunpack.c.l.b16 %v218
        %v293 = vunpack.c.h.b16 %v218
        %v294 = vunpack.c.l.b16 %v219
        %v295 = vunpack.c.h.b16 %v219
        %v296 = vunpack.c.l.b16 %v220
        %v297 = vunpack.c.h.b16 %v220
        %v298 = vunpack.c.l.b16 %v221
        %v299 = vunpack.c.h.b16 %v221
        %v300 = vunpack.c.l.b16 %v222
        %v301 = vunpack.c.h.b16 %v222
        %v302 = vunpack.c.l.b16 %v223
        %v303 = vunpack.c.h.b16 %v223
        %v304 = vunpack.c.l.b16 %v224
        %v305 = vunpack.c.h.b16 %v224
        %v306 = vunpack.c.l.b16 %v225
        %v307 = vunpack.c.h.b16 %v225
        %v308 = vunpack.c.l.b16 %v226
        %v309 = vunpack.c.h.b16 %v226
        %v310 = vunpack.c.l.b16 %v227
        %v311 = vunpack.c.h.b16 %v227
        %v312 = vunpack.c.l.b16 %v228
        %v313 = vunpack.c.h.b16 %v228
        %v314 = vunpack.c.l.b16 %v229
        %v315 = vunpack.c.h.b16 %v229
        %v316 = vunpack.c.l.b16 %v230
        %v317 = vunpack.c.h.b16 %v230
        %v318 = vunpack.c.l.b16 %v231
        %v319 = vunpack.c.h.b16 %v231
        %v320 = vunpack.c.l.b16 %v232
        %v321 = vunpack.c.h.b16 %v232
        %v322 = vunpack.c.l.b16 %v233
        %v323 = vunpack.c.h.b16 %v233
        %v324 = vunpack.c.l.b16 %v234
        %v325 = vunpack.c.h.b16 %v234
        %v326 = vunpack.c.l.b16 %v235
        %v327 = vunpack.c.h.b16 %v235
        %v328 = vunpack.c.l.b16 %v236
        %v329 = vunpack.c.h.b16 %v236
        %v330 = vunpack.c.l.b16 %v237
        %v331 = vunpack.c.h.b16 %v237
        %v332 = vunpack.c.l.b16 %v238
        %v333 = vunpack.c.h.b16 %v238
        %v334 = vunpack.c.l.b16 %v239
        %v335 = vunpack.c.h.b16 %v239
        %v336 = vpack.c.b16 %v276, %v272
        %v337 = vpack.c.b16 %v277, %v273
        %v338 = vpack.c.b16 %v278, %v274
        %v339 = vpack.c.b16 %v279, %v275
        %v340 = vpack.c.b16 %v284, %v280
        %v341 = vpack.c.b16 %v285, %v281
        %v342 = vpack.c.b16 %v286, %v282
        %v343 = vpack.c.b16 %v287, %v283
        %v344 = vpack.c.b16 %v292, %v288
        %v345 = vpack.c.b16 %v293, %v289
        %v346 = vpack.c.b16 %v294, %v290
        %v347 = vpack.c.b16 %v295, %v291
        %v348 = vpack.c.b16 %v300, %v296
        %v349 = vpack.c.b16 %v301, %v297
        %v350 = vpack.c.b16 %v302, %v298
        %v351 = vpack.c.b16 %v303, %v299
        %v352 = vpack.c.b16 %v308, %v304
        %v353 = vpack.c.b16 %v309, %v305
        %v354 = vpack.c.b16 %v310, %v306
        %v355 = vpack.c.b16 %v311, %v307
        %v356 = vpack.c.b16 %v316, %v312
        %v357 = vpack.c.b16 %v317, %v313
        %v358 = vpack.c.b16 %v318, %v314
        %v359 = vpack.c.b16 %v319, %v315
        %v360 = vpack.c.b16 %v324, %v320
        %v361 = vpack.c.b16 %v325, %v321
        %v362 = vpack.c.b16 %v326, %v322
        %v363 = vpack.c.b16 %v327, %v323
        %v364 = vpack.c.b16 %v332, %v328
        %v365 = vpack.c.b16 %v333, %v329
        %v366 = vpack.c.b16 %v334, %v330
        %v367 = vpack.c.b16 %v335, %v331
        %400 = vmatpush.bf16.msra.mxu0 %v364
        %401 = vmatpush.bf16.msra.mxu0 %v360
        %402 = vmatpush.bf16.msra.mxu0 %v356
        %403 = vmatpush.bf16.msra.mxu0 %v352
        %404 = vmatpush.bf16.msra.mxu0 %v348
        %405 = vmatpush.bf16.msra.mxu0 %v344
        %406 = vmatpush.bf16.msra.mxu0 %v340
        %407 = vmatpush.bf16.msra.mxu0 %v336
        %408 = vmatmul.bf16.gmra.mxu0 %v207
        %v409 = vpop.f32.mrf.mxu0
        %v410 = vadd.f32 0.0, %v409
        %v411 = vpop.f32.mrf.mxu0
        %412 = vdwg.mxu0
        %413 = vmatpush.bf16.msra.mxu0 %v365
        %414 = vmatpush.bf16.msra.mxu0 %v361
        %415 = vmatpush.bf16.msra.mxu0 %v357
        %416 = vmatpush.bf16.msra.mxu0 %v353
        %417 = vmatpush.bf16.msra.mxu0 %v349
        %418 = vmatpush.bf16.msra.mxu0 %v345
        %419 = vmatpush.bf16.msra.mxu0 %v341
        %420 = vmatpush.bf16.msra.mxu0 %v337
        %421 = vmatmul.bf16.gmra.mxu0 %v207
        %v422 = vpop.f32.mrf.mxu0
        %v423 = vadd.f32 0.0, %v422
        %v424 = vpop.f32.mrf.mxu0
        %425 = vdwg.mxu0
        %426 = vmatpush.bf16.msra.mxu0 %v366
        %427 = vmatpush.bf16.msra.mxu0 %v362
        %428 = vmatpush.bf16.msra.mxu0 %v358
        %429 = vmatpush.bf16.msra.mxu0 %v354
        %430 = vmatpush.bf16.msra.mxu0 %v350
        %431 = vmatpush.bf16.msra.mxu0 %v346
        %432 = vmatpush.bf16.msra.mxu0 %v342
        %433 = vmatpush.bf16.msra.mxu0 %v338
        %434 = vmatmul.bf16.gmra.mxu0 %v207
        %v435 = vpop.f32.mrf.mxu0
        %v436 = vadd.f32 0.0, %v435
        %v437 = vpop.f32.mrf.mxu0
        %438 = vdwg.mxu0
        %439 = vmatpush.bf16.msra.mxu0 %v367
        %440 = vmatpush.bf16.msra.mxu0 %v363
        %441 = vmatpush.bf16.msra.mxu0 %v359
        %442 = vmatpush.bf16.msra.mxu0 %v355
        %443 = vmatpush.bf16.msra.mxu0 %v351
        %444 = vmatpush.bf16.msra.mxu0 %v347
        %445 = vmatpush.bf16.msra.mxu0 %v343
        %446 = vmatpush.bf16.msra.mxu0 %v339
        %447 = vmatmul.bf16.gmra.mxu0 %v207
        %v448 = vpop.f32.mrf.mxu0
        %v449 = vadd.f32 0.0, %v448
        %v450 = vpop.f32.mrf.mxu0
        %451 = vdwg.mxu0
        %452 = vst [vmem:[%s205] sm:$0xff] %v410
        %453 = vst [vmem:[%s205 + $0x8] sm:$0xff] %v423
        %454 = vst [vmem:[%s205 + $0x10] sm:$0xff] %v436
        %455 = vst [vmem:[%s205 + $0x18] sm:$0xff] %v449
        %s456 = smul.u32 4, %s21
        %p457 = scmp.lt.s32.totalorder %s20, 0
        %s458 = scalar_select %p457, %s20, 0
        %p459 = scmp.lt.s32.totalorder %s456, 63
        %s460 = scalar_select %p459, %s456, 63
        %s461 = smul.addr %s458, 64
        %s462 = sadd.s32 %s460, %s461
        %s463 = smul.addr %s462, 8
        %s464 = scalar_lea.vmem %s2, %s463
        // Predicated region
        $region33: #{generator_forward.10} parent=27 // pred_check
          %p465 = pneg %p100
        $region34: #{generator_forward.10} parent=27 // pred_check_branch
          %467 = sbr.rel (%p465) target = $region36
        $region35: #{generator_forward.10} parent=27 // pred_region
          %s468 = smul.u32 4, %s21
        $region36: #{generator_forward.10} parent=27 // pred_fallthru
          _
      $region28: #{generator_forward.10} parent=5 // pred_fallthru
        _
      %p469 = scmp.le.s32.totalorder 2, %s11
      // Predicated region
      $region37: #{generator_forward.10} parent=5 // pred_check
        %p470 = pneg %p469
      $region38: #{generator_forward.10} parent=5 // pred_check_branch
        %472 = sbr.rel (%p470) target = $region40
      $region39: #{generator_forward.10} parent=5 // pred_region
        %s473 = ssub.s32 %s11, 2
        // Predicated region
        $region41: #{generator_forward.10} parent=39 // pred_check
          %p474 = pneg %p106
        $region42: #{generator_forward.10} parent=39 // pred_check_branch
          %476 = sbr.rel (%p474) target = $region44
        $region43: #{generator_forward.10} parent=39 // pred_region
          %s477 = smul.u32 4, %s23
          %p478 = scmp.lt.s32.totalorder %s22, 0
          %s479 = scalar_select %p478, %s22, 0
          %p480 = scmp.lt.s32.totalorder %s477, 63
          %s481 = scalar_select %p480, %s477, 63
          %s482 = smul.addr %s479, 64
          %s483 = sadd.s32 %s481, %s482
          %s484 = smul.addr %s483, 8
          %s485 = scalar_lea.vmem %s2, %s484
        $region44: #{generator_forward.10} parent=39 // pred_fallthru
          _
      $region40: #{generator_forward.10} parent=5 // pred_fallthru
        _
    $region6: #{generator_forward.10} parent=1 // loop_footer
      %s15 = sadd.s32 1, %s11
    $region7: #{generator_forward.10} parent=1 // loop_footer_branch
      %10 = sbr.rel target = $region3
    $region8: #{generator_forward.10} parent=1 // loop_exit
      _
    %486 = vsyncpa [#allocation3], 1
    %s487 = scalar_lea.sflag [#allocation3], 1
    %488 = vsyncpa %s487, 1

// kernel: generator_forward.12
$region0: #{generator_forward.12}
  #allocation0 [shape = 'u32[]', space=smem, size = 0x4, offset = 0x4, fixed_abs, tag = 'smem constant byte address 0x4 - core index']
  #allocation1 [shape = 'u32[72,128]{1,0:T(1,128)}', space=vmem, size = 0x9000, scoped, tag = 'internal scratch']
  %s0 = inlined_call_operand.vmem [shape: bf16[32,512], index: 0, kind: input, shape index: {}]
  %s1 = inlined_call_operand.hbm [shape: bf16[512,4096], index: 1, kind: input, shape index: {}]
  %s2 = inlined_call_operand.vmem [shape: f32[32,4096], index: 2, kind: output, shape index: {}]
  %s3 = sld [smem:[#allocation0]]
  $region64: #{generator_forward.12} parent=0
    _
  %s5 = ssub.s32 1, %s3
  %s6 = scalar_select 0, %s5, %s3
  $region1: #{generator_forward.12} parent=0
    #allocation2 [shape = 'u8[1048576]{0}', space=vmem, size = 0x100000, scoped, tag = 'input window, operand 1']
    #allocation3 [shape = 's32[2]{0}', space=sflag, size = 0x8, scoped, tag = 'scoped memory for generator_forward.12']
    #allocation4 [shape = 'u8[131072]{0}', space=vmem, size = 0x20000, scoped, tag = 'output window, operand 0']
    %7 = vsyncpa [#allocation3], 0
    %s8 = scalar_lea.sflag [#allocation3], 1
    %9 = vsyncpa %s8, 0
    loop: start=0, step=1, limit=10
    $region2: #{generator_forward.12} parent=1 // loop_pre_header
      _
    $region3: #{generator_forward.12} parent=1 // loop_header
      %s11 = sphi 0, %s15
      %p12 = scmp.ge.s32.totalorder %s11, 10
      %s18 = sphi 0, %s30
      %s19 = sphi 0, %s26
      %s20 = sphi 0, %s18
      %s21 = sphi 0, %s19
      %s22 = sphi 0, %s20
      %s23 = sphi 0, %s21
      %s33 = sphi 0, %s35
      %s36 = sphi 0, %s33
      %s37 = sphi 0, %s36
      %s53 = sphi 0, %s37
      %s59 = sphi 0, %s61
      %s62 = sphi 0, %s59
      %s63 = sphi 0, %s62
      %s79 = sphi 0, %s63
      %s87 = sphi 0, %s89
      %s90 = sphi 0, %s87
      %s91 = sphi 0, %s90
      %s107 = sphi 0, %s91
    $region4: #{generator_forward.12} parent=1 // loop_header_branch
      %14 = sbr.rel (%p12) target = $region8
    $region5: #{generator_forward.12} parent=1 // loop_body
      %s16 = ssub.s32 %s11, 1
      %s17 = ssub.s32 %s11, 2
      %s24 = sadd.s32 1, %s19
      %p25 = scmp.ge.s32.totalorder %s24, 8
      %s26 = scalar_select %p25, 0, %s24
      %s27 = sadd.s32 1, %s18
      %s28 = scalar_select %p25, %s27, %s18
      %p29 = scmp.ge.s32.totalorder %s28, 1
      %s30 = scalar_select %p29, 0, %s28
      %s31 = ssub.s32 %s18, %s30
      %p32 = scmp.eq.s32.totalorder %s31, 0
      %s34 = sadd.s32 %s33, 1
      %s35 = scalar_select %p32, %s33, %s34
      %p38 = pneg %p32
      %p39 = scmp.eq.s32.totalorder %s11, 7
      %p40 = por %p38, %p39
      %p41 = scmp.ne.s32.totalorder %s33, %s36
      %p42 = scmp.eq.s32.totalorder %s11, 0
      %p43 = por %p41, %p42
      %p44 = scmp.ne.s32.totalorder %s33, %s36
      %p45 = scmp.eq.s32.totalorder %s16, 7
      %p46 = por %p44, %p45
      %p47 = scmp.ne.s32.totalorder %s36, %s37
      %p48 = scmp.eq.s32.totalorder %s16, 0
      %p49 = por %p47, %p48
      %p50 = scmp.ne.s32.totalorder %s36, %s37
      %p51 = scmp.eq.s32.totalorder %s17, 7
      %p52 = por %p50, %p51
      %p54 = scmp.ne.s32.totalorder %s37, %s53
      %p55 = scmp.eq.s32.totalorder %s17, 0
      %p56 = por %p54, %p55
      %s57 = ssub.s32 %s19, %s26
      %p58 = scmp.eq.s32.totalorder %s57, 0
      %s60 = sadd.s32 %s59, 1
      %s61 = scalar_select %p58, %s59, %s60
      %p64 = pneg %p58
      %p65 = scmp.eq.s32.totalorder %s11, 7
      %p66 = por %p64, %p65
      %p67 = scmp.ne.s32.totalorder %s59, %s62
      %p68 = scmp.eq.s32.totalorder %s11, 0
      %p69 = por %p67, %p68
      %p70 = scmp.ne.s32.totalorder %s59, %s62
      %p71 = scmp.eq.s32.totalorder %s16, 7
      %p72 = por %p70, %p71
      %p73 = scmp.ne.s32.totalorder %s62, %s63
      %p74 = scmp.eq.s32.totalorder %s16, 0
      %p75 = por %p73, %p74
      %p76 = scmp.ne.s32.totalorder %s62, %s63
      %p77 = scmp.eq.s32.totalorder %s17, 7
      %p78 = por %p76, %p77
      %p80 = scmp.ne.s32.totalorder %s63, %s79
      %p81 = scmp.eq.s32.totalorder %s17, 0
      %p82 = por %p80, %p81
      %s83 = ssub.s32 %s18, %s30
      %s84 = ssub.s32 %s19, %s26
      %s85 = sor.u32 %s83, %s84
      %p86 = scmp.eq.s32.totalorder %s85, 0
      %s88 = sadd.s32 %s87, 1
      %s89 = scalar_select %p86, %s87, %s88
      %p92 = pneg %p86
      %p93 = scmp.eq.s32.totalorder %s11, 7
      %p94 = por %p92, %p93
      %p95 = scmp.ne.s32.totalorder %s87, %s90
      %p96 = scmp.eq.s32.totalorder %s11, 0
      %p97 = por %p95, %p96
      %p98 = scmp.ne.s32.totalorder %s87, %s90
      %p99 = scmp.eq.s32.totalorder %s16, 7
      %p100 = por %p98, %p99
      %p101 = scmp.ne.s32.totalorder %s90, %s91
      %p102 = scmp.eq.s32.totalorder %s16, 0
      %p103 = por %p101, %p102
      %p104 = scmp.ne.s32.totalorder %s90, %s91
      %p105 = scmp.eq.s32.totalorder %s17, 7
      %p106 = por %p104, %p105
      %p108 = scmp.ne.s32.totalorder %s91, %s107
      %p109 = scmp.eq.s32.totalorder %s17, 0
      %p110 = por %p108, %p109
      %p111 = scmp.le.s32.totalorder 1, %s11
      %p112 = scmp.lt.s32.totalorder %s11, 9
      %p113 = pnand %p111, %p112
      %p114 = pneg %p113
      // Predicated region
      $region9: #{generator_forward.12} parent=5 // pred_check
        _
      $region10: #{generator_forward.12} parent=5 // pred_check_branch
        %116 = sbr.rel (%p113) target = $region12
      $region11: #{generator_forward.12} parent=5 // pred_region
        %s117 = ssub.s32 %s11, 1
        // Predicated region
        $region13: #{generator_forward.12} parent=11 // pred_check
          %p118 = pneg %p49
        $region14: #{generator_forward.12} parent=11 // pred_check_branch
          %120 = sbr.rel (%p118) target = $region16
        $region15: #{generator_forward.12} parent=11 // pred_region
          %s121 = smul.u32 4, %s20
          %p122 = scmp.lt.s32.totalorder %s121, 3
          %s123 = scalar_select %p122, %s121, 3
          %s124 = smul.addr %s123, 4
          %s125 = smul.addr %s124, 4
          %s126 = scalar_lea.vmem %s0, %s125
          %s127 = smul.u32 4, %s20
        $region16: #{generator_forward.12} parent=11 // pred_fallthru
          _
      $region12: #{generator_forward.12} parent=5 // pred_fallthru
        _
      %p128 = scmp.lt.s32.totalorder %s11, 8
      // Predicated region
      $region17: #{generator_forward.12} parent=5 // pred_check
        %p129 = pneg %p128
      $region18: #{generator_forward.12} parent=5 // pred_check_branch
        %131 = sbr.rel (%p129) target = $region20
      $region19: #{generator_forward.12} parent=5 // pred_region
        // Predicated region
        $region21: #{generator_forward.12} parent=19 // pred_check
          %p132 = pneg %p69
        $region22: #{generator_forward.12} parent=19 // pred_check_branch
          %134 = sbr.rel (%p132) target = $region24
        $region23: #{generator_forward.12} parent=19 // pred_region
          %s135 = sand.u32 %s59, 1
          %s136 = scalar_lea.sflag [#allocation3], %s135
          %s137 = sand.u32 %s59, 1
          %s138 = smul.addr %s137, 1024
          %s139 = scalar_lea.vmem [#allocation2], %s138
          %s140 = smul.u32 4, %s19
          %142 = vsyncadd %s136, 0
          %s143 = smul.addr %s140, 4
          %s144 = scalar_lea.hbm %s1, %s143
          %s145 = sshll.u32 %s144, 4
          %s146 = int_to_ptr.hbm [resolvable:$true] %s145
          %s147 = sshll.u32 %s139, 4
          %s148 = int_to_ptr.vmem [resolvable:$true] %s147
          %153 = dma.hbm_to_vmem [thread:$0]  %s146, 16384, %s148, %s136, 2048, 256, 16
        $region24: #{generator_forward.12} parent=19 // pred_fallthru
          _
      $region20: #{generator_forward.12} parent=5 // pred_fallthru
        _
      %p154 = scmp.le.s32.totalorder 1, %s11
      %p155 = scmp.lt.s32.totalorder %s11, 9
      %p156 = pnand %p154, %p155
      %p157 = pneg %p156
      // Predicated region
      $region25: #{generator_forward.12} parent=5 // pred_check
        _
      $region26: #{generator_forward.12} parent=5 // pred_check_branch
        %159 = sbr.rel (%p156) target = $region28
      $region27: #{generator_forward.12} parent=5 // pred_region
        %s160 = ssub.s32 %s11, 1
        %s161 = sand.u32 %s62, 1
        %s162 = scalar_lea.sflag [#allocation3], %s161
        %s163 = sand.u32 %s62, 1
        %s164 = smul.addr %s163, 1024
        %s165 = scalar_lea.vmem [#allocation2], %s164
        // Predicated region
        $region29: #{generator_forward.12} parent=27 // pred_check
          %p166 = pneg %p75
        $region30: #{generator_forward.12} parent=27 // pred_check_branch
          %168 = sbr.rel (%p166) target = $region32
        $region31: #{generator_forward.12} parent=27 // pred_region
          %170 = dma.done %s162, 16384
        $region32: #{generator_forward.12} parent=27 // pred_fallthru
          _
        %s171 = smul.u32 4, %s20
        %p172 = scmp.lt.s32.totalorder %s171, 3
        %s173 = scalar_select %p172, %s171, 3
        %s174 = smul.addr %s173, 4
        %s175 = smul.addr %s174, 4
        %s176 = scalar_lea.vmem %s0, %s175
        %p177 = pneg %p49
        %p178 = pneg %p46
        %s179 = sand.u32 %s62, 1
        %s180 = scalar_lea.sflag [#allocation3], %s179
        %s181 = sand.u32 %s62, 1
        %s182 = smul.addr %s181, 1024
        %s183 = scalar_lea.vmem [#allocation2], %s182
        %p184 = pneg %p75
        %p185 = pneg %p72
        %p186 = pneg %p103
        %p187 = pneg %p100
        %s188 = sand.u32 %s90, 1
        %s189 = sand.u32 %s90, 1
        %s190 = smul.addr %s189, 128
        %s191 = scalar_lea.vmem [#allocation4], %s190
        %s192 = smul.u32 4, %s20
        %p193 = scmp.lt.s32.totalorder %s192, 3
        %s194 = scalar_select %p193, %s192, 3
        %s195 = smul.addr %s194, 4
        %s196 = smul.addr %s195, 4
        %s197 = scalar_lea.vmem %s0, %s196
        %s198 = smul.u32 4, %s20
        %s199 = smul.u32 4, %s21
        %s200 = smul.u32 4, %s20
        %s201 = smul.u32 4, %s21
        %v202 = vld [vmem:[%s197] sm:$0xff]
        %v203 = vld [vmem:[%s197 + $0x8] sm:$0xff]
        %v204 = vld [vmem:[%s197 + $0x10] sm:$0xff]
        %v205 = vld [vmem:[%s197 + $0x18] sm:$0xff]
        %v206 = vld [vmem:[%s197 + $0x20] sm:$0xff]
        %v207 = vld [vmem:[%s197 + $0x28] sm:$0xff]
        %v208 = vld [vmem:[%s197 + $0x30] sm:$0xff]
        %v209 = vld [vmem:[%s197 + $0x38] sm:$0xff]
        %v210 = vld [vmem:[%s165] sm:$0xff]
        %v211 = vld [vmem:[%s165 + $0x8] sm:$0xff]
        %v212 = vld [vmem:[%s165 + $0x10] sm:$0xff]
        %v213 = vld [vmem:[%s165 + $0x18] sm:$0xff]
        %v214 = vld [vmem:[%s165 + $0x20] sm:$0xff]
        %v215 = vld [vmem:[%s165 + $0x28] sm:$0xff]
        %v216 = vld [vmem:[%s165 + $0x30] sm:$0xff]
        %v217 = vld [vmem:[%s165 + $0x38] sm:$0xff]
        %v218 = vld [vmem:[%s165 + $0x40] sm:$0xff]
        %v219 = vld [vmem:[%s165 + $0x48] sm:$0xff]
        %v220 = vld [vmem:[%s165 + $0x50] sm:$0xff]
        %v221 = vld [vmem:[%s165 + $0x58] sm:$0xff]
        %v222 = vld [vmem:[%s165 + $0x60] sm:$0xff]
        %v223 = vld [vmem:[%s165 + $0x68] sm:$0xff]
        %v224 = vld [vmem:[%s165 + $0x70] sm:$0xff]
        %v225 = vld [vmem:[%s165 + $0x78] sm:$0xff]
        %v226 = vld [vmem:[%s165 + $0x80] sm:$0xff]
        %v227 = vld [vmem:[%s165 + $0x88] sm:$0xff]
        %v228 = vld [vmem:[%s165 + $0x90] sm:$0xff]
        %v229 = vld [vmem:[%s165 + $0x98] sm:$0xff]
        %v230 = vld [vmem:[%s165 + $0xa0] sm:$0xff]
        %v231 = vld [vmem:[%s165 + $0xa8] sm:$0xff]
        %v232 = vld [vmem:[%s165 + $0xb0] sm:$0xff]
        %v233 = vld [vmem:[%s165 + $0xb8] sm:$0xff]
        %v234 = vld [vmem:[%s165 + $0xc0] sm:$0xff]
        %v235 = vld [vmem:[%s165 + $0xc8] sm:$0xff]
        %v236 = vld [vmem:[%s165 + $0xd0] sm:$0xff]
        %v237 = vld [vmem:[%s165 + $0xd8] sm:$0xff]
        %v238 = vld [vmem:[%s165 + $0xe0] sm:$0xff]
        %v239 = vld [vmem:[%s165 + $0xe8] sm:$0xff]
        %v240 = vld [vmem:[%s165 + $0xf0] sm:$0xff]
        %v241 = vld [vmem:[%s165 + $0xf8] sm:$0xff]
        %v242 = vld [vmem:[%s165 + $0x100] sm:$0xff]
        %v243 = vld [vmem:[%s165 + $0x108] sm:$0xff]
        %v244 = vld [vmem:[%s165 + $0x110] sm:$0xff]
        %v245 = vld [vmem:[%s165 + $0x118] sm:$0xff]
        %v246 = vld [vmem:[%s165 + $0x120] sm:$0xff]
        %v247 = vld [vmem:[%s165 + $0x128] sm:$0xff]
        %v248 = vld [vmem:[%s165 + $0x130] sm:$0xff]
        %v249 = vld [vmem:[%s165 + $0x138] sm:$0xff]
        %v250 = vld [vmem:[%s165 + $0x140] sm:$0xff]
        %v251 = vld [vmem:[%s165 + $0x148] sm:$0xff]
        %v252 = vld [vmem:[%s165 + $0x150] sm:$0xff]
        %v253 = vld [vmem:[%s165 + $0x158] sm:$0xff]
        %v254 = vld [vmem:[%s165 + $0x160] sm:$0xff]
        %v255 = vld [vmem:[%s165 + $0x168] sm:$0xff]
        %v256 = vld [vmem:[%s165 + $0x170] sm:$0xff]
        %v257 = vld [vmem:[%s165 + $0x178] sm:$0xff]
        %v258 = vld [vmem:[%s165 + $0x180] sm:$0xff]
        %v259 = vld [vmem:[%s165 + $0x188] sm:$0xff]
        %v260 = vld [vmem:[%s165 + $0x190] sm:$0xff]
        %v261 = vld [vmem:[%s165 + $0x198] sm:$0xff]
        %v262 = vld [vmem:[%s165 + $0x1a0] sm:$0xff]
        %v263 = vld [vmem:[%s165 + $0x1a8] sm:$0xff]
        %v264 = vld [vmem:[%s165 + $0x1b0] sm:$0xff]
        %v265 = vld [vmem:[%s165 + $0x1b8] sm:$0xff]
        %v266 = vld [vmem:[%s165 + $0x1c0] sm:$0xff]
        %v267 = vld [vmem:[%s165 + $0x1c8] sm:$0xff]
        %v268 = vld [vmem:[%s165 + $0x1d0] sm:$0xff]
        %v269 = vld [vmem:[%s165 + $0x1d8] sm:$0xff]
        %v270 = vld [vmem:[%s165 + $0x1e0] sm:$0xff]
        %v271 = vld [vmem:[%s165 + $0x1e8] sm:$0xff]
        %v272 = vld [vmem:[%s165 + $0x1f0] sm:$0xff]
        %v273 = vld [vmem:[%s165 + $0x1f8] sm:$0xff]
        %v274 = vld [vmem:[%s165 + $0x200] sm:$0xff]
        %v275 = vld [vmem:[%s165 + $0x208] sm:$0xff]
        %v276 = vld [vmem:[%s165 + $0x210] sm:$0xff]
        %v277 = vld [vmem:[%s165 + $0x218] sm:$0xff]
        %v278 = vld [vmem:[%s165 + $0x220] sm:$0xff]
        %v279 = vld [vmem:[%s165 + $0x228] sm:$0xff]
        %v280 = vld [vmem:[%s165 + $0x230] sm:$0xff]
        %v281 = vld [vmem:[%s165 + $0x238] sm:$0xff]
        %v282 = vld [vmem:[%s165 + $0x240] sm:$0xff]
        %v283 = vld [vmem:[%s165 + $0x248] sm:$0xff]
        %v284 = vld [vmem:[%s165 + $0x250] sm:$0xff]
        %v285 = vld [vmem:[%s165 + $0x258] sm:$0xff]
        %v286 = vld [vmem:[%s165 + $0x260] sm:$0xff]
        %v287 = vld [vmem:[%s165 + $0x268] sm:$0xff]
        %v288 = vld [vmem:[%s165 + $0x270] sm:$0xff]
        %v289 = vld [vmem:[%s165 + $0x278] sm:$0xff]
        %v290 = vld [vmem:[%s165 + $0x280] sm:$0xff]
        %v291 = vld [vmem:[%s165 + $0x288] sm:$0xff]
        %v292 = vld [vmem:[%s165 + $0x290] sm:$0xff]
        %v293 = vld [vmem:[%s165 + $0x298] sm:$0xff]
        %v294 = vld [vmem:[%s165 + $0x2a0] sm:$0xff]
        %v295 = vld [vmem:[%s165 + $0x2a8] sm:$0xff]
        %v296 = vld [vmem:[%s165 + $0x2b0] sm:$0xff]
        %v297 = vld [vmem:[%s165 + $0x2b8] sm:$0xff]
        %v298 = vld [vmem:[%s165 + $0x2c0] sm:$0xff]
        %v299 = vld [vmem:[%s165 + $0x2c8] sm:$0xff]
        %v300 = vld [vmem:[%s165 + $0x2d0] sm:$0xff]
        %v301 = vld [vmem:[%s165 + $0x2d8] sm:$0xff]
        %v302 = vld [vmem:[%s165 + $0x2e0] sm:$0xff]
        %v303 = vld [vmem:[%s165 + $0x2e8] sm:$0xff]
        %v304 = vld [vmem:[%s165 + $0x2f0] sm:$0xff]
        %v305 = vld [vmem:[%s165 + $0x2f8] sm:$0xff]
        %v306 = vld [vmem:[%s165 + $0x300] sm:$0xff]
        %v307 = vld [vmem:[%s165 + $0x308] sm:$0xff]
        %v308 = vld [vmem:[%s165 + $0x310] sm:$0xff]
        %v309 = vld [vmem:[%s165 + $0x318] sm:$0xff]
        %v310 = vld [vmem:[%s165 + $0x320] sm:$0xff]
        %v311 = vld [vmem:[%s165 + $0x328] sm:$0xff]
        %v312 = vld [vmem:[%s165 + $0x330] sm:$0xff]
        %v313 = vld [vmem:[%s165 + $0x338] sm:$0xff]
        %v314 = vld [vmem:[%s165 + $0x340] sm:$0xff]
        %v315 = vld [vmem:[%s165 + $0x348] sm:$0xff]
        %v316 = vld [vmem:[%s165 + $0x350] sm:$0xff]
        %v317 = vld [vmem:[%s165 + $0x358] sm:$0xff]
        %v318 = vld [vmem:[%s165 + $0x360] sm:$0xff]
        %v319 = vld [vmem:[%s165 + $0x368] sm:$0xff]
        %v320 = vld [vmem:[%s165 + $0x370] sm:$0xff]
        %v321 = vld [vmem:[%s165 + $0x378] sm:$0xff]
        %v322 = vld [vmem:[%s165 + $0x380] sm:$0xff]
        %v323 = vld [vmem:[%s165 + $0x388] sm:$0xff]
        %v324 = vld [vmem:[%s165 + $0x390] sm:$0xff]
        %v325 = vld [vmem:[%s165 + $0x398] sm:$0xff]
        %v326 = vld [vmem:[%s165 + $0x3a0] sm:$0xff]
        %v327 = vld [vmem:[%s165 + $0x3a8] sm:$0xff]
        %v328 = vld [vmem:[%s165 + $0x3b0] sm:$0xff]
        %v329 = vld [vmem:[%s165 + $0x3b8] sm:$0xff]
        %v330 = vld [vmem:[%s165 + $0x3c0] sm:$0xff]
        %v331 = vld [vmem:[%s165 + $0x3c8] sm:$0xff]
        %v332 = vld [vmem:[%s165 + $0x3d0] sm:$0xff]
        %v333 = vld [vmem:[%s165 + $0x3d8] sm:$0xff]
        %v334 = vld [vmem:[%s165 + $0x3e0] sm:$0xff]
        %v335 = vld [vmem:[%s165 + $0x3e8] sm:$0xff]
        %v336 = vld [vmem:[%s165 + $0x3f0] sm:$0xff]
        %v337 = vld [vmem:[%s165 + $0x3f8] sm:$0xff]
        %v346 = vunpack.c.l.b16 %v202
        %v347 = vunpack.c.h.b16 %v202
        %v348 = vunpack.c.l.b16 %v203
        %v349 = vunpack.c.h.b16 %v203
        %v350 = vunpack.c.l.b16 %v204
        %v351 = vunpack.c.h.b16 %v204
        %v352 = vunpack.c.l.b16 %v205
        %v353 = vunpack.c.h.b16 %v205
        %v354 = vunpack.c.l.b16 %v206
        %v355 = vunpack.c.h.b16 %v206
        %v356 = vunpack.c.l.b16 %v207
        %v357 = vunpack.c.h.b16 %v207
        %v358 = vunpack.c.l.b16 %v208
        %v359 = vunpack.c.h.b16 %v208
        %v360 = vunpack.c.l.b16 %v209
        %v361 = vunpack.c.h.b16 %v209
        %v362 = vpack.c.b16 %v350, %v346
        %v363 = vpack.c.b16 %v351, %v347
        %v364 = vpack.c.b16 %v352, %v348
        %v365 = vpack.c.b16 %v353, %v349
        %v366 = vpack.c.b16 %v358, %v354
        %v367 = vpack.c.b16 %v359, %v355
        %v368 = vpack.c.b16 %v360, %v356
        %v369 = vpack.c.b16 %v361, %v357
        %v506 = vunpack.c.l.b16 %v210
        %v507 = vunpack.c.h.b16 %v210
        %v508 = vunpack.c.l.b16 %v211
        %v509 = vunpack.c.h.b16 %v211
        %v510 = vunpack.c.l.b16 %v212
        %v511 = vunpack.c.h.b16 %v212
        %v512 = vunpack.c.l.b16 %v213
        %v513 = vunpack.c.h.b16 %v213
        %v514 = vunpack.c.l.b16 %v214
        %v515 = vunpack.c.h.b16 %v214
        %v516 = vunpack.c.l.b16 %v215
        %v517 = vunpack.c.h.b16 %v215
        %v518 = vunpack.c.l.b16 %v216
        %v519 = vunpack.c.h.b16 %v216
        %v520 = vunpack.c.l.b16 %v217
        %v521 = vunpack.c.h.b16 %v217
        %v522 = vunpack.c.l.b16 %v218
        %v523 = vunpack.c.h.b16 %v218
        %v524 = vunpack.c.l.b16 %v219
        %v525 = vunpack.c.h.b16 %v219
        %v526 = vunpack.c.l.b16 %v220
        %v527 = vunpack.c.h.b16 %v220
        %v528 = vunpack.c.l.b16 %v221
        %v529 = vunpack.c.h.b16 %v221
        %v530 = vunpack.c.l.b16 %v222
        %v531 = vunpack.c.h.b16 %v222
        %v532 = vunpack.c.l.b16 %v223
        %v533 = vunpack.c.h.b16 %v223
        %v534 = vunpack.c.l.b16 %v224
        %v535 = vunpack.c.h.b16 %v224
        %v536 = vunpack.c.l.b16 %v225
        %v537 = vunpack.c.h.b16 %v225
        %v538 = vunpack.c.l.b16 %v226
        %v539 = vunpack.c.h.b16 %v226
        %v540 = vunpack.c.l.b16 %v227
        %v541 = vunpack.c.h.b16 %v227
        %v542 = vunpack.c.l.b16 %v228
        %v543 = vunpack.c.h.b16 %v228
        %v544 = vunpack.c.l.b16 %v229
        %v545 = vunpack.c.h.b16 %v229
        %v546 = vunpack.c.l.b16 %v230
        %v547 = vunpack.c.h.b16 %v230
        %v548 = vunpack.c.l.b16 %v231
        %v549 = vunpack.c.h.b16 %v231
        %v550 = vunpack.c.l.b16 %v232
        %v551 = vunpack.c.h.b16 %v232
        %v552 = vunpack.c.l.b16 %v233
        %v553 = vunpack.c.h.b16 %v233
        %v554 = vunpack.c.l.b16 %v234
        %v555 = vunpack.c.h.b16 %v234
        %v556 = vunpack.c.l.b16 %v235
        %v557 = vunpack.c.h.b16 %v235
        %v558 = vunpack.c.l.b16 %v236
        %v559 = vunpack.c.h.b16 %v236
        %v560 = vunpack.c.l.b16 %v237
        %v561 = vunpack.c.h.b16 %v237
        %v562 = vunpack.c.l.b16 %v238
        %v563 = vunpack.c.h.b16 %v238
        %v564 = vunpack.c.l.b16 %v239
        %v565 = vunpack.c.h.b16 %v239
        %v566 = vunpack.c.l.b16 %v240
        %v567 = vunpack.c.h.b16 %v240
        %v568 = vunpack.c.l.b16 %v241
        %v569 = vunpack.c.h.b16 %v241
        %v570 = vunpack.c.l.b16 %v242
        %v571 = vunpack.c.h.b16 %v242
        %v572 = vunpack.c.l.b16 %v243
        %v573 = vunpack.c.h.b16 %v243
        %v574 = vunpack.c.l.b16 %v244
        %v575 = vunpack.c.h.b16 %v244
        %v576 = vunpack.c.l.b16 %v245
        %v577 = vunpack.c.h.b16 %v245
        %v578 = vunpack.c.l.b16 %v246
        %v579 = vunpack.c.h.b16 %v246
        %v580 = vunpack.c.l.b16 %v247
        %v581 = vunpack.c.h.b16 %v247
        %v582 = vunpack.c.l.b16 %v248
        %v583 = vunpack.c.h.b16 %v248
        %v584 = vunpack.c.l.b16 %v249
        %v585 = vunpack.c.h.b16 %v249
        %v586 = vunpack.c.l.b16 %v250
        %v587 = vunpack.c.h.b16 %v250
        %v588 = vunpack.c.l.b16 %v251
        %v589 = vunpack.c.h.b16 %v251
        %v590 = vunpack.c.l.b16 %v252
        %v591 = vunpack.c.h.b16 %v252
        %v592 = vunpack.c.l.b16 %v253
        %v593 = vunpack.c.h.b16 %v253
        %v594 = vunpack.c.l.b16 %v254
        %v595 = vunpack.c.h.b16 %v254
        %v596 = vunpack.c.l.b16 %v255
        %v597 = vunpack.c.h.b16 %v255
        %v598 = vunpack.c.l.b16 %v256
        %v599 = vunpack.c.h.b16 %v256
        %v600 = vunpack.c.l.b16 %v257
        %v601 = vunpack.c.h.b16 %v257
        %v602 = vunpack.c.l.b16 %v258
        %v603 = vunpack.c.h.b16 %v258
        %v604 = vunpack.c.l.b16 %v259
        %v605 = vunpack.c.h.b16 %v259
        %v606 = vunpack.c.l.b16 %v260
        %v607 = vunpack.c.h.b16 %v260
        %v608 = vunpack.c.l.b16 %v261
        %v609 = vunpack.c.h.b16 %v261
        %v610 = vunpack.c.l.b16 %v262
        %v611 = vunpack.c.h.b16 %v262
        %v612 = vunpack.c.l.b16 %v263
        %v613 = vunpack.c.h.b16 %v263
        %v614 = vunpack.c.l.b16 %v264
        %v615 = vunpack.c.h.b16 %v264
        %v616 = vunpack.c.l.b16 %v265
        %v617 = vunpack.c.h.b16 %v265
        %v618 = vunpack.c.l.b16 %v266
        %v619 = vunpack.c.h.b16 %v266
        %v620 = vunpack.c.l.b16 %v267
        %v621 = vunpack.c.h.b16 %v267
        %v622 = vunpack.c.l.b16 %v268
        %v623 = vunpack.c.h.b16 %v268
        %v624 = vunpack.c.l.b16 %v269
        %v625 = vunpack.c.h.b16 %v269
        %v626 = vunpack.c.l.b16 %v270
        %v627 = vunpack.c.h.b16 %v270
        %v628 = vunpack.c.l.b16 %v271
        %v629 = vunpack.c.h.b16 %v271
        %v630 = vunpack.c.l.b16 %v272
        %v631 = vunpack.c.h.b16 %v272
        %v632 = vunpack.c.l.b16 %v273
        %v633 = vunpack.c.h.b16 %v273
        %v634 = vunpack.c.l.b16 %v274
        %v635 = vunpack.c.h.b16 %v274
        %v636 = vunpack.c.l.b16 %v275
        %v637 = vunpack.c.h.b16 %v275
        %v638 = vunpack.c.l.b16 %v276
        %v639 = vunpack.c.h.b16 %v276
        %v640 = vunpack.c.l.b16 %v277
        %v641 = vunpack.c.h.b16 %v277
        %v642 = vunpack.c.l.b16 %v278
        %v643 = vunpack.c.h.b16 %v278
        %v644 = vunpack.c.l.b16 %v279
        %v645 = vunpack.c.h.b16 %v279
        %v646 = vunpack.c.l.b16 %v280
        %v647 = vunpack.c.h.b16 %v280
        %v648 = vunpack.c.l.b16 %v281
        %v649 = vunpack.c.h.b16 %v281
        %v650 = vunpack.c.l.b16 %v282
        %v651 = vunpack.c.h.b16 %v282
        %v652 = vunpack.c.l.b16 %v283
        %v653 = vunpack.c.h.b16 %v283
        %v654 = vunpack.c.l.b16 %v284
        %v655 = vunpack.c.h.b16 %v284
        %v656 = vunpack.c.l.b16 %v285
        %v657 = vunpack.c.h.b16 %v285
        %v658 = vunpack.c.l.b16 %v286
        %v659 = vunpack.c.h.b16 %v286
        %v660 = vunpack.c.l.b16 %v287
        %v661 = vunpack.c.h.b16 %v287
        %v662 = vunpack.c.l.b16 %v288
        %v663 = vunpack.c.h.b16 %v288
        %v664 = vunpack.c.l.b16 %v289
        %v665 = vunpack.c.h.b16 %v289
        %v666 = vunpack.c.l.b16 %v290
        %v667 = vunpack.c.h.b16 %v290
        %v668 = vunpack.c.l.b16 %v291
        %v669 = vunpack.c.h.b16 %v291
        %v670 = vunpack.c.l.b16 %v292
        %v671 = vunpack.c.h.b16 %v292
        %v672 = vunpack.c.l.b16 %v293
        %v673 = vunpack.c.h.b16 %v293
        %v674 = vunpack.c.l.b16 %v294
        %v675 = vunpack.c.h.b16 %v294
        %v676 = vunpack.c.l.b16 %v295
        %v677 = vunpack.c.h.b16 %v295
        %v678 = vunpack.c.l.b16 %v296
        %v679 = vunpack.c.h.b16 %v296
        %v680 = vunpack.c.l.b16 %v297
        %v681 = vunpack.c.h.b16 %v297
        %v682 = vunpack.c.l.b16 %v298
        %v683 = vunpack.c.h.b16 %v298
        %v684 = vunpack.c.l.b16 %v299
        %v685 = vunpack.c.h.b16 %v299
        %v686 = vunpack.c.l.b16 %v300
        %v687 = vunpack.c.h.b16 %v300
        %v688 = vunpack.c.l.b16 %v301
        %v689 = vunpack.c.h.b16 %v301
        %v690 = vunpack.c.l.b16 %v302
        %v691 = vunpack.c.h.b16 %v302
        %v692 = vunpack.c.l.b16 %v303
        %v693 = vunpack.c.h.b16 %v303
        %v694 = vunpack.c.l.b16 %v304
        %v695 = vunpack.c.h.b16 %v304
        %v696 = vunpack.c.l.b16 %v305
        %v697 = vunpack.c.h.b16 %v305
        %v698 = vunpack.c.l.b16 %v306
        %v699 = vunpack.c.h.b16 %v306
        %v700 = vunpack.c.l.b16 %v307
        %v701 = vunpack.c.h.b16 %v307
        %v702 = vunpack.c.l.b16 %v308
        %v703 = vunpack.c.h.b16 %v308
        %v704 = vunpack.c.l.b16 %v309
        %v705 = vunpack.c.h.b16 %v309
        %v706 = vunpack.c.l.b16 %v310
        %v707 = vunpack.c.h.b16 %v310
        %v708 = vunpack.c.l.b16 %v311
        %v709 = vunpack.c.h.b16 %v311
        %v710 = vunpack.c.l.b16 %v312
        %v711 = vunpack.c.h.b16 %v312
        %v712 = vunpack.c.l.b16 %v313
        %v713 = vunpack.c.h.b16 %v313
        %v714 = vunpack.c.l.b16 %v314
        %v715 = vunpack.c.h.b16 %v314
        %v716 = vunpack.c.l.b16 %v315
        %v717 = vunpack.c.h.b16 %v315
        %v718 = vunpack.c.l.b16 %v316
        %v719 = vunpack.c.h.b16 %v316
        %v720 = vunpack.c.l.b16 %v317
        %v721 = vunpack.c.h.b16 %v317
        %v722 = vunpack.c.l.b16 %v318
        %v723 = vunpack.c.h.b16 %v318
        %v724 = vunpack.c.l.b16 %v319
        %v725 = vunpack.c.h.b16 %v319
        %v726 = vunpack.c.l.b16 %v320
        %v727 = vunpack.c.h.b16 %v320
        %v728 = vunpack.c.l.b16 %v321
        %v729 = vunpack.c.h.b16 %v321
        %v730 = vunpack.c.l.b16 %v322
        %v731 = vunpack.c.h.b16 %v322
        %v732 = vunpack.c.l.b16 %v323
        %v733 = vunpack.c.h.b16 %v323
        %v734 = vunpack.c.l.b16 %v324
        %v735 = vunpack.c.h.b16 %v324
        %v736 = vunpack.c.l.b16 %v325
        %v737 = vunpack.c.h.b16 %v325
        %v738 = vunpack.c.l.b16 %v326
        %v739 = vunpack.c.h.b16 %v326
        %v740 = vunpack.c.l.b16 %v327
        %v741 = vunpack.c.h.b16 %v327
        %v742 = vunpack.c.l.b16 %v328
        %v743 = vunpack.c.h.b16 %v328
        %v744 = vunpack.c.l.b16 %v329
        %v745 = vunpack.c.h.b16 %v329
        %v746 = vunpack.c.l.b16 %v330
        %v747 = vunpack.c.h.b16 %v330
        %v748 = vunpack.c.l.b16 %v331
        %v749 = vunpack.c.h.b16 %v331
        %v750 = vunpack.c.l.b16 %v332
        %v751 = vunpack.c.h.b16 %v332
        %v752 = vunpack.c.l.b16 %v333
        %v753 = vunpack.c.h.b16 %v333
        %v754 = vunpack.c.l.b16 %v334
        %v755 = vunpack.c.h.b16 %v334
        %v756 = vunpack.c.l.b16 %v335
        %v757 = vunpack.c.h.b16 %v335
        %v758 = vunpack.c.l.b16 %v336
        %v759 = vunpack.c.h.b16 %v336
        %v760 = vunpack.c.l.b16 %v337
        %v761 = vunpack.c.h.b16 %v337
        %v762 = vpack.c.b16 %v510, %v506
        %v763 = vpack.c.b16 %v511, %v507
        %v764 = vpack.c.b16 %v512, %v508
        %v765 = vpack.c.b16 %v513, %v509
        %v766 = vpack.c.b16 %v518, %v514
        %v767 = vpack.c.b16 %v519, %v515
        %v768 = vpack.c.b16 %v520, %v516
        %v769 = vpack.c.b16 %v521, %v517
        %v770 = vpack.c.b16 %v526, %v522
        %v771 = vpack.c.b16 %v527, %v523
        %v772 = vpack.c.b16 %v528, %v524
        %v773 = vpack.c.b16 %v529, %v525
        %v774 = vpack.c.b16 %v534, %v530
        %v775 = vpack.c.b16 %v535, %v531
        %v776 = vpack.c.b16 %v536, %v532
        %v777 = vpack.c.b16 %v537, %v533
        %v778 = vpack.c.b16 %v542, %v538
        %v779 = vpack.c.b16 %v543, %v539
        %v780 = vpack.c.b16 %v544, %v540
        %v781 = vpack.c.b16 %v545, %v541
        %v782 = vpack.c.b16 %v550, %v546
        %v783 = vpack.c.b16 %v551, %v547
        %v784 = vpack.c.b16 %v552, %v548
        %v785 = vpack.c.b16 %v553, %v549
        %v786 = vpack.c.b16 %v558, %v554
        %v787 = vpack.c.b16 %v559, %v555
        %v788 = vpack.c.b16 %v560, %v556
        %v789 = vpack.c.b16 %v561, %v557
        %v790 = vpack.c.b16 %v566, %v562
        %v791 = vpack.c.b16 %v567, %v563
        %v792 = vpack.c.b16 %v568, %v564
        %v793 = vpack.c.b16 %v569, %v565
        %v794 = vpack.c.b16 %v574, %v570
        %v795 = vpack.c.b16 %v575, %v571
        %v796 = vpack.c.b16 %v576, %v572
        %v797 = vpack.c.b16 %v577, %v573
        %v798 = vpack.c.b16 %v582, %v578
        %v799 = vpack.c.b16 %v583, %v579
        %v800 = vpack.c.b16 %v584, %v580
        %v801 = vpack.c.b16 %v585, %v581
        %v802 = vpack.c.b16 %v590, %v586
        %v803 = vpack.c.b16 %v591, %v587
        %v804 = vpack.c.b16 %v592, %v588
        %v805 = vpack.c.b16 %v593, %v589
        %v806 = vpack.c.b16 %v598, %v594
        %v807 = vpack.c.b16 %v599, %v595
        %v808 = vpack.c.b16 %v600, %v596
        %v809 = vpack.c.b16 %v601, %v597
        %v810 = vpack.c.b16 %v606, %v602
        %v811 = vpack.c.b16 %v607, %v603
        %v812 = vpack.c.b16 %v608, %v604
        %v813 = vpack.c.b16 %v609, %v605
        %v814 = vpack.c.b16 %v614, %v610
        %v815 = vpack.c.b16 %v615, %v611
        %v816 = vpack.c.b16 %v616, %v612
        %v817 = vpack.c.b16 %v617, %v613
        %v818 = vpack.c.b16 %v622, %v618
        %v819 = vpack.c.b16 %v623, %v619
        %v820 = vpack.c.b16 %v624, %v620
        %v821 = vpack.c.b16 %v625, %v621
        %v822 = vpack.c.b16 %v630, %v626
        %v823 = vpack.c.b16 %v631, %v627
        %v824 = vpack.c.b16 %v632, %v628
        %v825 = vpack.c.b16 %v633, %v629
        %v826 = vpack.c.b16 %v638, %v634
        %v827 = vpack.c.b16 %v639, %v635
        %v828 = vpack.c.b16 %v640, %v636
        %v829 = vpack.c.b16 %v641, %v637
        %v830 = vpack.c.b16 %v646, %v642
        %v831 = vpack.c.b16 %v647, %v643
        %v832 = vpack.c.b16 %v648, %v644
        %v833 = vpack.c.b16 %v649, %v645
        %v834 = vpack.c.b16 %v654, %v650
        %v835 = vpack.c.b16 %v655, %v651
        %v836 = vpack.c.b16 %v656, %v652
        %v837 = vpack.c.b16 %v657, %v653
        %v838 = vpack.c.b16 %v662, %v658
        %v839 = vpack.c.b16 %v663, %v659
        %v840 = vpack.c.b16 %v664, %v660
        %v841 = vpack.c.b16 %v665, %v661
        %v842 = vpack.c.b16 %v670, %v666
        %v843 = vpack.c.b16 %v671, %v667
        %v844 = vpack.c.b16 %v672, %v668
        %v845 = vpack.c.b16 %v673, %v669
        %v846 = vpack.c.b16 %v678, %v674
        %v847 = vpack.c.b16 %v679, %v675
        %v848 = vpack.c.b16 %v680, %v676
        %v849 = vpack.c.b16 %v681, %v677
        %v850 = vpack.c.b16 %v686, %v682
        %v851 = vpack.c.b16 %v687, %v683
        %v852 = vpack.c.b16 %v688, %v684
        %v853 = vpack.c.b16 %v689, %v685
        %v854 = vpack.c.b16 %v694, %v690
        %v855 = vpack.c.b16 %v695, %v691
        %v856 = vpack.c.b16 %v696, %v692
        %v857 = vpack.c.b16 %v697, %v693
        %v858 = vpack.c.b16 %v702, %v698
        %v859 = vpack.c.b16 %v703, %v699
        %v860 = vpack.c.b16 %v704, %v700
        %v861 = vpack.c.b16 %v705, %v701
        %v862 = vpack.c.b16 %v710, %v706
        %v863 = vpack.c.b16 %v711, %v707
        %v864 = vpack.c.b16 %v712, %v708
        %v865 = vpack.c.b16 %v713, %v709
        %v866 = vpack.c.b16 %v718, %v714
        %v867 = vpack.c.b16 %v719, %v715
        %v868 = vpack.c.b16 %v720, %v716
        %v869 = vpack.c.b16 %v721, %v717
        %v870 = vpack.c.b16 %v726, %v722
        %v871 = vpack.c.b16 %v727, %v723
        %v872 = vpack.c.b16 %v728, %v724
        %v873 = vpack.c.b16 %v729, %v725
        %v874 = vpack.c.b16 %v734, %v730
        %v875 = vpack.c.b16 %v735, %v731
        %v876 = vpack.c.b16 %v736, %v732
        %v877 = vpack.c.b16 %v737, %v733
        %v878 = vpack.c.b16 %v742, %v738
        %v879 = vpack.c.b16 %v743, %v739
        %v880 = vpack.c.b16 %v744, %v740
        %v881 = vpack.c.b16 %v745, %v741
        %v882 = vpack.c.b16 %v750, %v746
        %v883 = vpack.c.b16 %v751, %v747
        %v884 = vpack.c.b16 %v752, %v748
        %v885 = vpack.c.b16 %v753, %v749
        %v886 = vpack.c.b16 %v758, %v754
        %v887 = vpack.c.b16 %v759, %v755
        %v888 = vpack.c.b16 %v760, %v756
        %v889 = vpack.c.b16 %v761, %v757
        %1018 = vmatpush.bf16.msra.mxu0 %v790
        %1019 = vmatpush.bf16.msra.mxu0 %v786
        %1020 = vmatpush.bf16.msra.mxu0 %v782
        %1021 = vmatpush.bf16.msra.mxu0 %v778
        %1022 = vmatpush.bf16.msra.mxu0 %v774
        %1023 = vmatpush.bf16.msra.mxu0 %v770
        %1024 = vmatpush.bf16.msra.mxu0 %v766
        %1025 = vmatpush.bf16.msra.mxu0 %v762
        %1026 = vmatmul.bf16.gmra.mxu0 %v362
        %v1027 = vpop.f32.mrf.mxu0
        %v1028 = vadd.f32 0.0, %v1027
        %v1029 = vpop.f32.mrf.mxu0
        %v1030 = vadd.f32 0.0, %v1029
        %1031 = vmatmul.bf16.gmra.mxu0 %v366
        %v1032 = vpop.f32.mrf.mxu0
        %v1033 = vadd.f32 0.0, %v1032
        %v1034 = vpop.f32.mrf.mxu0
        %v1035 = vadd.f32 0.0, %v1034
        %1036 = vdwg.mxu0
        %1037 = vmatpush.bf16.msra.mxu0 %v822
        %1038 = vmatpush.bf16.msra.mxu0 %v818
        %1039 = vmatpush.bf16.msra.mxu0 %v814
        %1040 = vmatpush.bf16.msra.mxu0 %v810
        %1041 = vmatpush.bf16.msra.mxu0 %v806
        %1042 = vmatpush.bf16.msra.mxu0 %v802
        %1043 = vmatpush.bf16.msra.mxu0 %v798
        %1044 = vmatpush.bf16.msra.mxu0 %v794
        %1045 = vmatmul.bf16.gmra.mxu0 %v363
        %v1046 = vpop.f32.mrf.mxu0
        %v1047 = vadd.f32 %v1028, %v1046
        %v1048 = vpop.f32.mrf.mxu0
        %v1049 = vadd.f32 %v1030, %v1048
        %1050 = vmatmul.bf16.gmra.mxu0 %v367
        %v1051 = vpop.f32.mrf.mxu0
        %v1052 = vadd.f32 %v1033, %v1051
        %v1053 = vpop.f32.mrf.mxu0
        %v1054 = vadd.f32 %v1035, %v1053
        %1055 = vdwg.mxu0
        %1056 = vmatpush.bf16.msra.mxu0 %v854
        %1057 = vmatpush.bf16.msra.mxu0 %v850
        %1058 = vmatpush.bf16.msra.mxu0 %v846
        %1059 = vmatpush.bf16.msra.mxu0 %v842
        %1060 = vmatpush.bf16.msra.mxu0 %v838
        %1061 = vmatpush.bf16.msra.mxu0 %v834
        %1062 = vmatpush.bf16.msra.mxu0 %v830
        %1063 = vmatpush.bf16.msra.mxu0 %v826
        %1064 = vmatmul.bf16.gmra.mxu0 %v364
        %v1065 = vpop.f32.mrf.mxu0
        %v1066 = vadd.f32 %v1047, %v1065
        %v1067 = vpop.f32.mrf.mxu0
        %v1068 = vadd.f32 %v1049, %v1067
        %1069 = vmatmul.bf16.gmra.mxu0 %v368
        %v1070 = vpop.f32.mrf.mxu0
        %v1071 = vadd.f32 %v1052, %v1070
        %v1072 = vpop.f32.mrf.mxu0
        %v1073 = vadd.f32 %v1054, %v1072
        %1074 = vdwg.mxu0
        %1075 = vmatpush.bf16.msra.mxu0 %v886
        %1076 = vmatpush.bf16.msra.mxu0 %v882
        %1077 = vmatpush.bf16.msra.mxu0 %v878
        %1078 = vmatpush.bf16.msra.mxu0 %v874
        %1079 = vmatpush.bf16.msra.mxu0 %v870
        %1080 = vmatpush.bf16.msra.mxu0 %v866
        %1081 = vmatpush.bf16.msra.mxu0 %v862
        %1082 = vmatpush.bf16.msra.mxu0 %v858
        %1083 = vmatmul.bf16.gmra.mxu0 %v365
        %v1084 = vpop.f32.mrf.mxu0
        %v1085 = vadd.f32 %v1066, %v1084
        %v1086 = vpop.f32.mrf.mxu0
        %v1087 = vadd.f32 %v1068, %v1086
        %1088 = vmatmul.bf16.gmra.mxu0 %v369
        %v1089 = vpop.f32.mrf.mxu0
        %v1090 = vadd.f32 %v1071, %v1089
        %v1091 = vpop.f32.mrf.mxu0
        %v1092 = vadd.f32 %v1073, %v1091
        %1093 = vdwg.mxu0
        %1094 = vmatpush.bf16.msra.mxu0 %v791
        %1095 = vmatpush.bf16.msra.mxu0 %v787
        %1096 = vmatpush.bf16.msra.mxu0 %v783
        %1097 = vmatpush.bf16.msra.mxu0 %v779
        %1098 = vmatpush.bf16.msra.mxu0 %v775
        %1099 = vmatpush.bf16.msra.mxu0 %v771
        %1100 = vmatpush.bf16.msra.mxu0 %v767
        %1101 = vmatpush.bf16.msra.mxu0 %v763
        %1102 = vmatmul.bf16.gmra.mxu0 %v362
        %v1103 = vpop.f32.mrf.mxu0
        %v1104 = vadd.f32 0.0, %v1103
        %v1105 = vpop.f32.mrf.mxu0
        %v1106 = vadd.f32 0.0, %v1105
        %1107 = vmatmul.bf16.gmra.mxu0 %v366
        %v1108 = vpop.f32.mrf.mxu0
        %v1109 = vadd.f32 0.0, %v1108
        %v1110 = vpop.f32.mrf.mxu0
        %v1111 = vadd.f32 0.0, %v1110
        %1112 = vdwg.mxu0
        %1113 = vmatpush.bf16.msra.mxu0 %v823
        %1114 = vmatpush.bf16.msra.mxu0 %v819
        %1115 = vmatpush.bf16.msra.mxu0 %v815
        %1116 = vmatpush.bf16.msra.mxu0 %v811
        %1117 = vmatpush.bf16.msra.mxu0 %v807
        %1118 = vmatpush.bf16.msra.mxu0 %v803
        %1119 = vmatpush.bf16.msra.mxu0 %v799
        %1120 = vmatpush.bf16.msra.mxu0 %v795
        %1121 = vmatmul.bf16.gmra.mxu0 %v363
        %v1122 = vpop.f32.mrf.mxu0
        %v1123 = vadd.f32 %v1104, %v1122
        %v1124 = vpop.f32.mrf.mxu0
        %v1125 = vadd.f32 %v1106, %v1124
        %1126 = vmatmul.bf16.gmra.mxu0 %v367
        %v1127 = vpop.f32.mrf.mxu0
        %v1128 = vadd.f32 %v1109, %v1127
        %v1129 = vpop.f32.mrf.mxu0
        %v1130 = vadd.f32 %v1111, %v1129
        %1131 = vdwg.mxu0
        %1132 = vmatpush.bf16.msra.mxu0 %v855
        %1133 = vmatpush.bf16.msra.mxu0 %v851
        %1134 = vmatpush.bf16.msra.mxu0 %v847
        %1135 = vmatpush.bf16.msra.mxu0 %v843
        %1136 = vmatpush.bf16.msra.mxu0 %v839
        %1137 = vmatpush.bf16.msra.mxu0 %v835
        %1138 = vmatpush.bf16.msra.mxu0 %v831
        %1139 = vmatpush.bf16.msra.mxu0 %v827
        %1140 = vmatmul.bf16.gmra.mxu0 %v364
        %v1141 = vpop.f32.mrf.mxu0
        %v1142 = vadd.f32 %v1123, %v1141
        %v1143 = vpop.f32.mrf.mxu0
        %v1144 = vadd.f32 %v1125, %v1143
        %1145 = vmatmul.bf16.gmra.mxu0 %v368
        %v1146 = vpop.f32.mrf.mxu0
        %v1147 = vadd.f32 %v1128, %v1146
        %v1148 = vpop.f32.mrf.mxu0
        %v1149 = vadd.f32 %v1130, %v1148
        %1150 = vdwg.mxu0
        %1151 = vmatpush.bf16.msra.mxu0 %v887
        %1152 = vmatpush.bf16.msra.mxu0 %v883
        %1153 = vmatpush.bf16.msra.mxu0 %v879
        %1154 = vmatpush.bf16.msra.mxu0 %v875
        %1155 = vmatpush.bf16.msra.mxu0 %v871
        %1156 = vmatpush.bf16.msra.mxu0 %v867
        %1157 = vmatpush.bf16.msra.mxu0 %v863
        %1158 = vmatpush.bf16.msra.mxu0 %v859
        %1159 = vmatmul.bf16.gmra.mxu0 %v365
        %v1160 = vpop.f32.mrf.mxu0
        %v1161 = vadd.f32 %v1142, %v1160
        %v1162 = vpop.f32.mrf.mxu0
        %v1163 = vadd.f32 %v1144, %v1162
        %1164 = vmatmul.bf16.gmra.mxu0 %v369
        %v1165 = vpop.f32.mrf.mxu0
        %v1166 = vadd.f32 %v1147, %v1165
        %v1167 = vpop.f32.mrf.mxu0
        %v1168 = vadd.f32 %v1149, %v1167
        %1169 = vdwg.mxu0
        %1170 = vmatpush.bf16.msra.mxu0 %v792
        %1171 = vmatpush.bf16.msra.mxu0 %v788
        %1172 = vmatpush.bf16.msra.mxu0 %v784
        %1173 = vmatpush.bf16.msra.mxu0 %v780
        %1174 = vmatpush.bf16.msra.mxu0 %v776
        %1175 = vmatpush.bf16.msra.mxu0 %v772
        %1176 = vmatpush.bf16.msra.mxu0 %v768
        %1177 = vmatpush.bf16.msra.mxu0 %v764
        %1178 = vmatmul.bf16.gmra.mxu0 %v362
        %v1179 = vpop.f32.mrf.mxu0
        %v1180 = vadd.f32 0.0, %v1179
        %v1181 = vpop.f32.mrf.mxu0
        %v1182 = vadd.f32 0.0, %v1181
        %1183 = vmatmul.bf16.gmra.mxu0 %v366
        %v1184 = vpop.f32.mrf.mxu0
        %v1185 = vadd.f32 0.0, %v1184
        %v1186 = vpop.f32.mrf.mxu0
        %v1187 = vadd.f32 0.0, %v1186
        %1188 = vdwg.mxu0
        %1189 = vmatpush.bf16.msra.mxu0 %v824
        %1190 = vmatpush.bf16.msra.mxu0 %v820
        %1191 = vmatpush.bf16.msra.mxu0 %v816
        %1192 = vmatpush.bf16.msra.mxu0 %v812
        %1193 = vmatpush.bf16.msra.mxu0 %v808
        %1194 = vmatpush.bf16.msra.mxu0 %v804
        %1195 = vmatpush.bf16.msra.mxu0 %v800
        %1196 = vmatpush.bf16.msra.mxu0 %v796
        %1197 = vmatmul.bf16.gmra.mxu0 %v363
        %v1198 = vpop.f32.mrf.mxu0
        %v1199 = vadd.f32 %v1180, %v1198
        %v1200 = vpop.f32.mrf.mxu0
        %v1201 = vadd.f32 %v1182, %v1200
        %1202 = vmatmul.bf16.gmra.mxu0 %v367
        %v1203 = vpop.f32.mrf.mxu0
        %v1204 = vadd.f32 %v1185, %v1203
        %v1205 = vpop.f32.mrf.mxu0
        %v1206 = vadd.f32 %v1187, %v1205
        %1207 = vdwg.mxu0
        %1208 = vmatpush.bf16.msra.mxu0 %v856
        %1209 = vmatpush.bf16.msra.mxu0 %v852
        %1210 = vmatpush.bf16.msra.mxu0 %v848
        %1211 = vmatpush.bf16.msra.mxu0 %v844
        %1212 = vmatpush.bf16.msra.mxu0 %v840
        %1213 = vmatpush.bf16.msra.mxu0 %v836
        %1214 = vmatpush.bf16.msra.mxu0 %v832
        %1215 = vmatpush.bf16.msra.mxu0 %v828
        %1216 = vmatmul.bf16.gmra.mxu0 %v364
        %v1217 = vpop.f32.mrf.mxu0
        %v1218 = vadd.f32 %v1199, %v1217
        %v1219 = vpop.f32.mrf.mxu0
        %v1220 = vadd.f32 %v1201, %v1219
        %1221 = vmatmul.bf16.gmra.mxu0 %v368
        %v1222 = vpop.f32.mrf.mxu0
        %v1223 = vadd.f32 %v1204, %v1222
        %v1224 = vpop.f32.mrf.mxu0
        %v1225 = vadd.f32 %v1206, %v1224
        %1226 = vdwg.mxu0
        %1227 = vmatpush.bf16.msra.mxu0 %v888
        %1228 = vmatpush.bf16.msra.mxu0 %v884
        %1229 = vmatpush.bf16.msra.mxu0 %v880
        %1230 = vmatpush.bf16.msra.mxu0 %v876
        %1231 = vmatpush.bf16.msra.mxu0 %v872
        %1232 = vmatpush.bf16.msra.mxu0 %v868
        %1233 = vmatpush.bf16.msra.mxu0 %v864
        %1234 = vmatpush.bf16.msra.mxu0 %v860
        %1235 = vmatmul.bf16.gmra.mxu0 %v365
        %v1236 = vpop.f32.mrf.mxu0
        %v1237 = vadd.f32 %v1218, %v1236
        %v1238 = vpop.f32.mrf.mxu0
        %v1239 = vadd.f32 %v1220, %v1238
        %1240 = vmatmul.bf16.gmra.mxu0 %v369
        %v1241 = vpop.f32.mrf.mxu0
        %v1242 = vadd.f32 %v1223, %v1241
        %v1243 = vpop.f32.mrf.mxu0
        %v1244 = vadd.f32 %v1225, %v1243
        %1245 = vdwg.mxu0
        %1246 = vmatpush.bf16.msra.mxu0 %v793
        %1247 = vmatpush.bf16.msra.mxu0 %v789
        %1248 = vmatpush.bf16.msra.mxu0 %v785
        %1249 = vmatpush.bf16.msra.mxu0 %v781
        %1250 = vmatpush.bf16.msra.mxu0 %v777
        %1251 = vmatpush.bf16.msra.mxu0 %v773
        %1252 = vmatpush.bf16.msra.mxu0 %v769
        %1253 = vmatpush.bf16.msra.mxu0 %v765
        %1254 = vmatmul.bf16.gmra.mxu0 %v362
        %v1255 = vpop.f32.mrf.mxu0
        %v1256 = vadd.f32 0.0, %v1255
        %v1257 = vpop.f32.mrf.mxu0
        %v1258 = vadd.f32 0.0, %v1257
        %1259 = vmatmul.bf16.gmra.mxu0 %v366
        %v1260 = vpop.f32.mrf.mxu0
        %v1261 = vadd.f32 0.0, %v1260
        %v1262 = vpop.f32.mrf.mxu0
        %v1263 = vadd.f32 0.0, %v1262
        %1264 = vdwg.mxu0
        %1265 = vmatpush.bf16.msra.mxu0 %v825
        %1266 = vmatpush.bf16.msra.mxu0 %v821
        %1267 = vmatpush.bf16.msra.mxu0 %v817
        %1268 = vmatpush.bf16.msra.mxu0 %v813
        %1269 = vmatpush.bf16.msra.mxu0 %v809
        %1270 = vmatpush.bf16.msra.mxu0 %v805
        %1271 = vmatpush.bf16.msra.mxu0 %v801
        %1272 = vmatpush.bf16.msra.mxu0 %v797
        %1273 = vmatmul.bf16.gmra.mxu0 %v363
        %v1274 = vpop.f32.mrf.mxu0
        %v1275 = vadd.f32 %v1256, %v1274
        %v1276 = vpop.f32.mrf.mxu0
        %v1277 = vadd.f32 %v1258, %v1276
        %1278 = vmatmul.bf16.gmra.mxu0 %v367
        %v1279 = vpop.f32.mrf.mxu0
        %v1280 = vadd.f32 %v1261, %v1279
        %v1281 = vpop.f32.mrf.mxu0
        %v1282 = vadd.f32 %v1263, %v1281
        %1283 = vdwg.mxu0
        %1284 = vmatpush.bf16.msra.mxu0 %v857
        %1285 = vmatpush.bf16.msra.mxu0 %v853
        %1286 = vmatpush.bf16.msra.mxu0 %v849
        %1287 = vmatpush.bf16.msra.mxu0 %v845
        %1288 = vmatpush.bf16.msra.mxu0 %v841
        %1289 = vmatpush.bf16.msra.mxu0 %v837
        %1290 = vmatpush.bf16.msra.mxu0 %v833
        %1291 = vmatpush.bf16.msra.mxu0 %v829
        %1292 = vmatmul.bf16.gmra.mxu0 %v364
        %v1293 = vpop.f32.mrf.mxu0
        %v1294 = vadd.f32 %v1275, %v1293
        %v1295 = vpop.f32.mrf.mxu0
        %v1296 = vadd.f32 %v1277, %v1295
        %1297 = vmatmul.bf16.gmra.mxu0 %v368
        %v1298 = vpop.f32.mrf.mxu0
        %v1299 = vadd.f32 %v1280, %v1298
        %v1300 = vpop.f32.mrf.mxu0
        %v1301 = vadd.f32 %v1282, %v1300
        %1302 = vdwg.mxu0
        %1303 = vmatpush.bf16.msra.mxu0 %v889
        %1304 = vmatpush.bf16.msra.mxu0 %v885
        %1305 = vmatpush.bf16.msra.mxu0 %v881
        %1306 = vmatpush.bf16.msra.mxu0 %v877
        %1307 = vmatpush.bf16.msra.mxu0 %v873
        %1308 = vmatpush.bf16.msra.mxu0 %v869
        %1309 = vmatpush.bf16.msra.mxu0 %v865
        %1310 = vmatpush.bf16.msra.mxu0 %v861
        %1311 = vmatmul.bf16.gmra.mxu0 %v365
        %v1312 = vpop.f32.mrf.mxu0
        %v1313 = vadd.f32 %v1294, %v1312
        %v1314 = vpop.f32.mrf.mxu0
        %v1315 = vadd.f32 %v1296, %v1314
        %1316 = vmatmul.bf16.gmra.mxu0 %v369
        %v1317 = vpop.f32.mrf.mxu0
        %v1318 = vadd.f32 %v1299, %v1317
        %v1319 = vpop.f32.mrf.mxu0
        %v1320 = vadd.f32 %v1301, %v1319
        %1321 = vdwg.mxu0
        %1322 = vst [vmem:[%s191] sm:$0xff] %v1085
        %1323 = vst [vmem:[%s191 + $0x8] sm:$0xff] %v1161
        %1324 = vst [vmem:[%s191 + $0x10] sm:$0xff] %v1237
        %1325 = vst [vmem:[%s191 + $0x18] sm:$0xff] %v1313
        %1326 = vst [vmem:[%s191 + $0x20] sm:$0xff] %v1087
        %1327 = vst [vmem:[%s191 + $0x28] sm:$0xff] %v1163
        %1328 = vst [vmem:[%s191 + $0x30] sm:$0xff] %v1239
        %1329 = vst [vmem:[%s191 + $0x38] sm:$0xff] %v1315
        %1330 = vst [vmem:[%s191 + $0x40] sm:$0xff] %v1090
        %1331 = vst [vmem:[%s191 + $0x48] sm:$0xff] %v1166
        %1332 = vst [vmem:[%s191 + $0x50] sm:$0xff] %v1242
        %1333 = vst [vmem:[%s191 + $0x58] sm:$0xff] %v1318
        %1334 = vst [vmem:[%s191 + $0x60] sm:$0xff] %v1092
        %1335 = vst [vmem:[%s191 + $0x68] sm:$0xff] %v1168
        %1336 = vst [vmem:[%s191 + $0x70] sm:$0xff] %v1244
        %1337 = vst [vmem:[%s191 + $0x78] sm:$0xff] %v1320
        %s1338 = sand.u32 %s90, 1
        %s1339 = sand.u32 %s90, 1
        %s1340 = smul.addr %s1339, 128
        %s1341 = scalar_lea.vmem [#allocation4], %s1340
        // Predicated region
        $region33: #{generator_forward.12} parent=27 // pred_check
          %p1342 = pneg %p100
        $region34: #{generator_forward.12} parent=27 // pred_check_branch
          %1344 = sbr.rel (%p1342) target = $region36
        $region35: #{generator_forward.12} parent=27 // pred_region
          %s1345 = smul.u32 4, %s20
          %s1346 = smul.u32 4, %s21
          %s1347 = smul.addr %s1345, 32
          %s1348 = sadd.s32 %s1346, %s1347
          %s1349 = smul.addr %s1348, 8
          %s1350 = scalar_lea.vmem %s2, %s1349
          // Predicated region
          $region37: #{generator_forward.12} parent=35 // pred_check
            _
          $region38: #{generator_forward.12} parent=35 // pred_check_branch
            %1352 = sbr.rel (0) target = $region40
          $region39: #{generator_forward.12} parent=35 // pred_region
            // Predicated region
            $region41: #{generator_forward.12} parent=39 // pred_check
              _
            $region42: #{generator_forward.12} parent=39 // pred_check_branch
              %1354 = sbr.rel (0) target = $region44
            $region43: #{generator_forward.12} parent=39 // pred_region
              loop: start=0, step=1, limit=1
              $region45: #{generator_forward.12} parent=43 // loop_pre_header
                _
              $region46: #{generator_forward.12} parent=43 // loop_header
                %s1356 = sphi 0, %s1360
                %p1357 = scmp.ge.s32.totalorder %s1356, 1
                %s1361 = sphi %s1341, %s1341
                %s1362 = sphi %s1350, %s1350
              $region47: #{generator_forward.12} parent=43 // loop_header_branch
                %1359 = sbr.rel (%p1357) target = $region51
              $region48: #{generator_forward.12} parent=43 // loop_body
                %v1363 = vld [vmem:[%s1361] sm:$0xff]
                %1364 = vst [vmem:[%s1362] sm:$0xff] %v1363
                %v1365 = vld [vmem:[%s1361 + $0x8] sm:$0xff]
                %1366 = vst [vmem:[%s1362 + $0x8] sm:$0xff] %v1365
                %v1367 = vld [vmem:[%s1361 + $0x10] sm:$0xff]
                %1368 = vst [vmem:[%s1362 + $0x10] sm:$0xff] %v1367
                %v1369 = vld [vmem:[%s1361 + $0x18] sm:$0xff]
                %1370 = vst [vmem:[%s1362 + $0x18] sm:$0xff] %v1369
                %v1371 = vld [vmem:[%s1361 + $0x20] sm:$0xff]
                %1372 = vst [vmem:[%s1362 + $0x100] sm:$0xff] %v1371
                %v1373 = vld [vmem:[%s1361 + $0x28] sm:$0xff]
                %1374 = vst [vmem:[%s1362 + $0x108] sm:$0xff] %v1373
                %v1375 = vld [vmem:[%s1361 + $0x30] sm:$0xff]
                %1376 = vst [vmem:[%s1362 + $0x110] sm:$0xff] %v1375
                %v1377 = vld [vmem:[%s1361 + $0x38] sm:$0xff]
                %1378 = vst [vmem:[%s1362 + $0x118] sm:$0xff] %v1377
                %v1379 = vld [vmem:[%s1361 + $0x40] sm:$0xff]
                %1380 = vst [vmem:[%s1362 + $0x200] sm:$0xff] %v1379
                %v1381 = vld [vmem:[%s1361 + $0x48] sm:$0xff]
                %1382 = vst [vmem:[%s1362 + $0x208] sm:$0xff] %v1381
                %v1383 = vld [vmem:[%s1361 + $0x50] sm:$0xff]
                %1384 = vst [vmem:[%s1362 + $0x210] sm:$0xff] %v1383
                %v1385 = vld [vmem:[%s1361 + $0x58] sm:$0xff]
                %1386 = vst [vmem:[%s1362 + $0x218] sm:$0xff] %v1385
                %v1387 = vld [vmem:[%s1361 + $0x60] sm:$0xff]
                %1388 = vst [vmem:[%s1362 + $0x300] sm:$0xff] %v1387
                %v1389 = vld [vmem:[%s1361 + $0x68] sm:$0xff]
                %1390 = vst [vmem:[%s1362 + $0x308] sm:$0xff] %v1389
                %v1391 = vld [vmem:[%s1361 + $0x70] sm:$0xff]
                %1392 = vst [vmem:[%s1362 + $0x310] sm:$0xff] %v1391
                %v1393 = vld [vmem:[%s1361 + $0x78] sm:$0xff]
                %1394 = vst [vmem:[%s1362 + $0x318] sm:$0xff] %v1393
              $region49: #{generator_forward.12} parent=43 // loop_footer
                %s1360 = sadd.s32 1, %s1356
              $region50: #{generator_forward.12} parent=43 // loop_footer_branch
                %1355 = sbr.rel target = $region46
              $region51: #{generator_forward.12} parent=43 // loop_exit
                _
            $region44: #{generator_forward.12} parent=39 // pred_fallthru
              _
            // Predicated region
            $region52: #{generator_forward.12} parent=39 // pred_check
              _
            $region53: #{generator_forward.12} parent=39 // pred_check_branch
              %1396 = sbr.rel target = $region55
            $region54: #{generator_forward.12} parent=39 // pred_region
              _
            $region55: #{generator_forward.12} parent=39 // pred_fallthru
              _
          $region40: #{generator_forward.12} parent=35 // pred_fallthru
            _
          %1397 = vnop
        $region36: #{generator_forward.12} parent=27 // pred_fallthru
          _
      $region28: #{generator_forward.12} parent=5 // pred_fallthru
        _
      %p1398 = scmp.le.s32.totalorder 2, %s11
      // Predicated region
      $region56: #{generator_forward.12} parent=5 // pred_check
        %p1399 = pneg %p1398
      $region57: #{generator_forward.12} parent=5 // pred_check_branch
        %1401 = sbr.rel (%p1399) target = $region59
      $region58: #{generator_forward.12} parent=5 // pred_region
        %s1402 = ssub.s32 %s11, 2
        // Predicated region
        $region60: #{generator_forward.12} parent=58 // pred_check
          %p1403 = pneg %p106
        $region61: #{generator_forward.12} parent=58 // pred_check_branch
          %1405 = sbr.rel (%p1403) target = $region63
        $region62: #{generator_forward.12} parent=58 // pred_region
          %s1406 = sand.u32 %s91, 1
          %s1407 = sand.u32 %s91, 1
          %s1408 = smul.addr %s1407, 128
          %s1409 = scalar_lea.vmem [#allocation4], %s1408
        $region63: #{generator_forward.12} parent=58 // pred_fallthru
          _
      $region59: #{generator_forward.12} parent=5 // pred_fallthru
        _
    $region6: #{generator_forward.12} parent=1 // loop_footer
      %s15 = sadd.s32 1, %s11
    $region7: #{generator_forward.12} parent=1 // loop_footer_branch
      %10 = sbr.rel target = $region3
    $region8: #{generator_forward.12} parent=1 // loop_exit
      _
    %1410 = vsyncpa [#allocation3], 1
    %s1411 = scalar_lea.sflag [#allocation3], 1
    %1412 = vsyncpa %s1411, 1

// kernel: generator_forward.13
$region0: #{generator_forward.13}
  #allocation0 [shape = 'u32[]', space=smem, size = 0x4, offset = 0x4, fixed_abs, tag = 'smem constant byte address 0x4 - core index']
  #allocation1 [shape = 'u32[72,128]{1,0:T(1,128)}', space=vmem, size = 0x9000, scoped, tag = 'internal scratch']
  %s0 = inlined_call_operand.vmem [shape: f32[128,256], index: 0, kind: input, shape index: {}]
  %s1 = inlined_call_operand.vmem [shape: bf16[128,256], index: 1, kind: output, shape index: {}]
  %s2 = sld [smem:[#allocation0]]
  $region14: #{generator_forward.13} parent=0
    _
  %s4 = ssub.s32 1, %s2
  %s5 = scalar_select 0, %s4, %s2
  // Predicated region
  $region2: #{generator_forward.13} parent=0 // pred_check
    _
  $region3: #{generator_forward.13} parent=0 // pred_check_branch
    %7 = sbr.rel (0) target = $region5
  $region4: #{generator_forward.13} parent=0 // pred_region
    _
  $region5: #{generator_forward.13} parent=0 // pred_fallthru
    _
  %v8 = vld [vmem:[%s0] sm:$0xff]
  %v9 = vld [vmem:[%s0 + $0x8] sm:$0xff]
  %v10 = vld [vmem:[%s0 + $0x10] sm:$0xff]
  %v11 = vld [vmem:[%s0 + $0x18] sm:$0xff]
  %v12 = vld [vmem:[%s0 + $0x20] sm:$0xff]
  %v13 = vld [vmem:[%s0 + $0x28] sm:$0xff]
  %v14 = vld [vmem:[%s0 + $0x30] sm:$0xff]
  %v15 = vld [vmem:[%s0 + $0x38] sm:$0xff]
  %v16 = vld [vmem:[%s0 + $0x40] sm:$0xff]
  %v17 = vld [vmem:[%s0 + $0x48] sm:$0xff]
  %v18 = vld [vmem:[%s0 + $0x50] sm:$0xff]
  %v19 = vld [vmem:[%s0 + $0x58] sm:$0xff]
  %v20 = vld [vmem:[%s0 + $0x60] sm:$0xff]
  %v21 = vld [vmem:[%s0 + $0x68] sm:$0xff]
  %v22 = vld [vmem:[%s0 + $0x70] sm:$0xff]
  %v23 = vld [vmem:[%s0 + $0x78] sm:$0xff]
  %v24 = vld [vmem:[%s0 + $0x80] sm:$0xff]
  %v25 = vld [vmem:[%s0 + $0x88] sm:$0xff]
  %v26 = vld [vmem:[%s0 + $0x90] sm:$0xff]
  %v27 = vld [vmem:[%s0 + $0x98] sm:$0xff]
  %v28 = vld [vmem:[%s0 + $0xa0] sm:$0xff]
  %v29 = vld [vmem:[%s0 + $0xa8] sm:$0xff]
  %v30 = vld [vmem:[%s0 + $0xb0] sm:$0xff]
  %v31 = vld [vmem:[%s0 + $0xb8] sm:$0xff]
  %v32 = vld [vmem:[%s0 + $0xc0] sm:$0xff]
  %v33 = vld [vmem:[%s0 + $0xc8] sm:$0xff]
  %v34 = vld [vmem:[%s0 + $0xd0] sm:$0xff]
  %v35 = vld [vmem:[%s0 + $0xd8] sm:$0xff]
  %v36 = vld [vmem:[%s0 + $0xe0] sm:$0xff]
  %v37 = vld [vmem:[%s0 + $0xe8] sm:$0xff]
  %v38 = vld [vmem:[%s0 + $0xf0] sm:$0xff]
  %v39 = vld [vmem:[%s0 + $0xf8] sm:$0xff]
  %v40 = vadd.f32 %v8, %v10
  %v41 = vadd.f32 %v40, %v12
  %v42 = vadd.f32 %v41, %v14
  %v43 = vadd.f32 %v42, %v16
  %v44 = vadd.f32 %v43, %v18
  %v45 = vadd.f32 %v44, %v20
  %v46 = vadd.f32 %v45, %v22
  %v47 = vadd.f32 %v46, %v24
  %v48 = vadd.f32 %v47, %v26
  %v49 = vadd.f32 %v48, %v28
  %v50 = vadd.f32 %v49, %v30
  %v51 = vadd.f32 %v50, %v32
  %v52 = vadd.f32 %v51, %v34
  %v53 = vadd.f32 %v52, %v36
  %v54 = vadd.f32 %v53, %v38
  %v55 = vrot.slane %v54, 4
  %v56 = vadd.f32 %v54, %v55
  %v57 = vrot.slane %v56, 2
  %v58 = vadd.f32 %v56, %v57
  %v59 = vrot.slane %v58, 1
  %v60 = vadd.f32 %v58, %v59
  %v61 = vadd.f32 %v9, %v11
  %v62 = vadd.f32 %v61, %v13
  %v63 = vadd.f32 %v62, %v15
  %v64 = vadd.f32 %v63, %v17
  %v65 = vadd.f32 %v64, %v19
  %v66 = vadd.f32 %v65, %v21
  %v67 = vadd.f32 %v66, %v23
  %v68 = vadd.f32 %v67, %v25
  %v69 = vadd.f32 %v68, %v27
  %v70 = vadd.f32 %v69, %v29
  %v71 = vadd.f32 %v70, %v31
  %v72 = vadd.f32 %v71, %v33
  %v73 = vadd.f32 %v72, %v35
  %v74 = vadd.f32 %v73, %v37
  %v75 = vadd.f32 %v74, %v39
  %v76 = vrot.slane %v75, 4
  %v77 = vadd.f32 %v75, %v76
  %v78 = vrot.slane %v77, 2
  %v79 = vadd.f32 %v77, %v78
  %v80 = vrot.slane %v79, 1
  %v81 = vadd.f32 %v79, %v80
  %v82 = vrcp.pop 128.0
  %v83 = vmul.f32 128.0, %v82
  %v84 = vsub.f32 1.0, %v83
  %v85 = vmul.f32 %v82, %v84
  %v86 = vadd.f32 %v82, %v85
  %vm87 = vweird.f32 %v82
  %v88 = vsel %vm87, %v82, %v86
  %v89 = vmul.f32 %v60, %v88
  %v90 = vmul.f32 %v81, %v88
  %v91 = vsub.f32 %v8, %v89
  %v92 = vsub.f32 %v9, %v90
  %v93 = vsub.f32 %v10, %v89
  %v94 = vsub.f32 %v11, %v90
  %v95 = vsub.f32 %v12, %v89
  %v96 = vsub.f32 %v13, %v90
  %v97 = vsub.f32 %v14, %v89
  %v98 = vsub.f32 %v15, %v90
  %v99 = vsub.f32 %v16, %v89
  %v100 = vsub.f32 %v17, %v90
  %v101 = vsub.f32 %v18, %v89
  %v102 = vsub.f32 %v19, %v90
  %v103 = vsub.f32 %v20, %v89
  %v104 = vsub.f32 %v21, %v90
  %v105 = vsub.f32 %v22, %v89
  %v106 = vsub.f32 %v23, %v90
  %v107 = vsub.f32 %v24, %v89
  %v108 = vsub.f32 %v25, %v90
  %v109 = vsub.f32 %v26, %v89
  %v110 = vsub.f32 %v27, %v90
  %v111 = vsub.f32 %v28, %v89
  %v112 = vsub.f32 %v29, %v90
  %v113 = vsub.f32 %v30, %v89
  %v114 = vsub.f32 %v31, %v90
  %v115 = vsub.f32 %v32, %v89
  %v116 = vsub.f32 %v33, %v90
  %v117 = vsub.f32 %v34, %v89
  %v118 = vsub.f32 %v35, %v90
  %v119 = vsub.f32 %v36, %v89
  %v120 = vsub.f32 %v37, %v90
  %v121 = vsub.f32 %v38, %v89
  %v122 = vsub.f32 %v39, %v90
  %v123 = vmul.f32 %v91, %v91
  %v124 = vmul.f32 %v92, %v92
  %v125 = vmul.f32 %v93, %v93
  %v126 = vmul.f32 %v94, %v94
  %v127 = vmul.f32 %v95, %v95
  %v128 = vmul.f32 %v96, %v96
  %v129 = vmul.f32 %v97, %v97
  %v130 = vmul.f32 %v98, %v98
  %v131 = vmul.f32 %v99, %v99
  %v132 = vmul.f32 %v100, %v100
  %v133 = vmul.f32 %v101, %v101
  %v134 = vmul.f32 %v102, %v102
  %v135 = vmul.f32 %v103, %v103
  %v136 = vmul.f32 %v104, %v104
  %v137 = vmul.f32 %v105, %v105
  %v138 = vmul.f32 %v106, %v106
  %v139 = vmul.f32 %v107, %v107
  %v140 = vmul.f32 %v108, %v108
  %v141 = vmul.f32 %v109, %v109
  %v142 = vmul.f32 %v110, %v110
  %v143 = vmul.f32 %v111, %v111
  %v144 = vmul.f32 %v112, %v112
  %v145 = vmul.f32 %v113, %v113
  %v146 = vmul.f32 %v114, %v114
  %v147 = vmul.f32 %v115, %v115
  %v148 = vmul.f32 %v116, %v116
  %v149 = vmul.f32 %v117, %v117
  %v150 = vmul.f32 %v118, %v118
  %v151 = vmul.f32 %v119, %v119
  %v152 = vmul.f32 %v120, %v120
  %v153 = vmul.f32 %v121, %v121
  %v154 = vmul.f32 %v122, %v122
  %v155 = vadd.f32 %v123, %v125
  %v156 = vadd.f32 %v155, %v127
  %v157 = vadd.f32 %v156, %v129
  %v158 = vadd.f32 %v157, %v131
  %v159 = vadd.f32 %v158, %v133
  %v160 = vadd.f32 %v159, %v135
  %v161 = vadd.f32 %v160, %v137
  %v162 = vadd.f32 %v161, %v139
  %v163 = vadd.f32 %v162, %v141
  %v164 = vadd.f32 %v163, %v143
  %v165 = vadd.f32 %v164, %v145
  %v166 = vadd.f32 %v165, %v147
  %v167 = vadd.f32 %v166, %v149
  %v168 = vadd.f32 %v167, %v151
  %v169 = vadd.f32 %v168, %v153
  %v170 = vrot.slane %v169, 4
  %v171 = vadd.f32 %v169, %v170
  %v172 = vrot.slane %v171, 2
  %v173 = vadd.f32 %v171, %v172
  %v174 = vrot.slane %v173, 1
  %v175 = vadd.f32 %v173, %v174
  %v176 = vadd.f32 %v124, %v126
  %v177 = vadd.f32 %v176, %v128
  %v178 = vadd.f32 %v177, %v130
  %v179 = vadd.f32 %v178, %v132
  %v180 = vadd.f32 %v179, %v134
  %v181 = vadd.f32 %v180, %v136
  %v182 = vadd.f32 %v181, %v138
  %v183 = vadd.f32 %v182, %v140
  %v184 = vadd.f32 %v183, %v142
  %v185 = vadd.f32 %v184, %v144
  %v186 = vadd.f32 %v185, %v146
  %v187 = vadd.f32 %v186, %v148
  %v188 = vadd.f32 %v187, %v150
  %v189 = vadd.f32 %v188, %v152
  %v190 = vadd.f32 %v189, %v154
  %v191 = vrot.slane %v190, 4
  %v192 = vadd.f32 %v190, %v191
  %v193 = vrot.slane %v192, 2
  %v194 = vadd.f32 %v192, %v193
  %v195 = vrot.slane %v194, 1
  %v196 = vadd.f32 %v194, %v195
  %v197 = vmul.f32 %v175, %v88
  %v198 = vmul.f32 %v196, %v88
  %v199 = vadd.f32 %v197, 1e-05
  %v200 = vadd.f32 %v198, 1e-05
  %v201 = vrsqrt.pop %v199
  %v202 = vmul.f32 %v201, %v199
  %v203 = vmul.f32 %v202, %v201
  %v204 = vmul.f32 0.5, %v203
  %v205 = vsub.f32 1.5, %v204
  %v206 = vmul.f32 %v201, %v205
  %vm207 = vweird.f32 %v199
  %vm208 = vweird.f32 %v201
  %vm209 = vmor %vm207, %vm208
  %v210 = vsel %vm209, %v201, %v206
  %v211 = vrsqrt.pop %v200
  %v212 = vmul.f32 %v211, %v200
  %v213 = vmul.f32 %v212, %v211
  %v214 = vmul.f32 0.5, %v213
  %v215 = vsub.f32 1.5, %v214
  %v216 = vmul.f32 %v211, %v215
  %vm217 = vweird.f32 %v200
  %vm218 = vweird.f32 %v211
  %vm219 = vmor %vm217, %vm218
  %v220 = vsel %vm219, %v211, %v216
  %v221 = vmul.f32 %v91, %v210
  %v222 = vmul.f32 %v92, %v220
  %v223 = vmul.f32 %v93, %v210
  %v224 = vmul.f32 %v94, %v220
  %v225 = vmul.f32 %v95, %v210
  %v226 = vmul.f32 %v96, %v220
  %v227 = vmul.f32 %v97, %v210
  %v228 = vmul.f32 %v98, %v220
  %v229 = vmul.f32 %v99, %v210
  %v230 = vmul.f32 %v100, %v220
  %v231 = vmul.f32 %v101, %v210
  %v232 = vmul.f32 %v102, %v220
  %v233 = vmul.f32 %v103, %v210
  %v234 = vmul.f32 %v104, %v220
  %v235 = vmul.f32 %v105, %v210
  %v236 = vmul.f32 %v106, %v220
  %v237 = vmul.f32 %v107, %v210
  %v238 = vmul.f32 %v108, %v220
  %v239 = vmul.f32 %v109, %v210
  %v240 = vmul.f32 %v110, %v220
  %v241 = vmul.f32 %v111, %v210
  %v242 = vmul.f32 %v112, %v220
  %v243 = vmul.f32 %v113, %v210
  %v244 = vmul.f32 %v114, %v220
  %v245 = vmul.f32 %v115, %v210
  %v246 = vmul.f32 %v116, %v220
  %v247 = vmul.f32 %v117, %v210
  %v248 = vmul.f32 %v118, %v220
  %v249 = vmul.f32 %v119, %v210
  %v250 = vmul.f32 %v120, %v220
  %v251 = vmul.f32 %v121, %v210
  %v252 = vmul.f32 %v122, %v220
  %v253 = vmax.f32 %v221, 0.0
  %v254 = vmax.f32 %v222, 0.0
  %v255 = vmax.f32 %v223, 0.0
  %v256 = vmax.f32 %v224, 0.0
  %v257 = vmax.f32 %v225, 0.0
  %v258 = vmax.f32 %v226, 0.0
  %v259 = vmax.f32 %v227, 0.0
  %v260 = vmax.f32 %v228, 0.0
  %v261 = vmax.f32 %v229, 0.0
  %v262 = vmax.f32 %v230, 0.0
  %v263 = vmax.f32 %v231, 0.0
  %v264 = vmax.f32 %v232, 0.0
  %v265 = vmax.f32 %v233, 0.0
  %v266 = vmax.f32 %v234, 0.0
  %v267 = vmax.f32 %v235, 0.0
  %v268 = vmax.f32 %v236, 0.0
  %v269 = vmax.f32 %v237, 0.0
  %v270 = vmax.f32 %v238, 0.0
  %v271 = vmax.f32 %v239, 0.0
  %v272 = vmax.f32 %v240, 0.0
  %v273 = vmax.f32 %v241, 0.0
  %v274 = vmax.f32 %v242, 0.0
  %v275 = vmax.f32 %v243, 0.0
  %v276 = vmax.f32 %v244, 0.0
  %v277 = vmax.f32 %v245, 0.0
  %v278 = vmax.f32 %v246, 0.0
  %v279 = vmax.f32 %v247, 0.0
  %v280 = vmax.f32 %v248, 0.0
  %v281 = vmax.f32 %v249, 0.0
  %v282 = vmax.f32 %v250, 0.0
  %v283 = vmax.f32 %v251, 0.0
  %v284 = vmax.f32 %v252, 0.0
  %v285 = vpack.c.bf16 %v254, %v253
  %v286 = vpack.c.bf16 %v256, %v255
  %v287 = vpack.c.bf16 %v258, %v257
  %v288 = vpack.c.bf16 %v260, %v259
  %v289 = vpack.c.bf16 %v262, %v261
  %v290 = vpack.c.bf16 %v264, %v263
  %v291 = vpack.c.bf16 %v266, %v265
  %v292 = vpack.c.bf16 %v268, %v267
  %v293 = vpack.c.bf16 %v270, %v269
  %v294 = vpack.c.bf16 %v272, %v271
  %v295 = vpack.c.bf16 %v274, %v273
  %v296 = vpack.c.bf16 %v276, %v275
  %v297 = vpack.c.bf16 %v278, %v277
  %v298 = vpack.c.bf16 %v280, %v279
  %v299 = vpack.c.bf16 %v282, %v281
  %v300 = vpack.c.bf16 %v284, %v283
  %301 = vst [vmem:[%s1] sm:$0xff] %v285
  %302 = vst [vmem:[%s1 + $0x8] sm:$0xff] %v286
  %303 = vst [vmem:[%s1 + $0x10] sm:$0xff] %v287
  %304 = vst [vmem:[%s1 + $0x18] sm:$0xff] %v288
  %305 = vst [vmem:[%s1 + $0x20] sm:$0xff] %v289
  %306 = vst [vmem:[%s1 + $0x28] sm:$0xff] %v290
  %307 = vst [vmem:[%s1 + $0x30] sm:$0xff] %v291
  %308 = vst [vmem:[%s1 + $0x38] sm:$0xff] %v292
  %309 = vst [vmem:[%s1 + $0x40] sm:$0xff] %v293
  %310 = vst [vmem:[%s1 + $0x48] sm:$0xff] %v294
  %311 = vst [vmem:[%s1 + $0x50] sm:$0xff] %v295
  %312 = vst [vmem:[%s1 + $0x58] sm:$0xff] %v296
  %313 = vst [vmem:[%s1 + $0x60] sm:$0xff] %v297
  %314 = vst [vmem:[%s1 + $0x68] sm:$0xff] %v298
  %315 = vst [vmem:[%s1 + $0x70] sm:$0xff] %v299
  %316 = vst [vmem:[%s1 + $0x78] sm:$0xff] %v300
  // Predicated region
  $region6: #{generator_forward.13} parent=0 // pred_check
    _
  $region7: #{generator_forward.13} parent=0 // pred_check_branch
    %318 = sbr.rel (0) target = $region9
  $region8: #{generator_forward.13} parent=0 // pred_region
    _
  $region9: #{generator_forward.13} parent=0 // pred_fallthru
    _
  // Predicated region
  $region10: #{generator_forward.13} parent=0 // pred_check
    _
  $region11: #{generator_forward.13} parent=0 // pred_check_branch
    %320 = sbr.rel (0) target = $region13
  $region12: #{generator_forward.13} parent=0 // pred_region
    _
  $region13: #{generator_forward.13} parent=0 // pred_fallthru
    _

// kernel: generator_forward.14
$region0: #{generator_forward.14}
  #allocation0 [shape = 'u32[]', space=smem, size = 0x4, offset = 0x4, fixed_abs, tag = 'smem constant byte address 0x4 - core index']
  #allocation1 [shape = 'u32[72,128]{1,0:T(1,128)}', space=vmem, size = 0x9000, scoped, tag = 'internal scratch']
  %s0 = inlined_call_operand.vmem [shape: bf16[128,256], index: 0, kind: input, shape index: {}]
  %s1 = inlined_call_operand.vmem [shape: bf16[256,2048], index: 1, kind: input, shape index: {}]
  %s2 = inlined_call_operand.vmem [shape: f32[128,2048], index: 2, kind: output, shape index: {}]
  %s3 = sld [smem:[#allocation0]]
  $region83: #{generator_forward.14} parent=0
    _
  %s5 = ssub.s32 1, %s3
  %s6 = scalar_select 0, %s5, %s3
  $region1: #{generator_forward.14} parent=0
    #allocation2 [shape = 'u8[524288]{0}', space=vmem, size = 0x80000, scoped, tag = 'input window, operand 1']
    #allocation3 [shape = 'u8[524288]{0}', space=vmem, size = 0x80000, scoped, tag = 'output window, operand 0']
    loop: start=0, step=1, limit=6
    $region2: #{generator_forward.14} parent=1 // loop_pre_header
      _
    $region3: #{generator_forward.14} parent=1 // loop_header
      %s8 = sphi 0, %s12
      %p9 = scmp.ge.s32.totalorder %s8, 6
      %s15 = sphi 0, %s27
      %s16 = sphi 0, %s23
      %s17 = sphi 0, %s15
      %s18 = sphi 0, %s16
      %s19 = sphi 0, %s17
      %s20 = sphi 0, %s18
      %s30 = sphi 0, %s32
      %s33 = sphi 0, %s30
      %s34 = sphi 0, %s33
      %s50 = sphi 0, %s34
      %s56 = sphi 0, %s58
      %s59 = sphi 0, %s56
      %s60 = sphi 0, %s59
      %s76 = sphi 0, %s60
      %s84 = sphi 0, %s86
      %s87 = sphi 0, %s84
      %s88 = sphi 0, %s87
      %s104 = sphi 0, %s88
    $region4: #{generator_forward.14} parent=1 // loop_header_branch
      %11 = sbr.rel (%p9) target = $region8
    $region5: #{generator_forward.14} parent=1 // loop_body
      %s13 = ssub.s32 %s8, 1
      %s14 = ssub.s32 %s8, 2
      %s21 = sadd.s32 1, %s16
      %p22 = scmp.ge.s32.totalorder %s21, 4
      %s23 = scalar_select %p22, 0, %s21
      %s24 = sadd.s32 1, %s15
      %s25 = scalar_select %p22, %s24, %s15
      %p26 = scmp.ge.s32.totalorder %s25, 1
      %s27 = scalar_select %p26, 0, %s25
      %s28 = ssub.s32 %s15, %s27
      %p29 = scmp.eq.s32.totalorder %s28, 0
      %s31 = sadd.s32 %s30, 1
      %s32 = scalar_select %p29, %s30, %s31
      %p35 = pneg %p29
      %p36 = scmp.eq.s32.totalorder %s8, 3
      %p37 = por %p35, %p36
      %p38 = scmp.ne.s32.totalorder %s30, %s33
      %p39 = scmp.eq.s32.totalorder %s8, 0
      %p40 = por %p38, %p39
      %p41 = scmp.ne.s32.totalorder %s30, %s33
      %p42 = scmp.eq.s32.totalorder %s13, 3
      %p43 = por %p41, %p42
      %p44 = scmp.ne.s32.totalorder %s33, %s34
      %p45 = scmp.eq.s32.totalorder %s13, 0
      %p46 = por %p44, %p45
      %p47 = scmp.ne.s32.totalorder %s33, %s34
      %p48 = scmp.eq.s32.totalorder %s14, 3
      %p49 = por %p47, %p48
      %p51 = scmp.ne.s32.totalorder %s34, %s50
      %p52 = scmp.eq.s32.totalorder %s14, 0
      %p53 = por %p51, %p52
      %s54 = ssub.s32 %s16, %s23
      %p55 = scmp.eq.s32.totalorder %s54, 0
      %s57 = sadd.s32 %s56, 1
      %s58 = scalar_select %p55, %s56, %s57
      %p61 = pneg %p55
      %p62 = scmp.eq.s32.totalorder %s8, 3
      %p63 = por %p61, %p62
      %p64 = scmp.ne.s32.totalorder %s56, %s59
      %p65 = scmp.eq.s32.totalorder %s8, 0
      %p66 = por %p64, %p65
      %p67 = scmp.ne.s32.totalorder %s56, %s59
      %p68 = scmp.eq.s32.totalorder %s13, 3
      %p69 = por %p67, %p68
      %p70 = scmp.ne.s32.totalorder %s59, %s60
      %p71 = scmp.eq.s32.totalorder %s13, 0
      %p72 = por %p70, %p71
      %p73 = scmp.ne.s32.totalorder %s59, %s60
      %p74 = scmp.eq.s32.totalorder %s14, 3
      %p75 = por %p73, %p74
      %p77 = scmp.ne.s32.totalorder %s60, %s76
      %p78 = scmp.eq.s32.totalorder %s14, 0
      %p79 = por %p77, %p78
      %s80 = ssub.s32 %s15, %s27
      %s81 = ssub.s32 %s16, %s23
      %s82 = sor.u32 %s80, %s81
      %p83 = scmp.eq.s32.totalorder %s82, 0
      %s85 = sadd.s32 %s84, 1
      %s86 = scalar_select %p83, %s84, %s85
      %p89 = pneg %p83
      %p90 = scmp.eq.s32.totalorder %s8, 3
      %p91 = por %p89, %p90
      %p92 = scmp.ne.s32.totalorder %s84, %s87
      %p93 = scmp.eq.s32.totalorder %s8, 0
      %p94 = por %p92, %p93
      %p95 = scmp.ne.s32.totalorder %s84, %s87
      %p96 = scmp.eq.s32.totalorder %s13, 3
      %p97 = por %p95, %p96
      %p98 = scmp.ne.s32.totalorder %s87, %s88
      %p99 = scmp.eq.s32.totalorder %s13, 0
      %p100 = por %p98, %p99
      %p101 = scmp.ne.s32.totalorder %s87, %s88
      %p102 = scmp.eq.s32.totalorder %s14, 3
      %p103 = por %p101, %p102
      %p105 = scmp.ne.s32.totalorder %s88, %s104
      %p106 = scmp.eq.s32.totalorder %s14, 0
      %p107 = por %p105, %p106
      %p108 = scmp.le.s32.totalorder 1, %s8
      %p109 = scmp.lt.s32.totalorder %s8, 5
      %p110 = pnand %p108, %p109
      %p111 = pneg %p110
      // Predicated region
      $region9: #{generator_forward.14} parent=5 // pred_check
        _
      $region10: #{generator_forward.14} parent=5 // pred_check_branch
        %113 = sbr.rel (%p110) target = $region12
      $region11: #{generator_forward.14} parent=5 // pred_region
        %s114 = ssub.s32 %s8, 1
        // Predicated region
        $region13: #{generator_forward.14} parent=11 // pred_check
          %p115 = pneg %p46
        $region14: #{generator_forward.14} parent=11 // pred_check_branch
          %117 = sbr.rel (%p115) target = $region16
        $region15: #{generator_forward.14} parent=11 // pred_region
          %s118 = smul.u32 16, %s17
          %p119 = scmp.lt.s32.totalorder %s118, 15
          %s120 = scalar_select %p119, %s118, 15
          %s121 = smul.addr %s120, 2
          %s122 = smul.addr %s121, 4
          %s123 = scalar_lea.vmem %s0, %s122
          %s124 = smul.u32 16, %s17
        $region16: #{generator_forward.14} parent=11 // pred_fallthru
          _
      $region12: #{generator_forward.14} parent=5 // pred_fallthru
        _
      %p125 = scmp.lt.s32.totalorder %s8, 4
      // Predicated region
      $region17: #{generator_forward.14} parent=5 // pred_check
        %p126 = pneg %p125
      $region18: #{generator_forward.14} parent=5 // pred_check_branch
        %128 = sbr.rel (%p126) target = $region20
      $region19: #{generator_forward.14} parent=5 // pred_region
        // Predicated region
        $region21: #{generator_forward.14} parent=19 // pred_check
          %p129 = pneg %p66
        $region22: #{generator_forward.14} parent=19 // pred_check_branch
          %131 = sbr.rel (%p129) target = $region24
        $region23: #{generator_forward.14} parent=19 // pred_region
          %s132 = sand.u32 %s56, 1
          %s133 = sand.u32 %s56, 1
          %s134 = smul.addr %s133, 512
          %s135 = scalar_lea.vmem [#allocation2], %s134
          %s136 = smul.u32 4, %s16
          %s137 = smul.addr %s136, 4
          %s138 = scalar_lea.vmem %s1, %s137
          // Predicated region
          $region25: #{generator_forward.14} parent=23 // pred_check
            _
          $region26: #{generator_forward.14} parent=23 // pred_check_branch
            %140 = sbr.rel (0) target = $region28
          $region27: #{generator_forward.14} parent=23 // pred_region
            // Predicated region
            $region29: #{generator_forward.14} parent=27 // pred_check
              _
            $region30: #{generator_forward.14} parent=27 // pred_check_branch
              %142 = sbr.rel (0) target = $region32
            $region31: #{generator_forward.14} parent=27 // pred_region
              loop: start=0, step=1, limit=1
              $region33: #{generator_forward.14} parent=31 // loop_pre_header
                _
              $region34: #{generator_forward.14} parent=31 // loop_header
                %s144 = sphi 0, %s148
                %p145 = scmp.ge.s32.totalorder %s144, 1
                %s149 = sphi %s138, %s138
                %s150 = sphi %s135, %s135
              $region35: #{generator_forward.14} parent=31 // loop_header_branch
                %147 = sbr.rel (%p145) target = $region39
              $region36: #{generator_forward.14} parent=31 // loop_body
                %v151 = vld [vmem:[%s149] sm:$0xff]
                %152 = vst [vmem:[%s150] sm:$0xff] %v151
                %v153 = vld [vmem:[%s149 + $0x8] sm:$0xff]
                %154 = vst [vmem:[%s150 + $0x8] sm:$0xff] %v153
                %v155 = vld [vmem:[%s149 + $0x40] sm:$0xff]
                %156 = vst [vmem:[%s150 + $0x10] sm:$0xff] %v155
                %v157 = vld [vmem:[%s149 + $0x48] sm:$0xff]
                %158 = vst [vmem:[%s150 + $0x18] sm:$0xff] %v157
                %v159 = vld [vmem:[%s149 + $0x80] sm:$0xff]
                %160 = vst [vmem:[%s150 + $0x20] sm:$0xff] %v159
                %v161 = vld [vmem:[%s149 + $0x88] sm:$0xff]
                %162 = vst [vmem:[%s150 + $0x28] sm:$0xff] %v161
                %v163 = vld [vmem:[%s149 + $0xc0] sm:$0xff]
                %164 = vst [vmem:[%s150 + $0x30] sm:$0xff] %v163
                %v165 = vld [vmem:[%s149 + $0xc8] sm:$0xff]
                %166 = vst [vmem:[%s150 + $0x38] sm:$0xff] %v165
                %v167 = vld [vmem:[%s149 + $0x100] sm:$0xff]
                %168 = vst [vmem:[%s150 + $0x40] sm:$0xff] %v167
                %v169 = vld [vmem:[%s149 + $0x108] sm:$0xff]
                %170 = vst [vmem:[%s150 + $0x48] sm:$0xff] %v169
                %v171 = vld [vmem:[%s149 + $0x140] sm:$0xff]
                %172 = vst [vmem:[%s150 + $0x50] sm:$0xff] %v171
                %v173 = vld [vmem:[%s149 + $0x148] sm:$0xff]
                %174 = vst [vmem:[%s150 + $0x58] sm:$0xff] %v173
                %v175 = vld [vmem:[%s149 + $0x180] sm:$0xff]
                %176 = vst [vmem:[%s150 + $0x60] sm:$0xff] %v175
                %v177 = vld [vmem:[%s149 + $0x188] sm:$0xff]
                %178 = vst [vmem:[%s150 + $0x68] sm:$0xff] %v177
                %v179 = vld [vmem:[%s149 + $0x1c0] sm:$0xff]
                %180 = vst [vmem:[%s150 + $0x70] sm:$0xff] %v179
                %v181 = vld [vmem:[%s149 + $0x1c8] sm:$0xff]
                %182 = vst [vmem:[%s150 + $0x78] sm:$0xff] %v181
                %v183 = vld [vmem:[%s149 + $0x200] sm:$0xff]
                %184 = vst [vmem:[%s150 + $0x80] sm:$0xff] %v183
                %v185 = vld [vmem:[%s149 + $0x208] sm:$0xff]
                %186 = vst [vmem:[%s150 + $0x88] sm:$0xff] %v185
                %v187 = vld [vmem:[%s149 + $0x240] sm:$0xff]
                %188 = vst [vmem:[%s150 + $0x90] sm:$0xff] %v187
                %v189 = vld [vmem:[%s149 + $0x248] sm:$0xff]
                %190 = vst [vmem:[%s150 + $0x98] sm:$0xff] %v189
                %v191 = vld [vmem:[%s149 + $0x280] sm:$0xff]
                %192 = vst [vmem:[%s150 + $0xa0] sm:$0xff] %v191
                %v193 = vld [vmem:[%s149 + $0x288] sm:$0xff]
                %194 = vst [vmem:[%s150 + $0xa8] sm:$0xff] %v193
                %v195 = vld [vmem:[%s149 + $0x2c0] sm:$0xff]
                %196 = vst [vmem:[%s150 + $0xb0] sm:$0xff] %v195
                %v197 = vld [vmem:[%s149 + $0x2c8] sm:$0xff]
                %198 = vst [vmem:[%s150 + $0xb8] sm:$0xff] %v197
                %v199 = vld [vmem:[%s149 + $0x300] sm:$0xff]
                %200 = vst [vmem:[%s150 + $0xc0] sm:$0xff] %v199
                %v201 = vld [vmem:[%s149 + $0x308] sm:$0xff]
                %202 = vst [vmem:[%s150 + $0xc8] sm:$0xff] %v201
                %v203 = vld [vmem:[%s149 + $0x340] sm:$0xff]
                %204 = vst [vmem:[%s150 + $0xd0] sm:$0xff] %v203
                %v205 = vld [vmem:[%s149 + $0x348] sm:$0xff]
                %206 = vst [vmem:[%s150 + $0xd8] sm:$0xff] %v205
                %v207 = vld [vmem:[%s149 + $0x380] sm:$0xff]
                %208 = vst [vmem:[%s150 + $0xe0] sm:$0xff] %v207
                %v209 = vld [vmem:[%s149 + $0x388] sm:$0xff]
                %210 = vst [vmem:[%s150 + $0xe8] sm:$0xff] %v209
                %v211 = vld [vmem:[%s149 + $0x3c0] sm:$0xff]
                %212 = vst [vmem:[%s150 + $0xf0] sm:$0xff] %v211
                %v213 = vld [vmem:[%s149 + $0x3c8] sm:$0xff]
                %214 = vst [vmem:[%s150 + $0xf8] sm:$0xff] %v213
                %v215 = vld [vmem:[%s149 + $0x400] sm:$0xff]
                %216 = vst [vmem:[%s150 + $0x100] sm:$0xff] %v215
                %v217 = vld [vmem:[%s149 + $0x408] sm:$0xff]
                %218 = vst [vmem:[%s150 + $0x108] sm:$0xff] %v217
                %v219 = vld [vmem:[%s149 + $0x440] sm:$0xff]
                %220 = vst [vmem:[%s150 + $0x110] sm:$0xff] %v219
                %v221 = vld [vmem:[%s149 + $0x448] sm:$0xff]
                %222 = vst [vmem:[%s150 + $0x118] sm:$0xff] %v221
                %v223 = vld [vmem:[%s149 + $0x480] sm:$0xff]
                %224 = vst [vmem:[%s150 + $0x120] sm:$0xff] %v223
                %v225 = vld [vmem:[%s149 + $0x488] sm:$0xff]
                %226 = vst [vmem:[%s150 + $0x128] sm:$0xff] %v225
                %v227 = vld [vmem:[%s149 + $0x4c0] sm:$0xff]
                %228 = vst [vmem:[%s150 + $0x130] sm:$0xff] %v227
                %v229 = vld [vmem:[%s149 + $0x4c8] sm:$0xff]
                %230 = vst [vmem:[%s150 + $0x138] sm:$0xff] %v229
                %v231 = vld [vmem:[%s149 + $0x500] sm:$0xff]
                %232 = vst [vmem:[%s150 + $0x140] sm:$0xff] %v231
                %v233 = vld [vmem:[%s149 + $0x508] sm:$0xff]
                %234 = vst [vmem:[%s150 + $0x148] sm:$0xff] %v233
                %v235 = vld [vmem:[%s149 + $0x540] sm:$0xff]
                %236 = vst [vmem:[%s150 + $0x150] sm:$0xff] %v235
                %v237 = vld [vmem:[%s149 + $0x548] sm:$0xff]
                %238 = vst [vmem:[%s150 + $0x158] sm:$0xff] %v237
                %v239 = vld [vmem:[%s149 + $0x580] sm:$0xff]
                %240 = vst [vmem:[%s150 + $0x160] sm:$0xff] %v239
                %v241 = vld [vmem:[%s149 + $0x588] sm:$0xff]
                %242 = vst [vmem:[%s150 + $0x168] sm:$0xff] %v241
                %v243 = vld [vmem:[%s149 + $0x5c0] sm:$0xff]
                %244 = vst [vmem:[%s150 + $0x170] sm:$0xff] %v243
                %v245 = vld [vmem:[%s149 + $0x5c8] sm:$0xff]
                %246 = vst [vmem:[%s150 + $0x178] sm:$0xff] %v245
                %v247 = vld [vmem:[%s149 + $0x600] sm:$0xff]
                %248 = vst [vmem:[%s150 + $0x180] sm:$0xff] %v247
                %v249 = vld [vmem:[%s149 + $0x608] sm:$0xff]
                %250 = vst [vmem:[%s150 + $0x188] sm:$0xff] %v249
                %v251 = vld [vmem:[%s149 + $0x640] sm:$0xff]
                %252 = vst [vmem:[%s150 + $0x190] sm:$0xff] %v251
                %v253 = vld [vmem:[%s149 + $0x648] sm:$0xff]
                %254 = vst [vmem:[%s150 + $0x198] sm:$0xff] %v253
                %v255 = vld [vmem:[%s149 + $0x680] sm:$0xff]
                %256 = vst [vmem:[%s150 + $0x1a0] sm:$0xff] %v255
                %v257 = vld [vmem:[%s149 + $0x688] sm:$0xff]
                %258 = vst [vmem:[%s150 + $0x1a8] sm:$0xff] %v257
                %v259 = vld [vmem:[%s149 + $0x6c0] sm:$0xff]
                %260 = vst [vmem:[%s150 + $0x1b0] sm:$0xff] %v259
                %v261 = vld [vmem:[%s149 + $0x6c8] sm:$0xff]
                %262 = vst [vmem:[%s150 + $0x1b8] sm:$0xff] %v261
                %v263 = vld [vmem:[%s149 + $0x700] sm:$0xff]
                %264 = vst [vmem:[%s150 + $0x1c0] sm:$0xff] %v263
                %v265 = vld [vmem:[%s149 + $0x708] sm:$0xff]
                %266 = vst [vmem:[%s150 + $0x1c8] sm:$0xff] %v265
                %v267 = vld [vmem:[%s149 + $0x740] sm:$0xff]
                %268 = vst [vmem:[%s150 + $0x1d0] sm:$0xff] %v267
                %v269 = vld [vmem:[%s149 + $0x748] sm:$0xff]
                %270 = vst [vmem:[%s150 + $0x1d8] sm:$0xff] %v269
                %v271 = vld [vmem:[%s149 + $0x780] sm:$0xff]
                %272 = vst [vmem:[%s150 + $0x1e0] sm:$0xff] %v271
                %v273 = vld [vmem:[%s149 + $0x788] sm:$0xff]
                %274 = vst [vmem:[%s150 + $0x1e8] sm:$0xff] %v273
                %v275 = vld [vmem:[%s149 + $0x7c0] sm:$0xff]
                %276 = vst [vmem:[%s150 + $0x1f0] sm:$0xff] %v275
                %v277 = vld [vmem:[%s149 + $0x7c8] sm:$0xff]
                %278 = vst [vmem:[%s150 + $0x1f8] sm:$0xff] %v277
              $region37: #{generator_forward.14} parent=31 // loop_footer
                %s148 = sadd.s32 1, %s144
              $region38: #{generator_forward.14} parent=31 // loop_footer_branch
                %143 = sbr.rel target = $region34
              $region39: #{generator_forward.14} parent=31 // loop_exit
                _
            $region32: #{generator_forward.14} parent=27 // pred_fallthru
              _
            // Predicated region
            $region40: #{generator_forward.14} parent=27 // pred_check
              _
            $region41: #{generator_forward.14} parent=27 // pred_check_branch
              %280 = sbr.rel target = $region43
            $region42: #{generator_forward.14} parent=27 // pred_region
              _
            $region43: #{generator_forward.14} parent=27 // pred_fallthru
              _
          $region28: #{generator_forward.14} parent=23 // pred_fallthru
            _
          %281 = vnop
        $region24: #{generator_forward.14} parent=19 // pred_fallthru
          _
      $region20: #{generator_forward.14} parent=5 // pred_fallthru
        _
      %p282 = scmp.le.s32.totalorder 1, %s8
      %p283 = scmp.lt.s32.totalorder %s8, 5
      %p284 = pnand %p282, %p283
      %p285 = pneg %p284
      // Predicated region
      $region44: #{generator_forward.14} parent=5 // pred_check
        _
      $region45: #{generator_forward.14} parent=5 // pred_check_branch
        %287 = sbr.rel (%p284) target = $region47
      $region46: #{generator_forward.14} parent=5 // pred_region
        %s288 = ssub.s32 %s8, 1
        %s289 = sand.u32 %s59, 1
        %s290 = sand.u32 %s59, 1
        %s291 = smul.addr %s290, 512
        %s292 = scalar_lea.vmem [#allocation2], %s291
        // Predicated region
        $region48: #{generator_forward.14} parent=46 // pred_check
          %p293 = pneg %p72
        $region49: #{generator_forward.14} parent=46 // pred_check_branch
          %295 = sbr.rel (%p293) target = $region51
        $region50: #{generator_forward.14} parent=46 // pred_region
          _
        $region51: #{generator_forward.14} parent=46 // pred_fallthru
          _
        %s296 = smul.u32 16, %s17
        %p297 = scmp.lt.s32.totalorder %s296, 15
        %s298 = scalar_select %p297, %s296, 15
        %s299 = smul.addr %s298, 2
        %s300 = smul.addr %s299, 4
        %s301 = scalar_lea.vmem %s0, %s300
        %p302 = pneg %p46
        %p303 = pneg %p43
        %s304 = sand.u32 %s59, 1
        %s305 = sand.u32 %s59, 1
        %s306 = smul.addr %s305, 512
        %s307 = scalar_lea.vmem [#allocation2], %s306
        %p308 = pneg %p72
        %p309 = pneg %p69
        %p310 = pneg %p100
        %p311 = pneg %p97
        %s312 = sand.u32 %s87, 1
        %s313 = sand.u32 %s87, 1
        %s314 = smul.addr %s313, 512
        %s315 = scalar_lea.vmem [#allocation3], %s314
        %s316 = smul.u32 16, %s17
        %p317 = scmp.lt.s32.totalorder %s316, 15
        %s318 = scalar_select %p317, %s316, 15
        %s319 = smul.addr %s318, 2
        %s320 = smul.addr %s319, 4
        %s321 = scalar_lea.vmem %s0, %s320
        %s322 = smul.u32 16, %s17
        %s323 = smul.u32 4, %s18
        %s324 = smul.u32 16, %s17
        %s325 = smul.u32 4, %s18
        %v326 = vld [vmem:[%s321] sm:$0xff]
        %v327 = vld [vmem:[%s321 + $0x8] sm:$0xff]
        %v328 = vld [vmem:[%s321 + $0x10] sm:$0xff]
        %v329 = vld [vmem:[%s321 + $0x18] sm:$0xff]
        %v330 = vld [vmem:[%s321 + $0x20] sm:$0xff]
        %v331 = vld [vmem:[%s321 + $0x28] sm:$0xff]
        %v332 = vld [vmem:[%s321 + $0x30] sm:$0xff]
        %v333 = vld [vmem:[%s321 + $0x38] sm:$0xff]
        %v334 = vld [vmem:[%s321 + $0x40] sm:$0xff]
        %v335 = vld [vmem:[%s321 + $0x48] sm:$0xff]
        %v336 = vld [vmem:[%s321 + $0x50] sm:$0xff]
        %v337 = vld [vmem:[%s321 + $0x58] sm:$0xff]
        %v338 = vld [vmem:[%s321 + $0x60] sm:$0xff]
        %v339 = vld [vmem:[%s321 + $0x68] sm:$0xff]
        %v340 = vld [vmem:[%s321 + $0x70] sm:$0xff]
        %v341 = vld [vmem:[%s321 + $0x78] sm:$0xff]
        %v342 = vld [vmem:[%s292] sm:$0xff]
        %v343 = vld [vmem:[%s292 + $0x8] sm:$0xff]
        %v344 = vld [vmem:[%s292 + $0x10] sm:$0xff]
        %v345 = vld [vmem:[%s292 + $0x18] sm:$0xff]
        %v346 = vld [vmem:[%s292 + $0x20] sm:$0xff]
        %v347 = vld [vmem:[%s292 + $0x28] sm:$0xff]
        %v348 = vld [vmem:[%s292 + $0x30] sm:$0xff]
        %v349 = vld [vmem:[%s292 + $0x38] sm:$0xff]
        %v350 = vld [vmem:[%s292 + $0x40] sm:$0xff]
        %v351 = vld [vmem:[%s292 + $0x48] sm:$0xff]
        %v352 = vld [vmem:[%s292 + $0x50] sm:$0xff]
        %v353 = vld [vmem:[%s292 + $0x58] sm:$0xff]
        %v354 = vld [vmem:[%s292 + $0x60] sm:$0xff]
        %v355 = vld [vmem:[%s292 + $0x68] sm:$0xff]
        %v356 = vld [vmem:[%s292 + $0x70] sm:$0xff]
        %v357 = vld [vmem:[%s292 + $0x78] sm:$0xff]
        %v358 = vld [vmem:[%s292 + $0x80] sm:$0xff]
        %v359 = vld [vmem:[%s292 + $0x88] sm:$0xff]
        %v360 = vld [vmem:[%s292 + $0x90] sm:$0xff]
        %v361 = vld [vmem:[%s292 + $0x98] sm:$0xff]
        %v362 = vld [vmem:[%s292 + $0xa0] sm:$0xff]
        %v363 = vld [vmem:[%s292 + $0xa8] sm:$0xff]
        %v364 = vld [vmem:[%s292 + $0xb0] sm:$0xff]
        %v365 = vld [vmem:[%s292 + $0xb8] sm:$0xff]
        %v366 = vld [vmem:[%s292 + $0xc0] sm:$0xff]
        %v367 = vld [vmem:[%s292 + $0xc8] sm:$0xff]
        %v368 = vld [vmem:[%s292 + $0xd0] sm:$0xff]
        %v369 = vld [vmem:[%s292 + $0xd8] sm:$0xff]
        %v370 = vld [vmem:[%s292 + $0xe0] sm:$0xff]
        %v371 = vld [vmem:[%s292 + $0xe8] sm:$0xff]
        %v372 = vld [vmem:[%s292 + $0xf0] sm:$0xff]
        %v373 = vld [vmem:[%s292 + $0xf8] sm:$0xff]
        %v374 = vld [vmem:[%s292 + $0x100] sm:$0xff]
        %v375 = vld [vmem:[%s292 + $0x108] sm:$0xff]
        %v376 = vld [vmem:[%s292 + $0x110] sm:$0xff]
        %v377 = vld [vmem:[%s292 + $0x118] sm:$0xff]
        %v378 = vld [vmem:[%s292 + $0x120] sm:$0xff]
        %v379 = vld [vmem:[%s292 + $0x128] sm:$0xff]
        %v380 = vld [vmem:[%s292 + $0x130] sm:$0xff]
        %v381 = vld [vmem:[%s292 + $0x138] sm:$0xff]
        %v382 = vld [vmem:[%s292 + $0x140] sm:$0xff]
        %v383 = vld [vmem:[%s292 + $0x148] sm:$0xff]
        %v384 = vld [vmem:[%s292 + $0x150] sm:$0xff]
        %v385 = vld [vmem:[%s292 + $0x158] sm:$0xff]
        %v386 = vld [vmem:[%s292 + $0x160] sm:$0xff]
        %v387 = vld [vmem:[%s292 + $0x168] sm:$0xff]
        %v388 = vld [vmem:[%s292 + $0x170] sm:$0xff]
        %v389 = vld [vmem:[%s292 + $0x178] sm:$0xff]
        %v390 = vld [vmem:[%s292 + $0x180] sm:$0xff]
        %v391 = vld [vmem:[%s292 + $0x188] sm:$0xff]
        %v392 = vld [vmem:[%s292 + $0x190] sm:$0xff]
        %v393 = vld [vmem:[%s292 + $0x198] sm:$0xff]
        %v394 = vld [vmem:[%s292 + $0x1a0] sm:$0xff]
        %v395 = vld [vmem:[%s292 + $0x1a8] sm:$0xff]
        %v396 = vld [vmem:[%s292 + $0x1b0] sm:$0xff]
        %v397 = vld [vmem:[%s292 + $0x1b8] sm:$0xff]
        %v398 = vld [vmem:[%s292 + $0x1c0] sm:$0xff]
        %v399 = vld [vmem:[%s292 + $0x1c8] sm:$0xff]
        %v400 = vld [vmem:[%s292 + $0x1d0] sm:$0xff]
        %v401 = vld [vmem:[%s292 + $0x1d8] sm:$0xff]
        %v402 = vld [vmem:[%s292 + $0x1e0] sm:$0xff]
        %v403 = vld [vmem:[%s292 + $0x1e8] sm:$0xff]
        %v404 = vld [vmem:[%s292 + $0x1f0] sm:$0xff]
        %v405 = vld [vmem:[%s292 + $0x1f8] sm:$0xff]
        %v422 = vunpack.c.l.b16 %v326
        %v423 = vunpack.c.h.b16 %v326
        %v424 = vunpack.c.l.b16 %v327
        %v425 = vunpack.c.h.b16 %v327
        %v426 = vunpack.c.l.b16 %v328
        %v427 = vunpack.c.h.b16 %v328
        %v428 = vunpack.c.l.b16 %v329
        %v429 = vunpack.c.h.b16 %v329
        %v430 = vunpack.c.l.b16 %v330
        %v431 = vunpack.c.h.b16 %v330
        %v432 = vunpack.c.l.b16 %v331
        %v433 = vunpack.c.h.b16 %v331
        %v434 = vunpack.c.l.b16 %v332
        %v435 = vunpack.c.h.b16 %v332
        %v436 = vunpack.c.l.b16 %v333
        %v437 = vunpack.c.h.b16 %v333
        %v438 = vunpack.c.l.b16 %v334
        %v439 = vunpack.c.h.b16 %v334
        %v440 = vunpack.c.l.b16 %v335
        %v441 = vunpack.c.h.b16 %v335
        %v442 = vunpack.c.l.b16 %v336
        %v443 = vunpack.c.h.b16 %v336
        %v444 = vunpack.c.l.b16 %v337
        %v445 = vunpack.c.h.b16 %v337
        %v446 = vunpack.c.l.b16 %v338
        %v447 = vunpack.c.h.b16 %v338
        %v448 = vunpack.c.l.b16 %v339
        %v449 = vunpack.c.h.b16 %v339
        %v450 = vunpack.c.l.b16 %v340
        %v451 = vunpack.c.h.b16 %v340
        %v452 = vunpack.c.l.b16 %v341
        %v453 = vunpack.c.h.b16 %v341
        %v454 = vpack.c.b16 %v424, %v422
        %v455 = vpack.c.b16 %v425, %v423
        %v456 = vpack.c.b16 %v428, %v426
        %v457 = vpack.c.b16 %v429, %v427
        %v458 = vpack.c.b16 %v432, %v430
        %v459 = vpack.c.b16 %v433, %v431
        %v460 = vpack.c.b16 %v436, %v434
        %v461 = vpack.c.b16 %v437, %v435
        %v462 = vpack.c.b16 %v440, %v438
        %v463 = vpack.c.b16 %v441, %v439
        %v464 = vpack.c.b16 %v444, %v442
        %v465 = vpack.c.b16 %v445, %v443
        %v466 = vpack.c.b16 %v448, %v446
        %v467 = vpack.c.b16 %v449, %v447
        %v468 = vpack.c.b16 %v452, %v450
        %v469 = vpack.c.b16 %v453, %v451
        %v550 = vunpack.c.l.b16 %v342
        %v551 = vunpack.c.h.b16 %v342
        %v552 = vunpack.c.l.b16 %v343
        %v553 = vunpack.c.h.b16 %v343
        %v554 = vunpack.c.l.b16 %v344
        %v555 = vunpack.c.h.b16 %v344
        %v556 = vunpack.c.l.b16 %v345
        %v557 = vunpack.c.h.b16 %v345
        %v558 = vunpack.c.l.b16 %v346
        %v559 = vunpack.c.h.b16 %v346
        %v560 = vunpack.c.l.b16 %v347
        %v561 = vunpack.c.h.b16 %v347
        %v562 = vunpack.c.l.b16 %v348
        %v563 = vunpack.c.h.b16 %v348
        %v564 = vunpack.c.l.b16 %v349
        %v565 = vunpack.c.h.b16 %v349
        %v566 = vunpack.c.l.b16 %v350
        %v567 = vunpack.c.h.b16 %v350
        %v568 = vunpack.c.l.b16 %v351
        %v569 = vunpack.c.h.b16 %v351
        %v570 = vunpack.c.l.b16 %v352
        %v571 = vunpack.c.h.b16 %v352
        %v572 = vunpack.c.l.b16 %v353
        %v573 = vunpack.c.h.b16 %v353
        %v574 = vunpack.c.l.b16 %v354
        %v575 = vunpack.c.h.b16 %v354
        %v576 = vunpack.c.l.b16 %v355
        %v577 = vunpack.c.h.b16 %v355
        %v578 = vunpack.c.l.b16 %v356
        %v579 = vunpack.c.h.b16 %v356
        %v580 = vunpack.c.l.b16 %v357
        %v581 = vunpack.c.h.b16 %v357
        %v582 = vunpack.c.l.b16 %v358
        %v583 = vunpack.c.h.b16 %v358
        %v584 = vunpack.c.l.b16 %v359
        %v585 = vunpack.c.h.b16 %v359
        %v586 = vunpack.c.l.b16 %v360
        %v587 = vunpack.c.h.b16 %v360
        %v588 = vunpack.c.l.b16 %v361
        %v589 = vunpack.c.h.b16 %v361
        %v590 = vunpack.c.l.b16 %v362
        %v591 = vunpack.c.h.b16 %v362
        %v592 = vunpack.c.l.b16 %v363
        %v593 = vunpack.c.h.b16 %v363
        %v594 = vunpack.c.l.b16 %v364
        %v595 = vunpack.c.h.b16 %v364
        %v596 = vunpack.c.l.b16 %v365
        %v597 = vunpack.c.h.b16 %v365
        %v598 = vunpack.c.l.b16 %v366
        %v599 = vunpack.c.h.b16 %v366
        %v600 = vunpack.c.l.b16 %v367
        %v601 = vunpack.c.h.b16 %v367
        %v602 = vunpack.c.l.b16 %v368
        %v603 = vunpack.c.h.b16 %v368
        %v604 = vunpack.c.l.b16 %v369
        %v605 = vunpack.c.h.b16 %v369
        %v606 = vunpack.c.l.b16 %v370
        %v607 = vunpack.c.h.b16 %v370
        %v608 = vunpack.c.l.b16 %v371
        %v609 = vunpack.c.h.b16 %v371
        %v610 = vunpack.c.l.b16 %v372
        %v611 = vunpack.c.h.b16 %v372
        %v612 = vunpack.c.l.b16 %v373
        %v613 = vunpack.c.h.b16 %v373
        %v614 = vunpack.c.l.b16 %v374
        %v615 = vunpack.c.h.b16 %v374
        %v616 = vunpack.c.l.b16 %v375
        %v617 = vunpack.c.h.b16 %v375
        %v618 = vunpack.c.l.b16 %v376
        %v619 = vunpack.c.h.b16 %v376
        %v620 = vunpack.c.l.b16 %v377
        %v621 = vunpack.c.h.b16 %v377
        %v622 = vunpack.c.l.b16 %v378
        %v623 = vunpack.c.h.b16 %v378
        %v624 = vunpack.c.l.b16 %v379
        %v625 = vunpack.c.h.b16 %v379
        %v626 = vunpack.c.l.b16 %v380
        %v627 = vunpack.c.h.b16 %v380
        %v628 = vunpack.c.l.b16 %v381
        %v629 = vunpack.c.h.b16 %v381
        %v630 = vunpack.c.l.b16 %v382
        %v631 = vunpack.c.h.b16 %v382
        %v632 = vunpack.c.l.b16 %v383
        %v633 = vunpack.c.h.b16 %v383
        %v634 = vunpack.c.l.b16 %v384
        %v635 = vunpack.c.h.b16 %v384
        %v636 = vunpack.c.l.b16 %v385
        %v637 = vunpack.c.h.b16 %v385
        %v638 = vunpack.c.l.b16 %v386
        %v639 = vunpack.c.h.b16 %v386
        %v640 = vunpack.c.l.b16 %v387
        %v641 = vunpack.c.h.b16 %v387
        %v642 = vunpack.c.l.b16 %v388
        %v643 = vunpack.c.h.b16 %v388
        %v644 = vunpack.c.l.b16 %v389
        %v645 = vunpack.c.h.b16 %v389
        %v646 = vunpack.c.l.b16 %v390
        %v647 = vunpack.c.h.b16 %v390
        %v648 = vunpack.c.l.b16 %v391
        %v649 = vunpack.c.h.b16 %v391
        %v650 = vunpack.c.l.b16 %v392
        %v651 = vunpack.c.h.b16 %v392
        %v652 = vunpack.c.l.b16 %v393
        %v653 = vunpack.c.h.b16 %v393
        %v654 = vunpack.c.l.b16 %v394
        %v655 = vunpack.c.h.b16 %v394
        %v656 = vunpack.c.l.b16 %v395
        %v657 = vunpack.c.h.b16 %v395
        %v658 = vunpack.c.l.b16 %v396
        %v659 = vunpack.c.h.b16 %v396
        %v660 = vunpack.c.l.b16 %v397
        %v661 = vunpack.c.h.b16 %v397
        %v662 = vunpack.c.l.b16 %v398
        %v663 = vunpack.c.h.b16 %v398
        %v664 = vunpack.c.l.b16 %v399
        %v665 = vunpack.c.h.b16 %v399
        %v666 = vunpack.c.l.b16 %v400
        %v667 = vunpack.c.h.b16 %v400
        %v668 = vunpack.c.l.b16 %v401
        %v669 = vunpack.c.h.b16 %v401
        %v670 = vunpack.c.l.b16 %v402
        %v671 = vunpack.c.h.b16 %v402
        %v672 = vunpack.c.l.b16 %v403
        %v673 = vunpack.c.h.b16 %v403
        %v674 = vunpack.c.l.b16 %v404
        %v675 = vunpack.c.h.b16 %v404
        %v676 = vunpack.c.l.b16 %v405
        %v677 = vunpack.c.h.b16 %v405
        %v678 = vpack.c.b16 %v554, %v550
        %v679 = vpack.c.b16 %v555, %v551
        %v680 = vpack.c.b16 %v556, %v552
        %v681 = vpack.c.b16 %v557, %v553
        %v682 = vpack.c.b16 %v562, %v558
        %v683 = vpack.c.b16 %v563, %v559
        %v684 = vpack.c.b16 %v564, %v560
        %v685 = vpack.c.b16 %v565, %v561
        %v686 = vpack.c.b16 %v570, %v566
        %v687 = vpack.c.b16 %v571, %v567
        %v688 = vpack.c.b16 %v572, %v568
        %v689 = vpack.c.b16 %v573, %v569
        %v690 = vpack.c.b16 %v578, %v574
        %v691 = vpack.c.b16 %v579, %v575
        %v692 = vpack.c.b16 %v580, %v576
        %v693 = vpack.c.b16 %v581, %v577
        %v694 = vpack.c.b16 %v586, %v582
        %v695 = vpack.c.b16 %v587, %v583
        %v696 = vpack.c.b16 %v588, %v584
        %v697 = vpack.c.b16 %v589, %v585
        %v698 = vpack.c.b16 %v594, %v590
        %v699 = vpack.c.b16 %v595, %v591
        %v700 = vpack.c.b16 %v596, %v592
        %v701 = vpack.c.b16 %v597, %v593
        %v702 = vpack.c.b16 %v602, %v598
        %v703 = vpack.c.b16 %v603, %v599
        %v704 = vpack.c.b16 %v604, %v600
        %v705 = vpack.c.b16 %v605, %v601
        %v706 = vpack.c.b16 %v610, %v606
        %v707 = vpack.c.b16 %v611, %v607
        %v708 = vpack.c.b16 %v612, %v608
        %v709 = vpack.c.b16 %v613, %v609
        %v710 = vpack.c.b16 %v618, %v614
        %v711 = vpack.c.b16 %v619, %v615
        %v712 = vpack.c.b16 %v620, %v616
        %v713 = vpack.c.b16 %v621, %v617
        %v714 = vpack.c.b16 %v626, %v622
        %v715 = vpack.c.b16 %v627, %v623
        %v716 = vpack.c.b16 %v628, %v624
        %v717 = vpack.c.b16 %v629, %v625
        %v718 = vpack.c.b16 %v634, %v630
        %v719 = vpack.c.b16 %v635, %v631
        %v720 = vpack.c.b16 %v636, %v632
        %v721 = vpack.c.b16 %v637, %v633
        %v722 = vpack.c.b16 %v642, %v638
        %v723 = vpack.c.b16 %v643, %v639
        %v724 = vpack.c.b16 %v644, %v640
        %v725 = vpack.c.b16 %v645, %v641
        %v726 = vpack.c.b16 %v650, %v646
        %v727 = vpack.c.b16 %v651, %v647
        %v728 = vpack.c.b16 %v652, %v648
        %v729 = vpack.c.b16 %v653, %v649
        %v730 = vpack.c.b16 %v658, %v654
        %v731 = vpack.c.b16 %v659, %v655
        %v732 = vpack.c.b16 %v660, %v656
        %v733 = vpack.c.b16 %v661, %v657
        %v734 = vpack.c.b16 %v666, %v662
        %v735 = vpack.c.b16 %v667, %v663
        %v736 = vpack.c.b16 %v668, %v664
        %v737 = vpack.c.b16 %v669, %v665
        %v738 = vpack.c.b16 %v674, %v670
        %v739 = vpack.c.b16 %v675, %v671
        %v740 = vpack.c.b16 %v676, %v672
        %v741 = vpack.c.b16 %v677, %v673
        %806 = vmatpush.bf16.msra.mxu0 %v706
        %807 = vmatpush.bf16.msra.mxu0 %v702
        %808 = vmatpush.bf16.msra.mxu0 %v698
        %809 = vmatpush.bf16.msra.mxu0 %v694
        %810 = vmatpush.bf16.msra.mxu0 %v690
        %811 = vmatpush.bf16.msra.mxu0 %v686
        %812 = vmatpush.bf16.msra.mxu0 %v682
        %813 = vmatpush.bf16.msra.mxu0 %v678
        %814 = vmatmul.bf16.gmra.mxu0 %v454
        %v815 = vpop.f32.mrf.mxu0
        %v816 = vadd.f32 0.0, %v815
        %v817 = vpop.f32.mrf.mxu0
        %v818 = vadd.f32 0.0, %v817
        %819 = vmatmul.bf16.gmra.mxu0 %v456
        %v820 = vpop.f32.mrf.mxu0
        %v821 = vadd.f32 0.0, %v820
        %v822 = vpop.f32.mrf.mxu0
        %v823 = vadd.f32 0.0, %v822
        %824 = vmatmul.bf16.gmra.mxu0 %v458
        %v825 = vpop.f32.mrf.mxu0
        %v826 = vadd.f32 0.0, %v825
        %v827 = vpop.f32.mrf.mxu0
        %v828 = vadd.f32 0.0, %v827
        %829 = vmatmul.bf16.gmra.mxu0 %v460
        %v830 = vpop.f32.mrf.mxu0
        %v831 = vadd.f32 0.0, %v830
        %v832 = vpop.f32.mrf.mxu0
        %v833 = vadd.f32 0.0, %v832
        %834 = vmatmul.bf16.gmra.mxu0 %v462
        %v835 = vpop.f32.mrf.mxu0
        %v836 = vadd.f32 0.0, %v835
        %v837 = vpop.f32.mrf.mxu0
        %v838 = vadd.f32 0.0, %v837
        %839 = vmatmul.bf16.gmra.mxu0 %v464
        %v840 = vpop.f32.mrf.mxu0
        %v841 = vadd.f32 0.0, %v840
        %v842 = vpop.f32.mrf.mxu0
        %v843 = vadd.f32 0.0, %v842
        %844 = vmatmul.bf16.gmra.mxu0 %v466
        %v845 = vpop.f32.mrf.mxu0
        %v846 = vadd.f32 0.0, %v845
        %v847 = vpop.f32.mrf.mxu0
        %v848 = vadd.f32 0.0, %v847
        %849 = vmatmul.bf16.gmra.mxu0 %v468
        %v850 = vpop.f32.mrf.mxu0
        %v851 = vadd.f32 0.0, %v850
        %v852 = vpop.f32.mrf.mxu0
        %v853 = vadd.f32 0.0, %v852
        %854 = vdwg.mxu0
        %855 = vmatpush.bf16.msra.mxu0 %v738
        %856 = vmatpush.bf16.msra.mxu0 %v734
        %857 = vmatpush.bf16.msra.mxu0 %v730
        %858 = vmatpush.bf16.msra.mxu0 %v726
        %859 = vmatpush.bf16.msra.mxu0 %v722
        %860 = vmatpush.bf16.msra.mxu0 %v718
        %861 = vmatpush.bf16.msra.mxu0 %v714
        %862 = vmatpush.bf16.msra.mxu0 %v710
        %863 = vmatmul.bf16.gmra.mxu0 %v455
        %v864 = vpop.f32.mrf.mxu0
        %v865 = vadd.f32 %v816, %v864
        %v866 = vpop.f32.mrf.mxu0
        %v867 = vadd.f32 %v818, %v866
        %868 = vmatmul.bf16.gmra.mxu0 %v457
        %v869 = vpop.f32.mrf.mxu0
        %v870 = vadd.f32 %v821, %v869
        %v871 = vpop.f32.mrf.mxu0
        %v872 = vadd.f32 %v823, %v871
        %873 = vmatmul.bf16.gmra.mxu0 %v459
        %v874 = vpop.f32.mrf.mxu0
        %v875 = vadd.f32 %v826, %v874
        %v876 = vpop.f32.mrf.mxu0
        %v877 = vadd.f32 %v828, %v876
        %878 = vmatmul.bf16.gmra.mxu0 %v461
        %v879 = vpop.f32.mrf.mxu0
        %v880 = vadd.f32 %v831, %v879
        %v881 = vpop.f32.mrf.mxu0
        %v882 = vadd.f32 %v833, %v881
        %883 = vmatmul.bf16.gmra.mxu0 %v463
        %v884 = vpop.f32.mrf.mxu0
        %v885 = vadd.f32 %v836, %v884
        %v886 = vpop.f32.mrf.mxu0
        %v887 = vadd.f32 %v838, %v886
        %888 = vmatmul.bf16.gmra.mxu0 %v465
        %v889 = vpop.f32.mrf.mxu0
        %v890 = vadd.f32 %v841, %v889
        %v891 = vpop.f32.mrf.mxu0
        %v892 = vadd.f32 %v843, %v891
        %893 = vmatmul.bf16.gmra.mxu0 %v467
        %v894 = vpop.f32.mrf.mxu0
        %v895 = vadd.f32 %v846, %v894
        %v896 = vpop.f32.mrf.mxu0
        %v897 = vadd.f32 %v848, %v896
        %898 = vmatmul.bf16.gmra.mxu0 %v469
        %v899 = vpop.f32.mrf.mxu0
        %v900 = vadd.f32 %v851, %v899
        %v901 = vpop.f32.mrf.mxu0
        %v902 = vadd.f32 %v853, %v901
        %903 = vdwg.mxu0
        %904 = vmatpush.bf16.msra.mxu0 %v707
        %905 = vmatpush.bf16.msra.mxu0 %v703
        %906 = vmatpush.bf16.msra.mxu0 %v699
        %907 = vmatpush.bf16.msra.mxu0 %v695
        %908 = vmatpush.bf16.msra.mxu0 %v691
        %909 = vmatpush.bf16.msra.mxu0 %v687
        %910 = vmatpush.bf16.msra.mxu0 %v683
        %911 = vmatpush.bf16.msra.mxu0 %v679
        %912 = vmatmul.bf16.gmra.mxu0 %v454
        %v913 = vpop.f32.mrf.mxu0
        %v914 = vadd.f32 0.0, %v913
        %v915 = vpop.f32.mrf.mxu0
        %v916 = vadd.f32 0.0, %v915
        %917 = vmatmul.bf16.gmra.mxu0 %v456
        %v918 = vpop.f32.mrf.mxu0
        %v919 = vadd.f32 0.0, %v918
        %v920 = vpop.f32.mrf.mxu0
        %v921 = vadd.f32 0.0, %v920
        %922 = vmatmul.bf16.gmra.mxu0 %v458
        %v923 = vpop.f32.mrf.mxu0
        %v924 = vadd.f32 0.0, %v923
        %v925 = vpop.f32.mrf.mxu0
        %v926 = vadd.f32 0.0, %v925
        %927 = vmatmul.bf16.gmra.mxu0 %v460
        %v928 = vpop.f32.mrf.mxu0
        %v929 = vadd.f32 0.0, %v928
        %v930 = vpop.f32.mrf.mxu0
        %v931 = vadd.f32 0.0, %v930
        %932 = vmatmul.bf16.gmra.mxu0 %v462
        %v933 = vpop.f32.mrf.mxu0
        %v934 = vadd.f32 0.0, %v933
        %v935 = vpop.f32.mrf.mxu0
        %v936 = vadd.f32 0.0, %v935
        %937 = vmatmul.bf16.gmra.mxu0 %v464
        %v938 = vpop.f32.mrf.mxu0
        %v939 = vadd.f32 0.0, %v938
        %v940 = vpop.f32.mrf.mxu0
        %v941 = vadd.f32 0.0, %v940
        %942 = vmatmul.bf16.gmra.mxu0 %v466
        %v943 = vpop.f32.mrf.mxu0
        %v944 = vadd.f32 0.0, %v943
        %v945 = vpop.f32.mrf.mxu0
        %v946 = vadd.f32 0.0, %v945
        %947 = vmatmul.bf16.gmra.mxu0 %v468
        %v948 = vpop.f32.mrf.mxu0
        %v949 = vadd.f32 0.0, %v948
        %v950 = vpop.f32.mrf.mxu0
        %v951 = vadd.f32 0.0, %v950
        %952 = vdwg.mxu0
        %953 = vmatpush.bf16.msra.mxu0 %v739
        %954 = vmatpush.bf16.msra.mxu0 %v735
        %955 = vmatpush.bf16.msra.mxu0 %v731
        %956 = vmatpush.bf16.msra.mxu0 %v727
        %957 = vmatpush.bf16.msra.mxu0 %v723
        %958 = vmatpush.bf16.msra.mxu0 %v719
        %959 = vmatpush.bf16.msra.mxu0 %v715
        %960 = vmatpush.bf16.msra.mxu0 %v711
        %961 = vmatmul.bf16.gmra.mxu0 %v455
        %v962 = vpop.f32.mrf.mxu0
        %v963 = vadd.f32 %v914, %v962
        %v964 = vpop.f32.mrf.mxu0
        %v965 = vadd.f32 %v916, %v964
        %966 = vmatmul.bf16.gmra.mxu0 %v457
        %v967 = vpop.f32.mrf.mxu0
        %v968 = vadd.f32 %v919, %v967
        %v969 = vpop.f32.mrf.mxu0
        %v970 = vadd.f32 %v921, %v969
        %971 = vmatmul.bf16.gmra.mxu0 %v459
        %v972 = vpop.f32.mrf.mxu0
        %v973 = vadd.f32 %v924, %v972
        %v974 = vpop.f32.mrf.mxu0
        %v975 = vadd.f32 %v926, %v974
        %976 = vmatmul.bf16.gmra.mxu0 %v461
        %v977 = vpop.f32.mrf.mxu0
        %v978 = vadd.f32 %v929, %v977
        %v979 = vpop.f32.mrf.mxu0
        %v980 = vadd.f32 %v931, %v979
        %981 = vmatmul.bf16.gmra.mxu0 %v463
        %v982 = vpop.f32.mrf.mxu0
        %v983 = vadd.f32 %v934, %v982
        %v984 = vpop.f32.mrf.mxu0
        %v985 = vadd.f32 %v936, %v984
        %986 = vmatmul.bf16.gmra.mxu0 %v465
        %v987 = vpop.f32.mrf.mxu0
        %v988 = vadd.f32 %v939, %v987
        %v989 = vpop.f32.mrf.mxu0
        %v990 = vadd.f32 %v941, %v989
        %991 = vmatmul.bf16.gmra.mxu0 %v467
        %v992 = vpop.f32.mrf.mxu0
        %v993 = vadd.f32 %v944, %v992
        %v994 = vpop.f32.mrf.mxu0
        %v995 = vadd.f32 %v946, %v994
        %996 = vmatmul.bf16.gmra.mxu0 %v469
        %v997 = vpop.f32.mrf.mxu0
        %v998 = vadd.f32 %v949, %v997
        %v999 = vpop.f32.mrf.mxu0
        %v1000 = vadd.f32 %v951, %v999
        %1001 = vdwg.mxu0
        %1002 = vmatpush.bf16.msra.mxu0 %v708
        %1003 = vmatpush.bf16.msra.mxu0 %v704
        %1004 = vmatpush.bf16.msra.mxu0 %v700
        %1005 = vmatpush.bf16.msra.mxu0 %v696
        %1006 = vmatpush.bf16.msra.mxu0 %v692
        %1007 = vmatpush.bf16.msra.mxu0 %v688
        %1008 = vmatpush.bf16.msra.mxu0 %v684
        %1009 = vmatpush.bf16.msra.mxu0 %v680
        %1010 = vmatmul.bf16.gmra.mxu0 %v454
        %v1011 = vpop.f32.mrf.mxu0
        %v1012 = vadd.f32 0.0, %v1011
        %v1013 = vpop.f32.mrf.mxu0
        %v1014 = vadd.f32 0.0, %v1013
        %1015 = vmatmul.bf16.gmra.mxu0 %v456
        %v1016 = vpop.f32.mrf.mxu0
        %v1017 = vadd.f32 0.0, %v1016
        %v1018 = vpop.f32.mrf.mxu0
        %v1019 = vadd.f32 0.0, %v1018
        %1020 = vmatmul.bf16.gmra.mxu0 %v458
        %v1021 = vpop.f32.mrf.mxu0
        %v1022 = vadd.f32 0.0, %v1021
        %v1023 = vpop.f32.mrf.mxu0
        %v1024 = vadd.f32 0.0, %v1023
        %1025 = vmatmul.bf16.gmra.mxu0 %v460
        %v1026 = vpop.f32.mrf.mxu0
        %v1027 = vadd.f32 0.0, %v1026
        %v1028 = vpop.f32.mrf.mxu0
        %v1029 = vadd.f32 0.0, %v1028
        %1030 = vmatmul.bf16.gmra.mxu0 %v462
        %v1031 = vpop.f32.mrf.mxu0
        %v1032 = vadd.f32 0.0, %v1031
        %v1033 = vpop.f32.mrf.mxu0
        %v1034 = vadd.f32 0.0, %v1033
        %1035 = vmatmul.bf16.gmra.mxu0 %v464
        %v1036 = vpop.f32.mrf.mxu0
        %v1037 = vadd.f32 0.0, %v1036
        %v1038 = vpop.f32.mrf.mxu0
        %v1039 = vadd.f32 0.0, %v1038
        %1040 = vmatmul.bf16.gmra.mxu0 %v466
        %v1041 = vpop.f32.mrf.mxu0
        %v1042 = vadd.f32 0.0, %v1041
        %v1043 = vpop.f32.mrf.mxu0
        %v1044 = vadd.f32 0.0, %v1043
        %1045 = vmatmul.bf16.gmra.mxu0 %v468
        %v1046 = vpop.f32.mrf.mxu0
        %v1047 = vadd.f32 0.0, %v1046
        %v1048 = vpop.f32.mrf.mxu0
        %v1049 = vadd.f32 0.0, %v1048
        %1050 = vdwg.mxu0
        %1051 = vmatpush.bf16.msra.mxu0 %v740
        %1052 = vmatpush.bf16.msra.mxu0 %v736
        %1053 = vmatpush.bf16.msra.mxu0 %v732
        %1054 = vmatpush.bf16.msra.mxu0 %v728
        %1055 = vmatpush.bf16.msra.mxu0 %v724
        %1056 = vmatpush.bf16.msra.mxu0 %v720
        %1057 = vmatpush.bf16.msra.mxu0 %v716
        %1058 = vmatpush.bf16.msra.mxu0 %v712
        %1059 = vmatmul.bf16.gmra.mxu0 %v455
        %v1060 = vpop.f32.mrf.mxu0
        %v1061 = vadd.f32 %v1012, %v1060
        %v1062 = vpop.f32.mrf.mxu0
        %v1063 = vadd.f32 %v1014, %v1062
        %1064 = vmatmul.bf16.gmra.mxu0 %v457
        %v1065 = vpop.f32.mrf.mxu0
        %v1066 = vadd.f32 %v1017, %v1065
        %v1067 = vpop.f32.mrf.mxu0
        %v1068 = vadd.f32 %v1019, %v1067
        %1069 = vmatmul.bf16.gmra.mxu0 %v459
        %v1070 = vpop.f32.mrf.mxu0
        %v1071 = vadd.f32 %v1022, %v1070
        %v1072 = vpop.f32.mrf.mxu0
        %v1073 = vadd.f32 %v1024, %v1072
        %1074 = vmatmul.bf16.gmra.mxu0 %v461
        %v1075 = vpop.f32.mrf.mxu0
        %v1076 = vadd.f32 %v1027, %v1075
        %v1077 = vpop.f32.mrf.mxu0
        %v1078 = vadd.f32 %v1029, %v1077
        %1079 = vmatmul.bf16.gmra.mxu0 %v463
        %v1080 = vpop.f32.mrf.mxu0
        %v1081 = vadd.f32 %v1032, %v1080
        %v1082 = vpop.f32.mrf.mxu0
        %v1083 = vadd.f32 %v1034, %v1082
        %1084 = vmatmul.bf16.gmra.mxu0 %v465
        %v1085 = vpop.f32.mrf.mxu0
        %v1086 = vadd.f32 %v1037, %v1085
        %v1087 = vpop.f32.mrf.mxu0
        %v1088 = vadd.f32 %v1039, %v1087
        %1089 = vmatmul.bf16.gmra.mxu0 %v467
        %v1090 = vpop.f32.mrf.mxu0
        %v1091 = vadd.f32 %v1042, %v1090
        %v1092 = vpop.f32.mrf.mxu0
        %v1093 = vadd.f32 %v1044, %v1092
        %1094 = vmatmul.bf16.gmra.mxu0 %v469
        %v1095 = vpop.f32.mrf.mxu0
        %v1096 = vadd.f32 %v1047, %v1095
        %v1097 = vpop.f32.mrf.mxu0
        %v1098 = vadd.f32 %v1049, %v1097
        %1099 = vdwg.mxu0
        %1100 = vmatpush.bf16.msra.mxu0 %v709
        %1101 = vmatpush.bf16.msra.mxu0 %v705
        %1102 = vmatpush.bf16.msra.mxu0 %v701
        %1103 = vmatpush.bf16.msra.mxu0 %v697
        %1104 = vmatpush.bf16.msra.mxu0 %v693
        %1105 = vmatpush.bf16.msra.mxu0 %v689
        %1106 = vmatpush.bf16.msra.mxu0 %v685
        %1107 = vmatpush.bf16.msra.mxu0 %v681
        %1108 = vmatmul.bf16.gmra.mxu0 %v454
        %v1109 = vpop.f32.mrf.mxu0
        %v1110 = vadd.f32 0.0, %v1109
        %v1111 = vpop.f32.mrf.mxu0
        %v1112 = vadd.f32 0.0, %v1111
        %1113 = vmatmul.bf16.gmra.mxu0 %v456
        %v1114 = vpop.f32.mrf.mxu0
        %v1115 = vadd.f32 0.0, %v1114
        %v1116 = vpop.f32.mrf.mxu0
        %v1117 = vadd.f32 0.0, %v1116
        %1118 = vmatmul.bf16.gmra.mxu0 %v458
        %v1119 = vpop.f32.mrf.mxu0
        %v1120 = vadd.f32 0.0, %v1119
        %v1121 = vpop.f32.mrf.mxu0
        %v1122 = vadd.f32 0.0, %v1121
        %1123 = vmatmul.bf16.gmra.mxu0 %v460
        %v1124 = vpop.f32.mrf.mxu0
        %v1125 = vadd.f32 0.0, %v1124
        %v1126 = vpop.f32.mrf.mxu0
        %v1127 = vadd.f32 0.0, %v1126
        %1128 = vmatmul.bf16.gmra.mxu0 %v462
        %v1129 = vpop.f32.mrf.mxu0
        %v1130 = vadd.f32 0.0, %v1129
        %v1131 = vpop.f32.mrf.mxu0
        %v1132 = vadd.f32 0.0, %v1131
        %1133 = vmatmul.bf16.gmra.mxu0 %v464
        %v1134 = vpop.f32.mrf.mxu0
        %v1135 = vadd.f32 0.0, %v1134
        %v1136 = vpop.f32.mrf.mxu0
        %v1137 = vadd.f32 0.0, %v1136
        %1138 = vmatmul.bf16.gmra.mxu0 %v466
        %v1139 = vpop.f32.mrf.mxu0
        %v1140 = vadd.f32 0.0, %v1139
        %v1141 = vpop.f32.mrf.mxu0
        %v1142 = vadd.f32 0.0, %v1141
        %1143 = vmatmul.bf16.gmra.mxu0 %v468
        %v1144 = vpop.f32.mrf.mxu0
        %v1145 = vadd.f32 0.0, %v1144
        %v1146 = vpop.f32.mrf.mxu0
        %v1147 = vadd.f32 0.0, %v1146
        %1148 = vdwg.mxu0
        %1149 = vmatpush.bf16.msra.mxu0 %v741
        %1150 = vmatpush.bf16.msra.mxu0 %v737
        %1151 = vmatpush.bf16.msra.mxu0 %v733
        %1152 = vmatpush.bf16.msra.mxu0 %v729
        %1153 = vmatpush.bf16.msra.mxu0 %v725
        %1154 = vmatpush.bf16.msra.mxu0 %v721
        %1155 = vmatpush.bf16.msra.mxu0 %v717
        %1156 = vmatpush.bf16.msra.mxu0 %v713
        %1157 = vmatmul.bf16.gmra.mxu0 %v455
        %v1158 = vpop.f32.mrf.mxu0
        %v1159 = vadd.f32 %v1110, %v1158
        %v1160 = vpop.f32.mrf.mxu0
        %v1161 = vadd.f32 %v1112, %v1160
        %1162 = vmatmul.bf16.gmra.mxu0 %v457
        %v1163 = vpop.f32.mrf.mxu0
        %v1164 = vadd.f32 %v1115, %v1163
        %v1165 = vpop.f32.mrf.mxu0
        %v1166 = vadd.f32 %v1117, %v1165
        %1167 = vmatmul.bf16.gmra.mxu0 %v459
        %v1168 = vpop.f32.mrf.mxu0
        %v1169 = vadd.f32 %v1120, %v1168
        %v1170 = vpop.f32.mrf.mxu0
        %v1171 = vadd.f32 %v1122, %v1170
        %1172 = vmatmul.bf16.gmra.mxu0 %v461
        %v1173 = vpop.f32.mrf.mxu0
        %v1174 = vadd.f32 %v1125, %v1173
        %v1175 = vpop.f32.mrf.mxu0
        %v1176 = vadd.f32 %v1127, %v1175
        %1177 = vmatmul.bf16.gmra.mxu0 %v463
        %v1178 = vpop.f32.mrf.mxu0
        %v1179 = vadd.f32 %v1130, %v1178
        %v1180 = vpop.f32.mrf.mxu0
        %v1181 = vadd.f32 %v1132, %v1180
        %1182 = vmatmul.bf16.gmra.mxu0 %v465
        %v1183 = vpop.f32.mrf.mxu0
        %v1184 = vadd.f32 %v1135, %v1183
        %v1185 = vpop.f32.mrf.mxu0
        %v1186 = vadd.f32 %v1137, %v1185
        %1187 = vmatmul.bf16.gmra.mxu0 %v467
        %v1188 = vpop.f32.mrf.mxu0
        %v1189 = vadd.f32 %v1140, %v1188
        %v1190 = vpop.f32.mrf.mxu0
        %v1191 = vadd.f32 %v1142, %v1190
        %1192 = vmatmul.bf16.gmra.mxu0 %v469
        %v1193 = vpop.f32.mrf.mxu0
        %v1194 = vadd.f32 %v1145, %v1193
        %v1195 = vpop.f32.mrf.mxu0
        %v1196 = vadd.f32 %v1147, %v1195
        %1197 = vdwg.mxu0
        %1198 = vst [vmem:[%s315] sm:$0xff] %v865
        %1199 = vst [vmem:[%s315 + $0x8] sm:$0xff] %v963
        %1200 = vst [vmem:[%s315 + $0x10] sm:$0xff] %v1061
        %1201 = vst [vmem:[%s315 + $0x18] sm:$0xff] %v1159
        %1202 = vst [vmem:[%s315 + $0x20] sm:$0xff] %v867
        %1203 = vst [vmem:[%s315 + $0x28] sm:$0xff] %v965
        %1204 = vst [vmem:[%s315 + $0x30] sm:$0xff] %v1063
        %1205 = vst [vmem:[%s315 + $0x38] sm:$0xff] %v1161
        %1206 = vst [vmem:[%s315 + $0x40] sm:$0xff] %v870
        %1207 = vst [vmem:[%s315 + $0x48] sm:$0xff] %v968
        %1208 = vst [vmem:[%s315 + $0x50] sm:$0xff] %v1066
        %1209 = vst [vmem:[%s315 + $0x58] sm:$0xff] %v1164
        %1210 = vst [vmem:[%s315 + $0x60] sm:$0xff] %v872
        %1211 = vst [vmem:[%s315 + $0x68] sm:$0xff] %v970
        %1212 = vst [vmem:[%s315 + $0x70] sm:$0xff] %v1068
        %1213 = vst [vmem:[%s315 + $0x78] sm:$0xff] %v1166
        %1214 = vst [vmem:[%s315 + $0x80] sm:$0xff] %v875
        %1215 = vst [vmem:[%s315 + $0x88] sm:$0xff] %v973
        %1216 = vst [vmem:[%s315 + $0x90] sm:$0xff] %v1071
        %1217 = vst [vmem:[%s315 + $0x98] sm:$0xff] %v1169
        %1218 = vst [vmem:[%s315 + $0xa0] sm:$0xff] %v877
        %1219 = vst [vmem:[%s315 + $0xa8] sm:$0xff] %v975
        %1220 = vst [vmem:[%s315 + $0xb0] sm:$0xff] %v1073
        %1221 = vst [vmem:[%s315 + $0xb8] sm:$0xff] %v1171
        %1222 = vst [vmem:[%s315 + $0xc0] sm:$0xff] %v880
        %1223 = vst [vmem:[%s315 + $0xc8] sm:$0xff] %v978
        %1224 = vst [vmem:[%s315 + $0xd0] sm:$0xff] %v1076
        %1225 = vst [vmem:[%s315 + $0xd8] sm:$0xff] %v1174
        %1226 = vst [vmem:[%s315 + $0xe0] sm:$0xff] %v882
        %1227 = vst [vmem:[%s315 + $0xe8] sm:$0xff] %v980
        %1228 = vst [vmem:[%s315 + $0xf0] sm:$0xff] %v1078
        %1229 = vst [vmem:[%s315 + $0xf8] sm:$0xff] %v1176
        %1230 = vst [vmem:[%s315 + $0x100] sm:$0xff] %v885
        %1231 = vst [vmem:[%s315 + $0x108] sm:$0xff] %v983
        %1232 = vst [vmem:[%s315 + $0x110] sm:$0xff] %v1081
        %1233 = vst [vmem:[%s315 + $0x118] sm:$0xff] %v1179
        %1234 = vst [vmem:[%s315 + $0x120] sm:$0xff] %v887
        %1235 = vst [vmem:[%s315 + $0x128] sm:$0xff] %v985
        %1236 = vst [vmem:[%s315 + $0x130] sm:$0xff] %v1083
        %1237 = vst [vmem:[%s315 + $0x138] sm:$0xff] %v1181
        %1238 = vst [vmem:[%s315 + $0x140] sm:$0xff] %v890
        %1239 = vst [vmem:[%s315 + $0x148] sm:$0xff] %v988
        %1240 = vst [vmem:[%s315 + $0x150] sm:$0xff] %v1086
        %1241 = vst [vmem:[%s315 + $0x158] sm:$0xff] %v1184
        %1242 = vst [vmem:[%s315 + $0x160] sm:$0xff] %v892
        %1243 = vst [vmem:[%s315 + $0x168] sm:$0xff] %v990
        %1244 = vst [vmem:[%s315 + $0x170] sm:$0xff] %v1088
        %1245 = vst [vmem:[%s315 + $0x178] sm:$0xff] %v1186
        %1246 = vst [vmem:[%s315 + $0x180] sm:$0xff] %v895
        %1247 = vst [vmem:[%s315 + $0x188] sm:$0xff] %v993
        %1248 = vst [vmem:[%s315 + $0x190] sm:$0xff] %v1091
        %1249 = vst [vmem:[%s315 + $0x198] sm:$0xff] %v1189
        %1250 = vst [vmem:[%s315 + $0x1a0] sm:$0xff] %v897
        %1251 = vst [vmem:[%s315 + $0x1a8] sm:$0xff] %v995
        %1252 = vst [vmem:[%s315 + $0x1b0] sm:$0xff] %v1093
        %1253 = vst [vmem:[%s315 + $0x1b8] sm:$0xff] %v1191
        %1254 = vst [vmem:[%s315 + $0x1c0] sm:$0xff] %v900
        %1255 = vst [vmem:[%s315 + $0x1c8] sm:$0xff] %v998
        %1256 = vst [vmem:[%s315 + $0x1d0] sm:$0xff] %v1096
        %1257 = vst [vmem:[%s315 + $0x1d8] sm:$0xff] %v1194
        %1258 = vst [vmem:[%s315 + $0x1e0] sm:$0xff] %v902
        %1259 = vst [vmem:[%s315 + $0x1e8] sm:$0xff] %v1000
        %1260 = vst [vmem:[%s315 + $0x1f0] sm:$0xff] %v1098
        %1261 = vst [vmem:[%s315 + $0x1f8] sm:$0xff] %v1196
        %s1262 = sand.u32 %s87, 1
        %s1263 = sand.u32 %s87, 1
        %s1264 = smul.addr %s1263, 512
        %s1265 = scalar_lea.vmem [#allocation3], %s1264
        // Predicated region
        $region52: #{generator_forward.14} parent=46 // pred_check
          %p1266 = pneg %p97
        $region53: #{generator_forward.14} parent=46 // pred_check_branch
          %1268 = sbr.rel (%p1266) target = $region55
        $region54: #{generator_forward.14} parent=46 // pred_region
          %s1269 = smul.u32 16, %s17
          %s1270 = smul.u32 4, %s18
          %s1271 = smul.addr %s1269, 16
          %s1272 = sadd.s32 %s1270, %s1271
          %s1273 = smul.addr %s1272, 8
          %s1274 = scalar_lea.vmem %s2, %s1273
          // Predicated region
          $region56: #{generator_forward.14} parent=54 // pred_check
            _
          $region57: #{generator_forward.14} parent=54 // pred_check_branch
            %1276 = sbr.rel (0) target = $region59
          $region58: #{generator_forward.14} parent=54 // pred_region
            // Predicated region
            $region60: #{generator_forward.14} parent=58 // pred_check
              _
            $region61: #{generator_forward.14} parent=58 // pred_check_branch
              %1278 = sbr.rel (0) target = $region63
            $region62: #{generator_forward.14} parent=58 // pred_region
              loop: start=0, step=1, limit=1
              $region64: #{generator_forward.14} parent=62 // loop_pre_header
                _
              $region65: #{generator_forward.14} parent=62 // loop_header
                %s1280 = sphi 0, %s1284
                %p1281 = scmp.ge.s32.totalorder %s1280, 1
                %s1285 = sphi %s1265, %s1265
                %s1286 = sphi %s1274, %s1274
              $region66: #{generator_forward.14} parent=62 // loop_header_branch
                %1283 = sbr.rel (%p1281) target = $region70
              $region67: #{generator_forward.14} parent=62 // loop_body
                %v1287 = vld [vmem:[%s1285] sm:$0xff]
                %1288 = vst [vmem:[%s1286] sm:$0xff] %v1287
                %v1289 = vld [vmem:[%s1285 + $0x8] sm:$0xff]
                %1290 = vst [vmem:[%s1286 + $0x8] sm:$0xff] %v1289
                %v1291 = vld [vmem:[%s1285 + $0x10] sm:$0xff]
                %1292 = vst [vmem:[%s1286 + $0x10] sm:$0xff] %v1291
                %v1293 = vld [vmem:[%s1285 + $0x18] sm:$0xff]
                %1294 = vst [vmem:[%s1286 + $0x18] sm:$0xff] %v1293
                %v1295 = vld [vmem:[%s1285 + $0x20] sm:$0xff]
                %1296 = vst [vmem:[%s1286 + $0x80] sm:$0xff] %v1295
                %v1297 = vld [vmem:[%s1285 + $0x28] sm:$0xff]
                %1298 = vst [vmem:[%s1286 + $0x88] sm:$0xff] %v1297
                %v1299 = vld [vmem:[%s1285 + $0x30] sm:$0xff]
                %1300 = vst [vmem:[%s1286 + $0x90] sm:$0xff] %v1299
                %v1301 = vld [vmem:[%s1285 + $0x38] sm:$0xff]
                %1302 = vst [vmem:[%s1286 + $0x98] sm:$0xff] %v1301
                %v1303 = vld [vmem:[%s1285 + $0x40] sm:$0xff]
                %1304 = vst [vmem:[%s1286 + $0x100] sm:$0xff] %v1303
                %v1305 = vld [vmem:[%s1285 + $0x48] sm:$0xff]
                %1306 = vst [vmem:[%s1286 + $0x108] sm:$0xff] %v1305
                %v1307 = vld [vmem:[%s1285 + $0x50] sm:$0xff]
                %1308 = vst [vmem:[%s1286 + $0x110] sm:$0xff] %v1307
                %v1309 = vld [vmem:[%s1285 + $0x58] sm:$0xff]
                %1310 = vst [vmem:[%s1286 + $0x118] sm:$0xff] %v1309
                %v1311 = vld [vmem:[%s1285 + $0x60] sm:$0xff]
                %1312 = vst [vmem:[%s1286 + $0x180] sm:$0xff] %v1311
                %v1313 = vld [vmem:[%s1285 + $0x68] sm:$0xff]
                %1314 = vst [vmem:[%s1286 + $0x188] sm:$0xff] %v1313
                %v1315 = vld [vmem:[%s1285 + $0x70] sm:$0xff]
                %1316 = vst [vmem:[%s1286 + $0x190] sm:$0xff] %v1315
                %v1317 = vld [vmem:[%s1285 + $0x78] sm:$0xff]
                %1318 = vst [vmem:[%s1286 + $0x198] sm:$0xff] %v1317
                %v1319 = vld [vmem:[%s1285 + $0x80] sm:$0xff]
                %1320 = vst [vmem:[%s1286 + $0x200] sm:$0xff] %v1319
                %v1321 = vld [vmem:[%s1285 + $0x88] sm:$0xff]
                %1322 = vst [vmem:[%s1286 + $0x208] sm:$0xff] %v1321
                %v1323 = vld [vmem:[%s1285 + $0x90] sm:$0xff]
                %1324 = vst [vmem:[%s1286 + $0x210] sm:$0xff] %v1323
                %v1325 = vld [vmem:[%s1285 + $0x98] sm:$0xff]
                %1326 = vst [vmem:[%s1286 + $0x218] sm:$0xff] %v1325
                %v1327 = vld [vmem:[%s1285 + $0xa0] sm:$0xff]
                %1328 = vst [vmem:[%s1286 + $0x280] sm:$0xff] %v1327
                %v1329 = vld [vmem:[%s1285 + $0xa8] sm:$0xff]
                %1330 = vst [vmem:[%s1286 + $0x288] sm:$0xff] %v1329
                %v1331 = vld [vmem:[%s1285 + $0xb0] sm:$0xff]
                %1332 = vst [vmem:[%s1286 + $0x290] sm:$0xff] %v1331
                %v1333 = vld [vmem:[%s1285 + $0xb8] sm:$0xff]
                %1334 = vst [vmem:[%s1286 + $0x298] sm:$0xff] %v1333
                %v1335 = vld [vmem:[%s1285 + $0xc0] sm:$0xff]
                %1336 = vst [vmem:[%s1286 + $0x300] sm:$0xff] %v1335
                %v1337 = vld [vmem:[%s1285 + $0xc8] sm:$0xff]
                %1338 = vst [vmem:[%s1286 + $0x308] sm:$0xff] %v1337
                %v1339 = vld [vmem:[%s1285 + $0xd0] sm:$0xff]
                %1340 = vst [vmem:[%s1286 + $0x310] sm:$0xff] %v1339
                %v1341 = vld [vmem:[%s1285 + $0xd8] sm:$0xff]
                %1342 = vst [vmem:[%s1286 + $0x318] sm:$0xff] %v1341
                %v1343 = vld [vmem:[%s1285 + $0xe0] sm:$0xff]
                %1344 = vst [vmem:[%s1286 + $0x380] sm:$0xff] %v1343
                %v1345 = vld [vmem:[%s1285 + $0xe8] sm:$0xff]
                %1346 = vst [vmem:[%s1286 + $0x388] sm:$0xff] %v1345
                %v1347 = vld [vmem:[%s1285 + $0xf0] sm:$0xff]
                %1348 = vst [vmem:[%s1286 + $0x390] sm:$0xff] %v1347
                %v1349 = vld [vmem:[%s1285 + $0xf8] sm:$0xff]
                %1350 = vst [vmem:[%s1286 + $0x398] sm:$0xff] %v1349
                %v1351 = vld [vmem:[%s1285 + $0x100] sm:$0xff]
                %1352 = vst [vmem:[%s1286 + $0x400] sm:$0xff] %v1351
                %v1353 = vld [vmem:[%s1285 + $0x108] sm:$0xff]
                %1354 = vst [vmem:[%s1286 + $0x408] sm:$0xff] %v1353
                %v1355 = vld [vmem:[%s1285 + $0x110] sm:$0xff]
                %1356 = vst [vmem:[%s1286 + $0x410] sm:$0xff] %v1355
                %v1357 = vld [vmem:[%s1285 + $0x118] sm:$0xff]
                %1358 = vst [vmem:[%s1286 + $0x418] sm:$0xff] %v1357
                %v1359 = vld [vmem:[%s1285 + $0x120] sm:$0xff]
                %1360 = vst [vmem:[%s1286 + $0x480] sm:$0xff] %v1359
                %v1361 = vld [vmem:[%s1285 + $0x128] sm:$0xff]
                %1362 = vst [vmem:[%s1286 + $0x488] sm:$0xff] %v1361
                %v1363 = vld [vmem:[%s1285 + $0x130] sm:$0xff]
                %1364 = vst [vmem:[%s1286 + $0x490] sm:$0xff] %v1363
                %v1365 = vld [vmem:[%s1285 + $0x138] sm:$0xff]
                %1366 = vst [vmem:[%s1286 + $0x498] sm:$0xff] %v1365
                %v1367 = vld [vmem:[%s1285 + $0x140] sm:$0xff]
                %1368 = vst [vmem:[%s1286 + $0x500] sm:$0xff] %v1367
                %v1369 = vld [vmem:[%s1285 + $0x148] sm:$0xff]
                %1370 = vst [vmem:[%s1286 + $0x508] sm:$0xff] %v1369
                %v1371 = vld [vmem:[%s1285 + $0x150] sm:$0xff]
                %1372 = vst [vmem:[%s1286 + $0x510] sm:$0xff] %v1371
                %v1373 = vld [vmem:[%s1285 + $0x158] sm:$0xff]
                %1374 = vst [vmem:[%s1286 + $0x518] sm:$0xff] %v1373
                %v1375 = vld [vmem:[%s1285 + $0x160] sm:$0xff]
                %1376 = vst [vmem:[%s1286 + $0x580] sm:$0xff] %v1375
                %v1377 = vld [vmem:[%s1285 + $0x168] sm:$0xff]
                %1378 = vst [vmem:[%s1286 + $0x588] sm:$0xff] %v1377
                %v1379 = vld [vmem:[%s1285 + $0x170] sm:$0xff]
                %1380 = vst [vmem:[%s1286 + $0x590] sm:$0xff] %v1379
                %v1381 = vld [vmem:[%s1285 + $0x178] sm:$0xff]
                %1382 = vst [vmem:[%s1286 + $0x598] sm:$0xff] %v1381
                %v1383 = vld [vmem:[%s1285 + $0x180] sm:$0xff]
                %1384 = vst [vmem:[%s1286 + $0x600] sm:$0xff] %v1383
                %v1385 = vld [vmem:[%s1285 + $0x188] sm:$0xff]
                %1386 = vst [vmem:[%s1286 + $0x608] sm:$0xff] %v1385
                %v1387 = vld [vmem:[%s1285 + $0x190] sm:$0xff]
                %1388 = vst [vmem:[%s1286 + $0x610] sm:$0xff] %v1387
                %v1389 = vld [vmem:[%s1285 + $0x198] sm:$0xff]
                %1390 = vst [vmem:[%s1286 + $0x618] sm:$0xff] %v1389
                %v1391 = vld [vmem:[%s1285 + $0x1a0] sm:$0xff]
                %1392 = vst [vmem:[%s1286 + $0x680] sm:$0xff] %v1391
                %v1393 = vld [vmem:[%s1285 + $0x1a8] sm:$0xff]
                %1394 = vst [vmem:[%s1286 + $0x688] sm:$0xff] %v1393
                %v1395 = vld [vmem:[%s1285 + $0x1b0] sm:$0xff]
                %1396 = vst [vmem:[%s1286 + $0x690] sm:$0xff] %v1395
                %v1397 = vld [vmem:[%s1285 + $0x1b8] sm:$0xff]
                %1398 = vst [vmem:[%s1286 + $0x698] sm:$0xff] %v1397
                %v1399 = vld [vmem:[%s1285 + $0x1c0] sm:$0xff]
                %1400 = vst [vmem:[%s1286 + $0x700] sm:$0xff] %v1399
                %v1401 = vld [vmem:[%s1285 + $0x1c8] sm:$0xff]
                %1402 = vst [vmem:[%s1286 + $0x708] sm:$0xff] %v1401
                %v1403 = vld [vmem:[%s1285 + $0x1d0] sm:$0xff]
                %1404 = vst [vmem:[%s1286 + $0x710] sm:$0xff] %v1403
                %v1405 = vld [vmem:[%s1285 + $0x1d8] sm:$0xff]
                %1406 = vst [vmem:[%s1286 + $0x718] sm:$0xff] %v1405
                %v1407 = vld [vmem:[%s1285 + $0x1e0] sm:$0xff]
                %1408 = vst [vmem:[%s1286 + $0x780] sm:$0xff] %v1407
                %v1409 = vld [vmem:[%s1285 + $0x1e8] sm:$0xff]
                %1410 = vst [vmem:[%s1286 + $0x788] sm:$0xff] %v1409
                %v1411 = vld [vmem:[%s1285 + $0x1f0] sm:$0xff]
                %1412 = vst [vmem:[%s1286 + $0x790] sm:$0xff] %v1411
                %v1413 = vld [vmem:[%s1285 + $0x1f8] sm:$0xff]
                %1414 = vst [vmem:[%s1286 + $0x798] sm:$0xff] %v1413
              $region68: #{generator_forward.14} parent=62 // loop_footer
                %s1284 = sadd.s32 1, %s1280
              $region69: #{generator_forward.14} parent=62 // loop_footer_branch
                %1279 = sbr.rel target = $region65
              $region70: #{generator_forward.14} parent=62 // loop_exit
                _
            $region63: #{generator_forward.14} parent=58 // pred_fallthru
              _
            // Predicated region
            $region71: #{generator_forward.14} parent=58 // pred_check
              _
            $region72: #{generator_forward.14} parent=58 // pred_check_branch
              %1416 = sbr.rel target = $region74
            $region73: #{generator_forward.14} parent=58 // pred_region
              _
            $region74: #{generator_forward.14} parent=58 // pred_fallthru
              _
          $region59: #{generator_forward.14} parent=54 // pred_fallthru
            _
          %1417 = vnop
        $region55: #{generator_forward.14} parent=46 // pred_fallthru
          _
      $region47: #{generator_forward.14} parent=5 // pred_fallthru
        _
      %p1418 = scmp.le.s32.totalorder 2, %s8
      // Predicated region
      $region75: #{generator_forward.14} parent=5 // pred_check
        %p1419 = pneg %p1418
      $region76: #{generator_forward.14} parent=5 // pred_check_branch
        %1421 = sbr.rel (%p1419) target = $region78
      $region77: #{generator_forward.14} parent=5 // pred_region
        %s1422 = ssub.s32 %s8, 2
        // Predicated region
        $region79: #{generator_forward.14} parent=77 // pred_check
          %p1423 = pneg %p103
        $region80: #{generator_forward.14} parent=77 // pred_check_branch
          %1425 = sbr.rel (%p1423) target = $region82
        $region81: #{generator_forward.14} parent=77 // pred_region
          %s1426 = sand.u32 %s88, 1
          %s1427 = sand.u32 %s88, 1
          %s1428 = smul.addr %s1427, 512
          %s1429 = scalar_lea.vmem [#allocation3], %s1428
        $region82: #{generator_forward.14} parent=77 // pred_fallthru
          _
      $region78: #{generator_forward.14} parent=5 // pred_fallthru
        _
    $region6: #{generator_forward.14} parent=1 // loop_footer
      %s12 = sadd.s32 1, %s8
    $region7: #{generator_forward.14} parent=1 // loop_footer_branch
      %7 = sbr.rel target = $region3
    $region8: #{generator_forward.14} parent=1 // loop_exit
      _

// kernel: generator_forward.15
$region0: #{generator_forward.15}
  #allocation0 [shape = 'u32[]', space=smem, size = 0x4, offset = 0x4, fixed_abs, tag = 'smem constant byte address 0x4 - core index']
  #allocation1 [shape = 'u32[72,128]{1,0:T(1,128)}', space=vmem, size = 0x9000, scoped, tag = 'internal scratch']
  %s0 = inlined_call_operand.vmem [shape: f32[512,128], index: 0, kind: input, shape index: {}]
  %s1 = inlined_call_operand.vmem [shape: bf16[512,128], index: 1, kind: output, shape index: {}]
  %s2 = sld [smem:[#allocation0]]
  $region14: #{generator_forward.15} parent=0
    _
  %s4 = ssub.s32 1, %s2
  %s5 = scalar_select 0, %s4, %s2
  // Predicated region
  $region2: #{generator_forward.15} parent=0 // pred_check
    _
  $region3: #{generator_forward.15} parent=0 // pred_check_branch
    %7 = sbr.rel (0) target = $region5
  $region4: #{generator_forward.15} parent=0 // pred_region
    _
  $region5: #{generator_forward.15} parent=0 // pred_fallthru
    _
  %v8 = vld [vmem:[%s0] sm:$0xff]
  %v9 = vld [vmem:[%s0 + $0x8] sm:$0xff]
  %v10 = vld [vmem:[%s0 + $0x10] sm:$0xff]
  %v11 = vld [vmem:[%s0 + $0x18] sm:$0xff]
  %v12 = vld [vmem:[%s0 + $0x20] sm:$0xff]
  %v13 = vld [vmem:[%s0 + $0x28] sm:$0xff]
  %v14 = vld [vmem:[%s0 + $0x30] sm:$0xff]
  %v15 = vld [vmem:[%s0 + $0x38] sm:$0xff]
  %v16 = vld [vmem:[%s0 + $0x40] sm:$0xff]
  %v17 = vld [vmem:[%s0 + $0x48] sm:$0xff]
  %v18 = vld [vmem:[%s0 + $0x50] sm:$0xff]
  %v19 = vld [vmem:[%s0 + $0x58] sm:$0xff]
  %v20 = vld [vmem:[%s0 + $0x60] sm:$0xff]
  %v21 = vld [vmem:[%s0 + $0x68] sm:$0xff]
  %v22 = vld [vmem:[%s0 + $0x70] sm:$0xff]
  %v23 = vld [vmem:[%s0 + $0x78] sm:$0xff]
  %v24 = vld [vmem:[%s0 + $0x80] sm:$0xff]
  %v25 = vld [vmem:[%s0 + $0x88] sm:$0xff]
  %v26 = vld [vmem:[%s0 + $0x90] sm:$0xff]
  %v27 = vld [vmem:[%s0 + $0x98] sm:$0xff]
  %v28 = vld [vmem:[%s0 + $0xa0] sm:$0xff]
  %v29 = vld [vmem:[%s0 + $0xa8] sm:$0xff]
  %v30 = vld [vmem:[%s0 + $0xb0] sm:$0xff]
  %v31 = vld [vmem:[%s0 + $0xb8] sm:$0xff]
  %v32 = vld [vmem:[%s0 + $0xc0] sm:$0xff]
  %v33 = vld [vmem:[%s0 + $0xc8] sm:$0xff]
  %v34 = vld [vmem:[%s0 + $0xd0] sm:$0xff]
  %v35 = vld [vmem:[%s0 + $0xd8] sm:$0xff]
  %v36 = vld [vmem:[%s0 + $0xe0] sm:$0xff]
  %v37 = vld [vmem:[%s0 + $0xe8] sm:$0xff]
  %v38 = vld [vmem:[%s0 + $0xf0] sm:$0xff]
  %v39 = vld [vmem:[%s0 + $0xf8] sm:$0xff]
  %v40 = vld [vmem:[%s0 + $0x100] sm:$0xff]
  %v41 = vld [vmem:[%s0 + $0x108] sm:$0xff]
  %v42 = vld [vmem:[%s0 + $0x110] sm:$0xff]
  %v43 = vld [vmem:[%s0 + $0x118] sm:$0xff]
  %v44 = vld [vmem:[%s0 + $0x120] sm:$0xff]
  %v45 = vld [vmem:[%s0 + $0x128] sm:$0xff]
  %v46 = vld [vmem:[%s0 + $0x130] sm:$0xff]
  %v47 = vld [vmem:[%s0 + $0x138] sm:$0xff]
  %v48 = vld [vmem:[%s0 + $0x140] sm:$0xff]
  %v49 = vld [vmem:[%s0 + $0x148] sm:$0xff]
  %v50 = vld [vmem:[%s0 + $0x150] sm:$0xff]
  %v51 = vld [vmem:[%s0 + $0x158] sm:$0xff]
  %v52 = vld [vmem:[%s0 + $0x160] sm:$0xff]
  %v53 = vld [vmem:[%s0 + $0x168] sm:$0xff]
  %v54 = vld [vmem:[%s0 + $0x170] sm:$0xff]
  %v55 = vld [vmem:[%s0 + $0x178] sm:$0xff]
  %v56 = vld [vmem:[%s0 + $0x180] sm:$0xff]
  %v57 = vld [vmem:[%s0 + $0x188] sm:$0xff]
  %v58 = vld [vmem:[%s0 + $0x190] sm:$0xff]
  %v59 = vld [vmem:[%s0 + $0x198] sm:$0xff]
  %v60 = vld [vmem:[%s0 + $0x1a0] sm:$0xff]
  %v61 = vld [vmem:[%s0 + $0x1a8] sm:$0xff]
  %v62 = vld [vmem:[%s0 + $0x1b0] sm:$0xff]
  %v63 = vld [vmem:[%s0 + $0x1b8] sm:$0xff]
  %v64 = vld [vmem:[%s0 + $0x1c0] sm:$0xff]
  %v65 = vld [vmem:[%s0 + $0x1c8] sm:$0xff]
  %v66 = vld [vmem:[%s0 + $0x1d0] sm:$0xff]
  %v67 = vld [vmem:[%s0 + $0x1d8] sm:$0xff]
  %v68 = vld [vmem:[%s0 + $0x1e0] sm:$0xff]
  %v69 = vld [vmem:[%s0 + $0x1e8] sm:$0xff]
  %v70 = vld [vmem:[%s0 + $0x1f0] sm:$0xff]
  %v71 = vld [vmem:[%s0 + $0x1f8] sm:$0xff]
  %v72 = vadd.f32 %v8, %v9
  %v73 = vadd.f32 %v72, %v10
  %v74 = vadd.f32 %v73, %v11
  %v75 = vadd.f32 %v74, %v12
  %v76 = vadd.f32 %v75, %v13
  %v77 = vadd.f32 %v76, %v14
  %v78 = vadd.f32 %v77, %v15
  %v79 = vadd.f32 %v78, %v16
  %v80 = vadd.f32 %v79, %v17
  %v81 = vadd.f32 %v80, %v18
  %v82 = vadd.f32 %v81, %v19
  %v83 = vadd.f32 %v82, %v20
  %v84 = vadd.f32 %v83, %v21
  %v85 = vadd.f32 %v84, %v22
  %v86 = vadd.f32 %v85, %v23
  %v87 = vadd.f32 %v86, %v24
  %v88 = vadd.f32 %v87, %v25
  %v89 = vadd.f32 %v88, %v26
  %v90 = vadd.f32 %v89, %v27
  %v91 = vadd.f32 %v90, %v28
  %v92 = vadd.f32 %v91, %v29
  %v93 = vadd.f32 %v92, %v30
  %v94 = vadd.f32 %v93, %v31
  %v95 = vadd.f32 %v94, %v32
  %v96 = vadd.f32 %v95, %v33
  %v97 = vadd.f32 %v96, %v34
  %v98 = vadd.f32 %v97, %v35
  %v99 = vadd.f32 %v98, %v36
  %v100 = vadd.f32 %v99, %v37
  %v101 = vadd.f32 %v100, %v38
  %v102 = vadd.f32 %v101, %v39
  %v103 = vadd.f32 %v102, %v40
  %v104 = vadd.f32 %v103, %v41
  %v105 = vadd.f32 %v104, %v42
  %v106 = vadd.f32 %v105, %v43
  %v107 = vadd.f32 %v106, %v44
  %v108 = vadd.f32 %v107, %v45
  %v109 = vadd.f32 %v108, %v46
  %v110 = vadd.f32 %v109, %v47
  %v111 = vadd.f32 %v110, %v48
  %v112 = vadd.f32 %v111, %v49
  %v113 = vadd.f32 %v112, %v50
  %v114 = vadd.f32 %v113, %v51
  %v115 = vadd.f32 %v114, %v52
  %v116 = vadd.f32 %v115, %v53
  %v117 = vadd.f32 %v116, %v54
  %v118 = vadd.f32 %v117, %v55
  %v119 = vadd.f32 %v118, %v56
  %v120 = vadd.f32 %v119, %v57
  %v121 = vadd.f32 %v120, %v58
  %v122 = vadd.f32 %v121, %v59
  %v123 = vadd.f32 %v122, %v60
  %v124 = vadd.f32 %v123, %v61
  %v125 = vadd.f32 %v124, %v62
  %v126 = vadd.f32 %v125, %v63
  %v127 = vadd.f32 %v126, %v64
  %v128 = vadd.f32 %v127, %v65
  %v129 = vadd.f32 %v128, %v66
  %v130 = vadd.f32 %v129, %v67
  %v131 = vadd.f32 %v130, %v68
  %v132 = vadd.f32 %v131, %v69
  %v133 = vadd.f32 %v132, %v70
  %v134 = vadd.f32 %v133, %v71
  %v135 = vrot.slane %v134, 4
  %v136 = vadd.f32 %v134, %v135
  %v137 = vrot.slane %v136, 2
  %v138 = vadd.f32 %v136, %v137
  %v139 = vrot.slane %v138, 1
  %v140 = vadd.f32 %v138, %v139
  %v141 = vrcp.pop 512.0
  %v142 = vmul.f32 512.0, %v141
  %v143 = vsub.f32 1.0, %v142
  %v144 = vmul.f32 %v141, %v143
  %v145 = vadd.f32 %v141, %v144
  %vm146 = vweird.f32 %v141
  %v147 = vsel %vm146, %v141, %v145
  %v148 = vmul.f32 %v140, %v147
  %v149 = vsub.f32 %v8, %v148
  %v150 = vsub.f32 %v9, %v148
  %v151 = vsub.f32 %v10, %v148
  %v152 = vsub.f32 %v11, %v148
  %v153 = vsub.f32 %v12, %v148
  %v154 = vsub.f32 %v13, %v148
  %v155 = vsub.f32 %v14, %v148
  %v156 = vsub.f32 %v15, %v148
  %v157 = vsub.f32 %v16, %v148
  %v158 = vsub.f32 %v17, %v148
  %v159 = vsub.f32 %v18, %v148
  %v160 = vsub.f32 %v19, %v148
  %v161 = vsub.f32 %v20, %v148
  %v162 = vsub.f32 %v21, %v148
  %v163 = vsub.f32 %v22, %v148
  %v164 = vsub.f32 %v23, %v148
  %v165 = vsub.f32 %v24, %v148
  %v166 = vsub.f32 %v25, %v148
  %v167 = vsub.f32 %v26, %v148
  %v168 = vsub.f32 %v27, %v148
  %v169 = vsub.f32 %v28, %v148
  %v170 = vsub.f32 %v29, %v148
  %v171 = vsub.f32 %v30, %v148
  %v172 = vsub.f32 %v31, %v148
  %v173 = vsub.f32 %v32, %v148
  %v174 = vsub.f32 %v33, %v148
  %v175 = vsub.f32 %v34, %v148
  %v176 = vsub.f32 %v35, %v148
  %v177 = vsub.f32 %v36, %v148
  %v178 = vsub.f32 %v37, %v148
  %v179 = vsub.f32 %v38, %v148
  %v180 = vsub.f32 %v39, %v148
  %v181 = vsub.f32 %v40, %v148
  %v182 = vsub.f32 %v41, %v148
  %v183 = vsub.f32 %v42, %v148
  %v184 = vsub.f32 %v43, %v148
  %v185 = vsub.f32 %v44, %v148
  %v186 = vsub.f32 %v45, %v148
  %v187 = vsub.f32 %v46, %v148
  %v188 = vsub.f32 %v47, %v148
  %v189 = vsub.f32 %v48, %v148
  %v190 = vsub.f32 %v49, %v148
  %v191 = vsub.f32 %v50, %v148
  %v192 = vsub.f32 %v51, %v148
  %v193 = vsub.f32 %v52, %v148
  %v194 = vsub.f32 %v53, %v148
  %v195 = vsub.f32 %v54, %v148
  %v196 = vsub.f32 %v55, %v148
  %v197 = vsub.f32 %v56, %v148
  %v198 = vsub.f32 %v57, %v148
  %v199 = vsub.f32 %v58, %v148
  %v200 = vsub.f32 %v59, %v148
  %v201 = vsub.f32 %v60, %v148
  %v202 = vsub.f32 %v61, %v148
  %v203 = vsub.f32 %v62, %v148
  %v204 = vsub.f32 %v63, %v148
  %v205 = vsub.f32 %v64, %v148
  %v206 = vsub.f32 %v65, %v148
  %v207 = vsub.f32 %v66, %v148
  %v208 = vsub.f32 %v67, %v148
  %v209 = vsub.f32 %v68, %v148
  %v210 = vsub.f32 %v69, %v148
  %v211 = vsub.f32 %v70, %v148
  %v212 = vsub.f32 %v71, %v148
  %v213 = vmul.f32 %v149, %v149
  %v214 = vmul.f32 %v150, %v150
  %v215 = vmul.f32 %v151, %v151
  %v216 = vmul.f32 %v152, %v152
  %v217 = vmul.f32 %v153, %v153
  %v218 = vmul.f32 %v154, %v154
  %v219 = vmul.f32 %v155, %v155
  %v220 = vmul.f32 %v156, %v156
  %v221 = vmul.f32 %v157, %v157
  %v222 = vmul.f32 %v158, %v158
  %v223 = vmul.f32 %v159, %v159
  %v224 = vmul.f32 %v160, %v160
  %v225 = vmul.f32 %v161, %v161
  %v226 = vmul.f32 %v162, %v162
  %v227 = vmul.f32 %v163, %v163
  %v228 = vmul.f32 %v164, %v164
  %v229 = vmul.f32 %v165, %v165
  %v230 = vmul.f32 %v166, %v166
  %v231 = vmul.f32 %v167, %v167
  %v232 = vmul.f32 %v168, %v168
  %v233 = vmul.f32 %v169, %v169
  %v234 = vmul.f32 %v170, %v170
  %v235 = vmul.f32 %v171, %v171
  %v236 = vmul.f32 %v172, %v172
  %v237 = vmul.f32 %v173, %v173
  %v238 = vmul.f32 %v174, %v174
  %v239 = vmul.f32 %v175, %v175
  %v240 = vmul.f32 %v176, %v176
  %v241 = vmul.f32 %v177, %v177
  %v242 = vmul.f32 %v178, %v178
  %v243 = vmul.f32 %v179, %v179
  %v244 = vmul.f32 %v180, %v180
  %v245 = vmul.f32 %v181, %v181
  %v246 = vmul.f32 %v182, %v182
  %v247 = vmul.f32 %v183, %v183
  %v248 = vmul.f32 %v184, %v184
  %v249 = vmul.f32 %v185, %v185
  %v250 = vmul.f32 %v186, %v186
  %v251 = vmul.f32 %v187, %v187
  %v252 = vmul.f32 %v188, %v188
  %v253 = vmul.f32 %v189, %v189
  %v254 = vmul.f32 %v190, %v190
  %v255 = vmul.f32 %v191, %v191
  %v256 = vmul.f32 %v192, %v192
  %v257 = vmul.f32 %v193, %v193
  %v258 = vmul.f32 %v194, %v194
  %v259 = vmul.f32 %v195, %v195
  %v260 = vmul.f32 %v196, %v196
  %v261 = vmul.f32 %v197, %v197
  %v262 = vmul.f32 %v198, %v198
  %v263 = vmul.f32 %v199, %v199
  %v264 = vmul.f32 %v200, %v200
  %v265 = vmul.f32 %v201, %v201
  %v266 = vmul.f32 %v202, %v202
  %v267 = vmul.f32 %v203, %v203
  %v268 = vmul.f32 %v204, %v204
  %v269 = vmul.f32 %v205, %v205
  %v270 = vmul.f32 %v206, %v206
  %v271 = vmul.f32 %v207, %v207
  %v272 = vmul.f32 %v208, %v208
  %v273 = vmul.f32 %v209, %v209
  %v274 = vmul.f32 %v210, %v210
  %v275 = vmul.f32 %v211, %v211
  %v276 = vmul.f32 %v212, %v212
  %v277 = vadd.f32 %v213, %v214
  %v278 = vadd.f32 %v277, %v215
  %v279 = vadd.f32 %v278, %v216
  %v280 = vadd.f32 %v279, %v217
  %v281 = vadd.f32 %v280, %v218
  %v282 = vadd.f32 %v281, %v219
  %v283 = vadd.f32 %v282, %v220
  %v284 = vadd.f32 %v283, %v221
  %v285 = vadd.f32 %v284, %v222
  %v286 = vadd.f32 %v285, %v223
  %v287 = vadd.f32 %v286, %v224
  %v288 = vadd.f32 %v287, %v225
  %v289 = vadd.f32 %v288, %v226
  %v290 = vadd.f32 %v289, %v227
  %v291 = vadd.f32 %v290, %v228
  %v292 = vadd.f32 %v291, %v229
  %v293 = vadd.f32 %v292, %v230
  %v294 = vadd.f32 %v293, %v231
  %v295 = vadd.f32 %v294, %v232
  %v296 = vadd.f32 %v295, %v233
  %v297 = vadd.f32 %v296, %v234
  %v298 = vadd.f32 %v297, %v235
  %v299 = vadd.f32 %v298, %v236
  %v300 = vadd.f32 %v299, %v237
  %v301 = vadd.f32 %v300, %v238
  %v302 = vadd.f32 %v301, %v239
  %v303 = vadd.f32 %v302, %v240
  %v304 = vadd.f32 %v303, %v241
  %v305 = vadd.f32 %v304, %v242
  %v306 = vadd.f32 %v305, %v243
  %v307 = vadd.f32 %v306, %v244
  %v308 = vadd.f32 %v307, %v245
  %v309 = vadd.f32 %v308, %v246
  %v310 = vadd.f32 %v309, %v247
  %v311 = vadd.f32 %v310, %v248
  %v312 = vadd.f32 %v311, %v249
  %v313 = vadd.f32 %v312, %v250
  %v314 = vadd.f32 %v313, %v251
  %v315 = vadd.f32 %v314, %v252
  %v316 = vadd.f32 %v315, %v253
  %v317 = vadd.f32 %v316, %v254
  %v318 = vadd.f32 %v317, %v255
  %v319 = vadd.f32 %v318, %v256
  %v320 = vadd.f32 %v319, %v257
  %v321 = vadd.f32 %v320, %v258
  %v322 = vadd.f32 %v321, %v259
  %v323 = vadd.f32 %v322, %v260
  %v324 = vadd.f32 %v323, %v261
  %v325 = vadd.f32 %v324, %v262
  %v326 = vadd.f32 %v325, %v263
  %v327 = vadd.f32 %v326, %v264
  %v328 = vadd.f32 %v327, %v265
  %v329 = vadd.f32 %v328, %v266
  %v330 = vadd.f32 %v329, %v267
  %v331 = vadd.f32 %v330, %v268
  %v332 = vadd.f32 %v331, %v269
  %v333 = vadd.f32 %v332, %v270
  %v334 = vadd.f32 %v333, %v271
  %v335 = vadd.f32 %v334, %v272
  %v336 = vadd.f32 %v335, %v273
  %v337 = vadd.f32 %v336, %v274
  %v338 = vadd.f32 %v337, %v275
  %v339 = vadd.f32 %v338, %v276
  %v340 = vrot.slane %v339, 4
  %v341 = vadd.f32 %v339, %v340
  %v342 = vrot.slane %v341, 2
  %v343 = vadd.f32 %v341, %v342
  %v344 = vrot.slane %v343, 1
  %v345 = vadd.f32 %v343, %v344
  %v346 = vmul.f32 %v345, %v147
  %v347 = vadd.f32 %v346, 1e-05
  %v348 = vrsqrt.pop %v347
  %v349 = vmul.f32 %v348, %v347
  %v350 = vmul.f32 %v349, %v348
  %v351 = vmul.f32 0.5, %v350
  %v352 = vsub.f32 1.5, %v351
  %v353 = vmul.f32 %v348, %v352
  %vm354 = vweird.f32 %v347
  %vm355 = vweird.f32 %v348
  %vm356 = vmor %vm354, %vm355
  %v357 = vsel %vm356, %v348, %v353
  %v358 = vmul.f32 %v149, %v357
  %v359 = vmul.f32 %v150, %v357
  %v360 = vmul.f32 %v151, %v357
  %v361 = vmul.f32 %v152, %v357
  %v362 = vmul.f32 %v153, %v357
  %v363 = vmul.f32 %v154, %v357
  %v364 = vmul.f32 %v155, %v357
  %v365 = vmul.f32 %v156, %v357
  %v366 = vmul.f32 %v157, %v357
  %v367 = vmul.f32 %v158, %v357
  %v368 = vmul.f32 %v159, %v357
  %v369 = vmul.f32 %v160, %v357
  %v370 = vmul.f32 %v161, %v357
  %v371 = vmul.f32 %v162, %v357
  %v372 = vmul.f32 %v163, %v357
  %v373 = vmul.f32 %v164, %v357
  %v374 = vmul.f32 %v165, %v357
  %v375 = vmul.f32 %v166, %v357
  %v376 = vmul.f32 %v167, %v357
  %v377 = vmul.f32 %v168, %v357
  %v378 = vmul.f32 %v169, %v357
  %v379 = vmul.f32 %v170, %v357
  %v380 = vmul.f32 %v171, %v357
  %v381 = vmul.f32 %v172, %v357
  %v382 = vmul.f32 %v173, %v357
  %v383 = vmul.f32 %v174, %v357
  %v384 = vmul.f32 %v175, %v357
  %v385 = vmul.f32 %v176, %v357
  %v386 = vmul.f32 %v177, %v357
  %v387 = vmul.f32 %v178, %v357
  %v388 = vmul.f32 %v179, %v357
  %v389 = vmul.f32 %v180, %v357
  %v390 = vmul.f32 %v181, %v357
  %v391 = vmul.f32 %v182, %v357
  %v392 = vmul.f32 %v183, %v357
  %v393 = vmul.f32 %v184, %v357
  %v394 = vmul.f32 %v185, %v357
  %v395 = vmul.f32 %v186, %v357
  %v396 = vmul.f32 %v187, %v357
  %v397 = vmul.f32 %v188, %v357
  %v398 = vmul.f32 %v189, %v357
  %v399 = vmul.f32 %v190, %v357
  %v400 = vmul.f32 %v191, %v357
  %v401 = vmul.f32 %v192, %v357
  %v402 = vmul.f32 %v193, %v357
  %v403 = vmul.f32 %v194, %v357
  %v404 = vmul.f32 %v195, %v357
  %v405 = vmul.f32 %v196, %v357
  %v406 = vmul.f32 %v197, %v357
  %v407 = vmul.f32 %v198, %v357
  %v408 = vmul.f32 %v199, %v357
  %v409 = vmul.f32 %v200, %v357
  %v410 = vmul.f32 %v201, %v357
  %v411 = vmul.f32 %v202, %v357
  %v412 = vmul.f32 %v203, %v357
  %v413 = vmul.f32 %v204, %v357
  %v414 = vmul.f32 %v205, %v357
  %v415 = vmul.f32 %v206, %v357
  %v416 = vmul.f32 %v207, %v357
  %v417 = vmul.f32 %v208, %v357
  %v418 = vmul.f32 %v209, %v357
  %v419 = vmul.f32 %v210, %v357
  %v420 = vmul.f32 %v211, %v357
  %v421 = vmul.f32 %v212, %v357
  %v422 = vmax.f32 %v358, 0.0
  %v423 = vmax.f32 %v359, 0.0
  %v424 = vmax.f32 %v360, 0.0
  %v425 = vmax.f32 %v361, 0.0
  %v426 = vmax.f32 %v362, 0.0
  %v427 = vmax.f32 %v363, 0.0
  %v428 = vmax.f32 %v364, 0.0
  %v429 = vmax.f32 %v365, 0.0
  %v430 = vmax.f32 %v366, 0.0
  %v431 = vmax.f32 %v367, 0.0
  %v432 = vmax.f32 %v368, 0.0
  %v433 = vmax.f32 %v369, 0.0
  %v434 = vmax.f32 %v370, 0.0
  %v435 = vmax.f32 %v371, 0.0
  %v436 = vmax.f32 %v372, 0.0
  %v437 = vmax.f32 %v373, 0.0
  %v438 = vmax.f32 %v374, 0.0
  %v439 = vmax.f32 %v375, 0.0
  %v440 = vmax.f32 %v376, 0.0
  %v441 = vmax.f32 %v377, 0.0
  %v442 = vmax.f32 %v378, 0.0
  %v443 = vmax.f32 %v379, 0.0
  %v444 = vmax.f32 %v380, 0.0
  %v445 = vmax.f32 %v381, 0.0
  %v446 = vmax.f32 %v382, 0.0
  %v447 = vmax.f32 %v383, 0.0
  %v448 = vmax.f32 %v384, 0.0
  %v449 = vmax.f32 %v385, 0.0
  %v450 = vmax.f32 %v386, 0.0
  %v451 = vmax.f32 %v387, 0.0
  %v452 = vmax.f32 %v388, 0.0
  %v453 = vmax.f32 %v389, 0.0
  %v454 = vmax.f32 %v390, 0.0
  %v455 = vmax.f32 %v391, 0.0
  %v456 = vmax.f32 %v392, 0.0
  %v457 = vmax.f32 %v393, 0.0
  %v458 = vmax.f32 %v394, 0.0
  %v459 = vmax.f32 %v395, 0.0
  %v460 = vmax.f32 %v396, 0.0
  %v461 = vmax.f32 %v397, 0.0
  %v462 = vmax.f32 %v398, 0.0
  %v463 = vmax.f32 %v399, 0.0
  %v464 = vmax.f32 %v400, 0.0
  %v465 = vmax.f32 %v401, 0.0
  %v466 = vmax.f32 %v402, 0.0
  %v467 = vmax.f32 %v403, 0.0
  %v468 = vmax.f32 %v404, 0.0
  %v469 = vmax.f32 %v405, 0.0
  %v470 = vmax.f32 %v406, 0.0
  %v471 = vmax.f32 %v407, 0.0
  %v472 = vmax.f32 %v408, 0.0
  %v473 = vmax.f32 %v409, 0.0
  %v474 = vmax.f32 %v410, 0.0
  %v475 = vmax.f32 %v411, 0.0
  %v476 = vmax.f32 %v412, 0.0
  %v477 = vmax.f32 %v413, 0.0
  %v478 = vmax.f32 %v414, 0.0
  %v479 = vmax.f32 %v415, 0.0
  %v480 = vmax.f32 %v416, 0.0
  %v481 = vmax.f32 %v417, 0.0
  %v482 = vmax.f32 %v418, 0.0
  %v483 = vmax.f32 %v419, 0.0
  %v484 = vmax.f32 %v420, 0.0
  %v485 = vmax.f32 %v421, 0.0
  %v486 = vpack.c.bf16 %v422, %v422
  %v487 = vpack.c.bf16 %v423, %v423
  %v488 = vpack.c.bf16 %v424, %v424
  %v489 = vpack.c.bf16 %v425, %v425
  %v490 = vpack.c.bf16 %v426, %v426
  %v491 = vpack.c.bf16 %v427, %v427
  %v492 = vpack.c.bf16 %v428, %v428
  %v493 = vpack.c.bf16 %v429, %v429
  %v494 = vpack.c.bf16 %v430, %v430
  %v495 = vpack.c.bf16 %v431, %v431
  %v496 = vpack.c.bf16 %v432, %v432
  %v497 = vpack.c.bf16 %v433, %v433
  %v498 = vpack.c.bf16 %v434, %v434
  %v499 = vpack.c.bf16 %v435, %v435
  %v500 = vpack.c.bf16 %v436, %v436
  %v501 = vpack.c.bf16 %v437, %v437
  %v502 = vpack.c.bf16 %v438, %v438
  %v503 = vpack.c.bf16 %v439, %v439
  %v504 = vpack.c.bf16 %v440, %v440
  %v505 = vpack.c.bf16 %v441, %v441
  %v506 = vpack.c.bf16 %v442, %v442
  %v507 = vpack.c.bf16 %v443, %v443
  %v508 = vpack.c.bf16 %v444, %v444
  %v509 = vpack.c.bf16 %v445, %v445
  %v510 = vpack.c.bf16 %v446, %v446
  %v511 = vpack.c.bf16 %v447, %v447
  %v512 = vpack.c.bf16 %v448, %v448
  %v513 = vpack.c.bf16 %v449, %v449
  %v514 = vpack.c.bf16 %v450, %v450
  %v515 = vpack.c.bf16 %v451, %v451
  %v516 = vpack.c.bf16 %v452, %v452
  %v517 = vpack.c.bf16 %v453, %v453
  %v518 = vpack.c.bf16 %v454, %v454
  %v519 = vpack.c.bf16 %v455, %v455
  %v520 = vpack.c.bf16 %v456, %v456
  %v521 = vpack.c.bf16 %v457, %v457
  %v522 = vpack.c.bf16 %v458, %v458
  %v523 = vpack.c.bf16 %v459, %v459
  %v524 = vpack.c.bf16 %v460, %v460
  %v525 = vpack.c.bf16 %v461, %v461
  %v526 = vpack.c.bf16 %v462, %v462
  %v527 = vpack.c.bf16 %v463, %v463
  %v528 = vpack.c.bf16 %v464, %v464
  %v529 = vpack.c.bf16 %v465, %v465
  %v530 = vpack.c.bf16 %v466, %v466
  %v531 = vpack.c.bf16 %v467, %v467
  %v532 = vpack.c.bf16 %v468, %v468
  %v533 = vpack.c.bf16 %v469, %v469
  %v534 = vpack.c.bf16 %v470, %v470
  %v535 = vpack.c.bf16 %v471, %v471
  %v536 = vpack.c.bf16 %v472, %v472
  %v537 = vpack.c.bf16 %v473, %v473
  %v538 = vpack.c.bf16 %v474, %v474
  %v539 = vpack.c.bf16 %v475, %v475
  %v540 = vpack.c.bf16 %v476, %v476
  %v541 = vpack.c.bf16 %v477, %v477
  %v542 = vpack.c.bf16 %v478, %v478
  %v543 = vpack.c.bf16 %v479, %v479
  %v544 = vpack.c.bf16 %v480, %v480
  %v545 = vpack.c.bf16 %v481, %v481
  %v546 = vpack.c.bf16 %v482, %v482
  %v547 = vpack.c.bf16 %v483, %v483
  %v548 = vpack.c.bf16 %v484, %v484
  %v549 = vpack.c.bf16 %v485, %v485
  %550 = vst [vmem:[%s1] sm:$0xf] %v486
  %551 = vst [vmem:[%s1 + $0x4] sm:$0xf] %v487
  %552 = vst [vmem:[%s1 + $0x8] sm:$0xf] %v488
  %553 = vst [vmem:[%s1 + $0xc] sm:$0xf] %v489
  %554 = vst [vmem:[%s1 + $0x10] sm:$0xf] %v490
  %555 = vst [vmem:[%s1 + $0x14] sm:$0xf] %v491
  %556 = vst [vmem:[%s1 + $0x18] sm:$0xf] %v492
  %557 = vst [vmem:[%s1 + $0x1c] sm:$0xf] %v493
  %558 = vst [vmem:[%s1 + $0x20] sm:$0xf] %v494
  %559 = vst [vmem:[%s1 + $0x24] sm:$0xf] %v495
  %560 = vst [vmem:[%s1 + $0x28] sm:$0xf] %v496
  %561 = vst [vmem:[%s1 + $0x2c] sm:$0xf] %v497
  %562 = vst [vmem:[%s1 + $0x30] sm:$0xf] %v498
  %563 = vst [vmem:[%s1 + $0x34] sm:$0xf] %v499
  %564 = vst [vmem:[%s1 + $0x38] sm:$0xf] %v500
  %565 = vst [vmem:[%s1 + $0x3c] sm:$0xf] %v501
  %566 = vst [vmem:[%s1 + $0x40] sm:$0xf] %v502
  %567 = vst [vmem:[%s1 + $0x44] sm:$0xf] %v503
  %568 = vst [vmem:[%s1 + $0x48] sm:$0xf] %v504
  %569 = vst [vmem:[%s1 + $0x4c] sm:$0xf] %v505
  %570 = vst [vmem:[%s1 + $0x50] sm:$0xf] %v506
  %571 = vst [vmem:[%s1 + $0x54] sm:$0xf] %v507
  %572 = vst [vmem:[%s1 + $0x58] sm:$0xf] %v508
  %573 = vst [vmem:[%s1 + $0x5c] sm:$0xf] %v509
  %574 = vst [vmem:[%s1 + $0x60] sm:$0xf] %v510
  %575 = vst [vmem:[%s1 + $0x64] sm:$0xf] %v511
  %576 = vst [vmem:[%s1 + $0x68] sm:$0xf] %v512
  %577 = vst [vmem:[%s1 + $0x6c] sm:$0xf] %v513
  %578 = vst [vmem:[%s1 + $0x70] sm:$0xf] %v514
  %579 = vst [vmem:[%s1 + $0x74] sm:$0xf] %v515
  %580 = vst [vmem:[%s1 + $0x78] sm:$0xf] %v516
  %581 = vst [vmem:[%s1 + $0x7c] sm:$0xf] %v517
  %582 = vst [vmem:[%s1 + $0x80] sm:$0xf] %v518
  %583 = vst [vmem:[%s1 + $0x84] sm:$0xf] %v519
  %584 = vst [vmem:[%s1 + $0x88] sm:$0xf] %v520
  %585 = vst [vmem:[%s1 + $0x8c] sm:$0xf] %v521
  %586 = vst [vmem:[%s1 + $0x90] sm:$0xf] %v522
  %587 = vst [vmem:[%s1 + $0x94] sm:$0xf] %v523
  %588 = vst [vmem:[%s1 + $0x98] sm:$0xf] %v524
  %589 = vst [vmem:[%s1 + $0x9c] sm:$0xf] %v525
  %590 = vst [vmem:[%s1 + $0xa0] sm:$0xf] %v526
  %591 = vst [vmem:[%s1 + $0xa4] sm:$0xf] %v527
  %592 = vst [vmem:[%s1 + $0xa8] sm:$0xf] %v528
  %593 = vst [vmem:[%s1 + $0xac] sm:$0xf] %v529
  %594 = vst [vmem:[%s1 + $0xb0] sm:$0xf] %v530
  %595 = vst [vmem:[%s1 + $0xb4] sm:$0xf] %v531
  %596 = vst [vmem:[%s1 + $0xb8] sm:$0xf] %v532
  %597 = vst [vmem:[%s1 + $0xbc] sm:$0xf] %v533
  %598 = vst [vmem:[%s1 + $0xc0] sm:$0xf] %v534
  %599 = vst [vmem:[%s1 + $0xc4] sm:$0xf] %v535
  %600 = vst [vmem:[%s1 + $0xc8] sm:$0xf] %v536
  %601 = vst [vmem:[%s1 + $0xcc] sm:$0xf] %v537
  %602 = vst [vmem:[%s1 + $0xd0] sm:$0xf] %v538
  %603 = vst [vmem:[%s1 + $0xd4] sm:$0xf] %v539
  %604 = vst [vmem:[%s1 + $0xd8] sm:$0xf] %v540
  %605 = vst [vmem:[%s1 + $0xdc] sm:$0xf] %v541
  %606 = vst [vmem:[%s1 + $0xe0] sm:$0xf] %v542
  %607 = vst [vmem:[%s1 + $0xe4] sm:$0xf] %v543
  %608 = vst [vmem:[%s1 + $0xe8] sm:$0xf] %v544
  %609 = vst [vmem:[%s1 + $0xec] sm:$0xf] %v545
  %610 = vst [vmem:[%s1 + $0xf0] sm:$0xf] %v546
  %611 = vst [vmem:[%s1 + $0xf4] sm:$0xf] %v547
  %612 = vst [vmem:[%s1 + $0xf8] sm:$0xf] %v548
  %613 = vst [vmem:[%s1 + $0xfc] sm:$0xf] %v549
  // Predicated region
  $region6: #{generator_forward.15} parent=0 // pred_check
    _
  $region7: #{generator_forward.15} parent=0 // pred_check_branch
    %615 = sbr.rel (0) target = $region9
  $region8: #{generator_forward.15} parent=0 // pred_region
    _
  $region9: #{generator_forward.15} parent=0 // pred_fallthru
    _
  // Predicated region
  $region10: #{generator_forward.15} parent=0 // pred_check
    _
  $region11: #{generator_forward.15} parent=0 // pred_check_branch
    %617 = sbr.rel (0) target = $region13
  $region12: #{generator_forward.15} parent=0 // pred_region
    _
  $region13: #{generator_forward.15} parent=0 // pred_fallthru
    _

// kernel: generator_forward.16
$region0: #{generator_forward.16}
  #allocation0 [shape = 'u32[]', space=smem, size = 0x4, offset = 0x4, fixed_abs, tag = 'smem constant byte address 0x4 - core index']
  #allocation1 [shape = 'u32[72,128]{1,0:T(1,128)}', space=vmem, size = 0x9000, scoped, tag = 'internal scratch']
  %s0 = inlined_call_operand.vmem [shape: bf16[512,128], index: 0, kind: input, shape index: {}]
  %s1 = inlined_call_operand.vmem [shape: bf16[128,1024], index: 1, kind: input, shape index: {}]
  %s2 = inlined_call_operand.vmem [shape: f32[512,1024], index: 2, kind: output, shape index: {}]
  %s3 = sld [smem:[#allocation0]]
  $region83: #{generator_forward.16} parent=0
    _
  %s5 = ssub.s32 1, %s3
  %s6 = scalar_select 0, %s5, %s3
  $region1: #{generator_forward.16} parent=0
    #allocation2 [shape = 'u8[262144]{0}', space=vmem, size = 0x40000, scoped, tag = 'input window, operand 1']
    #allocation3 [shape = 'u8[2097152]{0}', space=vmem, size = 0x200000, scoped, tag = 'output window, operand 0']
    loop: start=0, step=1, limit=4
    $region2: #{generator_forward.16} parent=1 // loop_pre_header
      _
    $region3: #{generator_forward.16} parent=1 // loop_header
      %s8 = sphi 0, %s12
      %p9 = scmp.ge.s32.totalorder %s8, 4
      %s15 = sphi 0, %s27
      %s16 = sphi 0, %s23
      %s17 = sphi 0, %s15
      %s18 = sphi 0, %s16
      %s19 = sphi 0, %s17
      %s20 = sphi 0, %s18
      %s30 = sphi 0, %s32
      %s33 = sphi 0, %s30
      %s34 = sphi 0, %s33
      %s50 = sphi 0, %s34
      %s56 = sphi 0, %s58
      %s59 = sphi 0, %s56
      %s60 = sphi 0, %s59
      %s76 = sphi 0, %s60
      %s84 = sphi 0, %s86
      %s87 = sphi 0, %s84
      %s88 = sphi 0, %s87
      %s104 = sphi 0, %s88
    $region4: #{generator_forward.16} parent=1 // loop_header_branch
      %11 = sbr.rel (%p9) target = $region8
    $region5: #{generator_forward.16} parent=1 // loop_body
      %s13 = ssub.s32 %s8, 1
      %s14 = ssub.s32 %s8, 2
      %s21 = sadd.s32 1, %s16
      %p22 = scmp.ge.s32.totalorder %s21, 2
      %s23 = scalar_select %p22, 0, %s21
      %s24 = sadd.s32 1, %s15
      %s25 = scalar_select %p22, %s24, %s15
      %p26 = scmp.ge.s32.totalorder %s25, 1
      %s27 = scalar_select %p26, 0, %s25
      %s28 = ssub.s32 %s15, %s27
      %p29 = scmp.eq.s32.totalorder %s28, 0
      %s31 = sadd.s32 %s30, 1
      %s32 = scalar_select %p29, %s30, %s31
      %p35 = pneg %p29
      %p36 = scmp.eq.s32.totalorder %s8, 1
      %p37 = por %p35, %p36
      %p38 = scmp.ne.s32.totalorder %s30, %s33
      %p39 = scmp.eq.s32.totalorder %s8, 0
      %p40 = por %p38, %p39
      %p41 = scmp.ne.s32.totalorder %s30, %s33
      %p42 = scmp.eq.s32.totalorder %s13, 1
      %p43 = por %p41, %p42
      %p44 = scmp.ne.s32.totalorder %s33, %s34
      %p45 = scmp.eq.s32.totalorder %s13, 0
      %p46 = por %p44, %p45
      %p47 = scmp.ne.s32.totalorder %s33, %s34
      %p48 = scmp.eq.s32.totalorder %s14, 1
      %p49 = por %p47, %p48
      %p51 = scmp.ne.s32.totalorder %s34, %s50
      %p52 = scmp.eq.s32.totalorder %s14, 0
      %p53 = por %p51, %p52
      %s54 = ssub.s32 %s16, %s23
      %p55 = scmp.eq.s32.totalorder %s54, 0
      %s57 = sadd.s32 %s56, 1
      %s58 = scalar_select %p55, %s56, %s57
      %p61 = pneg %p55
      %p62 = scmp.eq.s32.totalorder %s8, 1
      %p63 = por %p61, %p62
      %p64 = scmp.ne.s32.totalorder %s56, %s59
      %p65 = scmp.eq.s32.totalorder %s8, 0
      %p66 = por %p64, %p65
      %p67 = scmp.ne.s32.totalorder %s56, %s59
      %p68 = scmp.eq.s32.totalorder %s13, 1
      %p69 = por %p67, %p68
      %p70 = scmp.ne.s32.totalorder %s59, %s60
      %p71 = scmp.eq.s32.totalorder %s13, 0
      %p72 = por %p70, %p71
      %p73 = scmp.ne.s32.totalorder %s59, %s60
      %p74 = scmp.eq.s32.totalorder %s14, 1
      %p75 = por %p73, %p74
      %p77 = scmp.ne.s32.totalorder %s60, %s76
      %p78 = scmp.eq.s32.totalorder %s14, 0
      %p79 = por %p77, %p78
      %s80 = ssub.s32 %s15, %s27
      %s81 = ssub.s32 %s16, %s23
      %s82 = sor.u32 %s80, %s81
      %p83 = scmp.eq.s32.totalorder %s82, 0
      %s85 = sadd.s32 %s84, 1
      %s86 = scalar_select %p83, %s84, %s85
      %p89 = pneg %p83
      %p90 = scmp.eq.s32.totalorder %s8, 1
      %p91 = por %p89, %p90
      %p92 = scmp.ne.s32.totalorder %s84, %s87
      %p93 = scmp.eq.s32.totalorder %s8, 0
      %p94 = por %p92, %p93
      %p95 = scmp.ne.s32.totalorder %s84, %s87
      %p96 = scmp.eq.s32.totalorder %s13, 1
      %p97 = por %p95, %p96
      %p98 = scmp.ne.s32.totalorder %s87, %s88
      %p99 = scmp.eq.s32.totalorder %s13, 0
      %p100 = por %p98, %p99
      %p101 = scmp.ne.s32.totalorder %s87, %s88
      %p102 = scmp.eq.s32.totalorder %s14, 1
      %p103 = por %p101, %p102
      %p105 = scmp.ne.s32.totalorder %s88, %s104
      %p106 = scmp.eq.s32.totalorder %s14, 0
      %p107 = por %p105, %p106
      %p108 = scmp.le.s32.totalorder 1, %s8
      %p109 = scmp.lt.s32.totalorder %s8, 3
      %p110 = pnand %p108, %p109
      %p111 = pneg %p110
      // Predicated region
      $region9: #{generator_forward.16} parent=5 // pred_check
        _
      $region10: #{generator_forward.16} parent=5 // pred_check_branch
        %113 = sbr.rel (%p110) target = $region12
      $region11: #{generator_forward.16} parent=5 // pred_region
        %s114 = ssub.s32 %s8, 1
        // Predicated region
        $region13: #{generator_forward.16} parent=11 // pred_check
          %p115 = pneg %p46
        $region14: #{generator_forward.16} parent=11 // pred_check_branch
          %117 = sbr.rel (%p115) target = $region16
        $region15: #{generator_forward.16} parent=11 // pred_region
          %s118 = smul.u32 64, %s17
          %p119 = scmp.lt.s32.totalorder %s118, 63
          %s120 = scalar_select %p119, %s118, 63
          %s121 = smul.addr %s120, 4
          %s122 = scalar_lea.vmem %s0, %s121
          %s123 = smul.u32 64, %s17
        $region16: #{generator_forward.16} parent=11 // pred_fallthru
          _
      $region12: #{generator_forward.16} parent=5 // pred_fallthru
        _
      %p124 = scmp.lt.s32.totalorder %s8, 2
      // Predicated region
      $region17: #{generator_forward.16} parent=5 // pred_check
        %p125 = pneg %p124
      $region18: #{generator_forward.16} parent=5 // pred_check_branch
        %127 = sbr.rel (%p125) target = $region20
      $region19: #{generator_forward.16} parent=5 // pred_region
        // Predicated region
        $region21: #{generator_forward.16} parent=19 // pred_check
          %p128 = pneg %p66
        $region22: #{generator_forward.16} parent=19 // pred_check_branch
          %130 = sbr.rel (%p128) target = $region24
        $region23: #{generator_forward.16} parent=19 // pred_region
          %s131 = sand.u32 %s56, 1
          %s132 = sand.u32 %s56, 1
          %s133 = smul.addr %s132, 256
          %s134 = scalar_lea.vmem [#allocation2], %s133
          %s135 = smul.u32 4, %s16
          %s136 = smul.addr %s135, 4
          %s137 = scalar_lea.vmem %s1, %s136
          // Predicated region
          $region25: #{generator_forward.16} parent=23 // pred_check
            _
          $region26: #{generator_forward.16} parent=23 // pred_check_branch
            %139 = sbr.rel (0) target = $region28
          $region27: #{generator_forward.16} parent=23 // pred_region
            // Predicated region
            $region29: #{generator_forward.16} parent=27 // pred_check
              _
            $region30: #{generator_forward.16} parent=27 // pred_check_branch
              %141 = sbr.rel (0) target = $region32
            $region31: #{generator_forward.16} parent=27 // pred_region
              loop: start=0, step=1, limit=1
              $region33: #{generator_forward.16} parent=31 // loop_pre_header
                _
              $region34: #{generator_forward.16} parent=31 // loop_header
                %s143 = sphi 0, %s147
                %p144 = scmp.ge.s32.totalorder %s143, 1
                %s148 = sphi %s137, %s137
                %s149 = sphi %s134, %s134
              $region35: #{generator_forward.16} parent=31 // loop_header_branch
                %146 = sbr.rel (%p144) target = $region39
              $region36: #{generator_forward.16} parent=31 // loop_body
                %v150 = vld [vmem:[%s148] sm:$0xff]
                %151 = vst [vmem:[%s149] sm:$0xff] %v150
                %v152 = vld [vmem:[%s148 + $0x8] sm:$0xff]
                %153 = vst [vmem:[%s149 + $0x8] sm:$0xff] %v152
                %v154 = vld [vmem:[%s148 + $0x20] sm:$0xff]
                %155 = vst [vmem:[%s149 + $0x10] sm:$0xff] %v154
                %v156 = vld [vmem:[%s148 + $0x28] sm:$0xff]
                %157 = vst [vmem:[%s149 + $0x18] sm:$0xff] %v156
                %v158 = vld [vmem:[%s148 + $0x40] sm:$0xff]
                %159 = vst [vmem:[%s149 + $0x20] sm:$0xff] %v158
                %v160 = vld [vmem:[%s148 + $0x48] sm:$0xff]
                %161 = vst [vmem:[%s149 + $0x28] sm:$0xff] %v160
                %v162 = vld [vmem:[%s148 + $0x60] sm:$0xff]
                %163 = vst [vmem:[%s149 + $0x30] sm:$0xff] %v162
                %v164 = vld [vmem:[%s148 + $0x68] sm:$0xff]
                %165 = vst [vmem:[%s149 + $0x38] sm:$0xff] %v164
                %v166 = vld [vmem:[%s148 + $0x80] sm:$0xff]
                %167 = vst [vmem:[%s149 + $0x40] sm:$0xff] %v166
                %v168 = vld [vmem:[%s148 + $0x88] sm:$0xff]
                %169 = vst [vmem:[%s149 + $0x48] sm:$0xff] %v168
                %v170 = vld [vmem:[%s148 + $0xa0] sm:$0xff]
                %171 = vst [vmem:[%s149 + $0x50] sm:$0xff] %v170
                %v172 = vld [vmem:[%s148 + $0xa8] sm:$0xff]
                %173 = vst [vmem:[%s149 + $0x58] sm:$0xff] %v172
                %v174 = vld [vmem:[%s148 + $0xc0] sm:$0xff]
                %175 = vst [vmem:[%s149 + $0x60] sm:$0xff] %v174
                %v176 = vld [vmem:[%s148 + $0xc8] sm:$0xff]
                %177 = vst [vmem:[%s149 + $0x68] sm:$0xff] %v176
                %v178 = vld [vmem:[%s148 + $0xe0] sm:$0xff]
                %179 = vst [vmem:[%s149 + $0x70] sm:$0xff] %v178
                %v180 = vld [vmem:[%s148 + $0xe8] sm:$0xff]
                %181 = vst [vmem:[%s149 + $0x78] sm:$0xff] %v180
                %v182 = vld [vmem:[%s148 + $0x100] sm:$0xff]
                %183 = vst [vmem:[%s149 + $0x80] sm:$0xff] %v182
                %v184 = vld [vmem:[%s148 + $0x108] sm:$0xff]
                %185 = vst [vmem:[%s149 + $0x88] sm:$0xff] %v184
                %v186 = vld [vmem:[%s148 + $0x120] sm:$0xff]
                %187 = vst [vmem:[%s149 + $0x90] sm:$0xff] %v186
                %v188 = vld [vmem:[%s148 + $0x128] sm:$0xff]
                %189 = vst [vmem:[%s149 + $0x98] sm:$0xff] %v188
                %v190 = vld [vmem:[%s148 + $0x140] sm:$0xff]
                %191 = vst [vmem:[%s149 + $0xa0] sm:$0xff] %v190
                %v192 = vld [vmem:[%s148 + $0x148] sm:$0xff]
                %193 = vst [vmem:[%s149 + $0xa8] sm:$0xff] %v192
                %v194 = vld [vmem:[%s148 + $0x160] sm:$0xff]
                %195 = vst [vmem:[%s149 + $0xb0] sm:$0xff] %v194
                %v196 = vld [vmem:[%s148 + $0x168] sm:$0xff]
                %197 = vst [vmem:[%s149 + $0xb8] sm:$0xff] %v196
                %v198 = vld [vmem:[%s148 + $0x180] sm:$0xff]
                %199 = vst [vmem:[%s149 + $0xc0] sm:$0xff] %v198
                %v200 = vld [vmem:[%s148 + $0x188] sm:$0xff]
                %201 = vst [vmem:[%s149 + $0xc8] sm:$0xff] %v200
                %v202 = vld [vmem:[%s148 + $0x1a0] sm:$0xff]
                %203 = vst [vmem:[%s149 + $0xd0] sm:$0xff] %v202
                %v204 = vld [vmem:[%s148 + $0x1a8] sm:$0xff]
                %205 = vst [vmem:[%s149 + $0xd8] sm:$0xff] %v204
                %v206 = vld [vmem:[%s148 + $0x1c0] sm:$0xff]
                %207 = vst [vmem:[%s149 + $0xe0] sm:$0xff] %v206
                %v208 = vld [vmem:[%s148 + $0x1c8] sm:$0xff]
                %209 = vst [vmem:[%s149 + $0xe8] sm:$0xff] %v208
                %v210 = vld [vmem:[%s148 + $0x1e0] sm:$0xff]
                %211 = vst [vmem:[%s149 + $0xf0] sm:$0xff] %v210
                %v212 = vld [vmem:[%s148 + $0x1e8] sm:$0xff]
                %213 = vst [vmem:[%s149 + $0xf8] sm:$0xff] %v212
              $region37: #{generator_forward.16} parent=31 // loop_footer
                %s147 = sadd.s32 1, %s143
              $region38: #{generator_forward.16} parent=31 // loop_footer_branch
                %142 = sbr.rel target = $region34
              $region39: #{generator_forward.16} parent=31 // loop_exit
                _
            $region32: #{generator_forward.16} parent=27 // pred_fallthru
              _
            // Predicated region
            $region40: #{generator_forward.16} parent=27 // pred_check
              _
            $region41: #{generator_forward.16} parent=27 // pred_check_branch
              %215 = sbr.rel target = $region43
            $region42: #{generator_forward.16} parent=27 // pred_region
              _
            $region43: #{generator_forward.16} parent=27 // pred_fallthru
              _
          $region28: #{generator_forward.16} parent=23 // pred_fallthru
            _
          %216 = vnop
        $region24: #{generator_forward.16} parent=19 // pred_fallthru
          _
      $region20: #{generator_forward.16} parent=5 // pred_fallthru
        _
      %p217 = scmp.le.s32.totalorder 1, %s8
      %p218 = scmp.lt.s32.totalorder %s8, 3
      %p219 = pnand %p217, %p218
      %p220 = pneg %p219
      // Predicated region
      $region44: #{generator_forward.16} parent=5 // pred_check
        _
      $region45: #{generator_forward.16} parent=5 // pred_check_branch
        %222 = sbr.rel (%p219) target = $region47
      $region46: #{generator_forward.16} parent=5 // pred_region
        %s223 = ssub.s32 %s8, 1
        %s224 = sand.u32 %s59, 1
        %s225 = sand.u32 %s59, 1
        %s226 = smul.addr %s225, 256
        %s227 = scalar_lea.vmem [#allocation2], %s226
        // Predicated region
        $region48: #{generator_forward.16} parent=46 // pred_check
          %p228 = pneg %p72
        $region49: #{generator_forward.16} parent=46 // pred_check_branch
          %230 = sbr.rel (%p228) target = $region51
        $region50: #{generator_forward.16} parent=46 // pred_region
          _
        $region51: #{generator_forward.16} parent=46 // pred_fallthru
          _
        %s231 = smul.u32 64, %s17
        %p232 = scmp.lt.s32.totalorder %s231, 63
        %s233 = scalar_select %p232, %s231, 63
        %s234 = smul.addr %s233, 4
        %s235 = scalar_lea.vmem %s0, %s234
        %p236 = pneg %p46
        %p237 = pneg %p43
        %s238 = sand.u32 %s59, 1
        %s239 = sand.u32 %s59, 1
        %s240 = smul.addr %s239, 256
        %s241 = scalar_lea.vmem [#allocation2], %s240
        %p242 = pneg %p72
        %p243 = pneg %p69
        %p244 = pneg %p100
        %p245 = pneg %p97
        %s246 = sand.u32 %s87, 1
        %s247 = sand.u32 %s87, 1
        %s248 = smul.addr %s247, 2048
        %s249 = scalar_lea.vmem [#allocation3], %s248
        %s250 = smul.u32 64, %s17
        %p251 = scmp.lt.s32.totalorder %s250, 63
        %s252 = scalar_select %p251, %s250, 63
        %s253 = smul.addr %s252, 4
        %s254 = scalar_lea.vmem %s0, %s253
        %s255 = smul.u32 64, %s17
        %s256 = smul.u32 4, %s18
        %s257 = smul.u32 64, %s17
        %s258 = smul.u32 4, %s18
        %v259 = vld [vmem:[%s254] sm:$0xf]
        %v260 = vld [vmem:[%s254 + $0x4] sm:$0xf]
        %v261 = vld [vmem:[%s254 + $0x8] sm:$0xf]
        %v262 = vld [vmem:[%s254 + $0xc] sm:$0xf]
        %v263 = vld [vmem:[%s254 + $0x10] sm:$0xf]
        %v264 = vld [vmem:[%s254 + $0x14] sm:$0xf]
        %v265 = vld [vmem:[%s254 + $0x18] sm:$0xf]
        %v266 = vld [vmem:[%s254 + $0x1c] sm:$0xf]
        %v267 = vld [vmem:[%s254 + $0x20] sm:$0xf]
        %v268 = vld [vmem:[%s254 + $0x24] sm:$0xf]
        %v269 = vld [vmem:[%s254 + $0x28] sm:$0xf]
        %v270 = vld [vmem:[%s254 + $0x2c] sm:$0xf]
        %v271 = vld [vmem:[%s254 + $0x30] sm:$0xf]
        %v272 = vld [vmem:[%s254 + $0x34] sm:$0xf]
        %v273 = vld [vmem:[%s254 + $0x38] sm:$0xf]
        %v274 = vld [vmem:[%s254 + $0x3c] sm:$0xf]
        %v275 = vld [vmem:[%s254 + $0x40] sm:$0xf]
        %v276 = vld [vmem:[%s254 + $0x44] sm:$0xf]
        %v277 = vld [vmem:[%s254 + $0x48] sm:$0xf]
        %v278 = vld [vmem:[%s254 + $0x4c] sm:$0xf]
        %v279 = vld [vmem:[%s254 + $0x50] sm:$0xf]
        %v280 = vld [vmem:[%s254 + $0x54] sm:$0xf]
        %v281 = vld [vmem:[%s254 + $0x58] sm:$0xf]
        %v282 = vld [vmem:[%s254 + $0x5c] sm:$0xf]
        %v283 = vld [vmem:[%s254 + $0x60] sm:$0xf]
        %v284 = vld [vmem:[%s254 + $0x64] sm:$0xf]
        %v285 = vld [vmem:[%s254 + $0x68] sm:$0xf]
        %v286 = vld [vmem:[%s254 + $0x6c] sm:$0xf]
        %v287 = vld [vmem:[%s254 + $0x70] sm:$0xf]
        %v288 = vld [vmem:[%s254 + $0x74] sm:$0xf]
        %v289 = vld [vmem:[%s254 + $0x78] sm:$0xf]
        %v290 = vld [vmem:[%s254 + $0x7c] sm:$0xf]
        %v291 = vld [vmem:[%s254 + $0x80] sm:$0xf]
        %v292 = vld [vmem:[%s254 + $0x84] sm:$0xf]
        %v293 = vld [vmem:[%s254 + $0x88] sm:$0xf]
        %v294 = vld [vmem:[%s254 + $0x8c] sm:$0xf]
        %v295 = vld [vmem:[%s254 + $0x90] sm:$0xf]
        %v296 = vld [vmem:[%s254 + $0x94] sm:$0xf]
        %v297 = vld [vmem:[%s254 + $0x98] sm:$0xf]
        %v298 = vld [vmem:[%s254 + $0x9c] sm:$0xf]
        %v299 = vld [vmem:[%s254 + $0xa0] sm:$0xf]
        %v300 = vld [vmem:[%s254 + $0xa4] sm:$0xf]
        %v301 = vld [vmem:[%s254 + $0xa8] sm:$0xf]
        %v302 = vld [vmem:[%s254 + $0xac] sm:$0xf]
        %v303 = vld [vmem:[%s254 + $0xb0] sm:$0xf]
        %v304 = vld [vmem:[%s254 + $0xb4] sm:$0xf]
        %v305 = vld [vmem:[%s254 + $0xb8] sm:$0xf]
        %v306 = vld [vmem:[%s254 + $0xbc] sm:$0xf]
        %v307 = vld [vmem:[%s254 + $0xc0] sm:$0xf]
        %v308 = vld [vmem:[%s254 + $0xc4] sm:$0xf]
        %v309 = vld [vmem:[%s254 + $0xc8] sm:$0xf]
        %v310 = vld [vmem:[%s254 + $0xcc] sm:$0xf]
        %v311 = vld [vmem:[%s254 + $0xd0] sm:$0xf]
        %v312 = vld [vmem:[%s254 + $0xd4] sm:$0xf]
        %v313 = vld [vmem:[%s254 + $0xd8] sm:$0xf]
        %v314 = vld [vmem:[%s254 + $0xdc] sm:$0xf]
        %v315 = vld [vmem:[%s254 + $0xe0] sm:$0xf]
        %v316 = vld [vmem:[%s254 + $0xe4] sm:$0xf]
        %v317 = vld [vmem:[%s254 + $0xe8] sm:$0xf]
        %v318 = vld [vmem:[%s254 + $0xec] sm:$0xf]
        %v319 = vld [vmem:[%s254 + $0xf0] sm:$0xf]
        %v320 = vld [vmem:[%s254 + $0xf4] sm:$0xf]
        %v321 = vld [vmem:[%s254 + $0xf8] sm:$0xf]
        %v322 = vld [vmem:[%s254 + $0xfc] sm:$0xf]
        %v323 = vld [vmem:[%s227] sm:$0xff]
        %v324 = vld [vmem:[%s227 + $0x8] sm:$0xff]
        %v325 = vld [vmem:[%s227 + $0x10] sm:$0xff]
        %v326 = vld [vmem:[%s227 + $0x18] sm:$0xff]
        %v327 = vld [vmem:[%s227 + $0x20] sm:$0xff]
        %v328 = vld [vmem:[%s227 + $0x28] sm:$0xff]
        %v329 = vld [vmem:[%s227 + $0x30] sm:$0xff]
        %v330 = vld [vmem:[%s227 + $0x38] sm:$0xff]
        %v331 = vld [vmem:[%s227 + $0x40] sm:$0xff]
        %v332 = vld [vmem:[%s227 + $0x48] sm:$0xff]
        %v333 = vld [vmem:[%s227 + $0x50] sm:$0xff]
        %v334 = vld [vmem:[%s227 + $0x58] sm:$0xff]
        %v335 = vld [vmem:[%s227 + $0x60] sm:$0xff]
        %v336 = vld [vmem:[%s227 + $0x68] sm:$0xff]
        %v337 = vld [vmem:[%s227 + $0x70] sm:$0xff]
        %v338 = vld [vmem:[%s227 + $0x78] sm:$0xff]
        %v339 = vld [vmem:[%s227 + $0x80] sm:$0xff]
        %v340 = vld [vmem:[%s227 + $0x88] sm:$0xff]
        %v341 = vld [vmem:[%s227 + $0x90] sm:$0xff]
        %v342 = vld [vmem:[%s227 + $0x98] sm:$0xff]
        %v343 = vld [vmem:[%s227 + $0xa0] sm:$0xff]
        %v344 = vld [vmem:[%s227 + $0xa8] sm:$0xff]
        %v345 = vld [vmem:[%s227 + $0xb0] sm:$0xff]
        %v346 = vld [vmem:[%s227 + $0xb8] sm:$0xff]
        %v347 = vld [vmem:[%s227 + $0xc0] sm:$0xff]
        %v348 = vld [vmem:[%s227 + $0xc8] sm:$0xff]
        %v349 = vld [vmem:[%s227 + $0xd0] sm:$0xff]
        %v350 = vld [vmem:[%s227 + $0xd8] sm:$0xff]
        %v351 = vld [vmem:[%s227 + $0xe0] sm:$0xff]
        %v352 = vld [vmem:[%s227 + $0xe8] sm:$0xff]
        %v353 = vld [vmem:[%s227 + $0xf0] sm:$0xff]
        %v354 = vld [vmem:[%s227 + $0xf8] sm:$0xff]
        %v419 = vunpack.c.l.b16 %v259
        %v420 = vunpack.c.l.b16 %v260
        %v421 = vunpack.c.l.b16 %v261
        %v422 = vunpack.c.l.b16 %v262
        %v423 = vunpack.c.l.b16 %v263
        %v424 = vunpack.c.l.b16 %v264
        %v425 = vunpack.c.l.b16 %v265
        %v426 = vunpack.c.l.b16 %v266
        %v427 = vunpack.c.l.b16 %v267
        %v428 = vunpack.c.l.b16 %v268
        %v429 = vunpack.c.l.b16 %v269
        %v430 = vunpack.c.l.b16 %v270
        %v431 = vunpack.c.l.b16 %v271
        %v432 = vunpack.c.l.b16 %v272
        %v433 = vunpack.c.l.b16 %v273
        %v434 = vunpack.c.l.b16 %v274
        %v435 = vunpack.c.l.b16 %v275
        %v436 = vunpack.c.l.b16 %v276
        %v437 = vunpack.c.l.b16 %v277
        %v438 = vunpack.c.l.b16 %v278
        %v439 = vunpack.c.l.b16 %v279
        %v440 = vunpack.c.l.b16 %v280
        %v441 = vunpack.c.l.b16 %v281
        %v442 = vunpack.c.l.b16 %v282
        %v443 = vunpack.c.l.b16 %v283
        %v444 = vunpack.c.l.b16 %v284
        %v445 = vunpack.c.l.b16 %v285
        %v446 = vunpack.c.l.b16 %v286
        %v447 = vunpack.c.l.b16 %v287
        %v448 = vunpack.c.l.b16 %v288
        %v449 = vunpack.c.l.b16 %v289
        %v450 = vunpack.c.l.b16 %v290
        %v451 = vunpack.c.l.b16 %v291
        %v452 = vunpack.c.l.b16 %v292
        %v453 = vunpack.c.l.b16 %v293
        %v454 = vunpack.c.l.b16 %v294
        %v455 = vunpack.c.l.b16 %v295
        %v456 = vunpack.c.l.b16 %v296
        %v457 = vunpack.c.l.b16 %v297
        %v458 = vunpack.c.l.b16 %v298
        %v459 = vunpack.c.l.b16 %v299
        %v460 = vunpack.c.l.b16 %v300
        %v461 = vunpack.c.l.b16 %v301
        %v462 = vunpack.c.l.b16 %v302
        %v463 = vunpack.c.l.b16 %v303
        %v464 = vunpack.c.l.b16 %v304
        %v465 = vunpack.c.l.b16 %v305
        %v466 = vunpack.c.l.b16 %v306
        %v467 = vunpack.c.l.b16 %v307
        %v468 = vunpack.c.l.b16 %v308
        %v469 = vunpack.c.l.b16 %v309
        %v470 = vunpack.c.l.b16 %v310
        %v471 = vunpack.c.l.b16 %v311
        %v472 = vunpack.c.l.b16 %v312
        %v473 = vunpack.c.l.b16 %v313
        %v474 = vunpack.c.l.b16 %v314
        %v475 = vunpack.c.l.b16 %v315
        %v476 = vunpack.c.l.b16 %v316
        %v477 = vunpack.c.l.b16 %v317
        %v478 = vunpack.c.l.b16 %v318
        %v479 = vunpack.c.l.b16 %v319
        %v480 = vunpack.c.l.b16 %v320
        %v481 = vunpack.c.l.b16 %v321
        %v482 = vunpack.c.l.b16 %v322
        %v483 = vpack.c.b16 %v420, %v419
        %v484 = vpack.c.b16 %v422, %v421
        %v485 = vpack.c.b16 %v424, %v423
        %v486 = vpack.c.b16 %v426, %v425
        %v487 = vpack.c.b16 %v428, %v427
        %v488 = vpack.c.b16 %v430, %v429
        %v489 = vpack.c.b16 %v432, %v431
        %v490 = vpack.c.b16 %v434, %v433
        %v491 = vpack.c.b16 %v436, %v435
        %v492 = vpack.c.b16 %v438, %v437
        %v493 = vpack.c.b16 %v440, %v439
        %v494 = vpack.c.b16 %v442, %v441
        %v495 = vpack.c.b16 %v444, %v443
        %v496 = vpack.c.b16 %v446, %v445
        %v497 = vpack.c.b16 %v448, %v447
        %v498 = vpack.c.b16 %v450, %v449
        %v499 = vpack.c.b16 %v452, %v451
        %v500 = vpack.c.b16 %v454, %v453
        %v501 = vpack.c.b16 %v456, %v455
        %v502 = vpack.c.b16 %v458, %v457
        %v503 = vpack.c.b16 %v460, %v459
        %v504 = vpack.c.b16 %v462, %v461
        %v505 = vpack.c.b16 %v464, %v463
        %v506 = vpack.c.b16 %v466, %v465
        %v507 = vpack.c.b16 %v468, %v467
        %v508 = vpack.c.b16 %v470, %v469
        %v509 = vpack.c.b16 %v472, %v471
        %v510 = vpack.c.b16 %v474, %v473
        %v511 = vpack.c.b16 %v476, %v475
        %v512 = vpack.c.b16 %v478, %v477
        %v513 = vpack.c.b16 %v480, %v479
        %v514 = vpack.c.b16 %v482, %v481
        %v579 = vunpack.c.l.b16 %v323
        %v580 = vunpack.c.h.b16 %v323
        %v581 = vunpack.c.l.b16 %v324
        %v582 = vunpack.c.h.b16 %v324
        %v583 = vunpack.c.l.b16 %v325
        %v584 = vunpack.c.h.b16 %v325
        %v585 = vunpack.c.l.b16 %v326
        %v586 = vunpack.c.h.b16 %v326
        %v587 = vunpack.c.l.b16 %v327
        %v588 = vunpack.c.h.b16 %v327
        %v589 = vunpack.c.l.b16 %v328
        %v590 = vunpack.c.h.b16 %v328
        %v591 = vunpack.c.l.b16 %v329
        %v592 = vunpack.c.h.b16 %v329
        %v593 = vunpack.c.l.b16 %v330
        %v594 = vunpack.c.h.b16 %v330
        %v595 = vunpack.c.l.b16 %v331
        %v596 = vunpack.c.h.b16 %v331
        %v597 = vunpack.c.l.b16 %v332
        %v598 = vunpack.c.h.b16 %v332
        %v599 = vunpack.c.l.b16 %v333
        %v600 = vunpack.c.h.b16 %v333
        %v601 = vunpack.c.l.b16 %v334
        %v602 = vunpack.c.h.b16 %v334
        %v603 = vunpack.c.l.b16 %v335
        %v604 = vunpack.c.h.b16 %v335
        %v605 = vunpack.c.l.b16 %v336
        %v606 = vunpack.c.h.b16 %v336
        %v607 = vunpack.c.l.b16 %v337
        %v608 = vunpack.c.h.b16 %v337
        %v609 = vunpack.c.l.b16 %v338
        %v610 = vunpack.c.h.b16 %v338
        %v611 = vunpack.c.l.b16 %v339
        %v612 = vunpack.c.h.b16 %v339
        %v613 = vunpack.c.l.b16 %v340
        %v614 = vunpack.c.h.b16 %v340
        %v615 = vunpack.c.l.b16 %v341
        %v616 = vunpack.c.h.b16 %v341
        %v617 = vunpack.c.l.b16 %v342
        %v618 = vunpack.c.h.b16 %v342
        %v619 = vunpack.c.l.b16 %v343
        %v620 = vunpack.c.h.b16 %v343
        %v621 = vunpack.c.l.b16 %v344
        %v622 = vunpack.c.h.b16 %v344
        %v623 = vunpack.c.l.b16 %v345
        %v624 = vunpack.c.h.b16 %v345
        %v625 = vunpack.c.l.b16 %v346
        %v626 = vunpack.c.h.b16 %v346
        %v627 = vunpack.c.l.b16 %v347
        %v628 = vunpack.c.h.b16 %v347
        %v629 = vunpack.c.l.b16 %v348
        %v630 = vunpack.c.h.b16 %v348
        %v631 = vunpack.c.l.b16 %v349
        %v632 = vunpack.c.h.b16 %v349
        %v633 = vunpack.c.l.b16 %v350
        %v634 = vunpack.c.h.b16 %v350
        %v635 = vunpack.c.l.b16 %v351
        %v636 = vunpack.c.h.b16 %v351
        %v637 = vunpack.c.l.b16 %v352
        %v638 = vunpack.c.h.b16 %v352
        %v639 = vunpack.c.l.b16 %v353
        %v640 = vunpack.c.h.b16 %v353
        %v641 = vunpack.c.l.b16 %v354
        %v642 = vunpack.c.h.b16 %v354
        %v643 = vpack.c.b16 %v583, %v579
        %v644 = vpack.c.b16 %v584, %v580
        %v645 = vpack.c.b16 %v585, %v581
        %v646 = vpack.c.b16 %v586, %v582
        %v647 = vpack.c.b16 %v591, %v587
        %v648 = vpack.c.b16 %v592, %v588
        %v649 = vpack.c.b16 %v593, %v589
        %v650 = vpack.c.b16 %v594, %v590
        %v651 = vpack.c.b16 %v599, %v595
        %v652 = vpack.c.b16 %v600, %v596
        %v653 = vpack.c.b16 %v601, %v597
        %v654 = vpack.c.b16 %v602, %v598
        %v655 = vpack.c.b16 %v607, %v603
        %v656 = vpack.c.b16 %v608, %v604
        %v657 = vpack.c.b16 %v609, %v605
        %v658 = vpack.c.b16 %v610, %v606
        %v659 = vpack.c.b16 %v615, %v611
        %v660 = vpack.c.b16 %v616, %v612
        %v661 = vpack.c.b16 %v617, %v613
        %v662 = vpack.c.b16 %v618, %v614
        %v663 = vpack.c.b16 %v623, %v619
        %v664 = vpack.c.b16 %v624, %v620
        %v665 = vpack.c.b16 %v625, %v621
        %v666 = vpack.c.b16 %v626, %v622
        %v667 = vpack.c.b16 %v631, %v627
        %v668 = vpack.c.b16 %v632, %v628
        %v669 = vpack.c.b16 %v633, %v629
        %v670 = vpack.c.b16 %v634, %v630
        %v671 = vpack.c.b16 %v639, %v635
        %v672 = vpack.c.b16 %v640, %v636
        %v673 = vpack.c.b16 %v641, %v637
        %v674 = vpack.c.b16 %v642, %v638
        %707 = vmatpush.bf16.msra.mxu0 %v671
        %708 = vmatpush.bf16.msra.mxu0 %v667
        %709 = vmatpush.bf16.msra.mxu0 %v663
        %710 = vmatpush.bf16.msra.mxu0 %v659
        %711 = vmatpush.bf16.msra.mxu0 %v655
        %712 = vmatpush.bf16.msra.mxu0 %v651
        %713 = vmatpush.bf16.msra.mxu0 %v647
        %714 = vmatpush.bf16.msra.mxu0 %v643
        %715 = vmatmul.bf16.gmra.mxu0 %v483
        %v716 = vpop.f32.mrf.mxu0
        %v717 = vadd.f32 0.0, %v716
        %v718 = vpop.f32.mrf.mxu0
        %v719 = vadd.f32 0.0, %v718
        %720 = vmatmul.bf16.gmra.mxu0 %v484
        %v721 = vpop.f32.mrf.mxu0
        %v722 = vadd.f32 0.0, %v721
        %v723 = vpop.f32.mrf.mxu0
        %v724 = vadd.f32 0.0, %v723
        %725 = vmatmul.bf16.gmra.mxu0 %v485
        %v726 = vpop.f32.mrf.mxu0
        %v727 = vadd.f32 0.0, %v726
        %v728 = vpop.f32.mrf.mxu0
        %v729 = vadd.f32 0.0, %v728
        %730 = vmatmul.bf16.gmra.mxu0 %v486
        %v731 = vpop.f32.mrf.mxu0
        %v732 = vadd.f32 0.0, %v731
        %v733 = vpop.f32.mrf.mxu0
        %v734 = vadd.f32 0.0, %v733
        %735 = vmatmul.bf16.gmra.mxu0 %v487
        %v736 = vpop.f32.mrf.mxu0
        %v737 = vadd.f32 0.0, %v736
        %v738 = vpop.f32.mrf.mxu0
        %v739 = vadd.f32 0.0, %v738
        %740 = vmatmul.bf16.gmra.mxu0 %v488
        %v741 = vpop.f32.mrf.mxu0
        %v742 = vadd.f32 0.0, %v741
        %v743 = vpop.f32.mrf.mxu0
        %v744 = vadd.f32 0.0, %v743
        %745 = vmatmul.bf16.gmra.mxu0 %v489
        %v746 = vpop.f32.mrf.mxu0
        %v747 = vadd.f32 0.0, %v746
        %v748 = vpop.f32.mrf.mxu0
        %v749 = vadd.f32 0.0, %v748
        %750 = vmatmul.bf16.gmra.mxu0 %v490
        %v751 = vpop.f32.mrf.mxu0
        %v752 = vadd.f32 0.0, %v751
        %v753 = vpop.f32.mrf.mxu0
        %v754 = vadd.f32 0.0, %v753
        %755 = vmatmul.bf16.gmra.mxu0 %v491
        %v756 = vpop.f32.mrf.mxu0
        %v757 = vadd.f32 0.0, %v756
        %v758 = vpop.f32.mrf.mxu0
        %v759 = vadd.f32 0.0, %v758
        %760 = vmatmul.bf16.gmra.mxu0 %v492
        %v761 = vpop.f32.mrf.mxu0
        %v762 = vadd.f32 0.0, %v761
        %v763 = vpop.f32.mrf.mxu0
        %v764 = vadd.f32 0.0, %v763
        %765 = vmatmul.bf16.gmra.mxu0 %v493
        %v766 = vpop.f32.mrf.mxu0
        %v767 = vadd.f32 0.0, %v766
        %v768 = vpop.f32.mrf.mxu0
        %v769 = vadd.f32 0.0, %v768
        %770 = vmatmul.bf16.gmra.mxu0 %v494
        %v771 = vpop.f32.mrf.mxu0
        %v772 = vadd.f32 0.0, %v771
        %v773 = vpop.f32.mrf.mxu0
        %v774 = vadd.f32 0.0, %v773
        %775 = vmatmul.bf16.gmra.mxu0 %v495
        %v776 = vpop.f32.mrf.mxu0
        %v777 = vadd.f32 0.0, %v776
        %v778 = vpop.f32.mrf.mxu0
        %v779 = vadd.f32 0.0, %v778
        %780 = vmatmul.bf16.gmra.mxu0 %v496
        %v781 = vpop.f32.mrf.mxu0
        %v782 = vadd.f32 0.0, %v781
        %v783 = vpop.f32.mrf.mxu0
        %v784 = vadd.f32 0.0, %v783
        %785 = vmatmul.bf16.gmra.mxu0 %v497
        %v786 = vpop.f32.mrf.mxu0
        %v787 = vadd.f32 0.0, %v786
        %v788 = vpop.f32.mrf.mxu0
        %v789 = vadd.f32 0.0, %v788
        %790 = vmatmul.bf16.gmra.mxu0 %v498
        %v791 = vpop.f32.mrf.mxu0
        %v792 = vadd.f32 0.0, %v791
        %v793 = vpop.f32.mrf.mxu0
        %v794 = vadd.f32 0.0, %v793
        %795 = vmatmul.bf16.gmra.mxu0 %v499
        %v796 = vpop.f32.mrf.mxu0
        %v797 = vadd.f32 0.0, %v796
        %v798 = vpop.f32.mrf.mxu0
        %v799 = vadd.f32 0.0, %v798
        %800 = vmatmul.bf16.gmra.mxu0 %v500
        %v801 = vpop.f32.mrf.mxu0
        %v802 = vadd.f32 0.0, %v801
        %v803 = vpop.f32.mrf.mxu0
        %v804 = vadd.f32 0.0, %v803
        %805 = vmatmul.bf16.gmra.mxu0 %v501
        %v806 = vpop.f32.mrf.mxu0
        %v807 = vadd.f32 0.0, %v806
        %v808 = vpop.f32.mrf.mxu0
        %v809 = vadd.f32 0.0, %v808
        %810 = vmatmul.bf16.gmra.mxu0 %v502
        %v811 = vpop.f32.mrf.mxu0
        %v812 = vadd.f32 0.0, %v811
        %v813 = vpop.f32.mrf.mxu0
        %v814 = vadd.f32 0.0, %v813
        %815 = vmatmul.bf16.gmra.mxu0 %v503
        %v816 = vpop.f32.mrf.mxu0
        %v817 = vadd.f32 0.0, %v816
        %v818 = vpop.f32.mrf.mxu0
        %v819 = vadd.f32 0.0, %v818
        %820 = vmatmul.bf16.gmra.mxu0 %v504
        %v821 = vpop.f32.mrf.mxu0
        %v822 = vadd.f32 0.0, %v821
        %v823 = vpop.f32.mrf.mxu0
        %v824 = vadd.f32 0.0, %v823
        %825 = vmatmul.bf16.gmra.mxu0 %v505
        %v826 = vpop.f32.mrf.mxu0
        %v827 = vadd.f32 0.0, %v826
        %v828 = vpop.f32.mrf.mxu0
        %v829 = vadd.f32 0.0, %v828
        %830 = vmatmul.bf16.gmra.mxu0 %v506
        %v831 = vpop.f32.mrf.mxu0
        %v832 = vadd.f32 0.0, %v831
        %v833 = vpop.f32.mrf.mxu0
        %v834 = vadd.f32 0.0, %v833
        %835 = vmatmul.bf16.gmra.mxu0 %v507
        %v836 = vpop.f32.mrf.mxu0
        %v837 = vadd.f32 0.0, %v836
        %v838 = vpop.f32.mrf.mxu0
        %v839 = vadd.f32 0.0, %v838
        %840 = vmatmul.bf16.gmra.mxu0 %v508
        %v841 = vpop.f32.mrf.mxu0
        %v842 = vadd.f32 0.0, %v841
        %v843 = vpop.f32.mrf.mxu0
        %v844 = vadd.f32 0.0, %v843
        %845 = vmatmul.bf16.gmra.mxu0 %v509
        %v846 = vpop.f32.mrf.mxu0
        %v847 = vadd.f32 0.0, %v846
        %v848 = vpop.f32.mrf.mxu0
        %v849 = vadd.f32 0.0, %v848
        %850 = vmatmul.bf16.gmra.mxu0 %v510
        %v851 = vpop.f32.mrf.mxu0
        %v852 = vadd.f32 0.0, %v851
        %v853 = vpop.f32.mrf.mxu0
        %v854 = vadd.f32 0.0, %v853
        %855 = vmatmul.bf16.gmra.mxu0 %v511
        %v856 = vpop.f32.mrf.mxu0
        %v857 = vadd.f32 0.0, %v856
        %v858 = vpop.f32.mrf.mxu0
        %v859 = vadd.f32 0.0, %v858
        %860 = vmatmul.bf16.gmra.mxu0 %v512
        %v861 = vpop.f32.mrf.mxu0
        %v862 = vadd.f32 0.0, %v861
        %v863 = vpop.f32.mrf.mxu0
        %v864 = vadd.f32 0.0, %v863
        %865 = vmatmul.bf16.gmra.mxu0 %v513
        %v866 = vpop.f32.mrf.mxu0
        %v867 = vadd.f32 0.0, %v866
        %v868 = vpop.f32.mrf.mxu0
        %v869 = vadd.f32 0.0, %v868
        %870 = vmatmul.bf16.gmra.mxu0 %v514
        %v871 = vpop.f32.mrf.mxu0
        %v872 = vadd.f32 0.0, %v871
        %v873 = vpop.f32.mrf.mxu0
        %v874 = vadd.f32 0.0, %v873
        %875 = vdwg.mxu0
        %876 = vmatpush.bf16.msra.mxu0 %v672
        %877 = vmatpush.bf16.msra.mxu0 %v668
        %878 = vmatpush.bf16.msra.mxu0 %v664
        %879 = vmatpush.bf16.msra.mxu0 %v660
        %880 = vmatpush.bf16.msra.mxu0 %v656
        %881 = vmatpush.bf16.msra.mxu0 %v652
        %882 = vmatpush.bf16.msra.mxu0 %v648
        %883 = vmatpush.bf16.msra.mxu0 %v644
        %884 = vmatmul.bf16.gmra.mxu0 %v483
        %v885 = vpop.f32.mrf.mxu0
        %v886 = vadd.f32 0.0, %v885
        %v887 = vpop.f32.mrf.mxu0
        %v888 = vadd.f32 0.0, %v887
        %889 = vmatmul.bf16.gmra.mxu0 %v484
        %v890 = vpop.f32.mrf.mxu0
        %v891 = vadd.f32 0.0, %v890
        %v892 = vpop.f32.mrf.mxu0
        %v893 = vadd.f32 0.0, %v892
        %894 = vmatmul.bf16.gmra.mxu0 %v485
        %v895 = vpop.f32.mrf.mxu0
        %v896 = vadd.f32 0.0, %v895
        %v897 = vpop.f32.mrf.mxu0
        %v898 = vadd.f32 0.0, %v897
        %899 = vmatmul.bf16.gmra.mxu0 %v486
        %v900 = vpop.f32.mrf.mxu0
        %v901 = vadd.f32 0.0, %v900
        %v902 = vpop.f32.mrf.mxu0
        %v903 = vadd.f32 0.0, %v902
        %904 = vmatmul.bf16.gmra.mxu0 %v487
        %v905 = vpop.f32.mrf.mxu0
        %v906 = vadd.f32 0.0, %v905
        %v907 = vpop.f32.mrf.mxu0
        %v908 = vadd.f32 0.0, %v907
        %909 = vmatmul.bf16.gmra.mxu0 %v488
        %v910 = vpop.f32.mrf.mxu0
        %v911 = vadd.f32 0.0, %v910
        %v912 = vpop.f32.mrf.mxu0
        %v913 = vadd.f32 0.0, %v912
        %914 = vmatmul.bf16.gmra.mxu0 %v489
        %v915 = vpop.f32.mrf.mxu0
        %v916 = vadd.f32 0.0, %v915
        %v917 = vpop.f32.mrf.mxu0
        %v918 = vadd.f32 0.0, %v917
        %919 = vmatmul.bf16.gmra.mxu0 %v490
        %v920 = vpop.f32.mrf.mxu0
        %v921 = vadd.f32 0.0, %v920
        %v922 = vpop.f32.mrf.mxu0
        %v923 = vadd.f32 0.0, %v922
        %924 = vmatmul.bf16.gmra.mxu0 %v491
        %v925 = vpop.f32.mrf.mxu0
        %v926 = vadd.f32 0.0, %v925
        %v927 = vpop.f32.mrf.mxu0
        %v928 = vadd.f32 0.0, %v927
        %929 = vmatmul.bf16.gmra.mxu0 %v492
        %v930 = vpop.f32.mrf.mxu0
        %v931 = vadd.f32 0.0, %v930
        %v932 = vpop.f32.mrf.mxu0
        %v933 = vadd.f32 0.0, %v932
        %934 = vmatmul.bf16.gmra.mxu0 %v493
        %v935 = vpop.f32.mrf.mxu0
        %v936 = vadd.f32 0.0, %v935
        %v937 = vpop.f32.mrf.mxu0
        %v938 = vadd.f32 0.0, %v937
        %939 = vmatmul.bf16.gmra.mxu0 %v494
        %v940 = vpop.f32.mrf.mxu0
        %v941 = vadd.f32 0.0, %v940
        %v942 = vpop.f32.mrf.mxu0
        %v943 = vadd.f32 0.0, %v942
        %944 = vmatmul.bf16.gmra.mxu0 %v495
        %v945 = vpop.f32.mrf.mxu0
        %v946 = vadd.f32 0.0, %v945
        %v947 = vpop.f32.mrf.mxu0
        %v948 = vadd.f32 0.0, %v947
        %949 = vmatmul.bf16.gmra.mxu0 %v496
        %v950 = vpop.f32.mrf.mxu0
        %v951 = vadd.f32 0.0, %v950
        %v952 = vpop.f32.mrf.mxu0
        %v953 = vadd.f32 0.0, %v952
        %954 = vmatmul.bf16.gmra.mxu0 %v497
        %v955 = vpop.f32.mrf.mxu0
        %v956 = vadd.f32 0.0, %v955
        %v957 = vpop.f32.mrf.mxu0
        %v958 = vadd.f32 0.0, %v957
        %959 = vmatmul.bf16.gmra.mxu0 %v498
        %v960 = vpop.f32.mrf.mxu0
        %v961 = vadd.f32 0.0, %v960
        %v962 = vpop.f32.mrf.mxu0
        %v963 = vadd.f32 0.0, %v962
        %964 = vmatmul.bf16.gmra.mxu0 %v499
        %v965 = vpop.f32.mrf.mxu0
        %v966 = vadd.f32 0.0, %v965
        %v967 = vpop.f32.mrf.mxu0
        %v968 = vadd.f32 0.0, %v967
        %969 = vmatmul.bf16.gmra.mxu0 %v500
        %v970 = vpop.f32.mrf.mxu0
        %v971 = vadd.f32 0.0, %v970
        %v972 = vpop.f32.mrf.mxu0
        %v973 = vadd.f32 0.0, %v972
        %974 = vmatmul.bf16.gmra.mxu0 %v501
        %v975 = vpop.f32.mrf.mxu0
        %v976 = vadd.f32 0.0, %v975
        %v977 = vpop.f32.mrf.mxu0
        %v978 = vadd.f32 0.0, %v977
        %979 = vmatmul.bf16.gmra.mxu0 %v502
        %v980 = vpop.f32.mrf.mxu0
        %v981 = vadd.f32 0.0, %v980
        %v982 = vpop.f32.mrf.mxu0
        %v983 = vadd.f32 0.0, %v982
        %984 = vmatmul.bf16.gmra.mxu0 %v503
        %v985 = vpop.f32.mrf.mxu0
        %v986 = vadd.f32 0.0, %v985
        %v987 = vpop.f32.mrf.mxu0
        %v988 = vadd.f32 0.0, %v987
        %989 = vmatmul.bf16.gmra.mxu0 %v504
        %v990 = vpop.f32.mrf.mxu0
        %v991 = vadd.f32 0.0, %v990
        %v992 = vpop.f32.mrf.mxu0
        %v993 = vadd.f32 0.0, %v992
        %994 = vmatmul.bf16.gmra.mxu0 %v505
        %v995 = vpop.f32.mrf.mxu0
        %v996 = vadd.f32 0.0, %v995
        %v997 = vpop.f32.mrf.mxu0
        %v998 = vadd.f32 0.0, %v997
        %999 = vmatmul.bf16.gmra.mxu0 %v506
        %v1000 = vpop.f32.mrf.mxu0
        %v1001 = vadd.f32 0.0, %v1000
        %v1002 = vpop.f32.mrf.mxu0
        %v1003 = vadd.f32 0.0, %v1002
        %1004 = vmatmul.bf16.gmra.mxu0 %v507
        %v1005 = vpop.f32.mrf.mxu0
        %v1006 = vadd.f32 0.0, %v1005
        %v1007 = vpop.f32.mrf.mxu0
        %v1008 = vadd.f32 0.0, %v1007
        %1009 = vmatmul.bf16.gmra.mxu0 %v508
        %v1010 = vpop.f32.mrf.mxu0
        %v1011 = vadd.f32 0.0, %v1010
        %v1012 = vpop.f32.mrf.mxu0
        %v1013 = vadd.f32 0.0, %v1012
        %1014 = vmatmul.bf16.gmra.mxu0 %v509
        %v1015 = vpop.f32.mrf.mxu0
        %v1016 = vadd.f32 0.0, %v1015
        %v1017 = vpop.f32.mrf.mxu0
        %v1018 = vadd.f32 0.0, %v1017
        %1019 = vmatmul.bf16.gmra.mxu0 %v510
        %v1020 = vpop.f32.mrf.mxu0
        %v1021 = vadd.f32 0.0, %v1020
        %v1022 = vpop.f32.mrf.mxu0
        %v1023 = vadd.f32 0.0, %v1022
        %1024 = vmatmul.bf16.gmra.mxu0 %v511
        %v1025 = vpop.f32.mrf.mxu0
        %v1026 = vadd.f32 0.0, %v1025
        %v1027 = vpop.f32.mrf.mxu0
        %v1028 = vadd.f32 0.0, %v1027
        %1029 = vmatmul.bf16.gmra.mxu0 %v512
        %v1030 = vpop.f32.mrf.mxu0
        %v1031 = vadd.f32 0.0, %v1030
        %v1032 = vpop.f32.mrf.mxu0
        %v1033 = vadd.f32 0.0, %v1032
        %1034 = vmatmul.bf16.gmra.mxu0 %v513
        %v1035 = vpop.f32.mrf.mxu0
        %v1036 = vadd.f32 0.0, %v1035
        %v1037 = vpop.f32.mrf.mxu0
        %v1038 = vadd.f32 0.0, %v1037
        %1039 = vmatmul.bf16.gmra.mxu0 %v514
        %v1040 = vpop.f32.mrf.mxu0
        %v1041 = vadd.f32 0.0, %v1040
        %v1042 = vpop.f32.mrf.mxu0
        %v1043 = vadd.f32 0.0, %v1042
        %1044 = vdwg.mxu0
        %1045 = vmatpush.bf16.msra.mxu0 %v673
        %1046 = vmatpush.bf16.msra.mxu0 %v669
        %1047 = vmatpush.bf16.msra.mxu0 %v665
        %1048 = vmatpush.bf16.msra.mxu0 %v661
        %1049 = vmatpush.bf16.msra.mxu0 %v657
        %1050 = vmatpush.bf16.msra.mxu0 %v653
        %1051 = vmatpush.bf16.msra.mxu0 %v649
        %1052 = vmatpush.bf16.msra.mxu0 %v645
        %1053 = vmatmul.bf16.gmra.mxu0 %v483
        %v1054 = vpop.f32.mrf.mxu0
        %v1055 = vadd.f32 0.0, %v1054
        %v1056 = vpop.f32.mrf.mxu0
        %v1057 = vadd.f32 0.0, %v1056
        %1058 = vmatmul.bf16.gmra.mxu0 %v484
        %v1059 = vpop.f32.mrf.mxu0
        %v1060 = vadd.f32 0.0, %v1059
        %v1061 = vpop.f32.mrf.mxu0
        %v1062 = vadd.f32 0.0, %v1061
        %1063 = vmatmul.bf16.gmra.mxu0 %v485
        %v1064 = vpop.f32.mrf.mxu0
        %v1065 = vadd.f32 0.0, %v1064
        %v1066 = vpop.f32.mrf.mxu0
        %v1067 = vadd.f32 0.0, %v1066
        %1068 = vmatmul.bf16.gmra.mxu0 %v486
        %v1069 = vpop.f32.mrf.mxu0
        %v1070 = vadd.f32 0.0, %v1069
        %v1071 = vpop.f32.mrf.mxu0
        %v1072 = vadd.f32 0.0, %v1071
        %1073 = vmatmul.bf16.gmra.mxu0 %v487
        %v1074 = vpop.f32.mrf.mxu0
        %v1075 = vadd.f32 0.0, %v1074
        %v1076 = vpop.f32.mrf.mxu0
        %v1077 = vadd.f32 0.0, %v1076
        %1078 = vmatmul.bf16.gmra.mxu0 %v488
        %v1079 = vpop.f32.mrf.mxu0
        %v1080 = vadd.f32 0.0, %v1079
        %v1081 = vpop.f32.mrf.mxu0
        %v1082 = vadd.f32 0.0, %v1081
        %1083 = vmatmul.bf16.gmra.mxu0 %v489
        %v1084 = vpop.f32.mrf.mxu0
        %v1085 = vadd.f32 0.0, %v1084
        %v1086 = vpop.f32.mrf.mxu0
        %v1087 = vadd.f32 0.0, %v1086
        %1088 = vmatmul.bf16.gmra.mxu0 %v490
        %v1089 = vpop.f32.mrf.mxu0
        %v1090 = vadd.f32 0.0, %v1089
        %v1091 = vpop.f32.mrf.mxu0
        %v1092 = vadd.f32 0.0, %v1091
        %1093 = vmatmul.bf16.gmra.mxu0 %v491
        %v1094 = vpop.f32.mrf.mxu0
        %v1095 = vadd.f32 0.0, %v1094
        %v1096 = vpop.f32.mrf.mxu0
        %v1097 = vadd.f32 0.0, %v1096
        %1098 = vmatmul.bf16.gmra.mxu0 %v492
        %v1099 = vpop.f32.mrf.mxu0
        %v1100 = vadd.f32 0.0, %v1099
        %v1101 = vpop.f32.mrf.mxu0
        %v1102 = vadd.f32 0.0, %v1101
        %1103 = vmatmul.bf16.gmra.mxu0 %v493
        %v1104 = vpop.f32.mrf.mxu0
        %v1105 = vadd.f32 0.0, %v1104
        %v1106 = vpop.f32.mrf.mxu0
        %v1107 = vadd.f32 0.0, %v1106
        %1108 = vmatmul.bf16.gmra.mxu0 %v494
        %v1109 = vpop.f32.mrf.mxu0
        %v1110 = vadd.f32 0.0, %v1109
        %v1111 = vpop.f32.mrf.mxu0
        %v1112 = vadd.f32 0.0, %v1111
        %1113 = vmatmul.bf16.gmra.mxu0 %v495
        %v1114 = vpop.f32.mrf.mxu0
        %v1115 = vadd.f32 0.0, %v1114
        %v1116 = vpop.f32.mrf.mxu0
        %v1117 = vadd.f32 0.0, %v1116
        %1118 = vmatmul.bf16.gmra.mxu0 %v496
        %v1119 = vpop.f32.mrf.mxu0
        %v1120 = vadd.f32 0.0, %v1119
        %v1121 = vpop.f32.mrf.mxu0
        %v1122 = vadd.f32 0.0, %v1121
        %1123 = vmatmul.bf16.gmra.mxu0 %v497
        %v1124 = vpop.f32.mrf.mxu0
        %v1125 = vadd.f32 0.0, %v1124
        %v1126 = vpop.f32.mrf.mxu0
        %v1127 = vadd.f32 0.0, %v1126
        %1128 = vmatmul.bf16.gmra.mxu0 %v498
        %v1129 = vpop.f32.mrf.mxu0
        %v1130 = vadd.f32 0.0, %v1129
        %v1131 = vpop.f32.mrf.mxu0
        %v1132 = vadd.f32 0.0, %v1131
        %1133 = vmatmul.bf16.gmra.mxu0 %v499
        %v1134 = vpop.f32.mrf.mxu0
        %v1135 = vadd.f32 0.0, %v1134
        %v1136 = vpop.f32.mrf.mxu0
        %v1137 = vadd.f32 0.0, %v1136
        %1138 = vmatmul.bf16.gmra.mxu0 %v500
        %v1139 = vpop.f32.mrf.mxu0
        %v1140 = vadd.f32 0.0, %v1139
        %v1141 = vpop.f32.mrf.mxu0
        %v1142 = vadd.f32 0.0, %v1141
        %1143 = vmatmul.bf16.gmra.mxu0 %v501
        %v1144 = vpop.f32.mrf.mxu0
        %v1145 = vadd.f32 0.0, %v1144
        %v1146 = vpop.f32.mrf.mxu0
        %v1147 = vadd.f32 0.0, %v1146
        %1148 = vmatmul.bf16.gmra.mxu0 %v502
        %v1149 = vpop.f32.mrf.mxu0
        %v1150 = vadd.f32 0.0, %v1149
        %v1151 = vpop.f32.mrf.mxu0
        %v1152 = vadd.f32 0.0, %v1151
        %1153 = vmatmul.bf16.gmra.mxu0 %v503
        %v1154 = vpop.f32.mrf.mxu0
        %v1155 = vadd.f32 0.0, %v1154
        %v1156 = vpop.f32.mrf.mxu0
        %v1157 = vadd.f32 0.0, %v1156
        %1158 = vmatmul.bf16.gmra.mxu0 %v504
        %v1159 = vpop.f32.mrf.mxu0
        %v1160 = vadd.f32 0.0, %v1159
        %v1161 = vpop.f32.mrf.mxu0
        %v1162 = vadd.f32 0.0, %v1161
        %1163 = vmatmul.bf16.gmra.mxu0 %v505
        %v1164 = vpop.f32.mrf.mxu0
        %v1165 = vadd.f32 0.0, %v1164
        %v1166 = vpop.f32.mrf.mxu0
        %v1167 = vadd.f32 0.0, %v1166
        %1168 = vmatmul.bf16.gmra.mxu0 %v506
        %v1169 = vpop.f32.mrf.mxu0
        %v1170 = vadd.f32 0.0, %v1169
        %v1171 = vpop.f32.mrf.mxu0
        %v1172 = vadd.f32 0.0, %v1171
        %1173 = vmatmul.bf16.gmra.mxu0 %v507
        %v1174 = vpop.f32.mrf.mxu0
        %v1175 = vadd.f32 0.0, %v1174
        %v1176 = vpop.f32.mrf.mxu0
        %v1177 = vadd.f32 0.0, %v1176
        %1178 = vmatmul.bf16.gmra.mxu0 %v508
        %v1179 = vpop.f32.mrf.mxu0
        %v1180 = vadd.f32 0.0, %v1179
        %v1181 = vpop.f32.mrf.mxu0
        %v1182 = vadd.f32 0.0, %v1181
        %1183 = vmatmul.bf16.gmra.mxu0 %v509
        %v1184 = vpop.f32.mrf.mxu0
        %v1185 = vadd.f32 0.0, %v1184
        %v1186 = vpop.f32.mrf.mxu0
        %v1187 = vadd.f32 0.0, %v1186
        %1188 = vmatmul.bf16.gmra.mxu0 %v510
        %v1189 = vpop.f32.mrf.mxu0
        %v1190 = vadd.f32 0.0, %v1189
        %v1191 = vpop.f32.mrf.mxu0
        %v1192 = vadd.f32 0.0, %v1191
        %1193 = vmatmul.bf16.gmra.mxu0 %v511
        %v1194 = vpop.f32.mrf.mxu0
        %v1195 = vadd.f32 0.0, %v1194
        %v1196 = vpop.f32.mrf.mxu0
        %v1197 = vadd.f32 0.0, %v1196
        %1198 = vmatmul.bf16.gmra.mxu0 %v512
        %v1199 = vpop.f32.mrf.mxu0
        %v1200 = vadd.f32 0.0, %v1199
        %v1201 = vpop.f32.mrf.mxu0
        %v1202 = vadd.f32 0.0, %v1201
        %1203 = vmatmul.bf16.gmra.mxu0 %v513
        %v1204 = vpop.f32.mrf.mxu0
        %v1205 = vadd.f32 0.0, %v1204
        %v1206 = vpop.f32.mrf.mxu0
        %v1207 = vadd.f32 0.0, %v1206
        %1208 = vmatmul.bf16.gmra.mxu0 %v514
        %v1209 = vpop.f32.mrf.mxu0
        %v1210 = vadd.f32 0.0, %v1209
        %v1211 = vpop.f32.mrf.mxu0
        %v1212 = vadd.f32 0.0, %v1211
        %1213 = vdwg.mxu0
        %1214 = vmatpush.bf16.msra.mxu0 %v674
        %1215 = vmatpush.bf16.msra.mxu0 %v670
        %1216 = vmatpush.bf16.msra.mxu0 %v666
        %1217 = vmatpush.bf16.msra.mxu0 %v662
        %1218 = vmatpush.bf16.msra.mxu0 %v658
        %1219 = vmatpush.bf16.msra.mxu0 %v654
        %1220 = vmatpush.bf16.msra.mxu0 %v650
        %1221 = vmatpush.bf16.msra.mxu0 %v646
        %1222 = vmatmul.bf16.gmra.mxu0 %v483
        %v1223 = vpop.f32.mrf.mxu0
        %v1224 = vadd.f32 0.0, %v1223
        %v1225 = vpop.f32.mrf.mxu0
        %v1226 = vadd.f32 0.0, %v1225
        %1227 = vmatmul.bf16.gmra.mxu0 %v484
        %v1228 = vpop.f32.mrf.mxu0
        %v1229 = vadd.f32 0.0, %v1228
        %v1230 = vpop.f32.mrf.mxu0
        %v1231 = vadd.f32 0.0, %v1230
        %1232 = vmatmul.bf16.gmra.mxu0 %v485
        %v1233 = vpop.f32.mrf.mxu0
        %v1234 = vadd.f32 0.0, %v1233
        %v1235 = vpop.f32.mrf.mxu0
        %v1236 = vadd.f32 0.0, %v1235
        %1237 = vmatmul.bf16.gmra.mxu0 %v486
        %v1238 = vpop.f32.mrf.mxu0
        %v1239 = vadd.f32 0.0, %v1238
        %v1240 = vpop.f32.mrf.mxu0
        %v1241 = vadd.f32 0.0, %v1240
        %1242 = vmatmul.bf16.gmra.mxu0 %v487
        %v1243 = vpop.f32.mrf.mxu0
        %v1244 = vadd.f32 0.0, %v1243
        %v1245 = vpop.f32.mrf.mxu0
        %v1246 = vadd.f32 0.0, %v1245
        %1247 = vmatmul.bf16.gmra.mxu0 %v488
        %v1248 = vpop.f32.mrf.mxu0
        %v1249 = vadd.f32 0.0, %v1248
        %v1250 = vpop.f32.mrf.mxu0
        %v1251 = vadd.f32 0.0, %v1250
        %1252 = vmatmul.bf16.gmra.mxu0 %v489
        %v1253 = vpop.f32.mrf.mxu0
        %v1254 = vadd.f32 0.0, %v1253
        %v1255 = vpop.f32.mrf.mxu0
        %v1256 = vadd.f32 0.0, %v1255
        %1257 = vmatmul.bf16.gmra.mxu0 %v490
        %v1258 = vpop.f32.mrf.mxu0
        %v1259 = vadd.f32 0.0, %v1258
        %v1260 = vpop.f32.mrf.mxu0
        %v1261 = vadd.f32 0.0, %v1260
        %1262 = vmatmul.bf16.gmra.mxu0 %v491
        %v1263 = vpop.f32.mrf.mxu0
        %v1264 = vadd.f32 0.0, %v1263
        %v1265 = vpop.f32.mrf.mxu0
        %v1266 = vadd.f32 0.0, %v1265
        %1267 = vmatmul.bf16.gmra.mxu0 %v492
        %v1268 = vpop.f32.mrf.mxu0
        %v1269 = vadd.f32 0.0, %v1268
        %v1270 = vpop.f32.mrf.mxu0
        %v1271 = vadd.f32 0.0, %v1270
        %1272 = vmatmul.bf16.gmra.mxu0 %v493
        %v1273 = vpop.f32.mrf.mxu0
        %v1274 = vadd.f32 0.0, %v1273
        %v1275 = vpop.f32.mrf.mxu0
        %v1276 = vadd.f32 0.0, %v1275
        %1277 = vmatmul.bf16.gmra.mxu0 %v494
        %v1278 = vpop.f32.mrf.mxu0
        %v1279 = vadd.f32 0.0, %v1278
        %v1280 = vpop.f32.mrf.mxu0
        %v1281 = vadd.f32 0.0, %v1280
        %1282 = vmatmul.bf16.gmra.mxu0 %v495
        %v1283 = vpop.f32.mrf.mxu0
        %v1284 = vadd.f32 0.0, %v1283
        %v1285 = vpop.f32.mrf.mxu0
        %v1286 = vadd.f32 0.0, %v1285
        %1287 = vmatmul.bf16.gmra.mxu0 %v496
        %v1288 = vpop.f32.mrf.mxu0
        %v1289 = vadd.f32 0.0, %v1288
        %v1290 = vpop.f32.mrf.mxu0
        %v1291 = vadd.f32 0.0, %v1290
        %1292 = vmatmul.bf16.gmra.mxu0 %v497
        %v1293 = vpop.f32.mrf.mxu0
        %v1294 = vadd.f32 0.0, %v1293
        %v1295 = vpop.f32.mrf.mxu0
        %v1296 = vadd.f32 0.0, %v1295
        %1297 = vmatmul.bf16.gmra.mxu0 %v498
        %v1298 = vpop.f32.mrf.mxu0
        %v1299 = vadd.f32 0.0, %v1298
        %v1300 = vpop.f32.mrf.mxu0
        %v1301 = vadd.f32 0.0, %v1300
        %1302 = vmatmul.bf16.gmra.mxu0 %v499
        %v1303 = vpop.f32.mrf.mxu0
        %v1304 = vadd.f32 0.0, %v1303
        %v1305 = vpop.f32.mrf.mxu0
        %v1306 = vadd.f32 0.0, %v1305
        %1307 = vmatmul.bf16.gmra.mxu0 %v500
        %v1308 = vpop.f32.mrf.mxu0
        %v1309 = vadd.f32 0.0, %v1308
        %v1310 = vpop.f32.mrf.mxu0
        %v1311 = vadd.f32 0.0, %v1310
        %1312 = vmatmul.bf16.gmra.mxu0 %v501
        %v1313 = vpop.f32.mrf.mxu0
        %v1314 = vadd.f32 0.0, %v1313
        %v1315 = vpop.f32.mrf.mxu0
        %v1316 = vadd.f32 0.0, %v1315
        %1317 = vmatmul.bf16.gmra.mxu0 %v502
        %v1318 = vpop.f32.mrf.mxu0
        %v1319 = vadd.f32 0.0, %v1318
        %v1320 = vpop.f32.mrf.mxu0
        %v1321 = vadd.f32 0.0, %v1320
        %1322 = vmatmul.bf16.gmra.mxu0 %v503
        %v1323 = vpop.f32.mrf.mxu0
        %v1324 = vadd.f32 0.0, %v1323
        %v1325 = vpop.f32.mrf.mxu0
        %v1326 = vadd.f32 0.0, %v1325
        %1327 = vmatmul.bf16.gmra.mxu0 %v504
        %v1328 = vpop.f32.mrf.mxu0
        %v1329 = vadd.f32 0.0, %v1328
        %v1330 = vpop.f32.mrf.mxu0
        %v1331 = vadd.f32 0.0, %v1330
        %1332 = vmatmul.bf16.gmra.mxu0 %v505
        %v1333 = vpop.f32.mrf.mxu0
        %v1334 = vadd.f32 0.0, %v1333
        %v1335 = vpop.f32.mrf.mxu0
        %v1336 = vadd.f32 0.0, %v1335
        %1337 = vmatmul.bf16.gmra.mxu0 %v506
        %v1338 = vpop.f32.mrf.mxu0
        %v1339 = vadd.f32 0.0, %v1338
        %v1340 = vpop.f32.mrf.mxu0
        %v1341 = vadd.f32 0.0, %v1340
        %1342 = vmatmul.bf16.gmra.mxu0 %v507
        %v1343 = vpop.f32.mrf.mxu0
        %v1344 = vadd.f32 0.0, %v1343
        %v1345 = vpop.f32.mrf.mxu0
        %v1346 = vadd.f32 0.0, %v1345
        %1347 = vmatmul.bf16.gmra.mxu0 %v508
        %v1348 = vpop.f32.mrf.mxu0
        %v1349 = vadd.f32 0.0, %v1348
        %v1350 = vpop.f32.mrf.mxu0
        %v1351 = vadd.f32 0.0, %v1350
        %1352 = vmatmul.bf16.gmra.mxu0 %v509
        %v1353 = vpop.f32.mrf.mxu0
        %v1354 = vadd.f32 0.0, %v1353
        %v1355 = vpop.f32.mrf.mxu0
        %v1356 = vadd.f32 0.0, %v1355
        %1357 = vmatmul.bf16.gmra.mxu0 %v510
        %v1358 = vpop.f32.mrf.mxu0
        %v1359 = vadd.f32 0.0, %v1358
        %v1360 = vpop.f32.mrf.mxu0
        %v1361 = vadd.f32 0.0, %v1360
        %1362 = vmatmul.bf16.gmra.mxu0 %v511
        %v1363 = vpop.f32.mrf.mxu0
        %v1364 = vadd.f32 0.0, %v1363
        %v1365 = vpop.f32.mrf.mxu0
        %v1366 = vadd.f32 0.0, %v1365
        %1367 = vmatmul.bf16.gmra.mxu0 %v512
        %v1368 = vpop.f32.mrf.mxu0
        %v1369 = vadd.f32 0.0, %v1368
        %v1370 = vpop.f32.mrf.mxu0
        %v1371 = vadd.f32 0.0, %v1370
        %1372 = vmatmul.bf16.gmra.mxu0 %v513
        %v1373 = vpop.f32.mrf.mxu0
        %v1374 = vadd.f32 0.0, %v1373
        %v1375 = vpop.f32.mrf.mxu0
        %v1376 = vadd.f32 0.0, %v1375
        %1377 = vmatmul.bf16.gmra.mxu0 %v514
        %v1378 = vpop.f32.mrf.mxu0
        %v1379 = vadd.f32 0.0, %v1378
        %v1380 = vpop.f32.mrf.mxu0
        %v1381 = vadd.f32 0.0, %v1380
        %1382 = vdwg.mxu0
        %1383 = vst [vmem:[%s249] sm:$0xff] %v717
        %1384 = vst [vmem:[%s249 + $0x8] sm:$0xff] %v886
        %1385 = vst [vmem:[%s249 + $0x10] sm:$0xff] %v1055
        %1386 = vst [vmem:[%s249 + $0x18] sm:$0xff] %v1224
        %1387 = vst [vmem:[%s249 + $0x20] sm:$0xff] %v719
        %1388 = vst [vmem:[%s249 + $0x28] sm:$0xff] %v888
        %1389 = vst [vmem:[%s249 + $0x30] sm:$0xff] %v1057
        %1390 = vst [vmem:[%s249 + $0x38] sm:$0xff] %v1226
        %1391 = vst [vmem:[%s249 + $0x40] sm:$0xff] %v722
        %1392 = vst [vmem:[%s249 + $0x48] sm:$0xff] %v891
        %1393 = vst [vmem:[%s249 + $0x50] sm:$0xff] %v1060
        %1394 = vst [vmem:[%s249 + $0x58] sm:$0xff] %v1229
        %1395 = vst [vmem:[%s249 + $0x60] sm:$0xff] %v724
        %1396 = vst [vmem:[%s249 + $0x68] sm:$0xff] %v893
        %1397 = vst [vmem:[%s249 + $0x70] sm:$0xff] %v1062
        %1398 = vst [vmem:[%s249 + $0x78] sm:$0xff] %v1231
        %1399 = vst [vmem:[%s249 + $0x80] sm:$0xff] %v727
        %1400 = vst [vmem:[%s249 + $0x88] sm:$0xff] %v896
        %1401 = vst [vmem:[%s249 + $0x90] sm:$0xff] %v1065
        %1402 = vst [vmem:[%s249 + $0x98] sm:$0xff] %v1234
        %1403 = vst [vmem:[%s249 + $0xa0] sm:$0xff] %v729
        %1404 = vst [vmem:[%s249 + $0xa8] sm:$0xff] %v898
        %1405 = vst [vmem:[%s249 + $0xb0] sm:$0xff] %v1067
        %1406 = vst [vmem:[%s249 + $0xb8] sm:$0xff] %v1236
        %1407 = vst [vmem:[%s249 + $0xc0] sm:$0xff] %v732
        %1408 = vst [vmem:[%s249 + $0xc8] sm:$0xff] %v901
        %1409 = vst [vmem:[%s249 + $0xd0] sm:$0xff] %v1070
        %1410 = vst [vmem:[%s249 + $0xd8] sm:$0xff] %v1239
        %1411 = vst [vmem:[%s249 + $0xe0] sm:$0xff] %v734
        %1412 = vst [vmem:[%s249 + $0xe8] sm:$0xff] %v903
        %1413 = vst [vmem:[%s249 + $0xf0] sm:$0xff] %v1072
        %1414 = vst [vmem:[%s249 + $0xf8] sm:$0xff] %v1241
        %1415 = vst [vmem:[%s249 + $0x100] sm:$0xff] %v737
        %1416 = vst [vmem:[%s249 + $0x108] sm:$0xff] %v906
        %1417 = vst [vmem:[%s249 + $0x110] sm:$0xff] %v1075
        %1418 = vst [vmem:[%s249 + $0x118] sm:$0xff] %v1244
        %1419 = vst [vmem:[%s249 + $0x120] sm:$0xff] %v739
        %1420 = vst [vmem:[%s249 + $0x128] sm:$0xff] %v908
        %1421 = vst [vmem:[%s249 + $0x130] sm:$0xff] %v1077
        %1422 = vst [vmem:[%s249 + $0x138] sm:$0xff] %v1246
        %1423 = vst [vmem:[%s249 + $0x140] sm:$0xff] %v742
        %1424 = vst [vmem:[%s249 + $0x148] sm:$0xff] %v911
        %1425 = vst [vmem:[%s249 + $0x150] sm:$0xff] %v1080
        %1426 = vst [vmem:[%s249 + $0x158] sm:$0xff] %v1249
        %1427 = vst [vmem:[%s249 + $0x160] sm:$0xff] %v744
        %1428 = vst [vmem:[%s249 + $0x168] sm:$0xff] %v913
        %1429 = vst [vmem:[%s249 + $0x170] sm:$0xff] %v1082
        %1430 = vst [vmem:[%s249 + $0x178] sm:$0xff] %v1251
        %1431 = vst [vmem:[%s249 + $0x180] sm:$0xff] %v747
        %1432 = vst [vmem:[%s249 + $0x188] sm:$0xff] %v916
        %1433 = vst [vmem:[%s249 + $0x190] sm:$0xff] %v1085
        %1434 = vst [vmem:[%s249 + $0x198] sm:$0xff] %v1254
        %1435 = vst [vmem:[%s249 + $0x1a0] sm:$0xff] %v749
        %1436 = vst [vmem:[%s249 + $0x1a8] sm:$0xff] %v918
        %1437 = vst [vmem:[%s249 + $0x1b0] sm:$0xff] %v1087
        %1438 = vst [vmem:[%s249 + $0x1b8] sm:$0xff] %v1256
        %1439 = vst [vmem:[%s249 + $0x1c0] sm:$0xff] %v752
        %1440 = vst [vmem:[%s249 + $0x1c8] sm:$0xff] %v921
        %1441 = vst [vmem:[%s249 + $0x1d0] sm:$0xff] %v1090
        %1442 = vst [vmem:[%s249 + $0x1d8] sm:$0xff] %v1259
        %1443 = vst [vmem:[%s249 + $0x1e0] sm:$0xff] %v754
        %1444 = vst [vmem:[%s249 + $0x1e8] sm:$0xff] %v923
        %1445 = vst [vmem:[%s249 + $0x1f0] sm:$0xff] %v1092
        %1446 = vst [vmem:[%s249 + $0x1f8] sm:$0xff] %v1261
        %1447 = vst [vmem:[%s249 + $0x200] sm:$0xff] %v757
        %1448 = vst [vmem:[%s249 + $0x208] sm:$0xff] %v926
        %1449 = vst [vmem:[%s249 + $0x210] sm:$0xff] %v1095
        %1450 = vst [vmem:[%s249 + $0x218] sm:$0xff] %v1264
        %1451 = vst [vmem:[%s249 + $0x220] sm:$0xff] %v759
        %1452 = vst [vmem:[%s249 + $0x228] sm:$0xff] %v928
        %1453 = vst [vmem:[%s249 + $0x230] sm:$0xff] %v1097
        %1454 = vst [vmem:[%s249 + $0x238] sm:$0xff] %v1266
        %1455 = vst [vmem:[%s249 + $0x240] sm:$0xff] %v762
        %1456 = vst [vmem:[%s249 + $0x248] sm:$0xff] %v931
        %1457 = vst [vmem:[%s249 + $0x250] sm:$0xff] %v1100
        %1458 = vst [vmem:[%s249 + $0x258] sm:$0xff] %v1269
        %1459 = vst [vmem:[%s249 + $0x260] sm:$0xff] %v764
        %1460 = vst [vmem:[%s249 + $0x268] sm:$0xff] %v933
        %1461 = vst [vmem:[%s249 + $0x270] sm:$0xff] %v1102
        %1462 = vst [vmem:[%s249 + $0x278] sm:$0xff] %v1271
        %1463 = vst [vmem:[%s249 + $0x280] sm:$0xff] %v767
        %1464 = vst [vmem:[%s249 + $0x288] sm:$0xff] %v936
        %1465 = vst [vmem:[%s249 + $0x290] sm:$0xff] %v1105
        %1466 = vst [vmem:[%s249 + $0x298] sm:$0xff] %v1274
        %1467 = vst [vmem:[%s249 + $0x2a0] sm:$0xff] %v769
        %1468 = vst [vmem:[%s249 + $0x2a8] sm:$0xff] %v938
        %1469 = vst [vmem:[%s249 + $0x2b0] sm:$0xff] %v1107
        %1470 = vst [vmem:[%s249 + $0x2b8] sm:$0xff] %v1276
        %1471 = vst [vmem:[%s249 + $0x2c0] sm:$0xff] %v772
        %1472 = vst [vmem:[%s249 + $0x2c8] sm:$0xff] %v941
        %1473 = vst [vmem:[%s249 + $0x2d0] sm:$0xff] %v1110
        %1474 = vst [vmem:[%s249 + $0x2d8] sm:$0xff] %v1279
        %1475 = vst [vmem:[%s249 + $0x2e0] sm:$0xff] %v774
        %1476 = vst [vmem:[%s249 + $0x2e8] sm:$0xff] %v943
        %1477 = vst [vmem:[%s249 + $0x2f0] sm:$0xff] %v1112
        %1478 = vst [vmem:[%s249 + $0x2f8] sm:$0xff] %v1281
        %1479 = vst [vmem:[%s249 + $0x300] sm:$0xff] %v777
        %1480 = vst [vmem:[%s249 + $0x308] sm:$0xff] %v946
        %1481 = vst [vmem:[%s249 + $0x310] sm:$0xff] %v1115
        %1482 = vst [vmem:[%s249 + $0x318] sm:$0xff] %v1284
        %1483 = vst [vmem:[%s249 + $0x320] sm:$0xff] %v779
        %1484 = vst [vmem:[%s249 + $0x328] sm:$0xff] %v948
        %1485 = vst [vmem:[%s249 + $0x330] sm:$0xff] %v1117
        %1486 = vst [vmem:[%s249 + $0x338] sm:$0xff] %v1286
        %1487 = vst [vmem:[%s249 + $0x340] sm:$0xff] %v782
        %1488 = vst [vmem:[%s249 + $0x348] sm:$0xff] %v951
        %1489 = vst [vmem:[%s249 + $0x350] sm:$0xff] %v1120
        %1490 = vst [vmem:[%s249 + $0x358] sm:$0xff] %v1289
        %1491 = vst [vmem:[%s249 + $0x360] sm:$0xff] %v784
        %1492 = vst [vmem:[%s249 + $0x368] sm:$0xff] %v953
        %1493 = vst [vmem:[%s249 + $0x370] sm:$0xff] %v1122
        %1494 = vst [vmem:[%s249 + $0x378] sm:$0xff] %v1291
        %1495 = vst [vmem:[%s249 + $0x380] sm:$0xff] %v787
        %1496 = vst [vmem:[%s249 + $0x388] sm:$0xff] %v956
        %1497 = vst [vmem:[%s249 + $0x390] sm:$0xff] %v1125
        %1498 = vst [vmem:[%s249 + $0x398] sm:$0xff] %v1294
        %1499 = vst [vmem:[%s249 + $0x3a0] sm:$0xff] %v789
        %1500 = vst [vmem:[%s249 + $0x3a8] sm:$0xff] %v958
        %1501 = vst [vmem:[%s249 + $0x3b0] sm:$0xff] %v1127
        %1502 = vst [vmem:[%s249 + $0x3b8] sm:$0xff] %v1296
        %1503 = vst [vmem:[%s249 + $0x3c0] sm:$0xff] %v792
        %1504 = vst [vmem:[%s249 + $0x3c8] sm:$0xff] %v961
        %1505 = vst [vmem:[%s249 + $0x3d0] sm:$0xff] %v1130
        %1506 = vst [vmem:[%s249 + $0x3d8] sm:$0xff] %v1299
        %1507 = vst [vmem:[%s249 + $0x3e0] sm:$0xff] %v794
        %1508 = vst [vmem:[%s249 + $0x3e8] sm:$0xff] %v963
        %1509 = vst [vmem:[%s249 + $0x3f0] sm:$0xff] %v1132
        %1510 = vst [vmem:[%s249 + $0x3f8] sm:$0xff] %v1301
        %1511 = vst [vmem:[%s249 + $0x400] sm:$0xff] %v797
        %1512 = vst [vmem:[%s249 + $0x408] sm:$0xff] %v966
        %1513 = vst [vmem:[%s249 + $0x410] sm:$0xff] %v1135
        %1514 = vst [vmem:[%s249 + $0x418] sm:$0xff] %v1304
        %1515 = vst [vmem:[%s249 + $0x420] sm:$0xff] %v799
        %1516 = vst [vmem:[%s249 + $0x428] sm:$0xff] %v968
        %1517 = vst [vmem:[%s249 + $0x430] sm:$0xff] %v1137
        %1518 = vst [vmem:[%s249 + $0x438] sm:$0xff] %v1306
        %1519 = vst [vmem:[%s249 + $0x440] sm:$0xff] %v802
        %1520 = vst [vmem:[%s249 + $0x448] sm:$0xff] %v971
        %1521 = vst [vmem:[%s249 + $0x450] sm:$0xff] %v1140
        %1522 = vst [vmem:[%s249 + $0x458] sm:$0xff] %v1309
        %1523 = vst [vmem:[%s249 + $0x460] sm:$0xff] %v804
        %1524 = vst [vmem:[%s249 + $0x468] sm:$0xff] %v973
        %1525 = vst [vmem:[%s249 + $0x470] sm:$0xff] %v1142
        %1526 = vst [vmem:[%s249 + $0x478] sm:$0xff] %v1311
        %1527 = vst [vmem:[%s249 + $0x480] sm:$0xff] %v807
        %1528 = vst [vmem:[%s249 + $0x488] sm:$0xff] %v976
        %1529 = vst [vmem:[%s249 + $0x490] sm:$0xff] %v1145
        %1530 = vst [vmem:[%s249 + $0x498] sm:$0xff] %v1314
        %1531 = vst [vmem:[%s249 + $0x4a0] sm:$0xff] %v809
        %1532 = vst [vmem:[%s249 + $0x4a8] sm:$0xff] %v978
        %1533 = vst [vmem:[%s249 + $0x4b0] sm:$0xff] %v1147
        %1534 = vst [vmem:[%s249 + $0x4b8] sm:$0xff] %v1316
        %1535 = vst [vmem:[%s249 + $0x4c0] sm:$0xff] %v812
        %1536 = vst [vmem:[%s249 + $0x4c8] sm:$0xff] %v981
        %1537 = vst [vmem:[%s249 + $0x4d0] sm:$0xff] %v1150
        %1538 = vst [vmem:[%s249 + $0x4d8] sm:$0xff] %v1319
        %1539 = vst [vmem:[%s249 + $0x4e0] sm:$0xff] %v814
        %1540 = vst [vmem:[%s249 + $0x4e8] sm:$0xff] %v983
        %1541 = vst [vmem:[%s249 + $0x4f0] sm:$0xff] %v1152
        %1542 = vst [vmem:[%s249 + $0x4f8] sm:$0xff] %v1321
        %1543 = vst [vmem:[%s249 + $0x500] sm:$0xff] %v817
        %1544 = vst [vmem:[%s249 + $0x508] sm:$0xff] %v986
        %1545 = vst [vmem:[%s249 + $0x510] sm:$0xff] %v1155
        %1546 = vst [vmem:[%s249 + $0x518] sm:$0xff] %v1324
        %1547 = vst [vmem:[%s249 + $0x520] sm:$0xff] %v819
        %1548 = vst [vmem:[%s249 + $0x528] sm:$0xff] %v988
        %1549 = vst [vmem:[%s249 + $0x530] sm:$0xff] %v1157
        %1550 = vst [vmem:[%s249 + $0x538] sm:$0xff] %v1326
        %1551 = vst [vmem:[%s249 + $0x540] sm:$0xff] %v822
        %1552 = vst [vmem:[%s249 + $0x548] sm:$0xff] %v991
        %1553 = vst [vmem:[%s249 + $0x550] sm:$0xff] %v1160
        %1554 = vst [vmem:[%s249 + $0x558] sm:$0xff] %v1329
        %1555 = vst [vmem:[%s249 + $0x560] sm:$0xff] %v824
        %1556 = vst [vmem:[%s249 + $0x568] sm:$0xff] %v993
        %1557 = vst [vmem:[%s249 + $0x570] sm:$0xff] %v1162
        %1558 = vst [vmem:[%s249 + $0x578] sm:$0xff] %v1331
        %1559 = vst [vmem:[%s249 + $0x580] sm:$0xff] %v827
        %1560 = vst [vmem:[%s249 + $0x588] sm:$0xff] %v996
        %1561 = vst [vmem:[%s249 + $0x590] sm:$0xff] %v1165
        %1562 = vst [vmem:[%s249 + $0x598] sm:$0xff] %v1334
        %1563 = vst [vmem:[%s249 + $0x5a0] sm:$0xff] %v829
        %1564 = vst [vmem:[%s249 + $0x5a8] sm:$0xff] %v998
        %1565 = vst [vmem:[%s249 + $0x5b0] sm:$0xff] %v1167
        %1566 = vst [vmem:[%s249 + $0x5b8] sm:$0xff] %v1336
        %1567 = vst [vmem:[%s249 + $0x5c0] sm:$0xff] %v832
        %1568 = vst [vmem:[%s249 + $0x5c8] sm:$0xff] %v1001
        %1569 = vst [vmem:[%s249 + $0x5d0] sm:$0xff] %v1170
        %1570 = vst [vmem:[%s249 + $0x5d8] sm:$0xff] %v1339
        %1571 = vst [vmem:[%s249 + $0x5e0] sm:$0xff] %v834
        %1572 = vst [vmem:[%s249 + $0x5e8] sm:$0xff] %v1003
        %1573 = vst [vmem:[%s249 + $0x5f0] sm:$0xff] %v1172
        %1574 = vst [vmem:[%s249 + $0x5f8] sm:$0xff] %v1341
        %1575 = vst [vmem:[%s249 + $0x600] sm:$0xff] %v837
        %1576 = vst [vmem:[%s249 + $0x608] sm:$0xff] %v1006
        %1577 = vst [vmem:[%s249 + $0x610] sm:$0xff] %v1175
        %1578 = vst [vmem:[%s249 + $0x618] sm:$0xff] %v1344
        %1579 = vst [vmem:[%s249 + $0x620] sm:$0xff] %v839
        %1580 = vst [vmem:[%s249 + $0x628] sm:$0xff] %v1008
        %1581 = vst [vmem:[%s249 + $0x630] sm:$0xff] %v1177
        %1582 = vst [vmem:[%s249 + $0x638] sm:$0xff] %v1346
        %1583 = vst [vmem:[%s249 + $0x640] sm:$0xff] %v842
        %1584 = vst [vmem:[%s249 + $0x648] sm:$0xff] %v1011
        %1585 = vst [vmem:[%s249 + $0x650] sm:$0xff] %v1180
        %1586 = vst [vmem:[%s249 + $0x658] sm:$0xff] %v1349
        %1587 = vst [vmem:[%s249 + $0x660] sm:$0xff] %v844
        %1588 = vst [vmem:[%s249 + $0x668] sm:$0xff] %v1013
        %1589 = vst [vmem:[%s249 + $0x670] sm:$0xff] %v1182
        %1590 = vst [vmem:[%s249 + $0x678] sm:$0xff] %v1351
        %1591 = vst [vmem:[%s249 + $0x680] sm:$0xff] %v847
        %1592 = vst [vmem:[%s249 + $0x688] sm:$0xff] %v1016
        %1593 = vst [vmem:[%s249 + $0x690] sm:$0xff] %v1185
        %1594 = vst [vmem:[%s249 + $0x698] sm:$0xff] %v1354
        %1595 = vst [vmem:[%s249 + $0x6a0] sm:$0xff] %v849
        %1596 = vst [vmem:[%s249 + $0x6a8] sm:$0xff] %v1018
        %1597 = vst [vmem:[%s249 + $0x6b0] sm:$0xff] %v1187
        %1598 = vst [vmem:[%s249 + $0x6b8] sm:$0xff] %v1356
        %1599 = vst [vmem:[%s249 + $0x6c0] sm:$0xff] %v852
        %1600 = vst [vmem:[%s249 + $0x6c8] sm:$0xff] %v1021
        %1601 = vst [vmem:[%s249 + $0x6d0] sm:$0xff] %v1190
        %1602 = vst [vmem:[%s249 + $0x6d8] sm:$0xff] %v1359
        %1603 = vst [vmem:[%s249 + $0x6e0] sm:$0xff] %v854
        %1604 = vst [vmem:[%s249 + $0x6e8] sm:$0xff] %v1023
        %1605 = vst [vmem:[%s249 + $0x6f0] sm:$0xff] %v1192
        %1606 = vst [vmem:[%s249 + $0x6f8] sm:$0xff] %v1361
        %1607 = vst [vmem:[%s249 + $0x700] sm:$0xff] %v857
        %1608 = vst [vmem:[%s249 + $0x708] sm:$0xff] %v1026
        %1609 = vst [vmem:[%s249 + $0x710] sm:$0xff] %v1195
        %1610 = vst [vmem:[%s249 + $0x718] sm:$0xff] %v1364
        %1611 = vst [vmem:[%s249 + $0x720] sm:$0xff] %v859
        %1612 = vst [vmem:[%s249 + $0x728] sm:$0xff] %v1028
        %1613 = vst [vmem:[%s249 + $0x730] sm:$0xff] %v1197
        %1614 = vst [vmem:[%s249 + $0x738] sm:$0xff] %v1366
        %1615 = vst [vmem:[%s249 + $0x740] sm:$0xff] %v862
        %1616 = vst [vmem:[%s249 + $0x748] sm:$0xff] %v1031
        %1617 = vst [vmem:[%s249 + $0x750] sm:$0xff] %v1200
        %1618 = vst [vmem:[%s249 + $0x758] sm:$0xff] %v1369
        %1619 = vst [vmem:[%s249 + $0x760] sm:$0xff] %v864
        %1620 = vst [vmem:[%s249 + $0x768] sm:$0xff] %v1033
        %1621 = vst [vmem:[%s249 + $0x770] sm:$0xff] %v1202
        %1622 = vst [vmem:[%s249 + $0x778] sm:$0xff] %v1371
        %1623 = vst [vmem:[%s249 + $0x780] sm:$0xff] %v867
        %1624 = vst [vmem:[%s249 + $0x788] sm:$0xff] %v1036
        %1625 = vst [vmem:[%s249 + $0x790] sm:$0xff] %v1205
        %1626 = vst [vmem:[%s249 + $0x798] sm:$0xff] %v1374
        %1627 = vst [vmem:[%s249 + $0x7a0] sm:$0xff] %v869
        %1628 = vst [vmem:[%s249 + $0x7a8] sm:$0xff] %v1038
        %1629 = vst [vmem:[%s249 + $0x7b0] sm:$0xff] %v1207
        %1630 = vst [vmem:[%s249 + $0x7b8] sm:$0xff] %v1376
        %1631 = vst [vmem:[%s249 + $0x7c0] sm:$0xff] %v872
        %1632 = vst [vmem:[%s249 + $0x7c8] sm:$0xff] %v1041
        %1633 = vst [vmem:[%s249 + $0x7d0] sm:$0xff] %v1210
        %1634 = vst [vmem:[%s249 + $0x7d8] sm:$0xff] %v1379
        %1635 = vst [vmem:[%s249 + $0x7e0] sm:$0xff] %v874
        %1636 = vst [vmem:[%s249 + $0x7e8] sm:$0xff] %v1043
        %1637 = vst [vmem:[%s249 + $0x7f0] sm:$0xff] %v1212
        %1638 = vst [vmem:[%s249 + $0x7f8] sm:$0xff] %v1381
        %s1639 = sand.u32 %s87, 1
        %s1640 = sand.u32 %s87, 1
        %s1641 = smul.addr %s1640, 2048
        %s1642 = scalar_lea.vmem [#allocation3], %s1641
        // Predicated region
        $region52: #{generator_forward.16} parent=46 // pred_check
          %p1643 = pneg %p97
        $region53: #{generator_forward.16} parent=46 // pred_check_branch
          %1645 = sbr.rel (%p1643) target = $region55
        $region54: #{generator_forward.16} parent=46 // pred_region
          %s1646 = smul.u32 64, %s17
          %s1647 = smul.u32 4, %s18
          %s1648 = smul.addr %s1646, 8
          %s1649 = sadd.s32 %s1647, %s1648
          %s1650 = smul.addr %s1649, 8
          %s1651 = scalar_lea.vmem %s2, %s1650
          // Predicated region
          $region56: #{generator_forward.16} parent=54 // pred_check
            _
          $region57: #{generator_forward.16} parent=54 // pred_check_branch
            %1653 = sbr.rel (0) target = $region59
          $region58: #{generator_forward.16} parent=54 // pred_region
            // Predicated region
            $region60: #{generator_forward.16} parent=58 // pred_check
              _
            $region61: #{generator_forward.16} parent=58 // pred_check_branch
              %1655 = sbr.rel (0) target = $region63
            $region62: #{generator_forward.16} parent=58 // pred_region
              loop: start=0, step=1, limit=1
              $region64: #{generator_forward.16} parent=62 // loop_pre_header
                _
              $region65: #{generator_forward.16} parent=62 // loop_header
                %s1657 = sphi 0, %s1661
                %p1658 = scmp.ge.s32.totalorder %s1657, 1
                %s1662 = sphi %s1642, %s1642
                %s1663 = sphi %s1651, %s1651
              $region66: #{generator_forward.16} parent=62 // loop_header_branch
                %1660 = sbr.rel (%p1658) target = $region70
              $region67: #{generator_forward.16} parent=62 // loop_body
                %v1664 = vld [vmem:[%s1662] sm:$0xff]
                %1665 = vst [vmem:[%s1663] sm:$0xff] %v1664
                %v1666 = vld [vmem:[%s1662 + $0x8] sm:$0xff]
                %1667 = vst [vmem:[%s1663 + $0x8] sm:$0xff] %v1666
                %v1668 = vld [vmem:[%s1662 + $0x10] sm:$0xff]
                %1669 = vst [vmem:[%s1663 + $0x10] sm:$0xff] %v1668
                %v1670 = vld [vmem:[%s1662 + $0x18] sm:$0xff]
                %1671 = vst [vmem:[%s1663 + $0x18] sm:$0xff] %v1670
                %v1672 = vld [vmem:[%s1662 + $0x20] sm:$0xff]
                %1673 = vst [vmem:[%s1663 + $0x40] sm:$0xff] %v1672
                %v1674 = vld [vmem:[%s1662 + $0x28] sm:$0xff]
                %1675 = vst [vmem:[%s1663 + $0x48] sm:$0xff] %v1674
                %v1676 = vld [vmem:[%s1662 + $0x30] sm:$0xff]
                %1677 = vst [vmem:[%s1663 + $0x50] sm:$0xff] %v1676
                %v1678 = vld [vmem:[%s1662 + $0x38] sm:$0xff]
                %1679 = vst [vmem:[%s1663 + $0x58] sm:$0xff] %v1678
                %v1680 = vld [vmem:[%s1662 + $0x40] sm:$0xff]
                %1681 = vst [vmem:[%s1663 + $0x80] sm:$0xff] %v1680
                %v1682 = vld [vmem:[%s1662 + $0x48] sm:$0xff]
                %1683 = vst [vmem:[%s1663 + $0x88] sm:$0xff] %v1682
                %v1684 = vld [vmem:[%s1662 + $0x50] sm:$0xff]
                %1685 = vst [vmem:[%s1663 + $0x90] sm:$0xff] %v1684
                %v1686 = vld [vmem:[%s1662 + $0x58] sm:$0xff]
                %1687 = vst [vmem:[%s1663 + $0x98] sm:$0xff] %v1686
                %v1688 = vld [vmem:[%s1662 + $0x60] sm:$0xff]
                %1689 = vst [vmem:[%s1663 + $0xc0] sm:$0xff] %v1688
                %v1690 = vld [vmem:[%s1662 + $0x68] sm:$0xff]
                %1691 = vst [vmem:[%s1663 + $0xc8] sm:$0xff] %v1690
                %v1692 = vld [vmem:[%s1662 + $0x70] sm:$0xff]
                %1693 = vst [vmem:[%s1663 + $0xd0] sm:$0xff] %v1692
                %v1694 = vld [vmem:[%s1662 + $0x78] sm:$0xff]
                %1695 = vst [vmem:[%s1663 + $0xd8] sm:$0xff] %v1694
                %v1696 = vld [vmem:[%s1662 + $0x80] sm:$0xff]
                %1697 = vst [vmem:[%s1663 + $0x100] sm:$0xff] %v1696
                %v1698 = vld [vmem:[%s1662 + $0x88] sm:$0xff]
                %1699 = vst [vmem:[%s1663 + $0x108] sm:$0xff] %v1698
                %v1700 = vld [vmem:[%s1662 + $0x90] sm:$0xff]
                %1701 = vst [vmem:[%s1663 + $0x110] sm:$0xff] %v1700
                %v1702 = vld [vmem:[%s1662 + $0x98] sm:$0xff]
                %1703 = vst [vmem:[%s1663 + $0x118] sm:$0xff] %v1702
                %v1704 = vld [vmem:[%s1662 + $0xa0] sm:$0xff]
                %1705 = vst [vmem:[%s1663 + $0x140] sm:$0xff] %v1704
                %v1706 = vld [vmem:[%s1662 + $0xa8] sm:$0xff]
                %1707 = vst [vmem:[%s1663 + $0x148] sm:$0xff] %v1706
                %v1708 = vld [vmem:[%s1662 + $0xb0] sm:$0xff]
                %1709 = vst [vmem:[%s1663 + $0x150] sm:$0xff] %v1708
                %v1710 = vld [vmem:[%s1662 + $0xb8] sm:$0xff]
                %1711 = vst [vmem:[%s1663 + $0x158] sm:$0xff] %v1710
                %v1712 = vld [vmem:[%s1662 + $0xc0] sm:$0xff]
                %1713 = vst [vmem:[%s1663 + $0x180] sm:$0xff] %v1712
                %v1714 = vld [vmem:[%s1662 + $0xc8] sm:$0xff]
                %1715 = vst [vmem:[%s1663 + $0x188] sm:$0xff] %v1714
                %v1716 = vld [vmem:[%s1662 + $0xd0] sm:$0xff]
                %1717 = vst [vmem:[%s1663 + $0x190] sm:$0xff] %v1716
                %v1718 = vld [vmem:[%s1662 + $0xd8] sm:$0xff]
                %1719 = vst [vmem:[%s1663 + $0x198] sm:$0xff] %v1718
                %v1720 = vld [vmem:[%s1662 + $0xe0] sm:$0xff]
                %1721 = vst [vmem:[%s1663 + $0x1c0] sm:$0xff] %v1720
                %v1722 = vld [vmem:[%s1662 + $0xe8] sm:$0xff]
                %1723 = vst [vmem:[%s1663 + $0x1c8] sm:$0xff] %v1722
                %v1724 = vld [vmem:[%s1662 + $0xf0] sm:$0xff]
                %1725 = vst [vmem:[%s1663 + $0x1d0] sm:$0xff] %v1724
                %v1726 = vld [vmem:[%s1662 + $0xf8] sm:$0xff]
                %1727 = vst [vmem:[%s1663 + $0x1d8] sm:$0xff] %v1726
                %v1728 = vld [vmem:[%s1662 + $0x100] sm:$0xff]
                %1729 = vst [vmem:[%s1663 + $0x200] sm:$0xff] %v1728
                %v1730 = vld [vmem:[%s1662 + $0x108] sm:$0xff]
                %1731 = vst [vmem:[%s1663 + $0x208] sm:$0xff] %v1730
                %v1732 = vld [vmem:[%s1662 + $0x110] sm:$0xff]
                %1733 = vst [vmem:[%s1663 + $0x210] sm:$0xff] %v1732
                %v1734 = vld [vmem:[%s1662 + $0x118] sm:$0xff]
                %1735 = vst [vmem:[%s1663 + $0x218] sm:$0xff] %v1734
                %v1736 = vld [vmem:[%s1662 + $0x120] sm:$0xff]
                %1737 = vst [vmem:[%s1663 + $0x240] sm:$0xff] %v1736
                %v1738 = vld [vmem:[%s1662 + $0x128] sm:$0xff]
                %1739 = vst [vmem:[%s1663 + $0x248] sm:$0xff] %v1738
                %v1740 = vld [vmem:[%s1662 + $0x130] sm:$0xff]
                %1741 = vst [vmem:[%s1663 + $0x250] sm:$0xff] %v1740
                %v1742 = vld [vmem:[%s1662 + $0x138] sm:$0xff]
                %1743 = vst [vmem:[%s1663 + $0x258] sm:$0xff] %v1742
                %v1744 = vld [vmem:[%s1662 + $0x140] sm:$0xff]
                %1745 = vst [vmem:[%s1663 + $0x280] sm:$0xff] %v1744
                %v1746 = vld [vmem:[%s1662 + $0x148] sm:$0xff]
                %1747 = vst [vmem:[%s1663 + $0x288] sm:$0xff] %v1746
                %v1748 = vld [vmem:[%s1662 + $0x150] sm:$0xff]
                %1749 = vst [vmem:[%s1663 + $0x290] sm:$0xff] %v1748
                %v1750 = vld [vmem:[%s1662 + $0x158] sm:$0xff]
                %1751 = vst [vmem:[%s1663 + $0x298] sm:$0xff] %v1750
                %v1752 = vld [vmem:[%s1662 + $0x160] sm:$0xff]
                %1753 = vst [vmem:[%s1663 + $0x2c0] sm:$0xff] %v1752
                %v1754 = vld [vmem:[%s1662 + $0x168] sm:$0xff]
                %1755 = vst [vmem:[%s1663 + $0x2c8] sm:$0xff] %v1754
                %v1756 = vld [vmem:[%s1662 + $0x170] sm:$0xff]
                %1757 = vst [vmem:[%s1663 + $0x2d0] sm:$0xff] %v1756
                %v1758 = vld [vmem:[%s1662 + $0x178] sm:$0xff]
                %1759 = vst [vmem:[%s1663 + $0x2d8] sm:$0xff] %v1758
                %v1760 = vld [vmem:[%s1662 + $0x180] sm:$0xff]
                %1761 = vst [vmem:[%s1663 + $0x300] sm:$0xff] %v1760
                %v1762 = vld [vmem:[%s1662 + $0x188] sm:$0xff]
                %1763 = vst [vmem:[%s1663 + $0x308] sm:$0xff] %v1762
                %v1764 = vld [vmem:[%s1662 + $0x190] sm:$0xff]
                %1765 = vst [vmem:[%s1663 + $0x310] sm:$0xff] %v1764
                %v1766 = vld [vmem:[%s1662 + $0x198] sm:$0xff]
                %1767 = vst [vmem:[%s1663 + $0x318] sm:$0xff] %v1766
                %v1768 = vld [vmem:[%s1662 + $0x1a0] sm:$0xff]
                %1769 = vst [vmem:[%s1663 + $0x340] sm:$0xff] %v1768
                %v1770 = vld [vmem:[%s1662 + $0x1a8] sm:$0xff]
                %1771 = vst [vmem:[%s1663 + $0x348] sm:$0xff] %v1770
                %v1772 = vld [vmem:[%s1662 + $0x1b0] sm:$0xff]
                %1773 = vst [vmem:[%s1663 + $0x350] sm:$0xff] %v1772
                %v1774 = vld [vmem:[%s1662 + $0x1b8] sm:$0xff]
                %1775 = vst [vmem:[%s1663 + $0x358] sm:$0xff] %v1774
                %v1776 = vld [vmem:[%s1662 + $0x1c0] sm:$0xff]
                %1777 = vst [vmem:[%s1663 + $0x380] sm:$0xff] %v1776
                %v1778 = vld [vmem:[%s1662 + $0x1c8] sm:$0xff]
                %1779 = vst [vmem:[%s1663 + $0x388] sm:$0xff] %v1778
                %v1780 = vld [vmem:[%s1662 + $0x1d0] sm:$0xff]
                %1781 = vst [vmem:[%s1663 + $0x390] sm:$0xff] %v1780
                %v1782 = vld [vmem:[%s1662 + $0x1d8] sm:$0xff]
                %1783 = vst [vmem:[%s1663 + $0x398] sm:$0xff] %v1782
                %v1784 = vld [vmem:[%s1662 + $0x1e0] sm:$0xff]
                %1785 = vst [vmem:[%s1663 + $0x3c0] sm:$0xff] %v1784
                %v1786 = vld [vmem:[%s1662 + $0x1e8] sm:$0xff]
                %1787 = vst [vmem:[%s1663 + $0x3c8] sm:$0xff] %v1786
                %v1788 = vld [vmem:[%s1662 + $0x1f0] sm:$0xff]
                %1789 = vst [vmem:[%s1663 + $0x3d0] sm:$0xff] %v1788
                %v1790 = vld [vmem:[%s1662 + $0x1f8] sm:$0xff]
                %1791 = vst [vmem:[%s1663 + $0x3d8] sm:$0xff] %v1790
                %v1792 = vld [vmem:[%s1662 + $0x200] sm:$0xff]
                %1793 = vst [vmem:[%s1663 + $0x400] sm:$0xff] %v1792
                %v1794 = vld [vmem:[%s1662 + $0x208] sm:$0xff]
                %1795 = vst [vmem:[%s1663 + $0x408] sm:$0xff] %v1794
                %v1796 = vld [vmem:[%s1662 + $0x210] sm:$0xff]
                %1797 = vst [vmem:[%s1663 + $0x410] sm:$0xff] %v1796
                %v1798 = vld [vmem:[%s1662 + $0x218] sm:$0xff]
                %1799 = vst [vmem:[%s1663 + $0x418] sm:$0xff] %v1798
                %v1800 = vld [vmem:[%s1662 + $0x220] sm:$0xff]
                %1801 = vst [vmem:[%s1663 + $0x440] sm:$0xff] %v1800
                %v1802 = vld [vmem:[%s1662 + $0x228] sm:$0xff]
                %1803 = vst [vmem:[%s1663 + $0x448] sm:$0xff] %v1802
                %v1804 = vld [vmem:[%s1662 + $0x230] sm:$0xff]
                %1805 = vst [vmem:[%s1663 + $0x450] sm:$0xff] %v1804
                %v1806 = vld [vmem:[%s1662 + $0x238] sm:$0xff]
                %1807 = vst [vmem:[%s1663 + $0x458] sm:$0xff] %v1806
                %v1808 = vld [vmem:[%s1662 + $0x240] sm:$0xff]
                %1809 = vst [vmem:[%s1663 + $0x480] sm:$0xff] %v1808
                %v1810 = vld [vmem:[%s1662 + $0x248] sm:$0xff]
                %1811 = vst [vmem:[%s1663 + $0x488] sm:$0xff] %v1810
                %v1812 = vld [vmem:[%s1662 + $0x250] sm:$0xff]
                %1813 = vst [vmem:[%s1663 + $0x490] sm:$0xff] %v1812
                %v1814 = vld [vmem:[%s1662 + $0x258] sm:$0xff]
                %1815 = vst [vmem:[%s1663 + $0x498] sm:$0xff] %v1814
                %v1816 = vld [vmem:[%s1662 + $0x260] sm:$0xff]
                %1817 = vst [vmem:[%s1663 + $0x4c0] sm:$0xff] %v1816
                %v1818 = vld [vmem:[%s1662 + $0x268] sm:$0xff]
                %1819 = vst [vmem:[%s1663 + $0x4c8] sm:$0xff] %v1818
                %v1820 = vld [vmem:[%s1662 + $0x270] sm:$0xff]
                %1821 = vst [vmem:[%s1663 + $0x4d0] sm:$0xff] %v1820
                %v1822 = vld [vmem:[%s1662 + $0x278] sm:$0xff]
                %1823 = vst [vmem:[%s1663 + $0x4d8] sm:$0xff] %v1822
                %v1824 = vld [vmem:[%s1662 + $0x280] sm:$0xff]
                %1825 = vst [vmem:[%s1663 + $0x500] sm:$0xff] %v1824
                %v1826 = vld [vmem:[%s1662 + $0x288] sm:$0xff]
                %1827 = vst [vmem:[%s1663 + $0x508] sm:$0xff] %v1826
                %v1828 = vld [vmem:[%s1662 + $0x290] sm:$0xff]
                %1829 = vst [vmem:[%s1663 + $0x510] sm:$0xff] %v1828
                %v1830 = vld [vmem:[%s1662 + $0x298] sm:$0xff]
                %1831 = vst [vmem:[%s1663 + $0x518] sm:$0xff] %v1830
                %v1832 = vld [vmem:[%s1662 + $0x2a0] sm:$0xff]
                %1833 = vst [vmem:[%s1663 + $0x540] sm:$0xff] %v1832
                %v1834 = vld [vmem:[%s1662 + $0x2a8] sm:$0xff]
                %1835 = vst [vmem:[%s1663 + $0x548] sm:$0xff] %v1834
                %v1836 = vld [vmem:[%s1662 + $0x2b0] sm:$0xff]
                %1837 = vst [vmem:[%s1663 + $0x550] sm:$0xff] %v1836
                %v1838 = vld [vmem:[%s1662 + $0x2b8] sm:$0xff]
                %1839 = vst [vmem:[%s1663 + $0x558] sm:$0xff] %v1838
                %v1840 = vld [vmem:[%s1662 + $0x2c0] sm:$0xff]
                %1841 = vst [vmem:[%s1663 + $0x580] sm:$0xff] %v1840
                %v1842 = vld [vmem:[%s1662 + $0x2c8] sm:$0xff]
                %1843 = vst [vmem:[%s1663 + $0x588] sm:$0xff] %v1842
                %v1844 = vld [vmem:[%s1662 + $0x2d0] sm:$0xff]
                %1845 = vst [vmem:[%s1663 + $0x590] sm:$0xff] %v1844
                %v1846 = vld [vmem:[%s1662 + $0x2d8] sm:$0xff]
                %1847 = vst [vmem:[%s1663 + $0x598] sm:$0xff] %v1846
                %v1848 = vld [vmem:[%s1662 + $0x2e0] sm:$0xff]
                %1849 = vst [vmem:[%s1663 + $0x5c0] sm:$0xff] %v1848
                %v1850 = vld [vmem:[%s1662 + $0x2e8] sm:$0xff]
                %1851 = vst [vmem:[%s1663 + $0x5c8] sm:$0xff] %v1850
                %v1852 = vld [vmem:[%s1662 + $0x2f0] sm:$0xff]
                %1853 = vst [vmem:[%s1663 + $0x5d0] sm:$0xff] %v1852
                %v1854 = vld [vmem:[%s1662 + $0x2f8] sm:$0xff]
                %1855 = vst [vmem:[%s1663 + $0x5d8] sm:$0xff] %v1854
                %v1856 = vld [vmem:[%s1662 + $0x300] sm:$0xff]
                %1857 = vst [vmem:[%s1663 + $0x600] sm:$0xff] %v1856
                %v1858 = vld [vmem:[%s1662 + $0x308] sm:$0xff]
                %1859 = vst [vmem:[%s1663 + $0x608] sm:$0xff] %v1858
                %v1860 = vld [vmem:[%s1662 + $0x310] sm:$0xff]
                %1861 = vst [vmem:[%s1663 + $0x610] sm:$0xff] %v1860
                %v1862 = vld [vmem:[%s1662 + $0x318] sm:$0xff]
                %1863 = vst [vmem:[%s1663 + $0x618] sm:$0xff] %v1862
                %v1864 = vld [vmem:[%s1662 + $0x320] sm:$0xff]
                %1865 = vst [vmem:[%s1663 + $0x640] sm:$0xff] %v1864
                %v1866 = vld [vmem:[%s1662 + $0x328] sm:$0xff]
                %1867 = vst [vmem:[%s1663 + $0x648] sm:$0xff] %v1866
                %v1868 = vld [vmem:[%s1662 + $0x330] sm:$0xff]
                %1869 = vst [vmem:[%s1663 + $0x650] sm:$0xff] %v1868
                %v1870 = vld [vmem:[%s1662 + $0x338] sm:$0xff]
                %1871 = vst [vmem:[%s1663 + $0x658] sm:$0xff] %v1870
                %v1872 = vld [vmem:[%s1662 + $0x340] sm:$0xff]
                %1873 = vst [vmem:[%s1663 + $0x680] sm:$0xff] %v1872
                %v1874 = vld [vmem:[%s1662 + $0x348] sm:$0xff]
                %1875 = vst [vmem:[%s1663 + $0x688] sm:$0xff] %v1874
                %v1876 = vld [vmem:[%s1662 + $0x350] sm:$0xff]
                %1877 = vst [vmem:[%s1663 + $0x690] sm:$0xff] %v1876
                %v1878 = vld [vmem:[%s1662 + $0x358] sm:$0xff]
                %1879 = vst [vmem:[%s1663 + $0x698] sm:$0xff] %v1878
                %v1880 = vld [vmem:[%s1662 + $0x360] sm:$0xff]
                %1881 = vst [vmem:[%s1663 + $0x6c0] sm:$0xff] %v1880
                %v1882 = vld [vmem:[%s1662 + $0x368] sm:$0xff]
                %1883 = vst [vmem:[%s1663 + $0x6c8] sm:$0xff] %v1882
                %v1884 = vld [vmem:[%s1662 + $0x370] sm:$0xff]
                %1885 = vst [vmem:[%s1663 + $0x6d0] sm:$0xff] %v1884
                %v1886 = vld [vmem:[%s1662 + $0x378] sm:$0xff]
                %1887 = vst [vmem:[%s1663 + $0x6d8] sm:$0xff] %v1886
                %v1888 = vld [vmem:[%s1662 + $0x380] sm:$0xff]
                %1889 = vst [vmem:[%s1663 + $0x700] sm:$0xff] %v1888
                %v1890 = vld [vmem:[%s1662 + $0x388] sm:$0xff]
                %1891 = vst [vmem:[%s1663 + $0x708] sm:$0xff] %v1890
                %v1892 = vld [vmem:[%s1662 + $0x390] sm:$0xff]
                %1893 = vst [vmem:[%s1663 + $0x710] sm:$0xff] %v1892
                %v1894 = vld [vmem:[%s1662 + $0x398] sm:$0xff]
                %1895 = vst [vmem:[%s1663 + $0x718] sm:$0xff] %v1894
                %v1896 = vld [vmem:[%s1662 + $0x3a0] sm:$0xff]
                %1897 = vst [vmem:[%s1663 + $0x740] sm:$0xff] %v1896
                %v1898 = vld [vmem:[%s1662 + $0x3a8] sm:$0xff]
                %1899 = vst [vmem:[%s1663 + $0x748] sm:$0xff] %v1898
                %v1900 = vld [vmem:[%s1662 + $0x3b0] sm:$0xff]
                %1901 = vst [vmem:[%s1663 + $0x750] sm:$0xff] %v1900
                %v1902 = vld [vmem:[%s1662 + $0x3b8] sm:$0xff]
                %1903 = vst [vmem:[%s1663 + $0x758] sm:$0xff] %v1902
                %v1904 = vld [vmem:[%s1662 + $0x3c0] sm:$0xff]
                %1905 = vst [vmem:[%s1663 + $0x780] sm:$0xff] %v1904
                %v1906 = vld [vmem:[%s1662 + $0x3c8] sm:$0xff]
                %1907 = vst [vmem:[%s1663 + $0x788] sm:$0xff] %v1906
                %v1908 = vld [vmem:[%s1662 + $0x3d0] sm:$0xff]
                %1909 = vst [vmem:[%s1663 + $0x790] sm:$0xff] %v1908
                %v1910 = vld [vmem:[%s1662 + $0x3d8] sm:$0xff]
                %1911 = vst [vmem:[%s1663 + $0x798] sm:$0xff] %v1910
                %v1912 = vld [vmem:[%s1662 + $0x3e0] sm:$0xff]
                %1913 = vst [vmem:[%s1663 + $0x7c0] sm:$0xff] %v1912
                %v1914 = vld [vmem:[%s1662 + $0x3e8] sm:$0xff]
                %1915 = vst [vmem:[%s1663 + $0x7c8] sm:$0xff] %v1914
                %v1916 = vld [vmem:[%s1662 + $0x3f0] sm:$0xff]
                %1917 = vst [vmem:[%s1663 + $0x7d0] sm:$0xff] %v1916
                %v1918 = vld [vmem:[%s1662 + $0x3f8] sm:$0xff]
                %1919 = vst [vmem:[%s1663 + $0x7d8] sm:$0xff] %v1918
                %v1920 = vld [vmem:[%s1662 + $0x400] sm:$0xff]
                %1921 = vst [vmem:[%s1663 + $0x800] sm:$0xff] %v1920
                %v1922 = vld [vmem:[%s1662 + $0x408] sm:$0xff]
                %1923 = vst [vmem:[%s1663 + $0x808] sm:$0xff] %v1922
                %v1924 = vld [vmem:[%s1662 + $0x410] sm:$0xff]
                %1925 = vst [vmem:[%s1663 + $0x810] sm:$0xff] %v1924
                %v1926 = vld [vmem:[%s1662 + $0x418] sm:$0xff]
                %1927 = vst [vmem:[%s1663 + $0x818] sm:$0xff] %v1926
                %v1928 = vld [vmem:[%s1662 + $0x420] sm:$0xff]
                %1929 = vst [vmem:[%s1663 + $0x840] sm:$0xff] %v1928
                %v1930 = vld [vmem:[%s1662 + $0x428] sm:$0xff]
                %1931 = vst [vmem:[%s1663 + $0x848] sm:$0xff] %v1930
                %v1932 = vld [vmem:[%s1662 + $0x430] sm:$0xff]
                %1933 = vst [vmem:[%s1663 + $0x850] sm:$0xff] %v1932
                %v1934 = vld [vmem:[%s1662 + $0x438] sm:$0xff]
                %1935 = vst [vmem:[%s1663 + $0x858] sm:$0xff] %v1934
                %v1936 = vld [vmem:[%s1662 + $0x440] sm:$0xff]
                %1937 = vst [vmem:[%s1663 + $0x880] sm:$0xff] %v1936
                %v1938 = vld [vmem:[%s1662 + $0x448] sm:$0xff]
                %1939 = vst [vmem:[%s1663 + $0x888] sm:$0xff] %v1938
                %v1940 = vld [vmem:[%s1662 + $0x450] sm:$0xff]
                %1941 = vst [vmem:[%s1663 + $0x890] sm:$0xff] %v1940
                %v1942 = vld [vmem:[%s1662 + $0x458] sm:$0xff]
                %1943 = vst [vmem:[%s1663 + $0x898] sm:$0xff] %v1942
                %v1944 = vld [vmem:[%s1662 + $0x460] sm:$0xff]
                %1945 = vst [vmem:[%s1663 + $0x8c0] sm:$0xff] %v1944
                %v1946 = vld [vmem:[%s1662 + $0x468] sm:$0xff]
                %1947 = vst [vmem:[%s1663 + $0x8c8] sm:$0xff] %v1946
                %v1948 = vld [vmem:[%s1662 + $0x470] sm:$0xff]
                %1949 = vst [vmem:[%s1663 + $0x8d0] sm:$0xff] %v1948
                %v1950 = vld [vmem:[%s1662 + $0x478] sm:$0xff]
                %1951 = vst [vmem:[%s1663 + $0x8d8] sm:$0xff] %v1950
                %v1952 = vld [vmem:[%s1662 + $0x480] sm:$0xff]
                %1953 = vst [vmem:[%s1663 + $0x900] sm:$0xff] %v1952
                %v1954 = vld [vmem:[%s1662 + $0x488] sm:$0xff]
                %1955 = vst [vmem:[%s1663 + $0x908] sm:$0xff] %v1954
                %v1956 = vld [vmem:[%s1662 + $0x490] sm:$0xff]
                %1957 = vst [vmem:[%s1663 + $0x910] sm:$0xff] %v1956
                %v1958 = vld [vmem:[%s1662 + $0x498] sm:$0xff]
                %1959 = vst [vmem:[%s1663 + $0x918] sm:$0xff] %v1958
                %v1960 = vld [vmem:[%s1662 + $0x4a0] sm:$0xff]
                %1961 = vst [vmem:[%s1663 + $0x940] sm:$0xff] %v1960
                %v1962 = vld [vmem:[%s1662 + $0x4a8] sm:$0xff]
                %1963 = vst [vmem:[%s1663 + $0x948] sm:$0xff] %v1962
                %v1964 = vld [vmem:[%s1662 + $0x4b0] sm:$0xff]
                %1965 = vst [vmem:[%s1663 + $0x950] sm:$0xff] %v1964
                %v1966 = vld [vmem:[%s1662 + $0x4b8] sm:$0xff]
                %1967 = vst [vmem:[%s1663 + $0x958] sm:$0xff] %v1966
                %v1968 = vld [vmem:[%s1662 + $0x4c0] sm:$0xff]
                %1969 = vst [vmem:[%s1663 + $0x980] sm:$0xff] %v1968
                %v1970 = vld [vmem:[%s1662 + $0x4c8] sm:$0xff]
                %1971 = vst [vmem:[%s1663 + $0x988] sm:$0xff] %v1970
                %v1972 = vld [vmem:[%s1662 + $0x4d0] sm:$0xff]
                %1973 = vst [vmem:[%s1663 + $0x990] sm:$0xff] %v1972
                %v1974 = vld [vmem:[%s1662 + $0x4d8] sm:$0xff]
                %1975 = vst [vmem:[%s1663 + $0x998] sm:$0xff] %v1974
                %v1976 = vld [vmem:[%s1662 + $0x4e0] sm:$0xff]
                %1977 = vst [vmem:[%s1663 + $0x9c0] sm:$0xff] %v1976
                %v1978 = vld [vmem:[%s1662 + $0x4e8] sm:$0xff]
                %1979 = vst [vmem:[%s1663 + $0x9c8] sm:$0xff] %v1978
                %v1980 = vld [vmem:[%s1662 + $0x4f0] sm:$0xff]
                %1981 = vst [vmem:[%s1663 + $0x9d0] sm:$0xff] %v1980
                %v1982 = vld [vmem:[%s1662 + $0x4f8] sm:$0xff]
                %1983 = vst [vmem:[%s1663 + $0x9d8] sm:$0xff] %v1982
                %v1984 = vld [vmem:[%s1662 + $0x500] sm:$0xff]
                %1985 = vst [vmem:[%s1663 + $0xa00] sm:$0xff] %v1984
                %v1986 = vld [vmem:[%s1662 + $0x508] sm:$0xff]
                %1987 = vst [vmem:[%s1663 + $0xa08] sm:$0xff] %v1986
                %v1988 = vld [vmem:[%s1662 + $0x510] sm:$0xff]
                %1989 = vst [vmem:[%s1663 + $0xa10] sm:$0xff] %v1988
                %v1990 = vld [vmem:[%s1662 + $0x518] sm:$0xff]
                %1991 = vst [vmem:[%s1663 + $0xa18] sm:$0xff] %v1990
                %v1992 = vld [vmem:[%s1662 + $0x520] sm:$0xff]
                %1993 = vst [vmem:[%s1663 + $0xa40] sm:$0xff] %v1992
                %v1994 = vld [vmem:[%s1662 + $0x528] sm:$0xff]
                %1995 = vst [vmem:[%s1663 + $0xa48] sm:$0xff] %v1994
                %v1996 = vld [vmem:[%s1662 + $0x530] sm:$0xff]
                %1997 = vst [vmem:[%s1663 + $0xa50] sm:$0xff] %v1996
                %v1998 = vld [vmem:[%s1662 + $0x538] sm:$0xff]
                %1999 = vst [vmem:[%s1663 + $0xa58] sm:$0xff] %v1998
                %v2000 = vld [vmem:[%s1662 + $0x540] sm:$0xff]
                %2001 = vst [vmem:[%s1663 + $0xa80] sm:$0xff] %v2000
                %v2002 = vld [vmem:[%s1662 + $0x548] sm:$0xff]
                %2003 = vst [vmem:[%s1663 + $0xa88] sm:$0xff] %v2002
                %v2004 = vld [vmem:[%s1662 + $0x550] sm:$0xff]
                %2005 = vst [vmem:[%s1663 + $0xa90] sm:$0xff] %v2004
                %v2006 = vld [vmem:[%s1662 + $0x558] sm:$0xff]
                %2007 = vst [vmem:[%s1663 + $0xa98] sm:$0xff] %v2006
                %v2008 = vld [vmem:[%s1662 + $0x560] sm:$0xff]
                %2009 = vst [vmem:[%s1663 + $0xac0] sm:$0xff] %v2008
                %v2010 = vld [vmem:[%s1662 + $0x568] sm:$0xff]
                %2011 = vst [vmem:[%s1663 + $0xac8] sm:$0xff] %v2010
                %v2012 = vld [vmem:[%s1662 + $0x570] sm:$0xff]
                %2013 = vst [vmem:[%s1663 + $0xad0] sm:$0xff] %v2012
                %v2014 = vld [vmem:[%s1662 + $0x578] sm:$0xff]
                %2015 = vst [vmem:[%s1663 + $0xad8] sm:$0xff] %v2014
                %v2016 = vld [vmem:[%s1662 + $0x580] sm:$0xff]
                %2017 = vst [vmem:[%s1663 + $0xb00] sm:$0xff] %v2016
                %v2018 = vld [vmem:[%s1662 + $0x588] sm:$0xff]
                %2019 = vst [vmem:[%s1663 + $0xb08] sm:$0xff] %v2018
                %v2020 = vld [vmem:[%s1662 + $0x590] sm:$0xff]
                %2021 = vst [vmem:[%s1663 + $0xb10] sm:$0xff] %v2020
                %v2022 = vld [vmem:[%s1662 + $0x598] sm:$0xff]
                %2023 = vst [vmem:[%s1663 + $0xb18] sm:$0xff] %v2022
                %v2024 = vld [vmem:[%s1662 + $0x5a0] sm:$0xff]
                %2025 = vst [vmem:[%s1663 + $0xb40] sm:$0xff] %v2024
                %v2026 = vld [vmem:[%s1662 + $0x5a8] sm:$0xff]
                %2027 = vst [vmem:[%s1663 + $0xb48] sm:$0xff] %v2026
                %v2028 = vld [vmem:[%s1662 + $0x5b0] sm:$0xff]
                %2029 = vst [vmem:[%s1663 + $0xb50] sm:$0xff] %v2028
                %v2030 = vld [vmem:[%s1662 + $0x5b8] sm:$0xff]
                %2031 = vst [vmem:[%s1663 + $0xb58] sm:$0xff] %v2030
                %v2032 = vld [vmem:[%s1662 + $0x5c0] sm:$0xff]
                %2033 = vst [vmem:[%s1663 + $0xb80] sm:$0xff] %v2032
                %v2034 = vld [vmem:[%s1662 + $0x5c8] sm:$0xff]
                %2035 = vst [vmem:[%s1663 + $0xb88] sm:$0xff] %v2034
                %v2036 = vld [vmem:[%s1662 + $0x5d0] sm:$0xff]
                %2037 = vst [vmem:[%s1663 + $0xb90] sm:$0xff] %v2036
                %v2038 = vld [vmem:[%s1662 + $0x5d8] sm:$0xff]
                %2039 = vst [vmem:[%s1663 + $0xb98] sm:$0xff] %v2038
                %v2040 = vld [vmem:[%s1662 + $0x5e0] sm:$0xff]
                %2041 = vst [vmem:[%s1663 + $0xbc0] sm:$0xff] %v2040
                %v2042 = vld [vmem:[%s1662 + $0x5e8] sm:$0xff]
                %2043 = vst [vmem:[%s1663 + $0xbc8] sm:$0xff] %v2042
                %v2044 = vld [vmem:[%s1662 + $0x5f0] sm:$0xff]
                %2045 = vst [vmem:[%s1663 + $0xbd0] sm:$0xff] %v2044
                %v2046 = vld [vmem:[%s1662 + $0x5f8] sm:$0xff]
                %2047 = vst [vmem:[%s1663 + $0xbd8] sm:$0xff] %v2046
                %v2048 = vld [vmem:[%s1662 + $0x600] sm:$0xff]
                %2049 = vst [vmem:[%s1663 + $0xc00] sm:$0xff] %v2048
                %v2050 = vld [vmem:[%s1662 + $0x608] sm:$0xff]
                %2051 = vst [vmem:[%s1663 + $0xc08] sm:$0xff] %v2050
                %v2052 = vld [vmem:[%s1662 + $0x610] sm:$0xff]
                %2053 = vst [vmem:[%s1663 + $0xc10] sm:$0xff] %v2052
                %v2054 = vld [vmem:[%s1662 + $0x618] sm:$0xff]
                %2055 = vst [vmem:[%s1663 + $0xc18] sm:$0xff] %v2054
                %v2056 = vld [vmem:[%s1662 + $0x620] sm:$0xff]
                %2057 = vst [vmem:[%s1663 + $0xc40] sm:$0xff] %v2056
                %v2058 = vld [vmem:[%s1662 + $0x628] sm:$0xff]
                %2059 = vst [vmem:[%s1663 + $0xc48] sm:$0xff] %v2058
                %v2060 = vld [vmem:[%s1662 + $0x630] sm:$0xff]
                %2061 = vst [vmem:[%s1663 + $0xc50] sm:$0xff] %v2060
                %v2062 = vld [vmem:[%s1662 + $0x638] sm:$0xff]
                %2063 = vst [vmem:[%s1663 + $0xc58] sm:$0xff] %v2062
                %v2064 = vld [vmem:[%s1662 + $0x640] sm:$0xff]
                %2065 = vst [vmem:[%s1663 + $0xc80] sm:$0xff] %v2064
                %v2066 = vld [vmem:[%s1662 + $0x648] sm:$0xff]
                %2067 = vst [vmem:[%s1663 + $0xc88] sm:$0xff] %v2066
                %v2068 = vld [vmem:[%s1662 + $0x650] sm:$0xff]
                %2069 = vst [vmem:[%s1663 + $0xc90] sm:$0xff] %v2068
                %v2070 = vld [vmem:[%s1662 + $0x658] sm:$0xff]
                %2071 = vst [vmem:[%s1663 + $0xc98] sm:$0xff] %v2070
                %v2072 = vld [vmem:[%s1662 + $0x660] sm:$0xff]
                %2073 = vst [vmem:[%s1663 + $0xcc0] sm:$0xff] %v2072
                %v2074 = vld [vmem:[%s1662 + $0x668] sm:$0xff]
                %2075 = vst [vmem:[%s1663 + $0xcc8] sm:$0xff] %v2074
                %v2076 = vld [vmem:[%s1662 + $0x670] sm:$0xff]
                %2077 = vst [vmem:[%s1663 + $0xcd0] sm:$0xff] %v2076
                %v2078 = vld [vmem:[%s1662 + $0x678] sm:$0xff]
                %2079 = vst [vmem:[%s1663 + $0xcd8] sm:$0xff] %v2078
                %v2080 = vld [vmem:[%s1662 + $0x680] sm:$0xff]
                %2081 = vst [vmem:[%s1663 + $0xd00] sm:$0xff] %v2080
                %v2082 = vld [vmem:[%s1662 + $0x688] sm:$0xff]
                %2083 = vst [vmem:[%s1663 + $0xd08] sm:$0xff] %v2082
                %v2084 = vld [vmem:[%s1662 + $0x690] sm:$0xff]
                %2085 = vst [vmem:[%s1663 + $0xd10] sm:$0xff] %v2084
                %v2086 = vld [vmem:[%s1662 + $0x698] sm:$0xff]
                %2087 = vst [vmem:[%s1663 + $0xd18] sm:$0xff] %v2086
                %v2088 = vld [vmem:[%s1662 + $0x6a0] sm:$0xff]
                %2089 = vst [vmem:[%s1663 + $0xd40] sm:$0xff] %v2088
                %v2090 = vld [vmem:[%s1662 + $0x6a8] sm:$0xff]
                %2091 = vst [vmem:[%s1663 + $0xd48] sm:$0xff] %v2090
                %v2092 = vld [vmem:[%s1662 + $0x6b0] sm:$0xff]
                %2093 = vst [vmem:[%s1663 + $0xd50] sm:$0xff] %v2092
                %v2094 = vld [vmem:[%s1662 + $0x6b8] sm:$0xff]
                %2095 = vst [vmem:[%s1663 + $0xd58] sm:$0xff] %v2094
                %v2096 = vld [vmem:[%s1662 + $0x6c0] sm:$0xff]
                %2097 = vst [vmem:[%s1663 + $0xd80] sm:$0xff] %v2096
                %v2098 = vld [vmem:[%s1662 + $0x6c8] sm:$0xff]
                %2099 = vst [vmem:[%s1663 + $0xd88] sm:$0xff] %v2098
                %v2100 = vld [vmem:[%s1662 + $0x6d0] sm:$0xff]
                %2101 = vst [vmem:[%s1663 + $0xd90] sm:$0xff] %v2100
                %v2102 = vld [vmem:[%s1662 + $0x6d8] sm:$0xff]
                %2103 = vst [vmem:[%s1663 + $0xd98] sm:$0xff] %v2102
                %v2104 = vld [vmem:[%s1662 + $0x6e0] sm:$0xff]
                %2105 = vst [vmem:[%s1663 + $0xdc0] sm:$0xff] %v2104
                %v2106 = vld [vmem:[%s1662 + $0x6e8] sm:$0xff]
                %2107 = vst [vmem:[%s1663 + $0xdc8] sm:$0xff] %v2106
                %v2108 = vld [vmem:[%s1662 + $0x6f0] sm:$0xff]
                %2109 = vst [vmem:[%s1663 + $0xdd0] sm:$0xff] %v2108
                %v2110 = vld [vmem:[%s1662 + $0x6f8] sm:$0xff]
                %2111 = vst [vmem:[%s1663 + $0xdd8] sm:$0xff] %v2110
                %v2112 = vld [vmem:[%s1662 + $0x700] sm:$0xff]
                %2113 = vst [vmem:[%s1663 + $0xe00] sm:$0xff] %v2112
                %v2114 = vld [vmem:[%s1662 + $0x708] sm:$0xff]
                %2115 = vst [vmem:[%s1663 + $0xe08] sm:$0xff] %v2114
                %v2116 = vld [vmem:[%s1662 + $0x710] sm:$0xff]
                %2117 = vst [vmem:[%s1663 + $0xe10] sm:$0xff] %v2116
                %v2118 = vld [vmem:[%s1662 + $0x718] sm:$0xff]
                %2119 = vst [vmem:[%s1663 + $0xe18] sm:$0xff] %v2118
                %v2120 = vld [vmem:[%s1662 + $0x720] sm:$0xff]
                %2121 = vst [vmem:[%s1663 + $0xe40] sm:$0xff] %v2120
                %v2122 = vld [vmem:[%s1662 + $0x728] sm:$0xff]
                %2123 = vst [vmem:[%s1663 + $0xe48] sm:$0xff] %v2122
                %v2124 = vld [vmem:[%s1662 + $0x730] sm:$0xff]
                %2125 = vst [vmem:[%s1663 + $0xe50] sm:$0xff] %v2124
                %v2126 = vld [vmem:[%s1662 + $0x738] sm:$0xff]
                %2127 = vst [vmem:[%s1663 + $0xe58] sm:$0xff] %v2126
                %v2128 = vld [vmem:[%s1662 + $0x740] sm:$0xff]
                %2129 = vst [vmem:[%s1663 + $0xe80] sm:$0xff] %v2128
                %v2130 = vld [vmem:[%s1662 + $0x748] sm:$0xff]
                %2131 = vst [vmem:[%s1663 + $0xe88] sm:$0xff] %v2130
                %v2132 = vld [vmem:[%s1662 + $0x750] sm:$0xff]
                %2133 = vst [vmem:[%s1663 + $0xe90] sm:$0xff] %v2132
                %v2134 = vld [vmem:[%s1662 + $0x758] sm:$0xff]
                %2135 = vst [vmem:[%s1663 + $0xe98] sm:$0xff] %v2134
                %v2136 = vld [vmem:[%s1662 + $0x760] sm:$0xff]
                %2137 = vst [vmem:[%s1663 + $0xec0] sm:$0xff] %v2136
                %v2138 = vld [vmem:[%s1662 + $0x768] sm:$0xff]
                %2139 = vst [vmem:[%s1663 + $0xec8] sm:$0xff] %v2138
                %v2140 = vld [vmem:[%s1662 + $0x770] sm:$0xff]
                %2141 = vst [vmem:[%s1663 + $0xed0] sm:$0xff] %v2140
                %v2142 = vld [vmem:[%s1662 + $0x778] sm:$0xff]
                %2143 = vst [vmem:[%s1663 + $0xed8] sm:$0xff] %v2142
                %v2144 = vld [vmem:[%s1662 + $0x780] sm:$0xff]
                %2145 = vst [vmem:[%s1663 + $0xf00] sm:$0xff] %v2144
                %v2146 = vld [vmem:[%s1662 + $0x788] sm:$0xff]
                %2147 = vst [vmem:[%s1663 + $0xf08] sm:$0xff] %v2146
                %v2148 = vld [vmem:[%s1662 + $0x790] sm:$0xff]
                %2149 = vst [vmem:[%s1663 + $0xf10] sm:$0xff] %v2148
                %v2150 = vld [vmem:[%s1662 + $0x798] sm:$0xff]
                %2151 = vst [vmem:[%s1663 + $0xf18] sm:$0xff] %v2150
                %v2152 = vld [vmem:[%s1662 + $0x7a0] sm:$0xff]
                %2153 = vst [vmem:[%s1663 + $0xf40] sm:$0xff] %v2152
                %v2154 = vld [vmem:[%s1662 + $0x7a8] sm:$0xff]
                %2155 = vst [vmem:[%s1663 + $0xf48] sm:$0xff] %v2154
                %v2156 = vld [vmem:[%s1662 + $0x7b0] sm:$0xff]
                %2157 = vst [vmem:[%s1663 + $0xf50] sm:$0xff] %v2156
                %v2158 = vld [vmem:[%s1662 + $0x7b8] sm:$0xff]
                %2159 = vst [vmem:[%s1663 + $0xf58] sm:$0xff] %v2158
                %v2160 = vld [vmem:[%s1662 + $0x7c0] sm:$0xff]
                %2161 = vst [vmem:[%s1663 + $0xf80] sm:$0xff] %v2160
                %v2162 = vld [vmem:[%s1662 + $0x7c8] sm:$0xff]
                %2163 = vst [vmem:[%s1663 + $0xf88] sm:$0xff] %v2162
                %v2164 = vld [vmem:[%s1662 + $0x7d0] sm:$0xff]
                %2165 = vst [vmem:[%s1663 + $0xf90] sm:$0xff] %v2164
                %v2166 = vld [vmem:[%s1662 + $0x7d8] sm:$0xff]
                %2167 = vst [vmem:[%s1663 + $0xf98] sm:$0xff] %v2166
                %v2168 = vld [vmem:[%s1662 + $0x7e0] sm:$0xff]
                %2169 = vst [vmem:[%s1663 + $0xfc0] sm:$0xff] %v2168
                %v2170 = vld [vmem:[%s1662 + $0x7e8] sm:$0xff]
                %2171 = vst [vmem:[%s1663 + $0xfc8] sm:$0xff] %v2170
                %v2172 = vld [vmem:[%s1662 + $0x7f0] sm:$0xff]
                %2173 = vst [vmem:[%s1663 + $0xfd0] sm:$0xff] %v2172
                %v2174 = vld [vmem:[%s1662 + $0x7f8] sm:$0xff]
                %2175 = vst [vmem:[%s1663 + $0xfd8] sm:$0xff] %v2174
              $region68: #{generator_forward.16} parent=62 // loop_footer
                %s1661 = sadd.s32 1, %s1657
              $region69: #{generator_forward.16} parent=62 // loop_footer_branch
                %1656 = sbr.rel target = $region65
              $region70: #{generator_forward.16} parent=62 // loop_exit
                _
            $region63: #{generator_forward.16} parent=58 // pred_fallthru
              _
            // Predicated region
            $region71: #{generator_forward.16} parent=58 // pred_check
              _
            $region72: #{generator_forward.16} parent=58 // pred_check_branch
              %2177 = sbr.rel target = $region74
            $region73: #{generator_forward.16} parent=58 // pred_region
              _
            $region74: #{generator_forward.16} parent=58 // pred_fallthru
              _
          $region59: #{generator_forward.16} parent=54 // pred_fallthru
            _
          %2178 = vnop
        $region55: #{generator_forward.16} parent=46 // pred_fallthru
          _
      $region47: #{generator_forward.16} parent=5 // pred_fallthru
        _
      %p2179 = scmp.le.s32.totalorder 2, %s8
      // Predicated region
      $region75: #{generator_forward.16} parent=5 // pred_check
        %p2180 = pneg %p2179
      $region76: #{generator_forward.16} parent=5 // pred_check_branch
        %2182 = sbr.rel (%p2180) target = $region78
      $region77: #{generator_forward.16} parent=5 // pred_region
        %s2183 = ssub.s32 %s8, 2
        // Predicated region
        $region79: #{generator_forward.16} parent=77 // pred_check
          %p2184 = pneg %p103
        $region80: #{generator_forward.16} parent=77 // pred_check_branch
          %2186 = sbr.rel (%p2184) target = $region82
        $region81: #{generator_forward.16} parent=77 // pred_region
          %s2187 = sand.u32 %s88, 1
          %s2188 = sand.u32 %s88, 1
          %s2189 = smul.addr %s2188, 2048
          %s2190 = scalar_lea.vmem [#allocation3], %s2189
        $region82: #{generator_forward.16} parent=77 // pred_fallthru
          _
      $region78: #{generator_forward.16} parent=5 // pred_fallthru
        _
    $region6: #{generator_forward.16} parent=1 // loop_footer
      %s12 = sadd.s32 1, %s8
    $region7: #{generator_forward.16} parent=1 // loop_footer_branch
      %7 = sbr.rel target = $region3
    $region8: #{generator_forward.16} parent=1 // loop_exit
      _

// kernel: generator_forward.17
$region0: #{generator_forward.17}
  #allocation0 [shape = 'u32[]', space=smem, size = 0x4, offset = 0x4, fixed_abs, tag = 'smem constant byte address 0x4 - core index']
  #allocation1 [shape = 'u32[72,128]{1,0:T(1,128)}', space=vmem, size = 0x9000, scoped, tag = 'internal scratch']
  %s0 = inlined_call_operand.vmem [shape: f32[2048,64], index: 0, kind: input, shape index: {}]
  %s1 = inlined_call_operand.vmem [shape: bf16[2048,64], index: 1, kind: output, shape index: {}]
  %s2 = sld [smem:[#allocation0]]
  $region14: #{generator_forward.17} parent=0
    _
  %s4 = ssub.s32 1, %s2
  %s5 = scalar_select 0, %s4, %s2
  // Predicated region
  $region2: #{generator_forward.17} parent=0 // pred_check
    _
  $region3: #{generator_forward.17} parent=0 // pred_check_branch
    %7 = sbr.rel (0) target = $region5
  $region4: #{generator_forward.17} parent=0 // pred_region
    _
  $region5: #{generator_forward.17} parent=0 // pred_fallthru
    _
  %v8 = vld [vmem:[%s0] sm:$0xff]
  %v9 = vld [vmem:[%s0 + $0x8] sm:$0xff]
  %v10 = vld [vmem:[%s0 + $0x10] sm:$0xff]
  %v11 = vld [vmem:[%s0 + $0x18] sm:$0xff]
  %v12 = vld [vmem:[%s0 + $0x20] sm:$0xff]
  %v13 = vld [vmem:[%s0 + $0x28] sm:$0xff]
  %v14 = vld [vmem:[%s0 + $0x30] sm:$0xff]
  %v15 = vld [vmem:[%s0 + $0x38] sm:$0xff]
  %v16 = vld [vmem:[%s0 + $0x40] sm:$0xff]
  %v17 = vld [vmem:[%s0 + $0x48] sm:$0xff]
  %v18 = vld [vmem:[%s0 + $0x50] sm:$0xff]
  %v19 = vld [vmem:[%s0 + $0x58] sm:$0xff]
  %v20 = vld [vmem:[%s0 + $0x60] sm:$0xff]
  %v21 = vld [vmem:[%s0 + $0x68] sm:$0xff]
  %v22 = vld [vmem:[%s0 + $0x70] sm:$0xff]
  %v23 = vld [vmem:[%s0 + $0x78] sm:$0xff]
  %v24 = vld [vmem:[%s0 + $0x80] sm:$0xff]
  %v25 = vld [vmem:[%s0 + $0x88] sm:$0xff]
  %v26 = vld [vmem:[%s0 + $0x90] sm:$0xff]
  %v27 = vld [vmem:[%s0 + $0x98] sm:$0xff]
  %v28 = vld [vmem:[%s0 + $0xa0] sm:$0xff]
  %v29 = vld [vmem:[%s0 + $0xa8] sm:$0xff]
  %v30 = vld [vmem:[%s0 + $0xb0] sm:$0xff]
  %v31 = vld [vmem:[%s0 + $0xb8] sm:$0xff]
  %v32 = vld [vmem:[%s0 + $0xc0] sm:$0xff]
  %v33 = vld [vmem:[%s0 + $0xc8] sm:$0xff]
  %v34 = vld [vmem:[%s0 + $0xd0] sm:$0xff]
  %v35 = vld [vmem:[%s0 + $0xd8] sm:$0xff]
  %v36 = vld [vmem:[%s0 + $0xe0] sm:$0xff]
  %v37 = vld [vmem:[%s0 + $0xe8] sm:$0xff]
  %v38 = vld [vmem:[%s0 + $0xf0] sm:$0xff]
  %v39 = vld [vmem:[%s0 + $0xf8] sm:$0xff]
  %v40 = vld [vmem:[%s0 + $0x100] sm:$0xff]
  %v41 = vld [vmem:[%s0 + $0x108] sm:$0xff]
  %v42 = vld [vmem:[%s0 + $0x110] sm:$0xff]
  %v43 = vld [vmem:[%s0 + $0x118] sm:$0xff]
  %v44 = vld [vmem:[%s0 + $0x120] sm:$0xff]
  %v45 = vld [vmem:[%s0 + $0x128] sm:$0xff]
  %v46 = vld [vmem:[%s0 + $0x130] sm:$0xff]
  %v47 = vld [vmem:[%s0 + $0x138] sm:$0xff]
  %v48 = vld [vmem:[%s0 + $0x140] sm:$0xff]
  %v49 = vld [vmem:[%s0 + $0x148] sm:$0xff]
  %v50 = vld [vmem:[%s0 + $0x150] sm:$0xff]
  %v51 = vld [vmem:[%s0 + $0x158] sm:$0xff]
  %v52 = vld [vmem:[%s0 + $0x160] sm:$0xff]
  %v53 = vld [vmem:[%s0 + $0x168] sm:$0xff]
  %v54 = vld [vmem:[%s0 + $0x170] sm:$0xff]
  %v55 = vld [vmem:[%s0 + $0x178] sm:$0xff]
  %v56 = vld [vmem:[%s0 + $0x180] sm:$0xff]
  %v57 = vld [vmem:[%s0 + $0x188] sm:$0xff]
  %v58 = vld [vmem:[%s0 + $0x190] sm:$0xff]
  %v59 = vld [vmem:[%s0 + $0x198] sm:$0xff]
  %v60 = vld [vmem:[%s0 + $0x1a0] sm:$0xff]
  %v61 = vld [vmem:[%s0 + $0x1a8] sm:$0xff]
  %v62 = vld [vmem:[%s0 + $0x1b0] sm:$0xff]
  %v63 = vld [vmem:[%s0 + $0x1b8] sm:$0xff]
  %v64 = vld [vmem:[%s0 + $0x1c0] sm:$0xff]
  %v65 = vld [vmem:[%s0 + $0x1c8] sm:$0xff]
  %v66 = vld [vmem:[%s0 + $0x1d0] sm:$0xff]
  %v67 = vld [vmem:[%s0 + $0x1d8] sm:$0xff]
  %v68 = vld [vmem:[%s0 + $0x1e0] sm:$0xff]
  %v69 = vld [vmem:[%s0 + $0x1e8] sm:$0xff]
  %v70 = vld [vmem:[%s0 + $0x1f0] sm:$0xff]
  %v71 = vld [vmem:[%s0 + $0x1f8] sm:$0xff]
  %v72 = vld [vmem:[%s0 + $0x200] sm:$0xff]
  %v73 = vld [vmem:[%s0 + $0x208] sm:$0xff]
  %v74 = vld [vmem:[%s0 + $0x210] sm:$0xff]
  %v75 = vld [vmem:[%s0 + $0x218] sm:$0xff]
  %v76 = vld [vmem:[%s0 + $0x220] sm:$0xff]
  %v77 = vld [vmem:[%s0 + $0x228] sm:$0xff]
  %v78 = vld [vmem:[%s0 + $0x230] sm:$0xff]
  %v79 = vld [vmem:[%s0 + $0x238] sm:$0xff]
  %v80 = vld [vmem:[%s0 + $0x240] sm:$0xff]
  %v81 = vld [vmem:[%s0 + $0x248] sm:$0xff]
  %v82 = vld [vmem:[%s0 + $0x250] sm:$0xff]
  %v83 = vld [vmem:[%s0 + $0x258] sm:$0xff]
  %v84 = vld [vmem:[%s0 + $0x260] sm:$0xff]
  %v85 = vld [vmem:[%s0 + $0x268] sm:$0xff]
  %v86 = vld [vmem:[%s0 + $0x270] sm:$0xff]
  %v87 = vld [vmem:[%s0 + $0x278] sm:$0xff]
  %v88 = vld [vmem:[%s0 + $0x280] sm:$0xff]
  %v89 = vld [vmem:[%s0 + $0x288] sm:$0xff]
  %v90 = vld [vmem:[%s0 + $0x290] sm:$0xff]
  %v91 = vld [vmem:[%s0 + $0x298] sm:$0xff]
  %v92 = vld [vmem:[%s0 + $0x2a0] sm:$0xff]
  %v93 = vld [vmem:[%s0 + $0x2a8] sm:$0xff]
  %v94 = vld [vmem:[%s0 + $0x2b0] sm:$0xff]
  %v95 = vld [vmem:[%s0 + $0x2b8] sm:$0xff]
  %v96 = vld [vmem:[%s0 + $0x2c0] sm:$0xff]
  %v97 = vld [vmem:[%s0 + $0x2c8] sm:$0xff]
  %v98 = vld [vmem:[%s0 + $0x2d0] sm:$0xff]
  %v99 = vld [vmem:[%s0 + $0x2d8] sm:$0xff]
  %v100 = vld [vmem:[%s0 + $0x2e0] sm:$0xff]
  %v101 = vld [vmem:[%s0 + $0x2e8] sm:$0xff]
  %v102 = vld [vmem:[%s0 + $0x2f0] sm:$0xff]
  %v103 = vld [vmem:[%s0 + $0x2f8] sm:$0xff]
  %v104 = vld [vmem:[%s0 + $0x300] sm:$0xff]
  %v105 = vld [vmem:[%s0 + $0x308] sm:$0xff]
  %v106 = vld [vmem:[%s0 + $0x310] sm:$0xff]
  %v107 = vld [vmem:[%s0 + $0x318] sm:$0xff]
  %v108 = vld [vmem:[%s0 + $0x320] sm:$0xff]
  %v109 = vld [vmem:[%s0 + $0x328] sm:$0xff]
  %v110 = vld [vmem:[%s0 + $0x330] sm:$0xff]
  %v111 = vld [vmem:[%s0 + $0x338] sm:$0xff]
  %v112 = vld [vmem:[%s0 + $0x340] sm:$0xff]
  %v113 = vld [vmem:[%s0 + $0x348] sm:$0xff]
  %v114 = vld [vmem:[%s0 + $0x350] sm:$0xff]
  %v115 = vld [vmem:[%s0 + $0x358] sm:$0xff]
  %v116 = vld [vmem:[%s0 + $0x360] sm:$0xff]
  %v117 = vld [vmem:[%s0 + $0x368] sm:$0xff]
  %v118 = vld [vmem:[%s0 + $0x370] sm:$0xff]
  %v119 = vld [vmem:[%s0 + $0x378] sm:$0xff]
  %v120 = vld [vmem:[%s0 + $0x380] sm:$0xff]
  %v121 = vld [vmem:[%s0 + $0x388] sm:$0xff]
  %v122 = vld [vmem:[%s0 + $0x390] sm:$0xff]
  %v123 = vld [vmem:[%s0 + $0x398] sm:$0xff]
  %v124 = vld [vmem:[%s0 + $0x3a0] sm:$0xff]
  %v125 = vld [vmem:[%s0 + $0x3a8] sm:$0xff]
  %v126 = vld [vmem:[%s0 + $0x3b0] sm:$0xff]
  %v127 = vld [vmem:[%s0 + $0x3b8] sm:$0xff]
  %v128 = vld [vmem:[%s0 + $0x3c0] sm:$0xff]
  %v129 = vld [vmem:[%s0 + $0x3c8] sm:$0xff]
  %v130 = vld [vmem:[%s0 + $0x3d0] sm:$0xff]
  %v131 = vld [vmem:[%s0 + $0x3d8] sm:$0xff]
  %v132 = vld [vmem:[%s0 + $0x3e0] sm:$0xff]
  %v133 = vld [vmem:[%s0 + $0x3e8] sm:$0xff]
  %v134 = vld [vmem:[%s0 + $0x3f0] sm:$0xff]
  %v135 = vld [vmem:[%s0 + $0x3f8] sm:$0xff]
  %v136 = vld [vmem:[%s0 + $0x400] sm:$0xff]
  %v137 = vld [vmem:[%s0 + $0x408] sm:$0xff]
  %v138 = vld [vmem:[%s0 + $0x410] sm:$0xff]
  %v139 = vld [vmem:[%s0 + $0x418] sm:$0xff]
  %v140 = vld [vmem:[%s0 + $0x420] sm:$0xff]
  %v141 = vld [vmem:[%s0 + $0x428] sm:$0xff]
  %v142 = vld [vmem:[%s0 + $0x430] sm:$0xff]
  %v143 = vld [vmem:[%s0 + $0x438] sm:$0xff]
  %v144 = vld [vmem:[%s0 + $0x440] sm:$0xff]
  %v145 = vld [vmem:[%s0 + $0x448] sm:$0xff]
  %v146 = vld [vmem:[%s0 + $0x450] sm:$0xff]
  %v147 = vld [vmem:[%s0 + $0x458] sm:$0xff]
  %v148 = vld [vmem:[%s0 + $0x460] sm:$0xff]
  %v149 = vld [vmem:[%s0 + $0x468] sm:$0xff]
  %v150 = vld [vmem:[%s0 + $0x470] sm:$0xff]
  %v151 = vld [vmem:[%s0 + $0x478] sm:$0xff]
  %v152 = vld [vmem:[%s0 + $0x480] sm:$0xff]
  %v153 = vld [vmem:[%s0 + $0x488] sm:$0xff]
  %v154 = vld [vmem:[%s0 + $0x490] sm:$0xff]
  %v155 = vld [vmem:[%s0 + $0x498] sm:$0xff]
  %v156 = vld [vmem:[%s0 + $0x4a0] sm:$0xff]
  %v157 = vld [vmem:[%s0 + $0x4a8] sm:$0xff]
  %v158 = vld [vmem:[%s0 + $0x4b0] sm:$0xff]
  %v159 = vld [vmem:[%s0 + $0x4b8] sm:$0xff]
  %v160 = vld [vmem:[%s0 + $0x4c0] sm:$0xff]
  %v161 = vld [vmem:[%s0 + $0x4c8] sm:$0xff]
  %v162 = vld [vmem:[%s0 + $0x4d0] sm:$0xff]
  %v163 = vld [vmem:[%s0 + $0x4d8] sm:$0xff]
  %v164 = vld [vmem:[%s0 + $0x4e0] sm:$0xff]
  %v165 = vld [vmem:[%s0 + $0x4e8] sm:$0xff]
  %v166 = vld [vmem:[%s0 + $0x4f0] sm:$0xff]
  %v167 = vld [vmem:[%s0 + $0x4f8] sm:$0xff]
  %v168 = vld [vmem:[%s0 + $0x500] sm:$0xff]
  %v169 = vld [vmem:[%s0 + $0x508] sm:$0xff]
  %v170 = vld [vmem:[%s0 + $0x510] sm:$0xff]
  %v171 = vld [vmem:[%s0 + $0x518] sm:$0xff]
  %v172 = vld [vmem:[%s0 + $0x520] sm:$0xff]
  %v173 = vld [vmem:[%s0 + $0x528] sm:$0xff]
  %v174 = vld [vmem:[%s0 + $0x530] sm:$0xff]
  %v175 = vld [vmem:[%s0 + $0x538] sm:$0xff]
  %v176 = vld [vmem:[%s0 + $0x540] sm:$0xff]
  %v177 = vld [vmem:[%s0 + $0x548] sm:$0xff]
  %v178 = vld [vmem:[%s0 + $0x550] sm:$0xff]
  %v179 = vld [vmem:[%s0 + $0x558] sm:$0xff]
  %v180 = vld [vmem:[%s0 + $0x560] sm:$0xff]
  %v181 = vld [vmem:[%s0 + $0x568] sm:$0xff]
  %v182 = vld [vmem:[%s0 + $0x570] sm:$0xff]
  %v183 = vld [vmem:[%s0 + $0x578] sm:$0xff]
  %v184 = vld [vmem:[%s0 + $0x580] sm:$0xff]
  %v185 = vld [vmem:[%s0 + $0x588] sm:$0xff]
  %v186 = vld [vmem:[%s0 + $0x590] sm:$0xff]
  %v187 = vld [vmem:[%s0 + $0x598] sm:$0xff]
  %v188 = vld [vmem:[%s0 + $0x5a0] sm:$0xff]
  %v189 = vld [vmem:[%s0 + $0x5a8] sm:$0xff]
  %v190 = vld [vmem:[%s0 + $0x5b0] sm:$0xff]
  %v191 = vld [vmem:[%s0 + $0x5b8] sm:$0xff]
  %v192 = vld [vmem:[%s0 + $0x5c0] sm:$0xff]
  %v193 = vld [vmem:[%s0 + $0x5c8] sm:$0xff]
  %v194 = vld [vmem:[%s0 + $0x5d0] sm:$0xff]
  %v195 = vld [vmem:[%s0 + $0x5d8] sm:$0xff]
  %v196 = vld [vmem:[%s0 + $0x5e0] sm:$0xff]
  %v197 = vld [vmem:[%s0 + $0x5e8] sm:$0xff]
  %v198 = vld [vmem:[%s0 + $0x5f0] sm:$0xff]
  %v199 = vld [vmem:[%s0 + $0x5f8] sm:$0xff]
  %v200 = vld [vmem:[%s0 + $0x600] sm:$0xff]
  %v201 = vld [vmem:[%s0 + $0x608] sm:$0xff]
  %v202 = vld [vmem:[%s0 + $0x610] sm:$0xff]
  %v203 = vld [vmem:[%s0 + $0x618] sm:$0xff]
  %v204 = vld [vmem:[%s0 + $0x620] sm:$0xff]
  %v205 = vld [vmem:[%s0 + $0x628] sm:$0xff]
  %v206 = vld [vmem:[%s0 + $0x630] sm:$0xff]
  %v207 = vld [vmem:[%s0 + $0x638] sm:$0xff]
  %v208 = vld [vmem:[%s0 + $0x640] sm:$0xff]
  %v209 = vld [vmem:[%s0 + $0x648] sm:$0xff]
  %v210 = vld [vmem:[%s0 + $0x650] sm:$0xff]
  %v211 = vld [vmem:[%s0 + $0x658] sm:$0xff]
  %v212 = vld [vmem:[%s0 + $0x660] sm:$0xff]
  %v213 = vld [vmem:[%s0 + $0x668] sm:$0xff]
  %v214 = vld [vmem:[%s0 + $0x670] sm:$0xff]
  %v215 = vld [vmem:[%s0 + $0x678] sm:$0xff]
  %v216 = vld [vmem:[%s0 + $0x680] sm:$0xff]
  %v217 = vld [vmem:[%s0 + $0x688] sm:$0xff]
  %v218 = vld [vmem:[%s0 + $0x690] sm:$0xff]
  %v219 = vld [vmem:[%s0 + $0x698] sm:$0xff]
  %v220 = vld [vmem:[%s0 + $0x6a0] sm:$0xff]
  %v221 = vld [vmem:[%s0 + $0x6a8] sm:$0xff]
  %v222 = vld [vmem:[%s0 + $0x6b0] sm:$0xff]
  %v223 = vld [vmem:[%s0 + $0x6b8] sm:$0xff]
  %v224 = vld [vmem:[%s0 + $0x6c0] sm:$0xff]
  %v225 = vld [vmem:[%s0 + $0x6c8] sm:$0xff]
  %v226 = vld [vmem:[%s0 + $0x6d0] sm:$0xff]
  %v227 = vld [vmem:[%s0 + $0x6d8] sm:$0xff]
  %v228 = vld [vmem:[%s0 + $0x6e0] sm:$0xff]
  %v229 = vld [vmem:[%s0 + $0x6e8] sm:$0xff]
  %v230 = vld [vmem:[%s0 + $0x6f0] sm:$0xff]
  %v231 = vld [vmem:[%s0 + $0x6f8] sm:$0xff]
  %v232 = vld [vmem:[%s0 + $0x700] sm:$0xff]
  %v233 = vld [vmem:[%s0 + $0x708] sm:$0xff]
  %v234 = vld [vmem:[%s0 + $0x710] sm:$0xff]
  %v235 = vld [vmem:[%s0 + $0x718] sm:$0xff]
  %v236 = vld [vmem:[%s0 + $0x720] sm:$0xff]
  %v237 = vld [vmem:[%s0 + $0x728] sm:$0xff]
  %v238 = vld [vmem:[%s0 + $0x730] sm:$0xff]
  %v239 = vld [vmem:[%s0 + $0x738] sm:$0xff]
  %v240 = vld [vmem:[%s0 + $0x740] sm:$0xff]
  %v241 = vld [vmem:[%s0 + $0x748] sm:$0xff]
  %v242 = vld [vmem:[%s0 + $0x750] sm:$0xff]
  %v243 = vld [vmem:[%s0 + $0x758] sm:$0xff]
  %v244 = vld [vmem:[%s0 + $0x760] sm:$0xff]
  %v245 = vld [vmem:[%s0 + $0x768] sm:$0xff]
  %v246 = vld [vmem:[%s0 + $0x770] sm:$0xff]
  %v247 = vld [vmem:[%s0 + $0x778] sm:$0xff]
  %v248 = vld [vmem:[%s0 + $0x780] sm:$0xff]
  %v249 = vld [vmem:[%s0 + $0x788] sm:$0xff]
  %v250 = vld [vmem:[%s0 + $0x790] sm:$0xff]
  %v251 = vld [vmem:[%s0 + $0x798] sm:$0xff]
  %v252 = vld [vmem:[%s0 + $0x7a0] sm:$0xff]
  %v253 = vld [vmem:[%s0 + $0x7a8] sm:$0xff]
  %v254 = vld [vmem:[%s0 + $0x7b0] sm:$0xff]
  %v255 = vld [vmem:[%s0 + $0x7b8] sm:$0xff]
  %v256 = vld [vmem:[%s0 + $0x7c0] sm:$0xff]
  %v257 = vld [vmem:[%s0 + $0x7c8] sm:$0xff]
  %v258 = vld [vmem:[%s0 + $0x7d0] sm:$0xff]
  %v259 = vld [vmem:[%s0 + $0x7d8] sm:$0xff]
  %v260 = vld [vmem:[%s0 + $0x7e0] sm:$0xff]
  %v261 = vld [vmem:[%s0 + $0x7e8] sm:$0xff]
  %v262 = vld [vmem:[%s0 + $0x7f0] sm:$0xff]
  %v263 = vld [vmem:[%s0 + $0x7f8] sm:$0xff]
  %vm264 = vcmask 523264
  %v265 = vsel %vm264, %v8, 0.0
  %v266 = vsel %vm264, %v9, 0.0
  %v267 = vadd.f32 %v265, %v266
  %v268 = vsel %vm264, %v10, 0.0
  %v269 = vadd.f32 %v267, %v268
  %v270 = vsel %vm264, %v11, 0.0
  %v271 = vadd.f32 %v269, %v270
  %v272 = vsel %vm264, %v12, 0.0
  %v273 = vadd.f32 %v271, %v272
  %v274 = vsel %vm264, %v13, 0.0
  %v275 = vadd.f32 %v273, %v274
  %v276 = vsel %vm264, %v14, 0.0
  %v277 = vadd.f32 %v275, %v276
  %v278 = vsel %vm264, %v15, 0.0
  %v279 = vadd.f32 %v277, %v278
  %v280 = vsel %vm264, %v16, 0.0
  %v281 = vadd.f32 %v279, %v280
  %v282 = vsel %vm264, %v17, 0.0
  %v283 = vadd.f32 %v281, %v282
  %v284 = vsel %vm264, %v18, 0.0
  %v285 = vadd.f32 %v283, %v284
  %v286 = vsel %vm264, %v19, 0.0
  %v287 = vadd.f32 %v285, %v286
  %v288 = vsel %vm264, %v20, 0.0
  %v289 = vadd.f32 %v287, %v288
  %v290 = vsel %vm264, %v21, 0.0
  %v291 = vadd.f32 %v289, %v290
  %v292 = vsel %vm264, %v22, 0.0
  %v293 = vadd.f32 %v291, %v292
  %v294 = vsel %vm264, %v23, 0.0
  %v295 = vadd.f32 %v293, %v294
  %v296 = vsel %vm264, %v24, 0.0
  %v297 = vadd.f32 %v295, %v296
  %v298 = vsel %vm264, %v25, 0.0
  %v299 = vadd.f32 %v297, %v298
  %v300 = vsel %vm264, %v26, 0.0
  %v301 = vadd.f32 %v299, %v300
  %v302 = vsel %vm264, %v27, 0.0
  %v303 = vadd.f32 %v301, %v302
  %v304 = vsel %vm264, %v28, 0.0
  %v305 = vadd.f32 %v303, %v304
  %v306 = vsel %vm264, %v29, 0.0
  %v307 = vadd.f32 %v305, %v306
  %v308 = vsel %vm264, %v30, 0.0
  %v309 = vadd.f32 %v307, %v308
  %v310 = vsel %vm264, %v31, 0.0
  %v311 = vadd.f32 %v309, %v310
  %v312 = vsel %vm264, %v32, 0.0
  %v313 = vadd.f32 %v311, %v312
  %v314 = vsel %vm264, %v33, 0.0
  %v315 = vadd.f32 %v313, %v314
  %v316 = vsel %vm264, %v34, 0.0
  %v317 = vadd.f32 %v315, %v316
  %v318 = vsel %vm264, %v35, 0.0
  %v319 = vadd.f32 %v317, %v318
  %v320 = vsel %vm264, %v36, 0.0
  %v321 = vadd.f32 %v319, %v320
  %v322 = vsel %vm264, %v37, 0.0
  %v323 = vadd.f32 %v321, %v322
  %v324 = vsel %vm264, %v38, 0.0
  %v325 = vadd.f32 %v323, %v324
  %v326 = vsel %vm264, %v39, 0.0
  %v327 = vadd.f32 %v325, %v326
  %v328 = vsel %vm264, %v40, 0.0
  %v329 = vadd.f32 %v327, %v328
  %v330 = vsel %vm264, %v41, 0.0
  %v331 = vadd.f32 %v329, %v330
  %v332 = vsel %vm264, %v42, 0.0
  %v333 = vadd.f32 %v331, %v332
  %v334 = vsel %vm264, %v43, 0.0
  %v335 = vadd.f32 %v333, %v334
  %v336 = vsel %vm264, %v44, 0.0
  %v337 = vadd.f32 %v335, %v336
  %v338 = vsel %vm264, %v45, 0.0
  %v339 = vadd.f32 %v337, %v338
  %v340 = vsel %vm264, %v46, 0.0
  %v341 = vadd.f32 %v339, %v340
  %v342 = vsel %vm264, %v47, 0.0
  %v343 = vadd.f32 %v341, %v342
  %v344 = vsel %vm264, %v48, 0.0
  %v345 = vadd.f32 %v343, %v344
  %v346 = vsel %vm264, %v49, 0.0
  %v347 = vadd.f32 %v345, %v346
  %v348 = vsel %vm264, %v50, 0.0
  %v349 = vadd.f32 %v347, %v348
  %v350 = vsel %vm264, %v51, 0.0
  %v351 = vadd.f32 %v349, %v350
  %v352 = vsel %vm264, %v52, 0.0
  %v353 = vadd.f32 %v351, %v352
  %v354 = vsel %vm264, %v53, 0.0
  %v355 = vadd.f32 %v353, %v354
  %v356 = vsel %vm264, %v54, 0.0
  %v357 = vadd.f32 %v355, %v356
  %v358 = vsel %vm264, %v55, 0.0
  %v359 = vadd.f32 %v357, %v358
  %v360 = vsel %vm264, %v56, 0.0
  %v361 = vadd.f32 %v359, %v360
  %v362 = vsel %vm264, %v57, 0.0
  %v363 = vadd.f32 %v361, %v362
  %v364 = vsel %vm264, %v58, 0.0
  %v365 = vadd.f32 %v363, %v364
  %v366 = vsel %vm264, %v59, 0.0
  %v367 = vadd.f32 %v365, %v366
  %v368 = vsel %vm264, %v60, 0.0
  %v369 = vadd.f32 %v367, %v368
  %v370 = vsel %vm264, %v61, 0.0
  %v371 = vadd.f32 %v369, %v370
  %v372 = vsel %vm264, %v62, 0.0
  %v373 = vadd.f32 %v371, %v372
  %v374 = vsel %vm264, %v63, 0.0
  %v375 = vadd.f32 %v373, %v374
  %v376 = vsel %vm264, %v64, 0.0
  %v377 = vadd.f32 %v375, %v376
  %v378 = vsel %vm264, %v65, 0.0
  %v379 = vadd.f32 %v377, %v378
  %v380 = vsel %vm264, %v66, 0.0
  %v381 = vadd.f32 %v379, %v380
  %v382 = vsel %vm264, %v67, 0.0
  %v383 = vadd.f32 %v381, %v382
  %v384 = vsel %vm264, %v68, 0.0
  %v385 = vadd.f32 %v383, %v384
  %v386 = vsel %vm264, %v69, 0.0
  %v387 = vadd.f32 %v385, %v386
  %v388 = vsel %vm264, %v70, 0.0
  %v389 = vadd.f32 %v387, %v388
  %v390 = vsel %vm264, %v71, 0.0
  %v391 = vadd.f32 %v389, %v390
  %v392 = vsel %vm264, %v72, 0.0
  %v393 = vadd.f32 %v391, %v392
  %v394 = vsel %vm264, %v73, 0.0
  %v395 = vadd.f32 %v393, %v394
  %v396 = vsel %vm264, %v74, 0.0
  %v397 = vadd.f32 %v395, %v396
  %v398 = vsel %vm264, %v75, 0.0
  %v399 = vadd.f32 %v397, %v398
  %v400 = vsel %vm264, %v76, 0.0
  %v401 = vadd.f32 %v399, %v400
  %v402 = vsel %vm264, %v77, 0.0
  %v403 = vadd.f32 %v401, %v402
  %v404 = vsel %vm264, %v78, 0.0
  %v405 = vadd.f32 %v403, %v404
  %v406 = vsel %vm264, %v79, 0.0
  %v407 = vadd.f32 %v405, %v406
  %v408 = vsel %vm264, %v80, 0.0
  %v409 = vadd.f32 %v407, %v408
  %v410 = vsel %vm264, %v81, 0.0
  %v411 = vadd.f32 %v409, %v410
  %v412 = vsel %vm264, %v82, 0.0
  %v413 = vadd.f32 %v411, %v412
  %v414 = vsel %vm264, %v83, 0.0
  %v415 = vadd.f32 %v413, %v414
  %v416 = vsel %vm264, %v84, 0.0
  %v417 = vadd.f32 %v415, %v416
  %v418 = vsel %vm264, %v85, 0.0
  %v419 = vadd.f32 %v417, %v418
  %v420 = vsel %vm264, %v86, 0.0
  %v421 = vadd.f32 %v419, %v420
  %v422 = vsel %vm264, %v87, 0.0
  %v423 = vadd.f32 %v421, %v422
  %v424 = vsel %vm264, %v88, 0.0
  %v425 = vadd.f32 %v423, %v424
  %v426 = vsel %vm264, %v89, 0.0
  %v427 = vadd.f32 %v425, %v426
  %v428 = vsel %vm264, %v90, 0.0
  %v429 = vadd.f32 %v427, %v428
  %v430 = vsel %vm264, %v91, 0.0
  %v431 = vadd.f32 %v429, %v430
  %v432 = vsel %vm264, %v92, 0.0
  %v433 = vadd.f32 %v431, %v432
  %v434 = vsel %vm264, %v93, 0.0
  %v435 = vadd.f32 %v433, %v434
  %v436 = vsel %vm264, %v94, 0.0
  %v437 = vadd.f32 %v435, %v436
  %v438 = vsel %vm264, %v95, 0.0
  %v439 = vadd.f32 %v437, %v438
  %v440 = vsel %vm264, %v96, 0.0
  %v441 = vadd.f32 %v439, %v440
  %v442 = vsel %vm264, %v97, 0.0
  %v443 = vadd.f32 %v441, %v442
  %v444 = vsel %vm264, %v98, 0.0
  %v445 = vadd.f32 %v443, %v444
  %v446 = vsel %vm264, %v99, 0.0
  %v447 = vadd.f32 %v445, %v446
  %v448 = vsel %vm264, %v100, 0.0
  %v449 = vadd.f32 %v447, %v448
  %v450 = vsel %vm264, %v101, 0.0
  %v451 = vadd.f32 %v449, %v450
  %v452 = vsel %vm264, %v102, 0.0
  %v453 = vadd.f32 %v451, %v452
  %v454 = vsel %vm264, %v103, 0.0
  %v455 = vadd.f32 %v453, %v454
  %v456 = vsel %vm264, %v104, 0.0
  %v457 = vadd.f32 %v455, %v456
  %v458 = vsel %vm264, %v105, 0.0
  %v459 = vadd.f32 %v457, %v458
  %v460 = vsel %vm264, %v106, 0.0
  %v461 = vadd.f32 %v459, %v460
  %v462 = vsel %vm264, %v107, 0.0
  %v463 = vadd.f32 %v461, %v462
  %v464 = vsel %vm264, %v108, 0.0
  %v465 = vadd.f32 %v463, %v464
  %v466 = vsel %vm264, %v109, 0.0
  %v467 = vadd.f32 %v465, %v466
  %v468 = vsel %vm264, %v110, 0.0
  %v469 = vadd.f32 %v467, %v468
  %v470 = vsel %vm264, %v111, 0.0
  %v471 = vadd.f32 %v469, %v470
  %v472 = vsel %vm264, %v112, 0.0
  %v473 = vadd.f32 %v471, %v472
  %v474 = vsel %vm264, %v113, 0.0
  %v475 = vadd.f32 %v473, %v474
  %v476 = vsel %vm264, %v114, 0.0
  %v477 = vadd.f32 %v475, %v476
  %v478 = vsel %vm264, %v115, 0.0
  %v479 = vadd.f32 %v477, %v478
  %v480 = vsel %vm264, %v116, 0.0
  %v481 = vadd.f32 %v479, %v480
  %v482 = vsel %vm264, %v117, 0.0
  %v483 = vadd.f32 %v481, %v482
  %v484 = vsel %vm264, %v118, 0.0
  %v485 = vadd.f32 %v483, %v484
  %v486 = vsel %vm264, %v119, 0.0
  %v487 = vadd.f32 %v485, %v486
  %v488 = vsel %vm264, %v120, 0.0
  %v489 = vadd.f32 %v487, %v488
  %v490 = vsel %vm264, %v121, 0.0
  %v491 = vadd.f32 %v489, %v490
  %v492 = vsel %vm264, %v122, 0.0
  %v493 = vadd.f32 %v491, %v492
  %v494 = vsel %vm264, %v123, 0.0
  %v495 = vadd.f32 %v493, %v494
  %v496 = vsel %vm264, %v124, 0.0
  %v497 = vadd.f32 %v495, %v496
  %v498 = vsel %vm264, %v125, 0.0
  %v499 = vadd.f32 %v497, %v498
  %v500 = vsel %vm264, %v126, 0.0
  %v501 = vadd.f32 %v499, %v500
  %v502 = vsel %vm264, %v127, 0.0
  %v503 = vadd.f32 %v501, %v502
  %v504 = vsel %vm264, %v128, 0.0
  %v505 = vadd.f32 %v503, %v504
  %v506 = vsel %vm264, %v129, 0.0
  %v507 = vadd.f32 %v505, %v506
  %v508 = vsel %vm264, %v130, 0.0
  %v509 = vadd.f32 %v507, %v508
  %v510 = vsel %vm264, %v131, 0.0
  %v511 = vadd.f32 %v509, %v510
  %v512 = vsel %vm264, %v132, 0.0
  %v513 = vadd.f32 %v511, %v512
  %v514 = vsel %vm264, %v133, 0.0
  %v515 = vadd.f32 %v513, %v514
  %v516 = vsel %vm264, %v134, 0.0
  %v517 = vadd.f32 %v515, %v516
  %v518 = vsel %vm264, %v135, 0.0
  %v519 = vadd.f32 %v517, %v518
  %v520 = vsel %vm264, %v136, 0.0
  %v521 = vadd.f32 %v519, %v520
  %v522 = vsel %vm264, %v137, 0.0
  %v523 = vadd.f32 %v521, %v522
  %v524 = vsel %vm264, %v138, 0.0
  %v525 = vadd.f32 %v523, %v524
  %v526 = vsel %vm264, %v139, 0.0
  %v527 = vadd.f32 %v525, %v526
  %v528 = vsel %vm264, %v140, 0.0
  %v529 = vadd.f32 %v527, %v528
  %v530 = vsel %vm264, %v141, 0.0
  %v531 = vadd.f32 %v529, %v530
  %v532 = vsel %vm264, %v142, 0.0
  %v533 = vadd.f32 %v531, %v532
  %v534 = vsel %vm264, %v143, 0.0
  %v535 = vadd.f32 %v533, %v534
  %v536 = vsel %vm264, %v144, 0.0
  %v537 = vadd.f32 %v535, %v536
  %v538 = vsel %vm264, %v145, 0.0
  %v539 = vadd.f32 %v537, %v538
  %v540 = vsel %vm264, %v146, 0.0
  %v541 = vadd.f32 %v539, %v540
  %v542 = vsel %vm264, %v147, 0.0
  %v543 = vadd.f32 %v541, %v542
  %v544 = vsel %vm264, %v148, 0.0
  %v545 = vadd.f32 %v543, %v544
  %v546 = vsel %vm264, %v149, 0.0
  %v547 = vadd.f32 %v545, %v546
  %v548 = vsel %vm264, %v150, 0.0
  %v549 = vadd.f32 %v547, %v548
  %v550 = vsel %vm264, %v151, 0.0
  %v551 = vadd.f32 %v549, %v550
  %v552 = vsel %vm264, %v152, 0.0
  %v553 = vadd.f32 %v551, %v552
  %v554 = vsel %vm264, %v153, 0.0
  %v555 = vadd.f32 %v553, %v554
  %v556 = vsel %vm264, %v154, 0.0
  %v557 = vadd.f32 %v555, %v556
  %v558 = vsel %vm264, %v155, 0.0
  %v559 = vadd.f32 %v557, %v558
  %v560 = vsel %vm264, %v156, 0.0
  %v561 = vadd.f32 %v559, %v560
  %v562 = vsel %vm264, %v157, 0.0
  %v563 = vadd.f32 %v561, %v562
  %v564 = vsel %vm264, %v158, 0.0
  %v565 = vadd.f32 %v563, %v564
  %v566 = vsel %vm264, %v159, 0.0
  %v567 = vadd.f32 %v565, %v566
  %v568 = vsel %vm264, %v160, 0.0
  %v569 = vadd.f32 %v567, %v568
  %v570 = vsel %vm264, %v161, 0.0
  %v571 = vadd.f32 %v569, %v570
  %v572 = vsel %vm264, %v162, 0.0
  %v573 = vadd.f32 %v571, %v572
  %v574 = vsel %vm264, %v163, 0.0
  %v575 = vadd.f32 %v573, %v574
  %v576 = vsel %vm264, %v164, 0.0
  %v577 = vadd.f32 %v575, %v576
  %v578 = vsel %vm264, %v165, 0.0
  %v579 = vadd.f32 %v577, %v578
  %v580 = vsel %vm264, %v166, 0.0
  %v581 = vadd.f32 %v579, %v580
  %v582 = vsel %vm264, %v167, 0.0
  %v583 = vadd.f32 %v581, %v582
  %v584 = vsel %vm264, %v168, 0.0
  %v585 = vadd.f32 %v583, %v584
  %v586 = vsel %vm264, %v169, 0.0
  %v587 = vadd.f32 %v585, %v586
  %v588 = vsel %vm264, %v170, 0.0
  %v589 = vadd.f32 %v587, %v588
  %v590 = vsel %vm264, %v171, 0.0
  %v591 = vadd.f32 %v589, %v590
  %v592 = vsel %vm264, %v172, 0.0
  %v593 = vadd.f32 %v591, %v592
  %v594 = vsel %vm264, %v173, 0.0
  %v595 = vadd.f32 %v593, %v594
  %v596 = vsel %vm264, %v174, 0.0
  %v597 = vadd.f32 %v595, %v596
  %v598 = vsel %vm264, %v175, 0.0
  %v599 = vadd.f32 %v597, %v598
  %v600 = vsel %vm264, %v176, 0.0
  %v601 = vadd.f32 %v599, %v600
  %v602 = vsel %vm264, %v177, 0.0
  %v603 = vadd.f32 %v601, %v602
  %v604 = vsel %vm264, %v178, 0.0
  %v605 = vadd.f32 %v603, %v604
  %v606 = vsel %vm264, %v179, 0.0
  %v607 = vadd.f32 %v605, %v606
  %v608 = vsel %vm264, %v180, 0.0
  %v609 = vadd.f32 %v607, %v608
  %v610 = vsel %vm264, %v181, 0.0
  %v611 = vadd.f32 %v609, %v610
  %v612 = vsel %vm264, %v182, 0.0
  %v613 = vadd.f32 %v611, %v612
  %v614 = vsel %vm264, %v183, 0.0
  %v615 = vadd.f32 %v613, %v614
  %v616 = vsel %vm264, %v184, 0.0
  %v617 = vadd.f32 %v615, %v616
  %v618 = vsel %vm264, %v185, 0.0
  %v619 = vadd.f32 %v617, %v618
  %v620 = vsel %vm264, %v186, 0.0
  %v621 = vadd.f32 %v619, %v620
  %v622 = vsel %vm264, %v187, 0.0
  %v623 = vadd.f32 %v621, %v622
  %v624 = vsel %vm264, %v188, 0.0
  %v625 = vadd.f32 %v623, %v624
  %v626 = vsel %vm264, %v189, 0.0
  %v627 = vadd.f32 %v625, %v626
  %v628 = vsel %vm264, %v190, 0.0
  %v629 = vadd.f32 %v627, %v628
  %v630 = vsel %vm264, %v191, 0.0
  %v631 = vadd.f32 %v629, %v630
  %v632 = vsel %vm264, %v192, 0.0
  %v633 = vadd.f32 %v631, %v632
  %v634 = vsel %vm264, %v193, 0.0
  %v635 = vadd.f32 %v633, %v634
  %v636 = vsel %vm264, %v194, 0.0
  %v637 = vadd.f32 %v635, %v636
  %v638 = vsel %vm264, %v195, 0.0
  %v639 = vadd.f32 %v637, %v638
  %v640 = vsel %vm264, %v196, 0.0
  %v641 = vadd.f32 %v639, %v640
  %v642 = vsel %vm264, %v197, 0.0
  %v643 = vadd.f32 %v641, %v642
  %v644 = vsel %vm264, %v198, 0.0
  %v645 = vadd.f32 %v643, %v644
  %v646 = vsel %vm264, %v199, 0.0
  %v647 = vadd.f32 %v645, %v646
  %v648 = vsel %vm264, %v200, 0.0
  %v649 = vadd.f32 %v647, %v648
  %v650 = vsel %vm264, %v201, 0.0
  %v651 = vadd.f32 %v649, %v650
  %v652 = vsel %vm264, %v202, 0.0
  %v653 = vadd.f32 %v651, %v652
  %v654 = vsel %vm264, %v203, 0.0
  %v655 = vadd.f32 %v653, %v654
  %v656 = vsel %vm264, %v204, 0.0
  %v657 = vadd.f32 %v655, %v656
  %v658 = vsel %vm264, %v205, 0.0
  %v659 = vadd.f32 %v657, %v658
  %v660 = vsel %vm264, %v206, 0.0
  %v661 = vadd.f32 %v659, %v660
  %v662 = vsel %vm264, %v207, 0.0
  %v663 = vadd.f32 %v661, %v662
  %v664 = vsel %vm264, %v208, 0.0
  %v665 = vadd.f32 %v663, %v664
  %v666 = vsel %vm264, %v209, 0.0
  %v667 = vadd.f32 %v665, %v666
  %v668 = vsel %vm264, %v210, 0.0
  %v669 = vadd.f32 %v667, %v668
  %v670 = vsel %vm264, %v211, 0.0
  %v671 = vadd.f32 %v669, %v670
  %v672 = vsel %vm264, %v212, 0.0
  %v673 = vadd.f32 %v671, %v672
  %v674 = vsel %vm264, %v213, 0.0
  %v675 = vadd.f32 %v673, %v674
  %v676 = vsel %vm264, %v214, 0.0
  %v677 = vadd.f32 %v675, %v676
  %v678 = vsel %vm264, %v215, 0.0
  %v679 = vadd.f32 %v677, %v678
  %v680 = vsel %vm264, %v216, 0.0
  %v681 = vadd.f32 %v679, %v680
  %v682 = vsel %vm264, %v217, 0.0
  %v683 = vadd.f32 %v681, %v682
  %v684 = vsel %vm264, %v218, 0.0
  %v685 = vadd.f32 %v683, %v684
  %v686 = vsel %vm264, %v219, 0.0
  %v687 = vadd.f32 %v685, %v686
  %v688 = vsel %vm264, %v220, 0.0
  %v689 = vadd.f32 %v687, %v688
  %v690 = vsel %vm264, %v221, 0.0
  %v691 = vadd.f32 %v689, %v690
  %v692 = vsel %vm264, %v222, 0.0
  %v693 = vadd.f32 %v691, %v692
  %v694 = vsel %vm264, %v223, 0.0
  %v695 = vadd.f32 %v693, %v694
  %v696 = vsel %vm264, %v224, 0.0
  %v697 = vadd.f32 %v695, %v696
  %v698 = vsel %vm264, %v225, 0.0
  %v699 = vadd.f32 %v697, %v698
  %v700 = vsel %vm264, %v226, 0.0
  %v701 = vadd.f32 %v699, %v700
  %v702 = vsel %vm264, %v227, 0.0
  %v703 = vadd.f32 %v701, %v702
  %v704 = vsel %vm264, %v228, 0.0
  %v705 = vadd.f32 %v703, %v704
  %v706 = vsel %vm264, %v229, 0.0
  %v707 = vadd.f32 %v705, %v706
  %v708 = vsel %vm264, %v230, 0.0
  %v709 = vadd.f32 %v707, %v708
  %v710 = vsel %vm264, %v231, 0.0
  %v711 = vadd.f32 %v709, %v710
  %v712 = vsel %vm264, %v232, 0.0
  %v713 = vadd.f32 %v711, %v712
  %v714 = vsel %vm264, %v233, 0.0
  %v715 = vadd.f32 %v713, %v714
  %v716 = vsel %vm264, %v234, 0.0
  %v717 = vadd.f32 %v715, %v716
  %v718 = vsel %vm264, %v235, 0.0
  %v719 = vadd.f32 %v717, %v718
  %v720 = vsel %vm264, %v236, 0.0
  %v721 = vadd.f32 %v719, %v720
  %v722 = vsel %vm264, %v237, 0.0
  %v723 = vadd.f32 %v721, %v722
  %v724 = vsel %vm264, %v238, 0.0
  %v725 = vadd.f32 %v723, %v724
  %v726 = vsel %vm264, %v239, 0.0
  %v727 = vadd.f32 %v725, %v726
  %v728 = vsel %vm264, %v240, 0.0
  %v729 = vadd.f32 %v727, %v728
  %v730 = vsel %vm264, %v241, 0.0
  %v731 = vadd.f32 %v729, %v730
  %v732 = vsel %vm264, %v242, 0.0
  %v733 = vadd.f32 %v731, %v732
  %v734 = vsel %vm264, %v243, 0.0
  %v735 = vadd.f32 %v733, %v734
  %v736 = vsel %vm264, %v244, 0.0
  %v737 = vadd.f32 %v735, %v736
  %v738 = vsel %vm264, %v245, 0.0
  %v739 = vadd.f32 %v737, %v738
  %v740 = vsel %vm264, %v246, 0.0
  %v741 = vadd.f32 %v739, %v740
  %v742 = vsel %vm264, %v247, 0.0
  %v743 = vadd.f32 %v741, %v742
  %v744 = vsel %vm264, %v248, 0.0
  %v745 = vadd.f32 %v743, %v744
  %v746 = vsel %vm264, %v249, 0.0
  %v747 = vadd.f32 %v745, %v746
  %v748 = vsel %vm264, %v250, 0.0
  %v749 = vadd.f32 %v747, %v748
  %v750 = vsel %vm264, %v251, 0.0
  %v751 = vadd.f32 %v749, %v750
  %v752 = vsel %vm264, %v252, 0.0
  %v753 = vadd.f32 %v751, %v752
  %v754 = vsel %vm264, %v253, 0.0
  %v755 = vadd.f32 %v753, %v754
  %v756 = vsel %vm264, %v254, 0.0
  %v757 = vadd.f32 %v755, %v756
  %v758 = vsel %vm264, %v255, 0.0
  %v759 = vadd.f32 %v757, %v758
  %v760 = vsel %vm264, %v256, 0.0
  %v761 = vadd.f32 %v759, %v760
  %v762 = vsel %vm264, %v257, 0.0
  %v763 = vadd.f32 %v761, %v762
  %v764 = vsel %vm264, %v258, 0.0
  %v765 = vadd.f32 %v763, %v764
  %v766 = vsel %vm264, %v259, 0.0
  %v767 = vadd.f32 %v765, %v766
  %v768 = vsel %vm264, %v260, 0.0
  %v769 = vadd.f32 %v767, %v768
  %v770 = vsel %vm264, %v261, 0.0
  %v771 = vadd.f32 %v769, %v770
  %v772 = vsel %vm264, %v262, 0.0
  %v773 = vadd.f32 %v771, %v772
  %v774 = vsel %vm264, %v263, 0.0
  %v775 = vadd.f32 %v773, %v774
  %v776 = vrot.slane %v775, 4
  %v777 = vadd.f32 %v775, %v776
  %v778 = vrot.slane %v777, 2
  %v779 = vadd.f32 %v777, %v778
  %v780 = vrot.slane %v779, 1
  %v781 = vadd.f32 %v779, %v780
  %v782 = vrcp.pop 2048.0
  %v783 = vmul.f32 2048.0, %v782
  %v784 = vsub.f32 1.0, %v783
  %v785 = vmul.f32 %v782, %v784
  %v786 = vadd.f32 %v782, %v785
  %vm787 = vweird.f32 %v782
  %v788 = vsel %vm787, %v782, %v786
  %v789 = vmul.f32 %v781, %v788
  %v790 = vsub.f32 %v8, %v789
  %v791 = vsub.f32 %v9, %v789
  %v792 = vsub.f32 %v10, %v789
  %v793 = vsub.f32 %v11, %v789
  %v794 = vsub.f32 %v12, %v789
  %v795 = vsub.f32 %v13, %v789
  %v796 = vsub.f32 %v14, %v789
  %v797 = vsub.f32 %v15, %v789
  %v798 = vsub.f32 %v16, %v789
  %v799 = vsub.f32 %v17, %v789
  %v800 = vsub.f32 %v18, %v789
  %v801 = vsub.f32 %v19, %v789
  %v802 = vsub.f32 %v20, %v789
  %v803 = vsub.f32 %v21, %v789
  %v804 = vsub.f32 %v22, %v789
  %v805 = vsub.f32 %v23, %v789
  %v806 = vsub.f32 %v24, %v789
  %v807 = vsub.f32 %v25, %v789
  %v808 = vsub.f32 %v26, %v789
  %v809 = vsub.f32 %v27, %v789
  %v810 = vsub.f32 %v28, %v789
  %v811 = vsub.f32 %v29, %v789
  %v812 = vsub.f32 %v30, %v789
  %v813 = vsub.f32 %v31, %v789
  %v814 = vsub.f32 %v32, %v789
  %v815 = vsub.f32 %v33, %v789
  %v816 = vsub.f32 %v34, %v789
  %v817 = vsub.f32 %v35, %v789
  %v818 = vsub.f32 %v36, %v789
  %v819 = vsub.f32 %v37, %v789
  %v820 = vsub.f32 %v38, %v789
  %v821 = vsub.f32 %v39, %v789
  %v822 = vsub.f32 %v40, %v789
  %v823 = vsub.f32 %v41, %v789
  %v824 = vsub.f32 %v42, %v789
  %v825 = vsub.f32 %v43, %v789
  %v826 = vsub.f32 %v44, %v789
  %v827 = vsub.f32 %v45, %v789
  %v828 = vsub.f32 %v46, %v789
  %v829 = vsub.f32 %v47, %v789
  %v830 = vsub.f32 %v48, %v789
  %v831 = vsub.f32 %v49, %v789
  %v832 = vsub.f32 %v50, %v789
  %v833 = vsub.f32 %v51, %v789
  %v834 = vsub.f32 %v52, %v789
  %v835 = vsub.f32 %v53, %v789
  %v836 = vsub.f32 %v54, %v789
  %v837 = vsub.f32 %v55, %v789
  %v838 = vsub.f32 %v56, %v789
  %v839 = vsub.f32 %v57, %v789
  %v840 = vsub.f32 %v58, %v789
  %v841 = vsub.f32 %v59, %v789
  %v842 = vsub.f32 %v60, %v789
  %v843 = vsub.f32 %v61, %v789
  %v844 = vsub.f32 %v62, %v789
  %v845 = vsub.f32 %v63, %v789
  %v846 = vsub.f32 %v64, %v789
  %v847 = vsub.f32 %v65, %v789
  %v848 = vsub.f32 %v66, %v789
  %v849 = vsub.f32 %v67, %v789
  %v850 = vsub.f32 %v68, %v789
  %v851 = vsub.f32 %v69, %v789
  %v852 = vsub.f32 %v70, %v789
  %v853 = vsub.f32 %v71, %v789
  %v854 = vsub.f32 %v72, %v789
  %v855 = vsub.f32 %v73, %v789
  %v856 = vsub.f32 %v74, %v789
  %v857 = vsub.f32 %v75, %v789
  %v858 = vsub.f32 %v76, %v789
  %v859 = vsub.f32 %v77, %v789
  %v860 = vsub.f32 %v78, %v789
  %v861 = vsub.f32 %v79, %v789
  %v862 = vsub.f32 %v80, %v789
  %v863 = vsub.f32 %v81, %v789
  %v864 = vsub.f32 %v82, %v789
  %v865 = vsub.f32 %v83, %v789
  %v866 = vsub.f32 %v84, %v789
  %v867 = vsub.f32 %v85, %v789
  %v868 = vsub.f32 %v86, %v789
  %v869 = vsub.f32 %v87, %v789
  %v870 = vsub.f32 %v88, %v789
  %v871 = vsub.f32 %v89, %v789
  %v872 = vsub.f32 %v90, %v789
  %v873 = vsub.f32 %v91, %v789
  %v874 = vsub.f32 %v92, %v789
  %v875 = vsub.f32 %v93, %v789
  %v876 = vsub.f32 %v94, %v789
  %v877 = vsub.f32 %v95, %v789
  %v878 = vsub.f32 %v96, %v789
  %v879 = vsub.f32 %v97, %v789
  %v880 = vsub.f32 %v98, %v789
  %v881 = vsub.f32 %v99, %v789
  %v882 = vsub.f32 %v100, %v789
  %v883 = vsub.f32 %v101, %v789
  %v884 = vsub.f32 %v102, %v789
  %v885 = vsub.f32 %v103, %v789
  %v886 = vsub.f32 %v104, %v789
  %v887 = vsub.f32 %v105, %v789
  %v888 = vsub.f32 %v106, %v789
  %v889 = vsub.f32 %v107, %v789
  %v890 = vsub.f32 %v108, %v789
  %v891 = vsub.f32 %v109, %v789
  %v892 = vsub.f32 %v110, %v789
  %v893 = vsub.f32 %v111, %v789
  %v894 = vsub.f32 %v112, %v789
  %v895 = vsub.f32 %v113, %v789
  %v896 = vsub.f32 %v114, %v789
  %v897 = vsub.f32 %v115, %v789
  %v898 = vsub.f32 %v116, %v789
  %v899 = vsub.f32 %v117, %v789
  %v900 = vsub.f32 %v118, %v789
  %v901 = vsub.f32 %v119, %v789
  %v902 = vsub.f32 %v120, %v789
  %v903 = vsub.f32 %v121, %v789
  %v904 = vsub.f32 %v122, %v789
  %v905 = vsub.f32 %v123, %v789
  %v906 = vsub.f32 %v124, %v789
  %v907 = vsub.f32 %v125, %v789
  %v908 = vsub.f32 %v126, %v789
  %v909 = vsub.f32 %v127, %v789
  %v910 = vsub.f32 %v128, %v789
  %v911 = vsub.f32 %v129, %v789
  %v912 = vsub.f32 %v130, %v789
  %v913 = vsub.f32 %v131, %v789
  %v914 = vsub.f32 %v132, %v789
  %v915 = vsub.f32 %v133, %v789
  %v916 = vsub.f32 %v134, %v789
  %v917 = vsub.f32 %v135, %v789
  %v918 = vsub.f32 %v136, %v789
  %v919 = vsub.f32 %v137, %v789
  %v920 = vsub.f32 %v138, %v789
  %v921 = vsub.f32 %v139, %v789
  %v922 = vsub.f32 %v140, %v789
  %v923 = vsub.f32 %v141, %v789
  %v924 = vsub.f32 %v142, %v789
  %v925 = vsub.f32 %v143, %v789
  %v926 = vsub.f32 %v144, %v789
  %v927 = vsub.f32 %v145, %v789
  %v928 = vsub.f32 %v146, %v789
  %v929 = vsub.f32 %v147, %v789
  %v930 = vsub.f32 %v148, %v789
  %v931 = vsub.f32 %v149, %v789
  %v932 = vsub.f32 %v150, %v789
  %v933 = vsub.f32 %v151, %v789
  %v934 = vsub.f32 %v152, %v789
  %v935 = vsub.f32 %v153, %v789
  %v936 = vsub.f32 %v154, %v789
  %v937 = vsub.f32 %v155, %v789
  %v938 = vsub.f32 %v156, %v789
  %v939 = vsub.f32 %v157, %v789
  %v940 = vsub.f32 %v158, %v789
  %v941 = vsub.f32 %v159, %v789
  %v942 = vsub.f32 %v160, %v789
  %v943 = vsub.f32 %v161, %v789
  %v944 = vsub.f32 %v162, %v789
  %v945 = vsub.f32 %v163, %v789
  %v946 = vsub.f32 %v164, %v789
  %v947 = vsub.f32 %v165, %v789
  %v948 = vsub.f32 %v166, %v789
  %v949 = vsub.f32 %v167, %v789
  %v950 = vsub.f32 %v168, %v789
  %v951 = vsub.f32 %v169, %v789
  %v952 = vsub.f32 %v170, %v789
  %v953 = vsub.f32 %v171, %v789
  %v954 = vsub.f32 %v172, %v789
  %v955 = vsub.f32 %v173, %v789
  %v956 = vsub.f32 %v174, %v789
  %v957 = vsub.f32 %v175, %v789
  %v958 = vsub.f32 %v176, %v789
  %v959 = vsub.f32 %v177, %v789
  %v960 = vsub.f32 %v178, %v789
  %v961 = vsub.f32 %v179, %v789
  %v962 = vsub.f32 %v180, %v789
  %v963 = vsub.f32 %v181, %v789
  %v964 = vsub.f32 %v182, %v789
  %v965 = vsub.f32 %v183, %v789
  %v966 = vsub.f32 %v184, %v789
  %v967 = vsub.f32 %v185, %v789
  %v968 = vsub.f32 %v186, %v789
  %v969 = vsub.f32 %v187, %v789
  %v970 = vsub.f32 %v188, %v789
  %v971 = vsub.f32 %v189, %v789
  %v972 = vsub.f32 %v190, %v789
  %v973 = vsub.f32 %v191, %v789
  %v974 = vsub.f32 %v192, %v789
  %v975 = vsub.f32 %v193, %v789
  %v976 = vsub.f32 %v194, %v789
  %v977 = vsub.f32 %v195, %v789
  %v978 = vsub.f32 %v196, %v789
  %v979 = vsub.f32 %v197, %v789
  %v980 = vsub.f32 %v198, %v789
  %v981 = vsub.f32 %v199, %v789
  %v982 = vsub.f32 %v200, %v789
  %v983 = vsub.f32 %v201, %v789
  %v984 = vsub.f32 %v202, %v789
  %v985 = vsub.f32 %v203, %v789
  %v986 = vsub.f32 %v204, %v789
  %v987 = vsub.f32 %v205, %v789
  %v988 = vsub.f32 %v206, %v789
  %v989 = vsub.f32 %v207, %v789
  %v990 = vsub.f32 %v208, %v789
  %v991 = vsub.f32 %v209, %v789
  %v992 = vsub.f32 %v210, %v789
  %v993 = vsub.f32 %v211, %v789
  %v994 = vsub.f32 %v212, %v789
  %v995 = vsub.f32 %v213, %v789
  %v996 = vsub.f32 %v214, %v789
  %v997 = vsub.f32 %v215, %v789
  %v998 = vsub.f32 %v216, %v789
  %v999 = vsub.f32 %v217, %v789
  %v1000 = vsub.f32 %v218, %v789
  %v1001 = vsub.f32 %v219, %v789
  %v1002 = vsub.f32 %v220, %v789
  %v1003 = vsub.f32 %v221, %v789
  %v1004 = vsub.f32 %v222, %v789
  %v1005 = vsub.f32 %v223, %v789
  %v1006 = vsub.f32 %v224, %v789
  %v1007 = vsub.f32 %v225, %v789
  %v1008 = vsub.f32 %v226, %v789
  %v1009 = vsub.f32 %v227, %v789
  %v1010 = vsub.f32 %v228, %v789
  %v1011 = vsub.f32 %v229, %v789
  %v1012 = vsub.f32 %v230, %v789
  %v1013 = vsub.f32 %v231, %v789
  %v1014 = vsub.f32 %v232, %v789
  %v1015 = vsub.f32 %v233, %v789
  %v1016 = vsub.f32 %v234, %v789
  %v1017 = vsub.f32 %v235, %v789
  %v1018 = vsub.f32 %v236, %v789
  %v1019 = vsub.f32 %v237, %v789
  %v1020 = vsub.f32 %v238, %v789
  %v1021 = vsub.f32 %v239, %v789
  %v1022 = vsub.f32 %v240, %v789
  %v1023 = vsub.f32 %v241, %v789
  %v1024 = vsub.f32 %v242, %v789
  %v1025 = vsub.f32 %v243, %v789
  %v1026 = vsub.f32 %v244, %v789
  %v1027 = vsub.f32 %v245, %v789
  %v1028 = vsub.f32 %v246, %v789
  %v1029 = vsub.f32 %v247, %v789
  %v1030 = vsub.f32 %v248, %v789
  %v1031 = vsub.f32 %v249, %v789
  %v1032 = vsub.f32 %v250, %v789
  %v1033 = vsub.f32 %v251, %v789
  %v1034 = vsub.f32 %v252, %v789
  %v1035 = vsub.f32 %v253, %v789
  %v1036 = vsub.f32 %v254, %v789
  %v1037 = vsub.f32 %v255, %v789
  %v1038 = vsub.f32 %v256, %v789
  %v1039 = vsub.f32 %v257, %v789
  %v1040 = vsub.f32 %v258, %v789
  %v1041 = vsub.f32 %v259, %v789
  %v1042 = vsub.f32 %v260, %v789
  %v1043 = vsub.f32 %v261, %v789
  %v1044 = vsub.f32 %v262, %v789
  %v1045 = vsub.f32 %v263, %v789
  %v1046 = vmul.f32 %v790, %v790
  %v1047 = vmul.f32 %v791, %v791
  %v1048 = vmul.f32 %v792, %v792
  %v1049 = vmul.f32 %v793, %v793
  %v1050 = vmul.f32 %v794, %v794
  %v1051 = vmul.f32 %v795, %v795
  %v1052 = vmul.f32 %v796, %v796
  %v1053 = vmul.f32 %v797, %v797
  %v1054 = vmul.f32 %v798, %v798
  %v1055 = vmul.f32 %v799, %v799
  %v1056 = vmul.f32 %v800, %v800
  %v1057 = vmul.f32 %v801, %v801
  %v1058 = vmul.f32 %v802, %v802
  %v1059 = vmul.f32 %v803, %v803
  %v1060 = vmul.f32 %v804, %v804
  %v1061 = vmul.f32 %v805, %v805
  %v1062 = vmul.f32 %v806, %v806
  %v1063 = vmul.f32 %v807, %v807
  %v1064 = vmul.f32 %v808, %v808
  %v1065 = vmul.f32 %v809, %v809
  %v1066 = vmul.f32 %v810, %v810
  %v1067 = vmul.f32 %v811, %v811
  %v1068 = vmul.f32 %v812, %v812
  %v1069 = vmul.f32 %v813, %v813
  %v1070 = vmul.f32 %v814, %v814
  %v1071 = vmul.f32 %v815, %v815
  %v1072 = vmul.f32 %v816, %v816
  %v1073 = vmul.f32 %v817, %v817
  %v1074 = vmul.f32 %v818, %v818
  %v1075 = vmul.f32 %v819, %v819
  %v1076 = vmul.f32 %v820, %v820
  %v1077 = vmul.f32 %v821, %v821
  %v1078 = vmul.f32 %v822, %v822
  %v1079 = vmul.f32 %v823, %v823
  %v1080 = vmul.f32 %v824, %v824
  %v1081 = vmul.f32 %v825, %v825
  %v1082 = vmul.f32 %v826, %v826
  %v1083 = vmul.f32 %v827, %v827
  %v1084 = vmul.f32 %v828, %v828
  %v1085 = vmul.f32 %v829, %v829
  %v1086 = vmul.f32 %v830, %v830
  %v1087 = vmul.f32 %v831, %v831
  %v1088 = vmul.f32 %v832, %v832
  %v1089 = vmul.f32 %v833, %v833
  %v1090 = vmul.f32 %v834, %v834
  %v1091 = vmul.f32 %v835, %v835
  %v1092 = vmul.f32 %v836, %v836
  %v1093 = vmul.f32 %v837, %v837
  %v1094 = vmul.f32 %v838, %v838
  %v1095 = vmul.f32 %v839, %v839
  %v1096 = vmul.f32 %v840, %v840
  %v1097 = vmul.f32 %v841, %v841
  %v1098 = vmul.f32 %v842, %v842
  %v1099 = vmul.f32 %v843, %v843
  %v1100 = vmul.f32 %v844, %v844
  %v1101 = vmul.f32 %v845, %v845
  %v1102 = vmul.f32 %v846, %v846
  %v1103 = vmul.f32 %v847, %v847
  %v1104 = vmul.f32 %v848, %v848
  %v1105 = vmul.f32 %v849, %v849
  %v1106 = vmul.f32 %v850, %v850
  %v1107 = vmul.f32 %v851, %v851
  %v1108 = vmul.f32 %v852, %v852
  %v1109 = vmul.f32 %v853, %v853
  %v1110 = vmul.f32 %v854, %v854
  %v1111 = vmul.f32 %v855, %v855
  %v1112 = vmul.f32 %v856, %v856
  %v1113 = vmul.f32 %v857, %v857
  %v1114 = vmul.f32 %v858, %v858
  %v1115 = vmul.f32 %v859, %v859
  %v1116 = vmul.f32 %v860, %v860
  %v1117 = vmul.f32 %v861, %v861
  %v1118 = vmul.f32 %v862, %v862
  %v1119 = vmul.f32 %v863, %v863
  %v1120 = vmul.f32 %v864, %v864
  %v1121 = vmul.f32 %v865, %v865
  %v1122 = vmul.f32 %v866, %v866
  %v1123 = vmul.f32 %v867, %v867
  %v1124 = vmul.f32 %v868, %v868
  %v1125 = vmul.f32 %v869, %v869
  %v1126 = vmul.f32 %v870, %v870
  %v1127 = vmul.f32 %v871, %v871
  %v1128 = vmul.f32 %v872, %v872
  %v1129 = vmul.f32 %v873, %v873
  %v1130 = vmul.f32 %v874, %v874
  %v1131 = vmul.f32 %v875, %v875
  %v1132 = vmul.f32 %v876, %v876
  %v1133 = vmul.f32 %v877, %v877
  %v1134 = vmul.f32 %v878, %v878
  %v1135 = vmul.f32 %v879, %v879
  %v1136 = vmul.f32 %v880, %v880
  %v1137 = vmul.f32 %v881, %v881
  %v1138 = vmul.f32 %v882, %v882
  %v1139 = vmul.f32 %v883, %v883
  %v1140 = vmul.f32 %v884, %v884
  %v1141 = vmul.f32 %v885, %v885
  %v1142 = vmul.f32 %v886, %v886
  %v1143 = vmul.f32 %v887, %v887
  %v1144 = vmul.f32 %v888, %v888
  %v1145 = vmul.f32 %v889, %v889
  %v1146 = vmul.f32 %v890, %v890
  %v1147 = vmul.f32 %v891, %v891
  %v1148 = vmul.f32 %v892, %v892
  %v1149 = vmul.f32 %v893, %v893
  %v1150 = vmul.f32 %v894, %v894
  %v1151 = vmul.f32 %v895, %v895
  %v1152 = vmul.f32 %v896, %v896
  %v1153 = vmul.f32 %v897, %v897
  %v1154 = vmul.f32 %v898, %v898
  %v1155 = vmul.f32 %v899, %v899
  %v1156 = vmul.f32 %v900, %v900
  %v1157 = vmul.f32 %v901, %v901
  %v1158 = vmul.f32 %v902, %v902
  %v1159 = vmul.f32 %v903, %v903
  %v1160 = vmul.f32 %v904, %v904
  %v1161 = vmul.f32 %v905, %v905
  %v1162 = vmul.f32 %v906, %v906
  %v1163 = vmul.f32 %v907, %v907
  %v1164 = vmul.f32 %v908, %v908
  %v1165 = vmul.f32 %v909, %v909
  %v1166 = vmul.f32 %v910, %v910
  %v1167 = vmul.f32 %v911, %v911
  %v1168 = vmul.f32 %v912, %v912
  %v1169 = vmul.f32 %v913, %v913
  %v1170 = vmul.f32 %v914, %v914
  %v1171 = vmul.f32 %v915, %v915
  %v1172 = vmul.f32 %v916, %v916
  %v1173 = vmul.f32 %v917, %v917
  %v1174 = vmul.f32 %v918, %v918
  %v1175 = vmul.f32 %v919, %v919
  %v1176 = vmul.f32 %v920, %v920
  %v1177 = vmul.f32 %v921, %v921
  %v1178 = vmul.f32 %v922, %v922
  %v1179 = vmul.f32 %v923, %v923
  %v1180 = vmul.f32 %v924, %v924
  %v1181 = vmul.f32 %v925, %v925
  %v1182 = vmul.f32 %v926, %v926
  %v1183 = vmul.f32 %v927, %v927
  %v1184 = vmul.f32 %v928, %v928
  %v1185 = vmul.f32 %v929, %v929
  %v1186 = vmul.f32 %v930, %v930
  %v1187 = vmul.f32 %v931, %v931
  %v1188 = vmul.f32 %v932, %v932
  %v1189 = vmul.f32 %v933, %v933
  %v1190 = vmul.f32 %v934, %v934
  %v1191 = vmul.f32 %v935, %v935
  %v1192 = vmul.f32 %v936, %v936
  %v1193 = vmul.f32 %v937, %v937
  %v1194 = vmul.f32 %v938, %v938
  %v1195 = vmul.f32 %v939, %v939
  %v1196 = vmul.f32 %v940, %v940
  %v1197 = vmul.f32 %v941, %v941
  %v1198 = vmul.f32 %v942, %v942
  %v1199 = vmul.f32 %v943, %v943
  %v1200 = vmul.f32 %v944, %v944
  %v1201 = vmul.f32 %v945, %v945
  %v1202 = vmul.f32 %v946, %v946
  %v1203 = vmul.f32 %v947, %v947
  %v1204 = vmul.f32 %v948, %v948
  %v1205 = vmul.f32 %v949, %v949
  %v1206 = vmul.f32 %v950, %v950
  %v1207 = vmul.f32 %v951, %v951
  %v1208 = vmul.f32 %v952, %v952
  %v1209 = vmul.f32 %v953, %v953
  %v1210 = vmul.f32 %v954, %v954
  %v1211 = vmul.f32 %v955, %v955
  %v1212 = vmul.f32 %v956, %v956
  %v1213 = vmul.f32 %v957, %v957
  %v1214 = vmul.f32 %v958, %v958
  %v1215 = vmul.f32 %v959, %v959
  %v1216 = vmul.f32 %v960, %v960
  %v1217 = vmul.f32 %v961, %v961
  %v1218 = vmul.f32 %v962, %v962
  %v1219 = vmul.f32 %v963, %v963
  %v1220 = vmul.f32 %v964, %v964
  %v1221 = vmul.f32 %v965, %v965
  %v1222 = vmul.f32 %v966, %v966
  %v1223 = vmul.f32 %v967, %v967
  %v1224 = vmul.f32 %v968, %v968
  %v1225 = vmul.f32 %v969, %v969
  %v1226 = vmul.f32 %v970, %v970
  %v1227 = vmul.f32 %v971, %v971
  %v1228 = vmul.f32 %v972, %v972
  %v1229 = vmul.f32 %v973, %v973
  %v1230 = vmul.f32 %v974, %v974
  %v1231 = vmul.f32 %v975, %v975
  %v1232 = vmul.f32 %v976, %v976
  %v1233 = vmul.f32 %v977, %v977
  %v1234 = vmul.f32 %v978, %v978
  %v1235 = vmul.f32 %v979, %v979
  %v1236 = vmul.f32 %v980, %v980
  %v1237 = vmul.f32 %v981, %v981
  %v1238 = vmul.f32 %v982, %v982
  %v1239 = vmul.f32 %v983, %v983
  %v1240 = vmul.f32 %v984, %v984
  %v1241 = vmul.f32 %v985, %v985
  %v1242 = vmul.f32 %v986, %v986
  %v1243 = vmul.f32 %v987, %v987
  %v1244 = vmul.f32 %v988, %v988
  %v1245 = vmul.f32 %v989, %v989
  %v1246 = vmul.f32 %v990, %v990
  %v1247 = vmul.f32 %v991, %v991
  %v1248 = vmul.f32 %v992, %v992
  %v1249 = vmul.f32 %v993, %v993
  %v1250 = vmul.f32 %v994, %v994
  %v1251 = vmul.f32 %v995, %v995
  %v1252 = vmul.f32 %v996, %v996
  %v1253 = vmul.f32 %v997, %v997
  %v1254 = vmul.f32 %v998, %v998
  %v1255 = vmul.f32 %v999, %v999
  %v1256 = vmul.f32 %v1000, %v1000
  %v1257 = vmul.f32 %v1001, %v1001
  %v1258 = vmul.f32 %v1002, %v1002
  %v1259 = vmul.f32 %v1003, %v1003
  %v1260 = vmul.f32 %v1004, %v1004
  %v1261 = vmul.f32 %v1005, %v1005
  %v1262 = vmul.f32 %v1006, %v1006
  %v1263 = vmul.f32 %v1007, %v1007
  %v1264 = vmul.f32 %v1008, %v1008
  %v1265 = vmul.f32 %v1009, %v1009
  %v1266 = vmul.f32 %v1010, %v1010
  %v1267 = vmul.f32 %v1011, %v1011
  %v1268 = vmul.f32 %v1012, %v1012
  %v1269 = vmul.f32 %v1013, %v1013
  %v1270 = vmul.f32 %v1014, %v1014
  %v1271 = vmul.f32 %v1015, %v1015
  %v1272 = vmul.f32 %v1016, %v1016
  %v1273 = vmul.f32 %v1017, %v1017
  %v1274 = vmul.f32 %v1018, %v1018
  %v1275 = vmul.f32 %v1019, %v1019
  %v1276 = vmul.f32 %v1020, %v1020
  %v1277 = vmul.f32 %v1021, %v1021
  %v1278 = vmul.f32 %v1022, %v1022
  %v1279 = vmul.f32 %v1023, %v1023
  %v1280 = vmul.f32 %v1024, %v1024
  %v1281 = vmul.f32 %v1025, %v1025
  %v1282 = vmul.f32 %v1026, %v1026
  %v1283 = vmul.f32 %v1027, %v1027
  %v1284 = vmul.f32 %v1028, %v1028
  %v1285 = vmul.f32 %v1029, %v1029
  %v1286 = vmul.f32 %v1030, %v1030
  %v1287 = vmul.f32 %v1031, %v1031
  %v1288 = vmul.f32 %v1032, %v1032
  %v1289 = vmul.f32 %v1033, %v1033
  %v1290 = vmul.f32 %v1034, %v1034
  %v1291 = vmul.f32 %v1035, %v1035
  %v1292 = vmul.f32 %v1036, %v1036
  %v1293 = vmul.f32 %v1037, %v1037
  %v1294 = vmul.f32 %v1038, %v1038
  %v1295 = vmul.f32 %v1039, %v1039
  %v1296 = vmul.f32 %v1040, %v1040
  %v1297 = vmul.f32 %v1041, %v1041
  %v1298 = vmul.f32 %v1042, %v1042
  %v1299 = vmul.f32 %v1043, %v1043
  %v1300 = vmul.f32 %v1044, %v1044
  %v1301 = vmul.f32 %v1045, %v1045
  %v1302 = vsel %vm264, %v1046, 0.0
  %v1303 = vsel %vm264, %v1047, 0.0
  %v1304 = vadd.f32 %v1302, %v1303
  %v1305 = vsel %vm264, %v1048, 0.0
  %v1306 = vadd.f32 %v1304, %v1305
  %v1307 = vsel %vm264, %v1049, 0.0
  %v1308 = vadd.f32 %v1306, %v1307
  %v1309 = vsel %vm264, %v1050, 0.0
  %v1310 = vadd.f32 %v1308, %v1309
  %v1311 = vsel %vm264, %v1051, 0.0
  %v1312 = vadd.f32 %v1310, %v1311
  %v1313 = vsel %vm264, %v1052, 0.0
  %v1314 = vadd.f32 %v1312, %v1313
  %v1315 = vsel %vm264, %v1053, 0.0
  %v1316 = vadd.f32 %v1314, %v1315
  %v1317 = vsel %vm264, %v1054, 0.0
  %v1318 = vadd.f32 %v1316, %v1317
  %v1319 = vsel %vm264, %v1055, 0.0
  %v1320 = vadd.f32 %v1318, %v1319
  %v1321 = vsel %vm264, %v1056, 0.0
  %v1322 = vadd.f32 %v1320, %v1321
  %v1323 = vsel %vm264, %v1057, 0.0
  %v1324 = vadd.f32 %v1322, %v1323
  %v1325 = vsel %vm264, %v1058, 0.0
  %v1326 = vadd.f32 %v1324, %v1325
  %v1327 = vsel %vm264, %v1059, 0.0
  %v1328 = vadd.f32 %v1326, %v1327
  %v1329 = vsel %vm264, %v1060, 0.0
  %v1330 = vadd.f32 %v1328, %v1329
  %v1331 = vsel %vm264, %v1061, 0.0
  %v1332 = vadd.f32 %v1330, %v1331
  %v1333 = vsel %vm264, %v1062, 0.0
  %v1334 = vadd.f32 %v1332, %v1333
  %v1335 = vsel %vm264, %v1063, 0.0
  %v1336 = vadd.f32 %v1334, %v1335
  %v1337 = vsel %vm264, %v1064, 0.0
  %v1338 = vadd.f32 %v1336, %v1337
  %v1339 = vsel %vm264, %v1065, 0.0
  %v1340 = vadd.f32 %v1338, %v1339
  %v1341 = vsel %vm264, %v1066, 0.0
  %v1342 = vadd.f32 %v1340, %v1341
  %v1343 = vsel %vm264, %v1067, 0.0
  %v1344 = vadd.f32 %v1342, %v1343
  %v1345 = vsel %vm264, %v1068, 0.0
  %v1346 = vadd.f32 %v1344, %v1345
  %v1347 = vsel %vm264, %v1069, 0.0
  %v1348 = vadd.f32 %v1346, %v1347
  %v1349 = vsel %vm264, %v1070, 0.0
  %v1350 = vadd.f32 %v1348, %v1349
  %v1351 = vsel %vm264, %v1071, 0.0
  %v1352 = vadd.f32 %v1350, %v1351
  %v1353 = vsel %vm264, %v1072, 0.0
  %v1354 = vadd.f32 %v1352, %v1353
  %v1355 = vsel %vm264, %v1073, 0.0
  %v1356 = vadd.f32 %v1354, %v1355
  %v1357 = vsel %vm264, %v1074, 0.0
  %v1358 = vadd.f32 %v1356, %v1357
  %v1359 = vsel %vm264, %v1075, 0.0
  %v1360 = vadd.f32 %v1358, %v1359
  %v1361 = vsel %vm264, %v1076, 0.0
  %v1362 = vadd.f32 %v1360, %v1361
  %v1363 = vsel %vm264, %v1077, 0.0
  %v1364 = vadd.f32 %v1362, %v1363
  %v1365 = vsel %vm264, %v1078, 0.0
  %v1366 = vadd.f32 %v1364, %v1365
  %v1367 = vsel %vm264, %v1079, 0.0
  %v1368 = vadd.f32 %v1366, %v1367
  %v1369 = vsel %vm264, %v1080, 0.0
  %v1370 = vadd.f32 %v1368, %v1369
  %v1371 = vsel %vm264, %v1081, 0.0
  %v1372 = vadd.f32 %v1370, %v1371
  %v1373 = vsel %vm264, %v1082, 0.0
  %v1374 = vadd.f32 %v1372, %v1373
  %v1375 = vsel %vm264, %v1083, 0.0
  %v1376 = vadd.f32 %v1374, %v1375
  %v1377 = vsel %vm264, %v1084, 0.0
  %v1378 = vadd.f32 %v1376, %v1377
  %v1379 = vsel %vm264, %v1085, 0.0
  %v1380 = vadd.f32 %v1378, %v1379
  %v1381 = vsel %vm264, %v1086, 0.0
  %v1382 = vadd.f32 %v1380, %v1381
  %v1383 = vsel %vm264, %v1087, 0.0
  %v1384 = vadd.f32 %v1382, %v1383
  %v1385 = vsel %vm264, %v1088, 0.0
  %v1386 = vadd.f32 %v1384, %v1385
  %v1387 = vsel %vm264, %v1089, 0.0
  %v1388 = vadd.f32 %v1386, %v1387
  %v1389 = vsel %vm264, %v1090, 0.0
  %v1390 = vadd.f32 %v1388, %v1389
  %v1391 = vsel %vm264, %v1091, 0.0
  %v1392 = vadd.f32 %v1390, %v1391
  %v1393 = vsel %vm264, %v1092, 0.0
  %v1394 = vadd.f32 %v1392, %v1393
  %v1395 = vsel %vm264, %v1093, 0.0
  %v1396 = vadd.f32 %v1394, %v1395
  %v1397 = vsel %vm264, %v1094, 0.0
  %v1398 = vadd.f32 %v1396, %v1397
  %v1399 = vsel %vm264, %v1095, 0.0
  %v1400 = vadd.f32 %v1398, %v1399
  %v1401 = vsel %vm264, %v1096, 0.0
  %v1402 = vadd.f32 %v1400, %v1401
  %v1403 = vsel %vm264, %v1097, 0.0
  %v1404 = vadd.f32 %v1402, %v1403
  %v1405 = vsel %vm264, %v1098, 0.0
  %v1406 = vadd.f32 %v1404, %v1405
  %v1407 = vsel %vm264, %v1099, 0.0
  %v1408 = vadd.f32 %v1406, %v1407
  %v1409 = vsel %vm264, %v1100, 0.0
  %v1410 = vadd.f32 %v1408, %v1409
  %v1411 = vsel %vm264, %v1101, 0.0
  %v1412 = vadd.f32 %v1410, %v1411
  %v1413 = vsel %vm264, %v1102, 0.0
  %v1414 = vadd.f32 %v1412, %v1413
  %v1415 = vsel %vm264, %v1103, 0.0
  %v1416 = vadd.f32 %v1414, %v1415
  %v1417 = vsel %vm264, %v1104, 0.0
  %v1418 = vadd.f32 %v1416, %v1417
  %v1419 = vsel %vm264, %v1105, 0.0
  %v1420 = vadd.f32 %v1418, %v1419
  %v1421 = vsel %vm264, %v1106, 0.0
  %v1422 = vadd.f32 %v1420, %v1421
  %v1423 = vsel %vm264, %v1107, 0.0
  %v1424 = vadd.f32 %v1422, %v1423
  %v1425 = vsel %vm264, %v1108, 0.0
  %v1426 = vadd.f32 %v1424, %v1425
  %v1427 = vsel %vm264, %v1109, 0.0
  %v1428 = vadd.f32 %v1426, %v1427
  %v1429 = vsel %vm264, %v1110, 0.0
  %v1430 = vadd.f32 %v1428, %v1429
  %v1431 = vsel %vm264, %v1111, 0.0
  %v1432 = vadd.f32 %v1430, %v1431
  %v1433 = vsel %vm264, %v1112, 0.0
  %v1434 = vadd.f32 %v1432, %v1433
  %v1435 = vsel %vm264, %v1113, 0.0
  %v1436 = vadd.f32 %v1434, %v1435
  %v1437 = vsel %vm264, %v1114, 0.0
  %v1438 = vadd.f32 %v1436, %v1437
  %v1439 = vsel %vm264, %v1115, 0.0
  %v1440 = vadd.f32 %v1438, %v1439
  %v1441 = vsel %vm264, %v1116, 0.0
  %v1442 = vadd.f32 %v1440, %v1441
  %v1443 = vsel %vm264, %v1117, 0.0
  %v1444 = vadd.f32 %v1442, %v1443
  %v1445 = vsel %vm264, %v1118, 0.0
  %v1446 = vadd.f32 %v1444, %v1445
  %v1447 = vsel %vm264, %v1119, 0.0
  %v1448 = vadd.f32 %v1446, %v1447
  %v1449 = vsel %vm264, %v1120, 0.0
  %v1450 = vadd.f32 %v1448, %v1449
  %v1451 = vsel %vm264, %v1121, 0.0
  %v1452 = vadd.f32 %v1450, %v1451
  %v1453 = vsel %vm264, %v1122, 0.0
  %v1454 = vadd.f32 %v1452, %v1453
  %v1455 = vsel %vm264, %v1123, 0.0
  %v1456 = vadd.f32 %v1454, %v1455
  %v1457 = vsel %vm264, %v1124, 0.0
  %v1458 = vadd.f32 %v1456, %v1457
  %v1459 = vsel %vm264, %v1125, 0.0
  %v1460 = vadd.f32 %v1458, %v1459
  %v1461 = vsel %vm264, %v1126, 0.0
  %v1462 = vadd.f32 %v1460, %v1461
  %v1463 = vsel %vm264, %v1127, 0.0
  %v1464 = vadd.f32 %v1462, %v1463
  %v1465 = vsel %vm264, %v1128, 0.0
  %v1466 = vadd.f32 %v1464, %v1465
  %v1467 = vsel %vm264, %v1129, 0.0
  %v1468 = vadd.f32 %v1466, %v1467
  %v1469 = vsel %vm264, %v1130, 0.0
  %v1470 = vadd.f32 %v1468, %v1469
  %v1471 = vsel %vm264, %v1131, 0.0
  %v1472 = vadd.f32 %v1470, %v1471
  %v1473 = vsel %vm264, %v1132, 0.0
  %v1474 = vadd.f32 %v1472, %v1473
  %v1475 = vsel %vm264, %v1133, 0.0
  %v1476 = vadd.f32 %v1474, %v1475
  %v1477 = vsel %vm264, %v1134, 0.0
  %v1478 = vadd.f32 %v1476, %v1477
  %v1479 = vsel %vm264, %v1135, 0.0
  %v1480 = vadd.f32 %v1478, %v1479
  %v1481 = vsel %vm264, %v1136, 0.0
  %v1482 = vadd.f32 %v1480, %v1481
  %v1483 = vsel %vm264, %v1137, 0.0
  %v1484 = vadd.f32 %v1482, %v1483
  %v1485 = vsel %vm264, %v1138, 0.0
  %v1486 = vadd.f32 %v1484, %v1485
  %v1487 = vsel %vm264, %v1139, 0.0
  %v1488 = vadd.f32 %v1486, %v1487
  %v1489 = vsel %vm264, %v1140, 0.0
  %v1490 = vadd.f32 %v1488, %v1489
  %v1491 = vsel %vm264, %v1141, 0.0
  %v1492 = vadd.f32 %v1490, %v1491
  %v1493 = vsel %vm264, %v1142, 0.0
  %v1494 = vadd.f32 %v1492, %v1493
  %v1495 = vsel %vm264, %v1143, 0.0
  %v1496 = vadd.f32 %v1494, %v1495
  %v1497 = vsel %vm264, %v1144, 0.0
  %v1498 = vadd.f32 %v1496, %v1497
  %v1499 = vsel %vm264, %v1145, 0.0
  %v1500 = vadd.f32 %v1498, %v1499
  %v1501 = vsel %vm264, %v1146, 0.0
  %v1502 = vadd.f32 %v1500, %v1501
  %v1503 = vsel %vm264, %v1147, 0.0
  %v1504 = vadd.f32 %v1502, %v1503
  %v1505 = vsel %vm264, %v1148, 0.0
  %v1506 = vadd.f32 %v1504, %v1505
  %v1507 = vsel %vm264, %v1149, 0.0
  %v1508 = vadd.f32 %v1506, %v1507
  %v1509 = vsel %vm264, %v1150, 0.0
  %v1510 = vadd.f32 %v1508, %v1509
  %v1511 = vsel %vm264, %v1151, 0.0
  %v1512 = vadd.f32 %v1510, %v1511
  %v1513 = vsel %vm264, %v1152, 0.0
  %v1514 = vadd.f32 %v1512, %v1513
  %v1515 = vsel %vm264, %v1153, 0.0
  %v1516 = vadd.f32 %v1514, %v1515
  %v1517 = vsel %vm264, %v1154, 0.0
  %v1518 = vadd.f32 %v1516, %v1517
  %v1519 = vsel %vm264, %v1155, 0.0
  %v1520 = vadd.f32 %v1518, %v1519
  %v1521 = vsel %vm264, %v1156, 0.0
  %v1522 = vadd.f32 %v1520, %v1521
  %v1523 = vsel %vm264, %v1157, 0.0
  %v1524 = vadd.f32 %v1522, %v1523
  %v1525 = vsel %vm264, %v1158, 0.0
  %v1526 = vadd.f32 %v1524, %v1525
  %v1527 = vsel %vm264, %v1159, 0.0
  %v1528 = vadd.f32 %v1526, %v1527
  %v1529 = vsel %vm264, %v1160, 0.0
  %v1530 = vadd.f32 %v1528, %v1529
  %v1531 = vsel %vm264, %v1161, 0.0
  %v1532 = vadd.f32 %v1530, %v1531
  %v1533 = vsel %vm264, %v1162, 0.0
  %v1534 = vadd.f32 %v1532, %v1533
  %v1535 = vsel %vm264, %v1163, 0.0
  %v1536 = vadd.f32 %v1534, %v1535
  %v1537 = vsel %vm264, %v1164, 0.0
  %v1538 = vadd.f32 %v1536, %v1537
  %v1539 = vsel %vm264, %v1165, 0.0
  %v1540 = vadd.f32 %v1538, %v1539
  %v1541 = vsel %vm264, %v1166, 0.0
  %v1542 = vadd.f32 %v1540, %v1541
  %v1543 = vsel %vm264, %v1167, 0.0
  %v1544 = vadd.f32 %v1542, %v1543
  %v1545 = vsel %vm264, %v1168, 0.0
  %v1546 = vadd.f32 %v1544, %v1545
  %v1547 = vsel %vm264, %v1169, 0.0
  %v1548 = vadd.f32 %v1546, %v1547
  %v1549 = vsel %vm264, %v1170, 0.0
  %v1550 = vadd.f32 %v1548, %v1549
  %v1551 = vsel %vm264, %v1171, 0.0
  %v1552 = vadd.f32 %v1550, %v1551
  %v1553 = vsel %vm264, %v1172, 0.0
  %v1554 = vadd.f32 %v1552, %v1553
  %v1555 = vsel %vm264, %v1173, 0.0
  %v1556 = vadd.f32 %v1554, %v1555
  %v1557 = vsel %vm264, %v1174, 0.0
  %v1558 = vadd.f32 %v1556, %v1557
  %v1559 = vsel %vm264, %v1175, 0.0
  %v1560 = vadd.f32 %v1558, %v1559
  %v1561 = vsel %vm264, %v1176, 0.0
  %v1562 = vadd.f32 %v1560, %v1561
  %v1563 = vsel %vm264, %v1177, 0.0
  %v1564 = vadd.f32 %v1562, %v1563
  %v1565 = vsel %vm264, %v1178, 0.0
  %v1566 = vadd.f32 %v1564, %v1565
  %v1567 = vsel %vm264, %v1179, 0.0
  %v1568 = vadd.f32 %v1566, %v1567
  %v1569 = vsel %vm264, %v1180, 0.0
  %v1570 = vadd.f32 %v1568, %v1569
  %v1571 = vsel %vm264, %v1181, 0.0
  %v1572 = vadd.f32 %v1570, %v1571
  %v1573 = vsel %vm264, %v1182, 0.0
  %v1574 = vadd.f32 %v1572, %v1573
  %v1575 = vsel %vm264, %v1183, 0.0
  %v1576 = vadd.f32 %v1574, %v1575
  %v1577 = vsel %vm264, %v1184, 0.0
  %v1578 = vadd.f32 %v1576, %v1577
  %v1579 = vsel %vm264, %v1185, 0.0
  %v1580 = vadd.f32 %v1578, %v1579
  %v1581 = vsel %vm264, %v1186, 0.0
  %v1582 = vadd.f32 %v1580, %v1581
  %v1583 = vsel %vm264, %v1187, 0.0
  %v1584 = vadd.f32 %v1582, %v1583
  %v1585 = vsel %vm264, %v1188, 0.0
  %v1586 = vadd.f32 %v1584, %v1585
  %v1587 = vsel %vm264, %v1189, 0.0
  %v1588 = vadd.f32 %v1586, %v1587
  %v1589 = vsel %vm264, %v1190, 0.0
  %v1590 = vadd.f32 %v1588, %v1589
  %v1591 = vsel %vm264, %v1191, 0.0
  %v1592 = vadd.f32 %v1590, %v1591
  %v1593 = vsel %vm264, %v1192, 0.0
  %v1594 = vadd.f32 %v1592, %v1593
  %v1595 = vsel %vm264, %v1193, 0.0
  %v1596 = vadd.f32 %v1594, %v1595
  %v1597 = vsel %vm264, %v1194, 0.0
  %v1598 = vadd.f32 %v1596, %v1597
  %v1599 = vsel %vm264, %v1195, 0.0
  %v1600 = vadd.f32 %v1598, %v1599
  %v1601 = vsel %vm264, %v1196, 0.0
  %v1602 = vadd.f32 %v1600, %v1601
  %v1603 = vsel %vm264, %v1197, 0.0
  %v1604 = vadd.f32 %v1602, %v1603
  %v1605 = vsel %vm264, %v1198, 0.0
  %v1606 = vadd.f32 %v1604, %v1605
  %v1607 = vsel %vm264, %v1199, 0.0
  %v1608 = vadd.f32 %v1606, %v1607
  %v1609 = vsel %vm264, %v1200, 0.0
  %v1610 = vadd.f32 %v1608, %v1609
  %v1611 = vsel %vm264, %v1201, 0.0
  %v1612 = vadd.f32 %v1610, %v1611
  %v1613 = vsel %vm264, %v1202, 0.0
  %v1614 = vadd.f32 %v1612, %v1613
  %v1615 = vsel %vm264, %v1203, 0.0
  %v1616 = vadd.f32 %v1614, %v1615
  %v1617 = vsel %vm264, %v1204, 0.0
  %v1618 = vadd.f32 %v1616, %v1617
  %v1619 = vsel %vm264, %v1205, 0.0
  %v1620 = vadd.f32 %v1618, %v1619
  %v1621 = vsel %vm264, %v1206, 0.0
  %v1622 = vadd.f32 %v1620, %v1621
  %v1623 = vsel %vm264, %v1207, 0.0
  %v1624 = vadd.f32 %v1622, %v1623
  %v1625 = vsel %vm264, %v1208, 0.0
  %v1626 = vadd.f32 %v1624, %v1625
  %v1627 = vsel %vm264, %v1209, 0.0
  %v1628 = vadd.f32 %v1626, %v1627
  %v1629 = vsel %vm264, %v1210, 0.0
  %v1630 = vadd.f32 %v1628, %v1629
  %v1631 = vsel %vm264, %v1211, 0.0
  %v1632 = vadd.f32 %v1630, %v1631
  %v1633 = vsel %vm264, %v1212, 0.0
  %v1634 = vadd.f32 %v1632, %v1633
  %v1635 = vsel %vm264, %v1213, 0.0
  %v1636 = vadd.f32 %v1634, %v1635
  %v1637 = vsel %vm264, %v1214, 0.0
  %v1638 = vadd.f32 %v1636, %v1637
  %v1639 = vsel %vm264, %v1215, 0.0
  %v1640 = vadd.f32 %v1638, %v1639
  %v1641 = vsel %vm264, %v1216, 0.0
  %v1642 = vadd.f32 %v1640, %v1641
  %v1643 = vsel %vm264, %v1217, 0.0
  %v1644 = vadd.f32 %v1642, %v1643
  %v1645 = vsel %vm264, %v1218, 0.0
  %v1646 = vadd.f32 %v1644, %v1645
  %v1647 = vsel %vm264, %v1219, 0.0
  %v1648 = vadd.f32 %v1646, %v1647
  %v1649 = vsel %vm264, %v1220, 0.0
  %v1650 = vadd.f32 %v1648, %v1649
  %v1651 = vsel %vm264, %v1221, 0.0
  %v1652 = vadd.f32 %v1650, %v1651
  %v1653 = vsel %vm264, %v1222, 0.0
  %v1654 = vadd.f32 %v1652, %v1653
  %v1655 = vsel %vm264, %v1223, 0.0
  %v1656 = vadd.f32 %v1654, %v1655
  %v1657 = vsel %vm264, %v1224, 0.0
  %v1658 = vadd.f32 %v1656, %v1657
  %v1659 = vsel %vm264, %v1225, 0.0
  %v1660 = vadd.f32 %v1658, %v1659
  %v1661 = vsel %vm264, %v1226, 0.0
  %v1662 = vadd.f32 %v1660, %v1661
  %v1663 = vsel %vm264, %v1227, 0.0
  %v1664 = vadd.f32 %v1662, %v1663
  %v1665 = vsel %vm264, %v1228, 0.0
  %v1666 = vadd.f32 %v1664, %v1665
  %v1667 = vsel %vm264, %v1229, 0.0
  %v1668 = vadd.f32 %v1666, %v1667
  %v1669 = vsel %vm264, %v1230, 0.0
  %v1670 = vadd.f32 %v1668, %v1669
  %v1671 = vsel %vm264, %v1231, 0.0
  %v1672 = vadd.f32 %v1670, %v1671
  %v1673 = vsel %vm264, %v1232, 0.0
  %v1674 = vadd.f32 %v1672, %v1673
  %v1675 = vsel %vm264, %v1233, 0.0
  %v1676 = vadd.f32 %v1674, %v1675
  %v1677 = vsel %vm264, %v1234, 0.0
  %v1678 = vadd.f32 %v1676, %v1677
  %v1679 = vsel %vm264, %v1235, 0.0
  %v1680 = vadd.f32 %v1678, %v1679
  %v1681 = vsel %vm264, %v1236, 0.0
  %v1682 = vadd.f32 %v1680, %v1681
  %v1683 = vsel %vm264, %v1237, 0.0
  %v1684 = vadd.f32 %v1682, %v1683
  %v1685 = vsel %vm264, %v1238, 0.0
  %v1686 = vadd.f32 %v1684, %v1685
  %v1687 = vsel %vm264, %v1239, 0.0
  %v1688 = vadd.f32 %v1686, %v1687
  %v1689 = vsel %vm264, %v1240, 0.0
  %v1690 = vadd.f32 %v1688, %v1689
  %v1691 = vsel %vm264, %v1241, 0.0
  %v1692 = vadd.f32 %v1690, %v1691
  %v1693 = vsel %vm264, %v1242, 0.0
  %v1694 = vadd.f32 %v1692, %v1693
  %v1695 = vsel %vm264, %v1243, 0.0
  %v1696 = vadd.f32 %v1694, %v1695
  %v1697 = vsel %vm264, %v1244, 0.0
  %v1698 = vadd.f32 %v1696, %v1697
  %v1699 = vsel %vm264, %v1245, 0.0
  %v1700 = vadd.f32 %v1698, %v1699
  %v1701 = vsel %vm264, %v1246, 0.0
  %v1702 = vadd.f32 %v1700, %v1701
  %v1703 = vsel %vm264, %v1247, 0.0
  %v1704 = vadd.f32 %v1702, %v1703
  %v1705 = vsel %vm264, %v1248, 0.0
  %v1706 = vadd.f32 %v1704, %v1705
  %v1707 = vsel %vm264, %v1249, 0.0
  %v1708 = vadd.f32 %v1706, %v1707
  %v1709 = vsel %vm264, %v1250, 0.0
  %v1710 = vadd.f32 %v1708, %v1709
  %v1711 = vsel %vm264, %v1251, 0.0
  %v1712 = vadd.f32 %v1710, %v1711
  %v1713 = vsel %vm264, %v1252, 0.0
  %v1714 = vadd.f32 %v1712, %v1713
  %v1715 = vsel %vm264, %v1253, 0.0
  %v1716 = vadd.f32 %v1714, %v1715
  %v1717 = vsel %vm264, %v1254, 0.0
  %v1718 = vadd.f32 %v1716, %v1717
  %v1719 = vsel %vm264, %v1255, 0.0
  %v1720 = vadd.f32 %v1718, %v1719
  %v1721 = vsel %vm264, %v1256, 0.0
  %v1722 = vadd.f32 %v1720, %v1721
  %v1723 = vsel %vm264, %v1257, 0.0
  %v1724 = vadd.f32 %v1722, %v1723
  %v1725 = vsel %vm264, %v1258, 0.0
  %v1726 = vadd.f32 %v1724, %v1725
  %v1727 = vsel %vm264, %v1259, 0.0
  %v1728 = vadd.f32 %v1726, %v1727
  %v1729 = vsel %vm264, %v1260, 0.0
  %v1730 = vadd.f32 %v1728, %v1729
  %v1731 = vsel %vm264, %v1261, 0.0
  %v1732 = vadd.f32 %v1730, %v1731
  %v1733 = vsel %vm264, %v1262, 0.0
  %v1734 = vadd.f32 %v1732, %v1733
  %v1735 = vsel %vm264, %v1263, 0.0
  %v1736 = vadd.f32 %v1734, %v1735
  %v1737 = vsel %vm264, %v1264, 0.0
  %v1738 = vadd.f32 %v1736, %v1737
  %v1739 = vsel %vm264, %v1265, 0.0
  %v1740 = vadd.f32 %v1738, %v1739
  %v1741 = vsel %vm264, %v1266, 0.0
  %v1742 = vadd.f32 %v1740, %v1741
  %v1743 = vsel %vm264, %v1267, 0.0
  %v1744 = vadd.f32 %v1742, %v1743
  %v1745 = vsel %vm264, %v1268, 0.0
  %v1746 = vadd.f32 %v1744, %v1745
  %v1747 = vsel %vm264, %v1269, 0.0
  %v1748 = vadd.f32 %v1746, %v1747
  %v1749 = vsel %vm264, %v1270, 0.0
  %v1750 = vadd.f32 %v1748, %v1749
  %v1751 = vsel %vm264, %v1271, 0.0
  %v1752 = vadd.f32 %v1750, %v1751
  %v1753 = vsel %vm264, %v1272, 0.0
  %v1754 = vadd.f32 %v1752, %v1753
  %v1755 = vsel %vm264, %v1273, 0.0
  %v1756 = vadd.f32 %v1754, %v1755
  %v1757 = vsel %vm264, %v1274, 0.0
  %v1758 = vadd.f32 %v1756, %v1757
  %v1759 = vsel %vm264, %v1275, 0.0
  %v1760 = vadd.f32 %v1758, %v1759
  %v1761 = vsel %vm264, %v1276, 0.0
  %v1762 = vadd.f32 %v1760, %v1761
  %v1763 = vsel %vm264, %v1277, 0.0
  %v1764 = vadd.f32 %v1762, %v1763
  %v1765 = vsel %vm264, %v1278, 0.0
  %v1766 = vadd.f32 %v1764, %v1765
  %v1767 = vsel %vm264, %v1279, 0.0
  %v1768 = vadd.f32 %v1766, %v1767
  %v1769 = vsel %vm264, %v1280, 0.0
  %v1770 = vadd.f32 %v1768, %v1769
  %v1771 = vsel %vm264, %v1281, 0.0
  %v1772 = vadd.f32 %v1770, %v1771
  %v1773 = vsel %vm264, %v1282, 0.0
  %v1774 = vadd.f32 %v1772, %v1773
  %v1775 = vsel %vm264, %v1283, 0.0
  %v1776 = vadd.f32 %v1774, %v1775
  %v1777 = vsel %vm264, %v1284, 0.0
  %v1778 = vadd.f32 %v1776, %v1777
  %v1779 = vsel %vm264, %v1285, 0.0
  %v1780 = vadd.f32 %v1778, %v1779
  %v1781 = vsel %vm264, %v1286, 0.0
  %v1782 = vadd.f32 %v1780, %v1781
  %v1783 = vsel %vm264, %v1287, 0.0
  %v1784 = vadd.f32 %v1782, %v1783
  %v1785 = vsel %vm264, %v1288, 0.0
  %v1786 = vadd.f32 %v1784, %v1785
  %v1787 = vsel %vm264, %v1289, 0.0
  %v1788 = vadd.f32 %v1786, %v1787
  %v1789 = vsel %vm264, %v1290, 0.0
  %v1790 = vadd.f32 %v1788, %v1789
  %v1791 = vsel %vm264, %v1291, 0.0
  %v1792 = vadd.f32 %v1790, %v1791
  %v1793 = vsel %vm264, %v1292, 0.0
  %v1794 = vadd.f32 %v1792, %v1793
  %v1795 = vsel %vm264, %v1293, 0.0
  %v1796 = vadd.f32 %v1794, %v1795
  %v1797 = vsel %vm264, %v1294, 0.0
  %v1798 = vadd.f32 %v1796, %v1797
  %v1799 = vsel %vm264, %v1295, 0.0
  %v1800 = vadd.f32 %v1798, %v1799
  %v1801 = vsel %vm264, %v1296, 0.0
  %v1802 = vadd.f32 %v1800, %v1801
  %v1803 = vsel %vm264, %v1297, 0.0
  %v1804 = vadd.f32 %v1802, %v1803
  %v1805 = vsel %vm264, %v1298, 0.0
  %v1806 = vadd.f32 %v1804, %v1805
  %v1807 = vsel %vm264, %v1299, 0.0
  %v1808 = vadd.f32 %v1806, %v1807
  %v1809 = vsel %vm264, %v1300, 0.0
  %v1810 = vadd.f32 %v1808, %v1809
  %v1811 = vsel %vm264, %v1301, 0.0
  %v1812 = vadd.f32 %v1810, %v1811
  %v1813 = vrot.slane %v1812, 4
  %v1814 = vadd.f32 %v1812, %v1813
  %v1815 = vrot.slane %v1814, 2
  %v1816 = vadd.f32 %v1814, %v1815
  %v1817 = vrot.slane %v1816, 1
  %v1818 = vadd.f32 %v1816, %v1817
  %v1819 = vmul.f32 %v1818, %v788
  %v1820 = vadd.f32 %v1819, 1e-05
  %v1821 = vrsqrt.pop %v1820
  %v1822 = vmul.f32 %v1821, %v1820
  %v1823 = vmul.f32 %v1822, %v1821
  %v1824 = vmul.f32 0.5, %v1823
  %v1825 = vsub.f32 1.5, %v1824
  %v1826 = vmul.f32 %v1821, %v1825
  %vm1827 = vweird.f32 %v1820
  %vm1828 = vweird.f32 %v1821
  %vm1829 = vmor %vm1827, %vm1828
  %v1830 = vsel %vm1829, %v1821, %v1826
  %v1831 = vmul.f32 %v790, %v1830
  %v1832 = vmul.f32 %v791, %v1830
  %v1833 = vmul.f32 %v792, %v1830
  %v1834 = vmul.f32 %v793, %v1830
  %v1835 = vmul.f32 %v794, %v1830
  %v1836 = vmul.f32 %v795, %v1830
  %v1837 = vmul.f32 %v796, %v1830
  %v1838 = vmul.f32 %v797, %v1830
  %v1839 = vmul.f32 %v798, %v1830
  %v1840 = vmul.f32 %v799, %v1830
  %v1841 = vmul.f32 %v800, %v1830
  %v1842 = vmul.f32 %v801, %v1830
  %v1843 = vmul.f32 %v802, %v1830
  %v1844 = vmul.f32 %v803, %v1830
  %v1845 = vmul.f32 %v804, %v1830
  %v1846 = vmul.f32 %v805, %v1830
  %v1847 = vmul.f32 %v806, %v1830
  %v1848 = vmul.f32 %v807, %v1830
  %v1849 = vmul.f32 %v808, %v1830
  %v1850 = vmul.f32 %v809, %v1830
  %v1851 = vmul.f32 %v810, %v1830
  %v1852 = vmul.f32 %v811, %v1830
  %v1853 = vmul.f32 %v812, %v1830
  %v1854 = vmul.f32 %v813, %v1830
  %v1855 = vmul.f32 %v814, %v1830
  %v1856 = vmul.f32 %v815, %v1830
  %v1857 = vmul.f32 %v816, %v1830
  %v1858 = vmul.f32 %v817, %v1830
  %v1859 = vmul.f32 %v818, %v1830
  %v1860 = vmul.f32 %v819, %v1830
  %v1861 = vmul.f32 %v820, %v1830
  %v1862 = vmul.f32 %v821, %v1830
  %v1863 = vmul.f32 %v822, %v1830
  %v1864 = vmul.f32 %v823, %v1830
  %v1865 = vmul.f32 %v824, %v1830
  %v1866 = vmul.f32 %v825, %v1830
  %v1867 = vmul.f32 %v826, %v1830
  %v1868 = vmul.f32 %v827, %v1830
  %v1869 = vmul.f32 %v828, %v1830
  %v1870 = vmul.f32 %v829, %v1830
  %v1871 = vmul.f32 %v830, %v1830
  %v1872 = vmul.f32 %v831, %v1830
  %v1873 = vmul.f32 %v832, %v1830
  %v1874 = vmul.f32 %v833, %v1830
  %v1875 = vmul.f32 %v834, %v1830
  %v1876 = vmul.f32 %v835, %v1830
  %v1877 = vmul.f32 %v836, %v1830
  %v1878 = vmul.f32 %v837, %v1830
  %v1879 = vmul.f32 %v838, %v1830
  %v1880 = vmul.f32 %v839, %v1830
  %v1881 = vmul.f32 %v840, %v1830
  %v1882 = vmul.f32 %v841, %v1830
  %v1883 = vmul.f32 %v842, %v1830
  %v1884 = vmul.f32 %v843, %v1830
  %v1885 = vmul.f32 %v844, %v1830
  %v1886 = vmul.f32 %v845, %v1830
  %v1887 = vmul.f32 %v846, %v1830
  %v1888 = vmul.f32 %v847, %v1830
  %v1889 = vmul.f32 %v848, %v1830
  %v1890 = vmul.f32 %v849, %v1830
  %v1891 = vmul.f32 %v850, %v1830
  %v1892 = vmul.f32 %v851, %v1830
  %v1893 = vmul.f32 %v852, %v1830
  %v1894 = vmul.f32 %v853, %v1830
  %v1895 = vmul.f32 %v854, %v1830
  %v1896 = vmul.f32 %v855, %v1830
  %v1897 = vmul.f32 %v856, %v1830
  %v1898 = vmul.f32 %v857, %v1830
  %v1899 = vmul.f32 %v858, %v1830
  %v1900 = vmul.f32 %v859, %v1830
  %v1901 = vmul.f32 %v860, %v1830
  %v1902 = vmul.f32 %v861, %v1830
  %v1903 = vmul.f32 %v862, %v1830
  %v1904 = vmul.f32 %v863, %v1830
  %v1905 = vmul.f32 %v864, %v1830
  %v1906 = vmul.f32 %v865, %v1830
  %v1907 = vmul.f32 %v866, %v1830
  %v1908 = vmul.f32 %v867, %v1830
  %v1909 = vmul.f32 %v868, %v1830
  %v1910 = vmul.f32 %v869, %v1830
  %v1911 = vmul.f32 %v870, %v1830
  %v1912 = vmul.f32 %v871, %v1830
  %v1913 = vmul.f32 %v872, %v1830
  %v1914 = vmul.f32 %v873, %v1830
  %v1915 = vmul.f32 %v874, %v1830
  %v1916 = vmul.f32 %v875, %v1830
  %v1917 = vmul.f32 %v876, %v1830
  %v1918 = vmul.f32 %v877, %v1830
  %v1919 = vmul.f32 %v878, %v1830
  %v1920 = vmul.f32 %v879, %v1830
  %v1921 = vmul.f32 %v880, %v1830
  %v1922 = vmul.f32 %v881, %v1830
  %v1923 = vmul.f32 %v882, %v1830
  %v1924 = vmul.f32 %v883, %v1830
  %v1925 = vmul.f32 %v884, %v1830
  %v1926 = vmul.f32 %v885, %v1830
  %v1927 = vmul.f32 %v886, %v1830
  %v1928 = vmul.f32 %v887, %v1830
  %v1929 = vmul.f32 %v888, %v1830
  %v1930 = vmul.f32 %v889, %v1830
  %v1931 = vmul.f32 %v890, %v1830
  %v1932 = vmul.f32 %v891, %v1830
  %v1933 = vmul.f32 %v892, %v1830
  %v1934 = vmul.f32 %v893, %v1830
  %v1935 = vmul.f32 %v894, %v1830
  %v1936 = vmul.f32 %v895, %v1830
  %v1937 = vmul.f32 %v896, %v1830
  %v1938 = vmul.f32 %v897, %v1830
  %v1939 = vmul.f32 %v898, %v1830
  %v1940 = vmul.f32 %v899, %v1830
  %v1941 = vmul.f32 %v900, %v1830
  %v1942 = vmul.f32 %v901, %v1830
  %v1943 = vmul.f32 %v902, %v1830
  %v1944 = vmul.f32 %v903, %v1830
  %v1945 = vmul.f32 %v904, %v1830
  %v1946 = vmul.f32 %v905, %v1830
  %v1947 = vmul.f32 %v906, %v1830
  %v1948 = vmul.f32 %v907, %v1830
  %v1949 = vmul.f32 %v908, %v1830
  %v1950 = vmul.f32 %v909, %v1830
  %v1951 = vmul.f32 %v910, %v1830
  %v1952 = vmul.f32 %v911, %v1830
  %v1953 = vmul.f32 %v912, %v1830
  %v1954 = vmul.f32 %v913, %v1830
  %v1955 = vmul.f32 %v914, %v1830
  %v1956 = vmul.f32 %v915, %v1830
  %v1957 = vmul.f32 %v916, %v1830
  %v1958 = vmul.f32 %v917, %v1830
  %v1959 = vmul.f32 %v918, %v1830
  %v1960 = vmul.f32 %v919, %v1830
  %v1961 = vmul.f32 %v920, %v1830
  %v1962 = vmul.f32 %v921, %v1830
  %v1963 = vmul.f32 %v922, %v1830
  %v1964 = vmul.f32 %v923, %v1830
  %v1965 = vmul.f32 %v924, %v1830
  %v1966 = vmul.f32 %v925, %v1830
  %v1967 = vmul.f32 %v926, %v1830
  %v1968 = vmul.f32 %v927, %v1830
  %v1969 = vmul.f32 %v928, %v1830
  %v1970 = vmul.f32 %v929, %v1830
  %v1971 = vmul.f32 %v930, %v1830
  %v1972 = vmul.f32 %v931, %v1830
  %v1973 = vmul.f32 %v932, %v1830
  %v1974 = vmul.f32 %v933, %v1830
  %v1975 = vmul.f32 %v934, %v1830
  %v1976 = vmul.f32 %v935, %v1830
  %v1977 = vmul.f32 %v936, %v1830
  %v1978 = vmul.f32 %v937, %v1830
  %v1979 = vmul.f32 %v938, %v1830
  %v1980 = vmul.f32 %v939, %v1830
  %v1981 = vmul.f32 %v940, %v1830
  %v1982 = vmul.f32 %v941, %v1830
  %v1983 = vmul.f32 %v942, %v1830
  %v1984 = vmul.f32 %v943, %v1830
  %v1985 = vmul.f32 %v944, %v1830
  %v1986 = vmul.f32 %v945, %v1830
  %v1987 = vmul.f32 %v946, %v1830
  %v1988 = vmul.f32 %v947, %v1830
  %v1989 = vmul.f32 %v948, %v1830
  %v1990 = vmul.f32 %v949, %v1830
  %v1991 = vmul.f32 %v950, %v1830
  %v1992 = vmul.f32 %v951, %v1830
  %v1993 = vmul.f32 %v952, %v1830
  %v1994 = vmul.f32 %v953, %v1830
  %v1995 = vmul.f32 %v954, %v1830
  %v1996 = vmul.f32 %v955, %v1830
  %v1997 = vmul.f32 %v956, %v1830
  %v1998 = vmul.f32 %v957, %v1830
  %v1999 = vmul.f32 %v958, %v1830
  %v2000 = vmul.f32 %v959, %v1830
  %v2001 = vmul.f32 %v960, %v1830
  %v2002 = vmul.f32 %v961, %v1830
  %v2003 = vmul.f32 %v962, %v1830
  %v2004 = vmul.f32 %v963, %v1830
  %v2005 = vmul.f32 %v964, %v1830
  %v2006 = vmul.f32 %v965, %v1830
  %v2007 = vmul.f32 %v966, %v1830
  %v2008 = vmul.f32 %v967, %v1830
  %v2009 = vmul.f32 %v968, %v1830
  %v2010 = vmul.f32 %v969, %v1830
  %v2011 = vmul.f32 %v970, %v1830
  %v2012 = vmul.f32 %v971, %v1830
  %v2013 = vmul.f32 %v972, %v1830
  %v2014 = vmul.f32 %v973, %v1830
  %v2015 = vmul.f32 %v974, %v1830
  %v2016 = vmul.f32 %v975, %v1830
  %v2017 = vmul.f32 %v976, %v1830
  %v2018 = vmul.f32 %v977, %v1830
  %v2019 = vmul.f32 %v978, %v1830
  %v2020 = vmul.f32 %v979, %v1830
  %v2021 = vmul.f32 %v980, %v1830
  %v2022 = vmul.f32 %v981, %v1830
  %v2023 = vmul.f32 %v982, %v1830
  %v2024 = vmul.f32 %v983, %v1830
  %v2025 = vmul.f32 %v984, %v1830
  %v2026 = vmul.f32 %v985, %v1830
  %v2027 = vmul.f32 %v986, %v1830
  %v2028 = vmul.f32 %v987, %v1830
  %v2029 = vmul.f32 %v988, %v1830
  %v2030 = vmul.f32 %v989, %v1830
  %v2031 = vmul.f32 %v990, %v1830
  %v2032 = vmul.f32 %v991, %v1830
  %v2033 = vmul.f32 %v992, %v1830
  %v2034 = vmul.f32 %v993, %v1830
  %v2035 = vmul.f32 %v994, %v1830
  %v2036 = vmul.f32 %v995, %v1830
  %v2037 = vmul.f32 %v996, %v1830
  %v2038 = vmul.f32 %v997, %v1830
  %v2039 = vmul.f32 %v998, %v1830
  %v2040 = vmul.f32 %v999, %v1830
  %v2041 = vmul.f32 %v1000, %v1830
  %v2042 = vmul.f32 %v1001, %v1830
  %v2043 = vmul.f32 %v1002, %v1830
  %v2044 = vmul.f32 %v1003, %v1830
  %v2045 = vmul.f32 %v1004, %v1830
  %v2046 = vmul.f32 %v1005, %v1830
  %v2047 = vmul.f32 %v1006, %v1830
  %v2048 = vmul.f32 %v1007, %v1830
  %v2049 = vmul.f32 %v1008, %v1830
  %v2050 = vmul.f32 %v1009, %v1830
  %v2051 = vmul.f32 %v1010, %v1830
  %v2052 = vmul.f32 %v1011, %v1830
  %v2053 = vmul.f32 %v1012, %v1830
  %v2054 = vmul.f32 %v1013, %v1830
  %v2055 = vmul.f32 %v1014, %v1830
  %v2056 = vmul.f32 %v1015, %v1830
  %v2057 = vmul.f32 %v1016, %v1830
  %v2058 = vmul.f32 %v1017, %v1830
  %v2059 = vmul.f32 %v1018, %v1830
  %v2060 = vmul.f32 %v1019, %v1830
  %v2061 = vmul.f32 %v1020, %v1830
  %v2062 = vmul.f32 %v1021, %v1830
  %v2063 = vmul.f32 %v1022, %v1830
  %v2064 = vmul.f32 %v1023, %v1830
  %v2065 = vmul.f32 %v1024, %v1830
  %v2066 = vmul.f32 %v1025, %v1830
  %v2067 = vmul.f32 %v1026, %v1830
  %v2068 = vmul.f32 %v1027, %v1830
  %v2069 = vmul.f32 %v1028, %v1830
  %v2070 = vmul.f32 %v1029, %v1830
  %v2071 = vmul.f32 %v1030, %v1830
  %v2072 = vmul.f32 %v1031, %v1830
  %v2073 = vmul.f32 %v1032, %v1830
  %v2074 = vmul.f32 %v1033, %v1830
  %v2075 = vmul.f32 %v1034, %v1830
  %v2076 = vmul.f32 %v1035, %v1830
  %v2077 = vmul.f32 %v1036, %v1830
  %v2078 = vmul.f32 %v1037, %v1830
  %v2079 = vmul.f32 %v1038, %v1830
  %v2080 = vmul.f32 %v1039, %v1830
  %v2081 = vmul.f32 %v1040, %v1830
  %v2082 = vmul.f32 %v1041, %v1830
  %v2083 = vmul.f32 %v1042, %v1830
  %v2084 = vmul.f32 %v1043, %v1830
  %v2085 = vmul.f32 %v1044, %v1830
  %v2086 = vmul.f32 %v1045, %v1830
  %v2087 = vmax.f32 %v1831, 0.0
  %v2088 = vmax.f32 %v1832, 0.0
  %v2089 = vmax.f32 %v1833, 0.0
  %v2090 = vmax.f32 %v1834, 0.0
  %v2091 = vmax.f32 %v1835, 0.0
  %v2092 = vmax.f32 %v1836, 0.0
  %v2093 = vmax.f32 %v1837, 0.0
  %v2094 = vmax.f32 %v1838, 0.0
  %v2095 = vmax.f32 %v1839, 0.0
  %v2096 = vmax.f32 %v1840, 0.0
  %v2097 = vmax.f32 %v1841, 0.0
  %v2098 = vmax.f32 %v1842, 0.0
  %v2099 = vmax.f32 %v1843, 0.0
  %v2100 = vmax.f32 %v1844, 0.0
  %v2101 = vmax.f32 %v1845, 0.0
  %v2102 = vmax.f32 %v1846, 0.0
  %v2103 = vmax.f32 %v1847, 0.0
  %v2104 = vmax.f32 %v1848, 0.0
  %v2105 = vmax.f32 %v1849, 0.0
  %v2106 = vmax.f32 %v1850, 0.0
  %v2107 = vmax.f32 %v1851, 0.0
  %v2108 = vmax.f32 %v1852, 0.0
  %v2109 = vmax.f32 %v1853, 0.0
  %v2110 = vmax.f32 %v1854, 0.0
  %v2111 = vmax.f32 %v1855, 0.0
  %v2112 = vmax.f32 %v1856, 0.0
  %v2113 = vmax.f32 %v1857, 0.0
  %v2114 = vmax.f32 %v1858, 0.0
  %v2115 = vmax.f32 %v1859, 0.0
  %v2116 = vmax.f32 %v1860, 0.0
  %v2117 = vmax.f32 %v1861, 0.0
  %v2118 = vmax.f32 %v1862, 0.0
  %v2119 = vmax.f32 %v1863, 0.0
  %v2120 = vmax.f32 %v1864, 0.0
  %v2121 = vmax.f32 %v1865, 0.0
  %v2122 = vmax.f32 %v1866, 0.0
  %v2123 = vmax.f32 %v1867, 0.0
  %v2124 = vmax.f32 %v1868, 0.0
  %v2125 = vmax.f32 %v1869, 0.0
  %v2126 = vmax.f32 %v1870, 0.0
  %v2127 = vmax.f32 %v1871, 0.0
  %v2128 = vmax.f32 %v1872, 0.0
  %v2129 = vmax.f32 %v1873, 0.0
  %v2130 = vmax.f32 %v1874, 0.0
  %v2131 = vmax.f32 %v1875, 0.0
  %v2132 = vmax.f32 %v1876, 0.0
  %v2133 = vmax.f32 %v1877, 0.0
  %v2134 = vmax.f32 %v1878, 0.0
  %v2135 = vmax.f32 %v1879, 0.0
  %v2136 = vmax.f32 %v1880, 0.0
  %v2137 = vmax.f32 %v1881, 0.0
  %v2138 = vmax.f32 %v1882, 0.0
  %v2139 = vmax.f32 %v1883, 0.0
  %v2140 = vmax.f32 %v1884, 0.0
  %v2141 = vmax.f32 %v1885, 0.0
  %v2142 = vmax.f32 %v1886, 0.0
  %v2143 = vmax.f32 %v1887, 0.0
  %v2144 = vmax.f32 %v1888, 0.0
  %v2145 = vmax.f32 %v1889, 0.0
  %v2146 = vmax.f32 %v1890, 0.0
  %v2147 = vmax.f32 %v1891, 0.0
  %v2148 = vmax.f32 %v1892, 0.0
  %v2149 = vmax.f32 %v1893, 0.0
  %v2150 = vmax.f32 %v1894, 0.0
  %v2151 = vmax.f32 %v1895, 0.0
  %v2152 = vmax.f32 %v1896, 0.0
  %v2153 = vmax.f32 %v1897, 0.0
  %v2154 = vmax.f32 %v1898, 0.0
  %v2155 = vmax.f32 %v1899, 0.0
  %v2156 = vmax.f32 %v1900, 0.0
  %v2157 = vmax.f32 %v1901, 0.0
  %v2158 = vmax.f32 %v1902, 0.0
  %v2159 = vmax.f32 %v1903, 0.0
  %v2160 = vmax.f32 %v1904, 0.0
  %v2161 = vmax.f32 %v1905, 0.0
  %v2162 = vmax.f32 %v1906, 0.0
  %v2163 = vmax.f32 %v1907, 0.0
  %v2164 = vmax.f32 %v1908, 0.0
  %v2165 = vmax.f32 %v1909, 0.0
  %v2166 = vmax.f32 %v1910, 0.0
  %v2167 = vmax.f32 %v1911, 0.0
  %v2168 = vmax.f32 %v1912, 0.0
  %v2169 = vmax.f32 %v1913, 0.0
  %v2170 = vmax.f32 %v1914, 0.0
  %v2171 = vmax.f32 %v1915, 0.0
  %v2172 = vmax.f32 %v1916, 0.0
  %v2173 = vmax.f32 %v1917, 0.0
  %v2174 = vmax.f32 %v1918, 0.0
  %v2175 = vmax.f32 %v1919, 0.0
  %v2176 = vmax.f32 %v1920, 0.0
  %v2177 = vmax.f32 %v1921, 0.0
  %v2178 = vmax.f32 %v1922, 0.0
  %v2179 = vmax.f32 %v1923, 0.0
  %v2180 = vmax.f32 %v1924, 0.0
  %v2181 = vmax.f32 %v1925, 0.0
  %v2182 = vmax.f32 %v1926, 0.0
  %v2183 = vmax.f32 %v1927, 0.0
  %v2184 = vmax.f32 %v1928, 0.0
  %v2185 = vmax.f32 %v1929, 0.0
  %v2186 = vmax.f32 %v1930, 0.0
  %v2187 = vmax.f32 %v1931, 0.0
  %v2188 = vmax.f32 %v1932, 0.0
  %v2189 = vmax.f32 %v1933, 0.0
  %v2190 = vmax.f32 %v1934, 0.0
  %v2191 = vmax.f32 %v1935, 0.0
  %v2192 = vmax.f32 %v1936, 0.0
  %v2193 = vmax.f32 %v1937, 0.0
  %v2194 = vmax.f32 %v1938, 0.0
  %v2195 = vmax.f32 %v1939, 0.0
  %v2196 = vmax.f32 %v1940, 0.0
  %v2197 = vmax.f32 %v1941, 0.0
  %v2198 = vmax.f32 %v1942, 0.0
  %v2199 = vmax.f32 %v1943, 0.0
  %v2200 = vmax.f32 %v1944, 0.0
  %v2201 = vmax.f32 %v1945, 0.0
  %v2202 = vmax.f32 %v1946, 0.0
  %v2203 = vmax.f32 %v1947, 0.0
  %v2204 = vmax.f32 %v1948, 0.0
  %v2205 = vmax.f32 %v1949, 0.0
  %v2206 = vmax.f32 %v1950, 0.0
  %v2207 = vmax.f32 %v1951, 0.0
  %v2208 = vmax.f32 %v1952, 0.0
  %v2209 = vmax.f32 %v1953, 0.0
  %v2210 = vmax.f32 %v1954, 0.0
  %v2211 = vmax.f32 %v1955, 0.0
  %v2212 = vmax.f32 %v1956, 0.0
  %v2213 = vmax.f32 %v1957, 0.0
  %v2214 = vmax.f32 %v1958, 0.0
  %v2215 = vmax.f32 %v1959, 0.0
  %v2216 = vmax.f32 %v1960, 0.0
  %v2217 = vmax.f32 %v1961, 0.0
  %v2218 = vmax.f32 %v1962, 0.0
  %v2219 = vmax.f32 %v1963, 0.0
  %v2220 = vmax.f32 %v1964, 0.0
  %v2221 = vmax.f32 %v1965, 0.0
  %v2222 = vmax.f32 %v1966, 0.0
  %v2223 = vmax.f32 %v1967, 0.0
  %v2224 = vmax.f32 %v1968, 0.0
  %v2225 = vmax.f32 %v1969, 0.0
  %v2226 = vmax.f32 %v1970, 0.0
  %v2227 = vmax.f32 %v1971, 0.0
  %v2228 = vmax.f32 %v1972, 0.0
  %v2229 = vmax.f32 %v1973, 0.0
  %v2230 = vmax.f32 %v1974, 0.0
  %v2231 = vmax.f32 %v1975, 0.0
  %v2232 = vmax.f32 %v1976, 0.0
  %v2233 = vmax.f32 %v1977, 0.0
  %v2234 = vmax.f32 %v1978, 0.0
  %v2235 = vmax.f32 %v1979, 0.0
  %v2236 = vmax.f32 %v1980, 0.0
  %v2237 = vmax.f32 %v1981, 0.0
  %v2238 = vmax.f32 %v1982, 0.0
  %v2239 = vmax.f32 %v1983, 0.0
  %v2240 = vmax.f32 %v1984, 0.0
  %v2241 = vmax.f32 %v1985, 0.0
  %v2242 = vmax.f32 %v1986, 0.0
  %v2243 = vmax.f32 %v1987, 0.0
  %v2244 = vmax.f32 %v1988, 0.0
  %v2245 = vmax.f32 %v1989, 0.0
  %v2246 = vmax.f32 %v1990, 0.0
  %v2247 = vmax.f32 %v1991, 0.0
  %v2248 = vmax.f32 %v1992, 0.0
  %v2249 = vmax.f32 %v1993, 0.0
  %v2250 = vmax.f32 %v1994, 0.0
  %v2251 = vmax.f32 %v1995, 0.0
  %v2252 = vmax.f32 %v1996, 0.0
  %v2253 = vmax.f32 %v1997, 0.0
  %v2254 = vmax.f32 %v1998, 0.0
  %v2255 = vmax.f32 %v1999, 0.0
  %v2256 = vmax.f32 %v2000, 0.0
  %v2257 = vmax.f32 %v2001, 0.0
  %v2258 = vmax.f32 %v2002, 0.0
  %v2259 = vmax.f32 %v2003, 0.0
  %v2260 = vmax.f32 %v2004, 0.0
  %v2261 = vmax.f32 %v2005, 0.0
  %v2262 = vmax.f32 %v2006, 0.0
  %v2263 = vmax.f32 %v2007, 0.0
  %v2264 = vmax.f32 %v2008, 0.0
  %v2265 = vmax.f32 %v2009, 0.0
  %v2266 = vmax.f32 %v2010, 0.0
  %v2267 = vmax.f32 %v2011, 0.0
  %v2268 = vmax.f32 %v2012, 0.0
  %v2269 = vmax.f32 %v2013, 0.0
  %v2270 = vmax.f32 %v2014, 0.0
  %v2271 = vmax.f32 %v2015, 0.0
  %v2272 = vmax.f32 %v2016, 0.0
  %v2273 = vmax.f32 %v2017, 0.0
  %v2274 = vmax.f32 %v2018, 0.0
  %v2275 = vmax.f32 %v2019, 0.0
  %v2276 = vmax.f32 %v2020, 0.0
  %v2277 = vmax.f32 %v2021, 0.0
  %v2278 = vmax.f32 %v2022, 0.0
  %v2279 = vmax.f32 %v2023, 0.0
  %v2280 = vmax.f32 %v2024, 0.0
  %v2281 = vmax.f32 %v2025, 0.0
  %v2282 = vmax.f32 %v2026, 0.0
  %v2283 = vmax.f32 %v2027, 0.0
  %v2284 = vmax.f32 %v2028, 0.0
  %v2285 = vmax.f32 %v2029, 0.0
  %v2286 = vmax.f32 %v2030, 0.0
  %v2287 = vmax.f32 %v2031, 0.0
  %v2288 = vmax.f32 %v2032, 0.0
  %v2289 = vmax.f32 %v2033, 0.0
  %v2290 = vmax.f32 %v2034, 0.0
  %v2291 = vmax.f32 %v2035, 0.0
  %v2292 = vmax.f32 %v2036, 0.0
  %v2293 = vmax.f32 %v2037, 0.0
  %v2294 = vmax.f32 %v2038, 0.0
  %v2295 = vmax.f32 %v2039, 0.0
  %v2296 = vmax.f32 %v2040, 0.0
  %v2297 = vmax.f32 %v2041, 0.0
  %v2298 = vmax.f32 %v2042, 0.0
  %v2299 = vmax.f32 %v2043, 0.0
  %v2300 = vmax.f32 %v2044, 0.0
  %v2301 = vmax.f32 %v2045, 0.0
  %v2302 = vmax.f32 %v2046, 0.0
  %v2303 = vmax.f32 %v2047, 0.0
  %v2304 = vmax.f32 %v2048, 0.0
  %v2305 = vmax.f32 %v2049, 0.0
  %v2306 = vmax.f32 %v2050, 0.0
  %v2307 = vmax.f32 %v2051, 0.0
  %v2308 = vmax.f32 %v2052, 0.0
  %v2309 = vmax.f32 %v2053, 0.0
  %v2310 = vmax.f32 %v2054, 0.0
  %v2311 = vmax.f32 %v2055, 0.0
  %v2312 = vmax.f32 %v2056, 0.0
  %v2313 = vmax.f32 %v2057, 0.0
  %v2314 = vmax.f32 %v2058, 0.0
  %v2315 = vmax.f32 %v2059, 0.0
  %v2316 = vmax.f32 %v2060, 0.0
  %v2317 = vmax.f32 %v2061, 0.0
  %v2318 = vmax.f32 %v2062, 0.0
  %v2319 = vmax.f32 %v2063, 0.0
  %v2320 = vmax.f32 %v2064, 0.0
  %v2321 = vmax.f32 %v2065, 0.0
  %v2322 = vmax.f32 %v2066, 0.0
  %v2323 = vmax.f32 %v2067, 0.0
  %v2324 = vmax.f32 %v2068, 0.0
  %v2325 = vmax.f32 %v2069, 0.0
  %v2326 = vmax.f32 %v2070, 0.0
  %v2327 = vmax.f32 %v2071, 0.0
  %v2328 = vmax.f32 %v2072, 0.0
  %v2329 = vmax.f32 %v2073, 0.0
  %v2330 = vmax.f32 %v2074, 0.0
  %v2331 = vmax.f32 %v2075, 0.0
  %v2332 = vmax.f32 %v2076, 0.0
  %v2333 = vmax.f32 %v2077, 0.0
  %v2334 = vmax.f32 %v2078, 0.0
  %v2335 = vmax.f32 %v2079, 0.0
  %v2336 = vmax.f32 %v2080, 0.0
  %v2337 = vmax.f32 %v2081, 0.0
  %v2338 = vmax.f32 %v2082, 0.0
  %v2339 = vmax.f32 %v2083, 0.0
  %v2340 = vmax.f32 %v2084, 0.0
  %v2341 = vmax.f32 %v2085, 0.0
  %v2342 = vmax.f32 %v2086, 0.0
  %v2343 = vpack.c.bf16 %v2087, %v2087
  %v2344 = vpack.c.bf16 %v2088, %v2088
  %v2345 = vpack.c.bf16 %v2089, %v2089
  %v2346 = vpack.c.bf16 %v2090, %v2090
  %v2347 = vpack.c.bf16 %v2091, %v2091
  %v2348 = vpack.c.bf16 %v2092, %v2092
  %v2349 = vpack.c.bf16 %v2093, %v2093
  %v2350 = vpack.c.bf16 %v2094, %v2094
  %v2351 = vpack.c.bf16 %v2095, %v2095
  %v2352 = vpack.c.bf16 %v2096, %v2096
  %v2353 = vpack.c.bf16 %v2097, %v2097
  %v2354 = vpack.c.bf16 %v2098, %v2098
  %v2355 = vpack.c.bf16 %v2099, %v2099
  %v2356 = vpack.c.bf16 %v2100, %v2100
  %v2357 = vpack.c.bf16 %v2101, %v2101
  %v2358 = vpack.c.bf16 %v2102, %v2102
  %v2359 = vpack.c.bf16 %v2103, %v2103
  %v2360 = vpack.c.bf16 %v2104, %v2104
  %v2361 = vpack.c.bf16 %v2105, %v2105
  %v2362 = vpack.c.bf16 %v2106, %v2106
  %v2363 = vpack.c.bf16 %v2107, %v2107
  %v2364 = vpack.c.bf16 %v2108, %v2108
  %v2365 = vpack.c.bf16 %v2109, %v2109
  %v2366 = vpack.c.bf16 %v2110, %v2110
  %v2367 = vpack.c.bf16 %v2111, %v2111
  %v2368 = vpack.c.bf16 %v2112, %v2112
  %v2369 = vpack.c.bf16 %v2113, %v2113
  %v2370 = vpack.c.bf16 %v2114, %v2114
  %v2371 = vpack.c.bf16 %v2115, %v2115
  %v2372 = vpack.c.bf16 %v2116, %v2116
  %v2373 = vpack.c.bf16 %v2117, %v2117
  %v2374 = vpack.c.bf16 %v2118, %v2118
  %v2375 = vpack.c.bf16 %v2119, %v2119
  %v2376 = vpack.c.bf16 %v2120, %v2120
  %v2377 = vpack.c.bf16 %v2121, %v2121
  %v2378 = vpack.c.bf16 %v2122, %v2122
  %v2379 = vpack.c.bf16 %v2123, %v2123
  %v2380 = vpack.c.bf16 %v2124, %v2124
  %v2381 = vpack.c.bf16 %v2125, %v2125
  %v2382 = vpack.c.bf16 %v2126, %v2126
  %v2383 = vpack.c.bf16 %v2127, %v2127
  %v2384 = vpack.c.bf16 %v2128, %v2128
  %v2385 = vpack.c.bf16 %v2129, %v2129
  %v2386 = vpack.c.bf16 %v2130, %v2130
  %v2387 = vpack.c.bf16 %v2131, %v2131
  %v2388 = vpack.c.bf16 %v2132, %v2132
  %v2389 = vpack.c.bf16 %v2133, %v2133
  %v2390 = vpack.c.bf16 %v2134, %v2134
  %v2391 = vpack.c.bf16 %v2135, %v2135
  %v2392 = vpack.c.bf16 %v2136, %v2136
  %v2393 = vpack.c.bf16 %v2137, %v2137
  %v2394 = vpack.c.bf16 %v2138, %v2138
  %v2395 = vpack.c.bf16 %v2139, %v2139
  %v2396 = vpack.c.bf16 %v2140, %v2140
  %v2397 = vpack.c.bf16 %v2141, %v2141
  %v2398 = vpack.c.bf16 %v2142, %v2142
  %v2399 = vpack.c.bf16 %v2143, %v2143
  %v2400 = vpack.c.bf16 %v2144, %v2144
  %v2401 = vpack.c.bf16 %v2145, %v2145
  %v2402 = vpack.c.bf16 %v2146, %v2146
  %v2403 = vpack.c.bf16 %v2147, %v2147
  %v2404 = vpack.c.bf16 %v2148, %v2148
  %v2405 = vpack.c.bf16 %v2149, %v2149
  %v2406 = vpack.c.bf16 %v2150, %v2150
  %v2407 = vpack.c.bf16 %v2151, %v2151
  %v2408 = vpack.c.bf16 %v2152, %v2152
  %v2409 = vpack.c.bf16 %v2153, %v2153
  %v2410 = vpack.c.bf16 %v2154, %v2154
  %v2411 = vpack.c.bf16 %v2155, %v2155
  %v2412 = vpack.c.bf16 %v2156, %v2156
  %v2413 = vpack.c.bf16 %v2157, %v2157
  %v2414 = vpack.c.bf16 %v2158, %v2158
  %v2415 = vpack.c.bf16 %v2159, %v2159
  %v2416 = vpack.c.bf16 %v2160, %v2160
  %v2417 = vpack.c.bf16 %v2161, %v2161
  %v2418 = vpack.c.bf16 %v2162, %v2162
  %v2419 = vpack.c.bf16 %v2163, %v2163
  %v2420 = vpack.c.bf16 %v2164, %v2164
  %v2421 = vpack.c.bf16 %v2165, %v2165
  %v2422 = vpack.c.bf16 %v2166, %v2166
  %v2423 = vpack.c.bf16 %v2167, %v2167
  %v2424 = vpack.c.bf16 %v2168, %v2168
  %v2425 = vpack.c.bf16 %v2169, %v2169
  %v2426 = vpack.c.bf16 %v2170, %v2170
  %v2427 = vpack.c.bf16 %v2171, %v2171
  %v2428 = vpack.c.bf16 %v2172, %v2172
  %v2429 = vpack.c.bf16 %v2173, %v2173
  %v2430 = vpack.c.bf16 %v2174, %v2174
  %v2431 = vpack.c.bf16 %v2175, %v2175
  %v2432 = vpack.c.bf16 %v2176, %v2176
  %v2433 = vpack.c.bf16 %v2177, %v2177
  %v2434 = vpack.c.bf16 %v2178, %v2178
  %v2435 = vpack.c.bf16 %v2179, %v2179
  %v2436 = vpack.c.bf16 %v2180, %v2180
  %v2437 = vpack.c.bf16 %v2181, %v2181
  %v2438 = vpack.c.bf16 %v2182, %v2182
  %v2439 = vpack.c.bf16 %v2183, %v2183
  %v2440 = vpack.c.bf16 %v2184, %v2184
  %v2441 = vpack.c.bf16 %v2185, %v2185
  %v2442 = vpack.c.bf16 %v2186, %v2186
  %v2443 = vpack.c.bf16 %v2187, %v2187
  %v2444 = vpack.c.bf16 %v2188, %v2188
  %v2445 = vpack.c.bf16 %v2189, %v2189
  %v2446 = vpack.c.bf16 %v2190, %v2190
  %v2447 = vpack.c.bf16 %v2191, %v2191
  %v2448 = vpack.c.bf16 %v2192, %v2192
  %v2449 = vpack.c.bf16 %v2193, %v2193
  %v2450 = vpack.c.bf16 %v2194, %v2194
  %v2451 = vpack.c.bf16 %v2195, %v2195
  %v2452 = vpack.c.bf16 %v2196, %v2196
  %v2453 = vpack.c.bf16 %v2197, %v2197
  %v2454 = vpack.c.bf16 %v2198, %v2198
  %v2455 = vpack.c.bf16 %v2199, %v2199
  %v2456 = vpack.c.bf16 %v2200, %v2200
  %v2457 = vpack.c.bf16 %v2201, %v2201
  %v2458 = vpack.c.bf16 %v2202, %v2202
  %v2459 = vpack.c.bf16 %v2203, %v2203
  %v2460 = vpack.c.bf16 %v2204, %v2204
  %v2461 = vpack.c.bf16 %v2205, %v2205
  %v2462 = vpack.c.bf16 %v2206, %v2206
  %v2463 = vpack.c.bf16 %v2207, %v2207
  %v2464 = vpack.c.bf16 %v2208, %v2208
  %v2465 = vpack.c.bf16 %v2209, %v2209
  %v2466 = vpack.c.bf16 %v2210, %v2210
  %v2467 = vpack.c.bf16 %v2211, %v2211
  %v2468 = vpack.c.bf16 %v2212, %v2212
  %v2469 = vpack.c.bf16 %v2213, %v2213
  %v2470 = vpack.c.bf16 %v2214, %v2214
  %v2471 = vpack.c.bf16 %v2215, %v2215
  %v2472 = vpack.c.bf16 %v2216, %v2216
  %v2473 = vpack.c.bf16 %v2217, %v2217
  %v2474 = vpack.c.bf16 %v2218, %v2218
  %v2475 = vpack.c.bf16 %v2219, %v2219
  %v2476 = vpack.c.bf16 %v2220, %v2220
  %v2477 = vpack.c.bf16 %v2221, %v2221
  %v2478 = vpack.c.bf16 %v2222, %v2222
  %v2479 = vpack.c.bf16 %v2223, %v2223
  %v2480 = vpack.c.bf16 %v2224, %v2224
  %v2481 = vpack.c.bf16 %v2225, %v2225
  %v2482 = vpack.c.bf16 %v2226, %v2226
  %v2483 = vpack.c.bf16 %v2227, %v2227
  %v2484 = vpack.c.bf16 %v2228, %v2228
  %v2485 = vpack.c.bf16 %v2229, %v2229
  %v2486 = vpack.c.bf16 %v2230, %v2230
  %v2487 = vpack.c.bf16 %v2231, %v2231
  %v2488 = vpack.c.bf16 %v2232, %v2232
  %v2489 = vpack.c.bf16 %v2233, %v2233
  %v2490 = vpack.c.bf16 %v2234, %v2234
  %v2491 = vpack.c.bf16 %v2235, %v2235
  %v2492 = vpack.c.bf16 %v2236, %v2236
  %v2493 = vpack.c.bf16 %v2237, %v2237
  %v2494 = vpack.c.bf16 %v2238, %v2238
  %v2495 = vpack.c.bf16 %v2239, %v2239
  %v2496 = vpack.c.bf16 %v2240, %v2240
  %v2497 = vpack.c.bf16 %v2241, %v2241
  %v2498 = vpack.c.bf16 %v2242, %v2242
  %v2499 = vpack.c.bf16 %v2243, %v2243
  %v2500 = vpack.c.bf16 %v2244, %v2244
  %v2501 = vpack.c.bf16 %v2245, %v2245
  %v2502 = vpack.c.bf16 %v2246, %v2246
  %v2503 = vpack.c.bf16 %v2247, %v2247
  %v2504 = vpack.c.bf16 %v2248, %v2248
  %v2505 = vpack.c.bf16 %v2249, %v2249
  %v2506 = vpack.c.bf16 %v2250, %v2250
  %v2507 = vpack.c.bf16 %v2251, %v2251
  %v2508 = vpack.c.bf16 %v2252, %v2252
  %v2509 = vpack.c.bf16 %v2253, %v2253
  %v2510 = vpack.c.bf16 %v2254, %v2254
  %v2511 = vpack.c.bf16 %v2255, %v2255
  %v2512 = vpack.c.bf16 %v2256, %v2256
  %v2513 = vpack.c.bf16 %v2257, %v2257
  %v2514 = vpack.c.bf16 %v2258, %v2258
  %v2515 = vpack.c.bf16 %v2259, %v2259
  %v2516 = vpack.c.bf16 %v2260, %v2260
  %v2517 = vpack.c.bf16 %v2261, %v2261
  %v2518 = vpack.c.bf16 %v2262, %v2262
  %v2519 = vpack.c.bf16 %v2263, %v2263
  %v2520 = vpack.c.bf16 %v2264, %v2264
  %v2521 = vpack.c.bf16 %v2265, %v2265
  %v2522 = vpack.c.bf16 %v2266, %v2266
  %v2523 = vpack.c.bf16 %v2267, %v2267
  %v2524 = vpack.c.bf16 %v2268, %v2268
  %v2525 = vpack.c.bf16 %v2269, %v2269
  %v2526 = vpack.c.bf16 %v2270, %v2270
  %v2527 = vpack.c.bf16 %v2271, %v2271
  %v2528 = vpack.c.bf16 %v2272, %v2272
  %v2529 = vpack.c.bf16 %v2273, %v2273
  %v2530 = vpack.c.bf16 %v2274, %v2274
  %v2531 = vpack.c.bf16 %v2275, %v2275
  %v2532 = vpack.c.bf16 %v2276, %v2276
  %v2533 = vpack.c.bf16 %v2277, %v2277
  %v2534 = vpack.c.bf16 %v2278, %v2278
  %v2535 = vpack.c.bf16 %v2279, %v2279
  %v2536 = vpack.c.bf16 %v2280, %v2280
  %v2537 = vpack.c.bf16 %v2281, %v2281
  %v2538 = vpack.c.bf16 %v2282, %v2282
  %v2539 = vpack.c.bf16 %v2283, %v2283
  %v2540 = vpack.c.bf16 %v2284, %v2284
  %v2541 = vpack.c.bf16 %v2285, %v2285
  %v2542 = vpack.c.bf16 %v2286, %v2286
  %v2543 = vpack.c.bf16 %v2287, %v2287
  %v2544 = vpack.c.bf16 %v2288, %v2288
  %v2545 = vpack.c.bf16 %v2289, %v2289
  %v2546 = vpack.c.bf16 %v2290, %v2290
  %v2547 = vpack.c.bf16 %v2291, %v2291
  %v2548 = vpack.c.bf16 %v2292, %v2292
  %v2549 = vpack.c.bf16 %v2293, %v2293
  %v2550 = vpack.c.bf16 %v2294, %v2294
  %v2551 = vpack.c.bf16 %v2295, %v2295
  %v2552 = vpack.c.bf16 %v2296, %v2296
  %v2553 = vpack.c.bf16 %v2297, %v2297
  %v2554 = vpack.c.bf16 %v2298, %v2298
  %v2555 = vpack.c.bf16 %v2299, %v2299
  %v2556 = vpack.c.bf16 %v2300, %v2300
  %v2557 = vpack.c.bf16 %v2301, %v2301
  %v2558 = vpack.c.bf16 %v2302, %v2302
  %v2559 = vpack.c.bf16 %v2303, %v2303
  %v2560 = vpack.c.bf16 %v2304, %v2304
  %v2561 = vpack.c.bf16 %v2305, %v2305
  %v2562 = vpack.c.bf16 %v2306, %v2306
  %v2563 = vpack.c.bf16 %v2307, %v2307
  %v2564 = vpack.c.bf16 %v2308, %v2308
  %v2565 = vpack.c.bf16 %v2309, %v2309
  %v2566 = vpack.c.bf16 %v2310, %v2310
  %v2567 = vpack.c.bf16 %v2311, %v2311
  %v2568 = vpack.c.bf16 %v2312, %v2312
  %v2569 = vpack.c.bf16 %v2313, %v2313
  %v2570 = vpack.c.bf16 %v2314, %v2314
  %v2571 = vpack.c.bf16 %v2315, %v2315
  %v2572 = vpack.c.bf16 %v2316, %v2316
  %v2573 = vpack.c.bf16 %v2317, %v2317
  %v2574 = vpack.c.bf16 %v2318, %v2318
  %v2575 = vpack.c.bf16 %v2319, %v2319
  %v2576 = vpack.c.bf16 %v2320, %v2320
  %v2577 = vpack.c.bf16 %v2321, %v2321
  %v2578 = vpack.c.bf16 %v2322, %v2322
  %v2579 = vpack.c.bf16 %v2323, %v2323
  %v2580 = vpack.c.bf16 %v2324, %v2324
  %v2581 = vpack.c.bf16 %v2325, %v2325
  %v2582 = vpack.c.bf16 %v2326, %v2326
  %v2583 = vpack.c.bf16 %v2327, %v2327
  %v2584 = vpack.c.bf16 %v2328, %v2328
  %v2585 = vpack.c.bf16 %v2329, %v2329
  %v2586 = vpack.c.bf16 %v2330, %v2330
  %v2587 = vpack.c.bf16 %v2331, %v2331
  %v2588 = vpack.c.bf16 %v2332, %v2332
  %v2589 = vpack.c.bf16 %v2333, %v2333
  %v2590 = vpack.c.bf16 %v2334, %v2334
  %v2591 = vpack.c.bf16 %v2335, %v2335
  %v2592 = vpack.c.bf16 %v2336, %v2336
  %v2593 = vpack.c.bf16 %v2337, %v2337
  %v2594 = vpack.c.bf16 %v2338, %v2338
  %v2595 = vpack.c.bf16 %v2339, %v2339
  %v2596 = vpack.c.bf16 %v2340, %v2340
  %v2597 = vpack.c.bf16 %v2341, %v2341
  %v2598 = vpack.c.bf16 %v2342, %v2342
  %vm2599 = vcmask 519168
  %2600 = vst.msk [vmem:[%s1] sm:$0xf] %vm2599, %v2343
  %2601 = vst.msk [vmem:[%s1 + $0x4] sm:$0xf] %vm2599, %v2344
  %2602 = vst.msk [vmem:[%s1 + $0x8] sm:$0xf] %vm2599, %v2345
  %2603 = vst.msk [vmem:[%s1 + $0xc] sm:$0xf] %vm2599, %v2346
  %2604 = vst.msk [vmem:[%s1 + $0x10] sm:$0xf] %vm2599, %v2347
  %2605 = vst.msk [vmem:[%s1 + $0x14] sm:$0xf] %vm2599, %v2348
  %2606 = vst.msk [vmem:[%s1 + $0x18] sm:$0xf] %vm2599, %v2349
  %2607 = vst.msk [vmem:[%s1 + $0x1c] sm:$0xf] %vm2599, %v2350
  %2608 = vst.msk [vmem:[%s1 + $0x20] sm:$0xf] %vm2599, %v2351
  %2609 = vst.msk [vmem:[%s1 + $0x24] sm:$0xf] %vm2599, %v2352
  %2610 = vst.msk [vmem:[%s1 + $0x28] sm:$0xf] %vm2599, %v2353
  %2611 = vst.msk [vmem:[%s1 + $0x2c] sm:$0xf] %vm2599, %v2354
  %2612 = vst.msk [vmem:[%s1 + $0x30] sm:$0xf] %vm2599, %v2355
  %2613 = vst.msk [vmem:[%s1 + $0x34] sm:$0xf] %vm2599, %v2356
  %2614 = vst.msk [vmem:[%s1 + $0x38] sm:$0xf] %vm2599, %v2357
  %2615 = vst.msk [vmem:[%s1 + $0x3c] sm:$0xf] %vm2599, %v2358
  %2616 = vst.msk [vmem:[%s1 + $0x40] sm:$0xf] %vm2599, %v2359
  %2617 = vst.msk [vmem:[%s1 + $0x44] sm:$0xf] %vm2599, %v2360
  %2618 = vst.msk [vmem:[%s1 + $0x48] sm:$0xf] %vm2599, %v2361
  %2619 = vst.msk [vmem:[%s1 + $0x4c] sm:$0xf] %vm2599, %v2362
  %2620 = vst.msk [vmem:[%s1 + $0x50] sm:$0xf] %vm2599, %v2363
  %2621 = vst.msk [vmem:[%s1 + $0x54] sm:$0xf] %vm2599, %v2364
  %2622 = vst.msk [vmem:[%s1 + $0x58] sm:$0xf] %vm2599, %v2365
  %2623 = vst.msk [vmem:[%s1 + $0x5c] sm:$0xf] %vm2599, %v2366
  %2624 = vst.msk [vmem:[%s1 + $0x60] sm:$0xf] %vm2599, %v2367
  %2625 = vst.msk [vmem:[%s1 + $0x64] sm:$0xf] %vm2599, %v2368
  %2626 = vst.msk [vmem:[%s1 + $0x68] sm:$0xf] %vm2599, %v2369
  %2627 = vst.msk [vmem:[%s1 + $0x6c] sm:$0xf] %vm2599, %v2370
  %2628 = vst.msk [vmem:[%s1 + $0x70] sm:$0xf] %vm2599, %v2371
  %2629 = vst.msk [vmem:[%s1 + $0x74] sm:$0xf] %vm2599, %v2372
  %2630 = vst.msk [vmem:[%s1 + $0x78] sm:$0xf] %vm2599, %v2373
  %2631 = vst.msk [vmem:[%s1 + $0x7c] sm:$0xf] %vm2599, %v2374
  %2632 = vst.msk [vmem:[%s1 + $0x80] sm:$0xf] %vm2599, %v2375
  %2633 = vst.msk [vmem:[%s1 + $0x84] sm:$0xf] %vm2599, %v2376
  %2634 = vst.msk [vmem:[%s1 + $0x88] sm:$0xf] %vm2599, %v2377
  %2635 = vst.msk [vmem:[%s1 + $0x8c] sm:$0xf] %vm2599, %v2378
  %2636 = vst.msk [vmem:[%s1 + $0x90] sm:$0xf] %vm2599, %v2379
  %2637 = vst.msk [vmem:[%s1 + $0x94] sm:$0xf] %vm2599, %v2380
  %2638 = vst.msk [vmem:[%s1 + $0x98] sm:$0xf] %vm2599, %v2381
  %2639 = vst.msk [vmem:[%s1 + $0x9c] sm:$0xf] %vm2599, %v2382
  %2640 = vst.msk [vmem:[%s1 + $0xa0] sm:$0xf] %vm2599, %v2383
  %2641 = vst.msk [vmem:[%s1 + $0xa4] sm:$0xf] %vm2599, %v2384
  %2642 = vst.msk [vmem:[%s1 + $0xa8] sm:$0xf] %vm2599, %v2385
  %2643 = vst.msk [vmem:[%s1 + $0xac] sm:$0xf] %vm2599, %v2386
  %2644 = vst.msk [vmem:[%s1 + $0xb0] sm:$0xf] %vm2599, %v2387
  %2645 = vst.msk [vmem:[%s1 + $0xb4] sm:$0xf] %vm2599, %v2388
  %2646 = vst.msk [vmem:[%s1 + $0xb8] sm:$0xf] %vm2599, %v2389
  %2647 = vst.msk [vmem:[%s1 + $0xbc] sm:$0xf] %vm2599, %v2390
  %2648 = vst.msk [vmem:[%s1 + $0xc0] sm:$0xf] %vm2599, %v2391
  %2649 = vst.msk [vmem:[%s1 + $0xc4] sm:$0xf] %vm2599, %v2392
  %2650 = vst.msk [vmem:[%s1 + $0xc8] sm:$0xf] %vm2599, %v2393
  %2651 = vst.msk [vmem:[%s1 + $0xcc] sm:$0xf] %vm2599, %v2394
  %2652 = vst.msk [vmem:[%s1 + $0xd0] sm:$0xf] %vm2599, %v2395
  %2653 = vst.msk [vmem:[%s1 + $0xd4] sm:$0xf] %vm2599, %v2396
  %2654 = vst.msk [vmem:[%s1 + $0xd8] sm:$0xf] %vm2599, %v2397
  %2655 = vst.msk [vmem:[%s1 + $0xdc] sm:$0xf] %vm2599, %v2398
  %2656 = vst.msk [vmem:[%s1 + $0xe0] sm:$0xf] %vm2599, %v2399
  %2657 = vst.msk [vmem:[%s1 + $0xe4] sm:$0xf] %vm2599, %v2400
  %2658 = vst.msk [vmem:[%s1 + $0xe8] sm:$0xf] %vm2599, %v2401
  %2659 = vst.msk [vmem:[%s1 + $0xec] sm:$0xf] %vm2599, %v2402
  %2660 = vst.msk [vmem:[%s1 + $0xf0] sm:$0xf] %vm2599, %v2403
  %2661 = vst.msk [vmem:[%s1 + $0xf4] sm:$0xf] %vm2599, %v2404
  %2662 = vst.msk [vmem:[%s1 + $0xf8] sm:$0xf] %vm2599, %v2405
  %2663 = vst.msk [vmem:[%s1 + $0xfc] sm:$0xf] %vm2599, %v2406
  %2664 = vst.msk [vmem:[%s1 + $0x100] sm:$0xf] %vm2599, %v2407
  %2665 = vst.msk [vmem:[%s1 + $0x104] sm:$0xf] %vm2599, %v2408
  %2666 = vst.msk [vmem:[%s1 + $0x108] sm:$0xf] %vm2599, %v2409
  %2667 = vst.msk [vmem:[%s1 + $0x10c] sm:$0xf] %vm2599, %v2410
  %2668 = vst.msk [vmem:[%s1 + $0x110] sm:$0xf] %vm2599, %v2411
  %2669 = vst.msk [vmem:[%s1 + $0x114] sm:$0xf] %vm2599, %v2412
  %2670 = vst.msk [vmem:[%s1 + $0x118] sm:$0xf] %vm2599, %v2413
  %2671 = vst.msk [vmem:[%s1 + $0x11c] sm:$0xf] %vm2599, %v2414
  %2672 = vst.msk [vmem:[%s1 + $0x120] sm:$0xf] %vm2599, %v2415
  %2673 = vst.msk [vmem:[%s1 + $0x124] sm:$0xf] %vm2599, %v2416
  %2674 = vst.msk [vmem:[%s1 + $0x128] sm:$0xf] %vm2599, %v2417
  %2675 = vst.msk [vmem:[%s1 + $0x12c] sm:$0xf] %vm2599, %v2418
  %2676 = vst.msk [vmem:[%s1 + $0x130] sm:$0xf] %vm2599, %v2419
  %2677 = vst.msk [vmem:[%s1 + $0x134] sm:$0xf] %vm2599, %v2420
  %2678 = vst.msk [vmem:[%s1 + $0x138] sm:$0xf] %vm2599, %v2421
  %2679 = vst.msk [vmem:[%s1 + $0x13c] sm:$0xf] %vm2599, %v2422
  %2680 = vst.msk [vmem:[%s1 + $0x140] sm:$0xf] %vm2599, %v2423
  %2681 = vst.msk [vmem:[%s1 + $0x144] sm:$0xf] %vm2599, %v2424
  %2682 = vst.msk [vmem:[%s1 + $0x148] sm:$0xf] %vm2599, %v2425
  %2683 = vst.msk [vmem:[%s1 + $0x14c] sm:$0xf] %vm2599, %v2426
  %2684 = vst.msk [vmem:[%s1 + $0x150] sm:$0xf] %vm2599, %v2427
  %2685 = vst.msk [vmem:[%s1 + $0x154] sm:$0xf] %vm2599, %v2428
  %2686 = vst.msk [vmem:[%s1 + $0x158] sm:$0xf] %vm2599, %v2429
  %2687 = vst.msk [vmem:[%s1 + $0x15c] sm:$0xf] %vm2599, %v2430
  %2688 = vst.msk [vmem:[%s1 + $0x160] sm:$0xf] %vm2599, %v2431
  %2689 = vst.msk [vmem:[%s1 + $0x164] sm:$0xf] %vm2599, %v2432
  %2690 = vst.msk [vmem:[%s1 + $0x168] sm:$0xf] %vm2599, %v2433
  %2691 = vst.msk [vmem:[%s1 + $0x16c] sm:$0xf] %vm2599, %v2434
  %2692 = vst.msk [vmem:[%s1 + $0x170] sm:$0xf] %vm2599, %v2435
  %2693 = vst.msk [vmem:[%s1 + $0x174] sm:$0xf] %vm2599, %v2436
  %2694 = vst.msk [vmem:[%s1 + $0x178] sm:$0xf] %vm2599, %v2437
  %2695 = vst.msk [vmem:[%s1 + $0x17c] sm:$0xf] %vm2599, %v2438
  %2696 = vst.msk [vmem:[%s1 + $0x180] sm:$0xf] %vm2599, %v2439
  %2697 = vst.msk [vmem:[%s1 + $0x184] sm:$0xf] %vm2599, %v2440
  %2698 = vst.msk [vmem:[%s1 + $0x188] sm:$0xf] %vm2599, %v2441
  %2699 = vst.msk [vmem:[%s1 + $0x18c] sm:$0xf] %vm2599, %v2442
  %2700 = vst.msk [vmem:[%s1 + $0x190] sm:$0xf] %vm2599, %v2443
  %2701 = vst.msk [vmem:[%s1 + $0x194] sm:$0xf] %vm2599, %v2444
  %2702 = vst.msk [vmem:[%s1 + $0x198] sm:$0xf] %vm2599, %v2445
  %2703 = vst.msk [vmem:[%s1 + $0x19c] sm:$0xf] %vm2599, %v2446
  %2704 = vst.msk [vmem:[%s1 + $0x1a0] sm:$0xf] %vm2599, %v2447
  %2705 = vst.msk [vmem:[%s1 + $0x1a4] sm:$0xf] %vm2599, %v2448
  %2706 = vst.msk [vmem:[%s1 + $0x1a8] sm:$0xf] %vm2599, %v2449
  %2707 = vst.msk [vmem:[%s1 + $0x1ac] sm:$0xf] %vm2599, %v2450
  %2708 = vst.msk [vmem:[%s1 + $0x1b0] sm:$0xf] %vm2599, %v2451
  %2709 = vst.msk [vmem:[%s1 + $0x1b4] sm:$0xf] %vm2599, %v2452
  %2710 = vst.msk [vmem:[%s1 + $0x1b8] sm:$0xf] %vm2599, %v2453
  %2711 = vst.msk [vmem:[%s1 + $0x1bc] sm:$0xf] %vm2599, %v2454
  %2712 = vst.msk [vmem:[%s1 + $0x1c0] sm:$0xf] %vm2599, %v2455
  %2713 = vst.msk [vmem:[%s1 + $0x1c4] sm:$0xf] %vm2599, %v2456
  %2714 = vst.msk [vmem:[%s1 + $0x1c8] sm:$0xf] %vm2599, %v2457
  %2715 = vst.msk [vmem:[%s1 + $0x1cc] sm:$0xf] %vm2599, %v2458
  %2716 = vst.msk [vmem:[%s1 + $0x1d0] sm:$0xf] %vm2599, %v2459
  %2717 = vst.msk [vmem:[%s1 + $0x1d4] sm:$0xf] %vm2599, %v2460
  %2718 = vst.msk [vmem:[%s1 + $0x1d8] sm:$0xf] %vm2599, %v2461
  %2719 = vst.msk [vmem:[%s1 + $0x1dc] sm:$0xf] %vm2599, %v2462
  %2720 = vst.msk [vmem:[%s1 + $0x1e0] sm:$0xf] %vm2599, %v2463
  %2721 = vst.msk [vmem:[%s1 + $0x1e4] sm:$0xf] %vm2599, %v2464
  %2722 = vst.msk [vmem:[%s1 + $0x1e8] sm:$0xf] %vm2599, %v2465
  %2723 = vst.msk [vmem:[%s1 + $0x1ec] sm:$0xf] %vm2599, %v2466
  %2724 = vst.msk [vmem:[%s1 + $0x1f0] sm:$0xf] %vm2599, %v2467
  %2725 = vst.msk [vmem:[%s1 + $0x1f4] sm:$0xf] %vm2599, %v2468
  %2726 = vst.msk [vmem:[%s1 + $0x1f8] sm:$0xf] %vm2599, %v2469
  %2727 = vst.msk [vmem:[%s1 + $0x1fc] sm:$0xf] %vm2599, %v2470
  %2728 = vst.msk [vmem:[%s1 + $0x200] sm:$0xf] %vm2599, %v2471
  %2729 = vst.msk [vmem:[%s1 + $0x204] sm:$0xf] %vm2599, %v2472
  %2730 = vst.msk [vmem:[%s1 + $0x208] sm:$0xf] %vm2599, %v2473
  %2731 = vst.msk [vmem:[%s1 + $0x20c] sm:$0xf] %vm2599, %v2474
  %2732 = vst.msk [vmem:[%s1 + $0x210] sm:$0xf] %vm2599, %v2475
  %2733 = vst.msk [vmem:[%s1 + $0x214] sm:$0xf] %vm2599, %v2476
  %2734 = vst.msk [vmem:[%s1 + $0x218] sm:$0xf] %vm2599, %v2477
  %2735 = vst.msk [vmem:[%s1 + $0x21c] sm:$0xf] %vm2599, %v2478
  %2736 = vst.msk [vmem:[%s1 + $0x220] sm:$0xf] %vm2599, %v2479
  %2737 = vst.msk [vmem:[%s1 + $0x224] sm:$0xf] %vm2599, %v2480
  %2738 = vst.msk [vmem:[%s1 + $0x228] sm:$0xf] %vm2599, %v2481
  %2739 = vst.msk [vmem:[%s1 + $0x22c] sm:$0xf] %vm2599, %v2482
  %2740 = vst.msk [vmem:[%s1 + $0x230] sm:$0xf] %vm2599, %v2483
  %2741 = vst.msk [vmem:[%s1 + $0x234] sm:$0xf] %vm2599, %v2484
  %2742 = vst.msk [vmem:[%s1 + $0x238] sm:$0xf] %vm2599, %v2485
  %2743 = vst.msk [vmem:[%s1 + $0x23c] sm:$0xf] %vm2599, %v2486
  %2744 = vst.msk [vmem:[%s1 + $0x240] sm:$0xf] %vm2599, %v2487
  %2745 = vst.msk [vmem:[%s1 + $0x244] sm:$0xf] %vm2599, %v2488
  %2746 = vst.msk [vmem:[%s1 + $0x248] sm:$0xf] %vm2599, %v2489
  %2747 = vst.msk [vmem:[%s1 + $0x24c] sm:$0xf] %vm2599, %v2490
  %2748 = vst.msk [vmem:[%s1 + $0x250] sm:$0xf] %vm2599, %v2491
  %2749 = vst.msk [vmem:[%s1 + $0x254] sm:$0xf] %vm2599, %v2492
  %2750 = vst.msk [vmem:[%s1 + $0x258] sm:$0xf] %vm2599, %v2493
  %2751 = vst.msk [vmem:[%s1 + $0x25c] sm:$0xf] %vm2599, %v2494
  %2752 = vst.msk [vmem:[%s1 + $0x260] sm:$0xf] %vm2599, %v2495
  %2753 = vst.msk [vmem:[%s1 + $0x264] sm:$0xf] %vm2599, %v2496
  %2754 = vst.msk [vmem:[%s1 + $0x268] sm:$0xf] %vm2599, %v2497
  %2755 = vst.msk [vmem:[%s1 + $0x26c] sm:$0xf] %vm2599, %v2498
  %2756 = vst.msk [vmem:[%s1 + $0x270] sm:$0xf] %vm2599, %v2499
  %2757 = vst.msk [vmem:[%s1 + $0x274] sm:$0xf] %vm2599, %v2500
  %2758 = vst.msk [vmem:[%s1 + $0x278] sm:$0xf] %vm2599, %v2501
  %2759 = vst.msk [vmem:[%s1 + $0x27c] sm:$0xf] %vm2599, %v2502
  %2760 = vst.msk [vmem:[%s1 + $0x280] sm:$0xf] %vm2599, %v2503
  %2761 = vst.msk [vmem:[%s1 + $0x284] sm:$0xf] %vm2599, %v2504
  %2762 = vst.msk [vmem:[%s1 + $0x288] sm:$0xf] %vm2599, %v2505
  %2763 = vst.msk [vmem:[%s1 + $0x28c] sm:$0xf] %vm2599, %v2506
  %2764 = vst.msk [vmem:[%s1 + $0x290] sm:$0xf] %vm2599, %v2507
  %2765 = vst.msk [vmem:[%s1 + $0x294] sm:$0xf] %vm2599, %v2508
  %2766 = vst.msk [vmem:[%s1 + $0x298] sm:$0xf] %vm2599, %v2509
  %2767 = vst.msk [vmem:[%s1 + $0x29c] sm:$0xf] %vm2599, %v2510
  %2768 = vst.msk [vmem:[%s1 + $0x2a0] sm:$0xf] %vm2599, %v2511
  %2769 = vst.msk [vmem:[%s1 + $0x2a4] sm:$0xf] %vm2599, %v2512
  %2770 = vst.msk [vmem:[%s1 + $0x2a8] sm:$0xf] %vm2599, %v2513
  %2771 = vst.msk [vmem:[%s1 + $0x2ac] sm:$0xf] %vm2599, %v2514
  %2772 = vst.msk [vmem:[%s1 + $0x2b0] sm:$0xf] %vm2599, %v2515
  %2773 = vst.msk [vmem:[%s1 + $0x2b4] sm:$0xf] %vm2599, %v2516
  %2774 = vst.msk [vmem:[%s1 + $0x2b8] sm:$0xf] %vm2599, %v2517
  %2775 = vst.msk [vmem:[%s1 + $0x2bc] sm:$0xf] %vm2599, %v2518
  %2776 = vst.msk [vmem:[%s1 + $0x2c0] sm:$0xf] %vm2599, %v2519
  %2777 = vst.msk [vmem:[%s1 + $0x2c4] sm:$0xf] %vm2599, %v2520
  %2778 = vst.msk [vmem:[%s1 + $0x2c8] sm:$0xf] %vm2599, %v2521
  %2779 = vst.msk [vmem:[%s1 + $0x2cc] sm:$0xf] %vm2599, %v2522
  %2780 = vst.msk [vmem:[%s1 + $0x2d0] sm:$0xf] %vm2599, %v2523
  %2781 = vst.msk [vmem:[%s1 + $0x2d4] sm:$0xf] %vm2599, %v2524
  %2782 = vst.msk [vmem:[%s1 + $0x2d8] sm:$0xf] %vm2599, %v2525
  %2783 = vst.msk [vmem:[%s1 + $0x2dc] sm:$0xf] %vm2599, %v2526
  %2784 = vst.msk [vmem:[%s1 + $0x2e0] sm:$0xf] %vm2599, %v2527
  %2785 = vst.msk [vmem:[%s1 + $0x2e4] sm:$0xf] %vm2599, %v2528
  %2786 = vst.msk [vmem:[%s1 + $0x2e8] sm:$0xf] %vm2599, %v2529
  %2787 = vst.msk [vmem:[%s1 + $0x2ec] sm:$0xf] %vm2599, %v2530
  %2788 = vst.msk [vmem:[%s1 + $0x2f0] sm:$0xf] %vm2599, %v2531
  %2789 = vst.msk [vmem:[%s1 + $0x2f4] sm:$0xf] %vm2599, %v2532
  %2790 = vst.msk [vmem:[%s1 + $0x2f8] sm:$0xf] %vm2599, %v2533
  %2791 = vst.msk [vmem:[%s1 + $0x2fc] sm:$0xf] %vm2599, %v2534
  %2792 = vst.msk [vmem:[%s1 + $0x300] sm:$0xf] %vm2599, %v2535
  %2793 = vst.msk [vmem:[%s1 + $0x304] sm:$0xf] %vm2599, %v2536
  %2794 = vst.msk [vmem:[%s1 + $0x308] sm:$0xf] %vm2599, %v2537
  %2795 = vst.msk [vmem:[%s1 + $0x30c] sm:$0xf] %vm2599, %v2538
  %2796 = vst.msk [vmem:[%s1 + $0x310] sm:$0xf] %vm2599, %v2539
  %2797 = vst.msk [vmem:[%s1 + $0x314] sm:$0xf] %vm2599, %v2540
  %2798 = vst.msk [vmem:[%s1 + $0x318] sm:$0xf] %vm2599, %v2541
  %2799 = vst.msk [vmem:[%s1 + $0x31c] sm:$0xf] %vm2599, %v2542
  %2800 = vst.msk [vmem:[%s1 + $0x320] sm:$0xf] %vm2599, %v2543
  %2801 = vst.msk [vmem:[%s1 + $0x324] sm:$0xf] %vm2599, %v2544
  %2802 = vst.msk [vmem:[%s1 + $0x328] sm:$0xf] %vm2599, %v2545
  %2803 = vst.msk [vmem:[%s1 + $0x32c] sm:$0xf] %vm2599, %v2546
  %2804 = vst.msk [vmem:[%s1 + $0x330] sm:$0xf] %vm2599, %v2547
  %2805 = vst.msk [vmem:[%s1 + $0x334] sm:$0xf] %vm2599, %v2548
  %2806 = vst.msk [vmem:[%s1 + $0x338] sm:$0xf] %vm2599, %v2549
  %2807 = vst.msk [vmem:[%s1 + $0x33c] sm:$0xf] %vm2599, %v2550
  %2808 = vst.msk [vmem:[%s1 + $0x340] sm:$0xf] %vm2599, %v2551
  %2809 = vst.msk [vmem:[%s1 + $0x344] sm:$0xf] %vm2599, %v2552
  %2810 = vst.msk [vmem:[%s1 + $0x348] sm:$0xf] %vm2599, %v2553
  %2811 = vst.msk [vmem:[%s1 + $0x34c] sm:$0xf] %vm2599, %v2554
  %2812 = vst.msk [vmem:[%s1 + $0x350] sm:$0xf] %vm2599, %v2555
  %2813 = vst.msk [vmem:[%s1 + $0x354] sm:$0xf] %vm2599, %v2556
  %2814 = vst.msk [vmem:[%s1 + $0x358] sm:$0xf] %vm2599, %v2557
  %2815 = vst.msk [vmem:[%s1 + $0x35c] sm:$0xf] %vm2599, %v2558
  %2816 = vst.msk [vmem:[%s1 + $0x360] sm:$0xf] %vm2599, %v2559
  %2817 = vst.msk [vmem:[%s1 + $0x364] sm:$0xf] %vm2599, %v2560
  %2818 = vst.msk [vmem:[%s1 + $0x368] sm:$0xf] %vm2599, %v2561
  %2819 = vst.msk [vmem:[%s1 + $0x36c] sm:$0xf] %vm2599, %v2562
  %2820 = vst.msk [vmem:[%s1 + $0x370] sm:$0xf] %vm2599, %v2563
  %2821 = vst.msk [vmem:[%s1 + $0x374] sm:$0xf] %vm2599, %v2564
  %2822 = vst.msk [vmem:[%s1 + $0x378] sm:$0xf] %vm2599, %v2565
  %2823 = vst.msk [vmem:[%s1 + $0x37c] sm:$0xf] %vm2599, %v2566
  %2824 = vst.msk [vmem:[%s1 + $0x380] sm:$0xf] %vm2599, %v2567
  %2825 = vst.msk [vmem:[%s1 + $0x384] sm:$0xf] %vm2599, %v2568
  %2826 = vst.msk [vmem:[%s1 + $0x388] sm:$0xf] %vm2599, %v2569
  %2827 = vst.msk [vmem:[%s1 + $0x38c] sm:$0xf] %vm2599, %v2570
  %2828 = vst.msk [vmem:[%s1 + $0x390] sm:$0xf] %vm2599, %v2571
  %2829 = vst.msk [vmem:[%s1 + $0x394] sm:$0xf] %vm2599, %v2572
  %2830 = vst.msk [vmem:[%s1 + $0x398] sm:$0xf] %vm2599, %v2573
  %2831 = vst.msk [vmem:[%s1 + $0x39c] sm:$0xf] %vm2599, %v2574
  %2832 = vst.msk [vmem:[%s1 + $0x3a0] sm:$0xf] %vm2599, %v2575
  %2833 = vst.msk [vmem:[%s1 + $0x3a4] sm:$0xf] %vm2599, %v2576
  %2834 = vst.msk [vmem:[%s1 + $0x3a8] sm:$0xf] %vm2599, %v2577
  %2835 = vst.msk [vmem:[%s1 + $0x3ac] sm:$0xf] %vm2599, %v2578
  %2836 = vst.msk [vmem:[%s1 + $0x3b0] sm:$0xf] %vm2599, %v2579
  %2837 = vst.msk [vmem:[%s1 + $0x3b4] sm:$0xf] %vm2599, %v2580
  %2838 = vst.msk [vmem:[%s1 + $0x3b8] sm:$0xf] %vm2599, %v2581
  %2839 = vst.msk [vmem:[%s1 + $0x3bc] sm:$0xf] %vm2599, %v2582
  %2840 = vst.msk [vmem:[%s1 + $0x3c0] sm:$0xf] %vm2599, %v2583
  %2841 = vst.msk [vmem:[%s1 + $0x3c4] sm:$0xf] %vm2599, %v2584
  %2842 = vst.msk [vmem:[%s1 + $0x3c8] sm:$0xf] %vm2599, %v2585
  %2843 = vst.msk [vmem:[%s1 + $0x3cc] sm:$0xf] %vm2599, %v2586
  %2844 = vst.msk [vmem:[%s1 + $0x3d0] sm:$0xf] %vm2599, %v2587
  %2845 = vst.msk [vmem:[%s1 + $0x3d4] sm:$0xf] %vm2599, %v2588
  %2846 = vst.msk [vmem:[%s1 + $0x3d8] sm:$0xf] %vm2599, %v2589
  %2847 = vst.msk [vmem:[%s1 + $0x3dc] sm:$0xf] %vm2599, %v2590
  %2848 = vst.msk [vmem:[%s1 + $0x3e0] sm:$0xf] %vm2599, %v2591
  %2849 = vst.msk [vmem:[%s1 + $0x3e4] sm:$0xf] %vm2599, %v2592
  %2850 = vst.msk [vmem:[%s1 + $0x3e8] sm:$0xf] %vm2599, %v2593
  %2851 = vst.msk [vmem:[%s1 + $0x3ec] sm:$0xf] %vm2599, %v2594
  %2852 = vst.msk [vmem:[%s1 + $0x3f0] sm:$0xf] %vm2599, %v2595
  %2853 = vst.msk [vmem:[%s1 + $0x3f4] sm:$0xf] %vm2599, %v2596
  %2854 = vst.msk [vmem:[%s1 + $0x3f8] sm:$0xf] %vm2599, %v2597
  %2855 = vst.msk [vmem:[%s1 + $0x3fc] sm:$0xf] %vm2599, %v2598
  // Predicated region
  $region6: #{generator_forward.17} parent=0 // pred_check
    _
  $region7: #{generator_forward.17} parent=0 // pred_check_branch
    %2857 = sbr.rel (0) target = $region9
  $region8: #{generator_forward.17} parent=0 // pred_region
    _
  $region9: #{generator_forward.17} parent=0 // pred_fallthru
    _
  // Predicated region
  $region10: #{generator_forward.17} parent=0 // pred_check
    _
  $region11: #{generator_forward.17} parent=0 // pred_check_branch
    %2859 = sbr.rel (0) target = $region13
  $region12: #{generator_forward.17} parent=0 // pred_region
    _
  $region13: #{generator_forward.17} parent=0 // pred_fallthru
    _

// kernel: generator_forward.18
$region0: #{generator_forward.18}
  #allocation0 [shape = 'u32[]', space=smem, size = 0x4, offset = 0x4, fixed_abs, tag = 'smem constant byte address 0x4 - core index']
  #allocation1 [shape = 'u32[72,128]{1,0:T(1,128)}', space=vmem, size = 0x9000, scoped, tag = 'internal scratch']
  %s0 = inlined_call_operand.vmem [shape: bf16[2048,64], index: 0, kind: input, shape index: {}]
  %s1 = inlined_call_operand.vmem [shape: bf16[64,128], index: 1, kind: input, shape index: {}]
  %s2 = inlined_call_operand.vmem [shape: f32[2048,128], index: 2, kind: output, shape index: {}]
  %s3 = sld [smem:[#allocation0]]
  $region41: #{generator_forward.18} parent=0
    _
  %s5 = ssub.s32 1, %s3
  %s6 = scalar_select 0, %s5, %s3
  loop: start=0, step=1, limit=6
  $region2: #{generator_forward.18} parent=0 // loop_pre_header
    _
  $region3: #{generator_forward.18} parent=0 // loop_header
    %s8 = sphi 0, %s12
    %p9 = scmp.ge.s32.totalorder %s8, 6
    %s15 = sphi 0, %s27
    %s16 = sphi 0, %s23
    %s17 = sphi 0, %s15
    %s18 = sphi 0, %s16
    %s19 = sphi 0, %s17
    %s20 = sphi 0, %s18
    %s30 = sphi 0, %s32
    %s33 = sphi 0, %s30
    %s34 = sphi 0, %s33
    %s50 = sphi 0, %s34
    %s56 = sphi 0, %s58
    %s59 = sphi 0, %s56
    %s60 = sphi 0, %s59
    %s76 = sphi 0, %s60
    %s84 = sphi 0, %s86
    %s87 = sphi 0, %s84
    %s88 = sphi 0, %s87
    %s104 = sphi 0, %s88
  $region4: #{generator_forward.18} parent=0 // loop_header_branch
    %11 = sbr.rel (%p9) target = $region8
  $region5: #{generator_forward.18} parent=0 // loop_body
    %s13 = ssub.s32 %s8, 1
    %s14 = ssub.s32 %s8, 2
    %s21 = sadd.s32 1, %s16
    %p22 = scmp.ge.s32.totalorder %s21, 1
    %s23 = scalar_select %p22, 0, %s21
    %s24 = sadd.s32 1, %s15
    %s25 = scalar_select %p22, %s24, %s15
    %p26 = scmp.ge.s32.totalorder %s25, 4
    %s27 = scalar_select %p26, 0, %s25
    %s28 = ssub.s32 %s15, %s27
    %p29 = scmp.eq.s32.totalorder %s28, 0
    %s31 = sadd.s32 %s30, 1
    %s32 = scalar_select %p29, %s30, %s31
    %p35 = pneg %p29
    %p36 = scmp.eq.s32.totalorder %s8, 3
    %p37 = por %p35, %p36
    %p38 = scmp.ne.s32.totalorder %s30, %s33
    %p39 = scmp.eq.s32.totalorder %s8, 0
    %p40 = por %p38, %p39
    %p41 = scmp.ne.s32.totalorder %s30, %s33
    %p42 = scmp.eq.s32.totalorder %s13, 3
    %p43 = por %p41, %p42
    %p44 = scmp.ne.s32.totalorder %s33, %s34
    %p45 = scmp.eq.s32.totalorder %s13, 0
    %p46 = por %p44, %p45
    %p47 = scmp.ne.s32.totalorder %s33, %s34
    %p48 = scmp.eq.s32.totalorder %s14, 3
    %p49 = por %p47, %p48
    %p51 = scmp.ne.s32.totalorder %s34, %s50
    %p52 = scmp.eq.s32.totalorder %s14, 0
    %p53 = por %p51, %p52
    %s54 = ssub.s32 %s16, %s23
    %p55 = scmp.eq.s32.totalorder %s54, 0
    %s57 = sadd.s32 %s56, 1
    %s58 = scalar_select %p55, %s56, %s57
    %p61 = pneg %p55
    %p62 = scmp.eq.s32.totalorder %s8, 3
    %p63 = por %p61, %p62
    %p64 = scmp.ne.s32.totalorder %s56, %s59
    %p65 = scmp.eq.s32.totalorder %s8, 0
    %p66 = por %p64, %p65
    %p67 = scmp.ne.s32.totalorder %s56, %s59
    %p68 = scmp.eq.s32.totalorder %s13, 3
    %p69 = por %p67, %p68
    %p70 = scmp.ne.s32.totalorder %s59, %s60
    %p71 = scmp.eq.s32.totalorder %s13, 0
    %p72 = por %p70, %p71
    %p73 = scmp.ne.s32.totalorder %s59, %s60
    %p74 = scmp.eq.s32.totalorder %s14, 3
    %p75 = por %p73, %p74
    %p77 = scmp.ne.s32.totalorder %s60, %s76
    %p78 = scmp.eq.s32.totalorder %s14, 0
    %p79 = por %p77, %p78
    %s80 = ssub.s32 %s15, %s27
    %s81 = ssub.s32 %s16, %s23
    %s82 = sor.u32 %s80, %s81
    %p83 = scmp.eq.s32.totalorder %s82, 0
    %s85 = sadd.s32 %s84, 1
    %s86 = scalar_select %p83, %s84, %s85
    %p89 = pneg %p83
    %p90 = scmp.eq.s32.totalorder %s8, 3
    %p91 = por %p89, %p90
    %p92 = scmp.ne.s32.totalorder %s84, %s87
    %p93 = scmp.eq.s32.totalorder %s8, 0
    %p94 = por %p92, %p93
    %p95 = scmp.ne.s32.totalorder %s84, %s87
    %p96 = scmp.eq.s32.totalorder %s13, 3
    %p97 = por %p95, %p96
    %p98 = scmp.ne.s32.totalorder %s87, %s88
    %p99 = scmp.eq.s32.totalorder %s13, 0
    %p100 = por %p98, %p99
    %p101 = scmp.ne.s32.totalorder %s87, %s88
    %p102 = scmp.eq.s32.totalorder %s14, 3
    %p103 = por %p101, %p102
    %p105 = scmp.ne.s32.totalorder %s88, %s104
    %p106 = scmp.eq.s32.totalorder %s14, 0
    %p107 = por %p105, %p106
    %p108 = scmp.le.s32.totalorder 1, %s8
    %p109 = scmp.lt.s32.totalorder %s8, 5
    %p110 = pnand %p108, %p109
    %p111 = pneg %p110
    // Predicated region
    $region9: #{generator_forward.18} parent=5 // pred_check
      _
    $region10: #{generator_forward.18} parent=5 // pred_check_branch
      %113 = sbr.rel (%p110) target = $region12
    $region11: #{generator_forward.18} parent=5 // pred_region
      %s114 = ssub.s32 %s8, 1
      // Predicated region
      $region13: #{generator_forward.18} parent=11 // pred_check
        %p115 = pneg %p72
      $region14: #{generator_forward.18} parent=11 // pred_check_branch
        %117 = sbr.rel (%p115) target = $region16
      $region15: #{generator_forward.18} parent=11 // pred_region
        %p118 = scmp.lt.s32.totalorder %s18, 0
        %s119 = scalar_select %p118, %s18, 0
        %s120 = smul.addr %s119, 4
        %s121 = scalar_lea.vmem %s1, %s120
      $region16: #{generator_forward.18} parent=11 // pred_fallthru
        _
    $region12: #{generator_forward.18} parent=5 // pred_fallthru
      _
    %p122 = scmp.lt.s32.totalorder %s8, 4
    // Predicated region
    $region17: #{generator_forward.18} parent=5 // pred_check
      %p123 = pneg %p122
    $region18: #{generator_forward.18} parent=5 // pred_check_branch
      %125 = sbr.rel (%p123) target = $region20
    $region19: #{generator_forward.18} parent=5 // pred_region
      // Predicated region
      $region21: #{generator_forward.18} parent=19 // pred_check
        %p126 = pneg %p40
      $region22: #{generator_forward.18} parent=19 // pred_check_branch
        %128 = sbr.rel (%p126) target = $region24
      $region23: #{generator_forward.18} parent=19 // pred_region
        %s129 = smul.u32 64, %s15
        %p130 = scmp.lt.s32.totalorder %s129, 255
        %s131 = scalar_select %p130, %s129, 255
        %s132 = smul.addr %s131, 4
        %s133 = scalar_lea.vmem %s0, %s132
        %s134 = smul.u32 64, %s15
      $region24: #{generator_forward.18} parent=19 // pred_fallthru
        _
    $region20: #{generator_forward.18} parent=5 // pred_fallthru
      _
    %p135 = scmp.le.s32.totalorder 1, %s8
    %p136 = scmp.lt.s32.totalorder %s8, 5
    %p137 = pnand %p135, %p136
    %p138 = pneg %p137
    // Predicated region
    $region25: #{generator_forward.18} parent=5 // pred_check
      _
    $region26: #{generator_forward.18} parent=5 // pred_check_branch
      %140 = sbr.rel (%p137) target = $region28
    $region27: #{generator_forward.18} parent=5 // pred_region
      %s141 = ssub.s32 %s8, 1
      %s142 = smul.u32 64, %s17
      %p143 = scmp.lt.s32.totalorder %s142, 255
      %s144 = scalar_select %p143, %s142, 255
      %s145 = smul.addr %s144, 4
      %s146 = scalar_lea.vmem %s0, %s145
      %p147 = pneg %p46
      %p148 = pneg %p43
      %p149 = scmp.lt.s32.totalorder %s18, 0
      %s150 = scalar_select %p149, %s18, 0
      %s151 = smul.addr %s150, 4
      %s152 = scalar_lea.vmem %s1, %s151
      %p153 = pneg %p72
      %p154 = pneg %p69
      %p155 = pneg %p100
      %p156 = pneg %p97
      %s157 = smul.u32 64, %s17
      %p158 = scmp.lt.s32.totalorder %s157, 255
      %s159 = scalar_select %p158, %s157, 255
      %p160 = scmp.lt.s32.totalorder %s18, 0
      %s161 = scalar_select %p160, %s18, 0
      %s162 = sadd.s32 %s161, %s159
      %s163 = smul.addr %s162, 8
      %s164 = scalar_lea.vmem %s2, %s163
      %s165 = smul.u32 64, %s17
      %p166 = scmp.lt.s32.totalorder %s165, 255
      %s167 = scalar_select %p166, %s165, 255
      %s168 = smul.addr %s167, 4
      %s169 = scalar_lea.vmem %s0, %s168
      %s170 = smul.u32 64, %s17
      %p171 = scmp.lt.s32.totalorder %s18, 0
      %s172 = scalar_select %p171, %s18, 0
      %s173 = smul.addr %s172, 4
      %s174 = scalar_lea.vmem %s1, %s173
      %s175 = smul.u32 64, %s17
      %p176 = scmp.lt.s32.totalorder %s175, 255
      %s177 = scalar_select %p176, %s175, 255
      %p178 = scmp.lt.s32.totalorder %s18, 0
      %s179 = scalar_select %p178, %s18, 0
      %s180 = sadd.s32 %s179, %s177
      %s181 = smul.addr %s180, 8
      %s182 = scalar_lea.vmem %s2, %s181
      %s183 = smul.u32 64, %s17
      %v185 = vld [vmem:[%s169] sm:$0xf]
      %v186 = vld [vmem:[%s169 + $0x4] sm:$0xf]
      %v187 = vld [vmem:[%s169 + $0x8] sm:$0xf]
      %v188 = vld [vmem:[%s169 + $0xc] sm:$0xf]
      %v189 = vld [vmem:[%s169 + $0x10] sm:$0xf]
      %v190 = vld [vmem:[%s169 + $0x14] sm:$0xf]
      %v191 = vld [vmem:[%s169 + $0x18] sm:$0xf]
      %v192 = vld [vmem:[%s169 + $0x1c] sm:$0xf]
      %v193 = vld [vmem:[%s169 + $0x20] sm:$0xf]
      %v194 = vld [vmem:[%s169 + $0x24] sm:$0xf]
      %v195 = vld [vmem:[%s169 + $0x28] sm:$0xf]
      %v196 = vld [vmem:[%s169 + $0x2c] sm:$0xf]
      %v197 = vld [vmem:[%s169 + $0x30] sm:$0xf]
      %v198 = vld [vmem:[%s169 + $0x34] sm:$0xf]
      %v199 = vld [vmem:[%s169 + $0x38] sm:$0xf]
      %v200 = vld [vmem:[%s169 + $0x3c] sm:$0xf]
      %v201 = vld [vmem:[%s169 + $0x40] sm:$0xf]
      %v202 = vld [vmem:[%s169 + $0x44] sm:$0xf]
      %v203 = vld [vmem:[%s169 + $0x48] sm:$0xf]
      %v204 = vld [vmem:[%s169 + $0x4c] sm:$0xf]
      %v205 = vld [vmem:[%s169 + $0x50] sm:$0xf]
      %v206 = vld [vmem:[%s169 + $0x54] sm:$0xf]
      %v207 = vld [vmem:[%s169 + $0x58] sm:$0xf]
      %v208 = vld [vmem:[%s169 + $0x5c] sm:$0xf]
      %v209 = vld [vmem:[%s169 + $0x60] sm:$0xf]
      %v210 = vld [vmem:[%s169 + $0x64] sm:$0xf]
      %v211 = vld [vmem:[%s169 + $0x68] sm:$0xf]
      %v212 = vld [vmem:[%s169 + $0x6c] sm:$0xf]
      %v213 = vld [vmem:[%s169 + $0x70] sm:$0xf]
      %v214 = vld [vmem:[%s169 + $0x74] sm:$0xf]
      %v215 = vld [vmem:[%s169 + $0x78] sm:$0xf]
      %v216 = vld [vmem:[%s169 + $0x7c] sm:$0xf]
      %v217 = vld [vmem:[%s169 + $0x80] sm:$0xf]
      %v218 = vld [vmem:[%s169 + $0x84] sm:$0xf]
      %v219 = vld [vmem:[%s169 + $0x88] sm:$0xf]
      %v220 = vld [vmem:[%s169 + $0x8c] sm:$0xf]
      %v221 = vld [vmem:[%s169 + $0x90] sm:$0xf]
      %v222 = vld [vmem:[%s169 + $0x94] sm:$0xf]
      %v223 = vld [vmem:[%s169 + $0x98] sm:$0xf]
      %v224 = vld [vmem:[%s169 + $0x9c] sm:$0xf]
      %v225 = vld [vmem:[%s169 + $0xa0] sm:$0xf]
      %v226 = vld [vmem:[%s169 + $0xa4] sm:$0xf]
      %v227 = vld [vmem:[%s169 + $0xa8] sm:$0xf]
      %v228 = vld [vmem:[%s169 + $0xac] sm:$0xf]
      %v229 = vld [vmem:[%s169 + $0xb0] sm:$0xf]
      %v230 = vld [vmem:[%s169 + $0xb4] sm:$0xf]
      %v231 = vld [vmem:[%s169 + $0xb8] sm:$0xf]
      %v232 = vld [vmem:[%s169 + $0xbc] sm:$0xf]
      %v233 = vld [vmem:[%s169 + $0xc0] sm:$0xf]
      %v234 = vld [vmem:[%s169 + $0xc4] sm:$0xf]
      %v235 = vld [vmem:[%s169 + $0xc8] sm:$0xf]
      %v236 = vld [vmem:[%s169 + $0xcc] sm:$0xf]
      %v237 = vld [vmem:[%s169 + $0xd0] sm:$0xf]
      %v238 = vld [vmem:[%s169 + $0xd4] sm:$0xf]
      %v239 = vld [vmem:[%s169 + $0xd8] sm:$0xf]
      %v240 = vld [vmem:[%s169 + $0xdc] sm:$0xf]
      %v241 = vld [vmem:[%s169 + $0xe0] sm:$0xf]
      %v242 = vld [vmem:[%s169 + $0xe4] sm:$0xf]
      %v243 = vld [vmem:[%s169 + $0xe8] sm:$0xf]
      %v244 = vld [vmem:[%s169 + $0xec] sm:$0xf]
      %v245 = vld [vmem:[%s169 + $0xf0] sm:$0xf]
      %v246 = vld [vmem:[%s169 + $0xf4] sm:$0xf]
      %v247 = vld [vmem:[%s169 + $0xf8] sm:$0xf]
      %v248 = vld [vmem:[%s169 + $0xfc] sm:$0xf]
      %v249 = vld [vmem:[%s174] sm:$0xf]
      %v250 = vld [vmem:[%s174 + $0x4] sm:$0xf]
      %v251 = vld [vmem:[%s174 + $0x8] sm:$0xf]
      %v252 = vld [vmem:[%s174 + $0xc] sm:$0xf]
      %v253 = vld [vmem:[%s174 + $0x10] sm:$0xf]
      %v254 = vld [vmem:[%s174 + $0x14] sm:$0xf]
      %v255 = vld [vmem:[%s174 + $0x18] sm:$0xf]
      %v256 = vld [vmem:[%s174 + $0x1c] sm:$0xf]
      %v321 = vunpack.c.l.b16 %v185
      %v322 = vunpack.c.l.b16 %v186
      %v323 = vunpack.c.l.b16 %v187
      %v324 = vunpack.c.l.b16 %v188
      %v325 = vunpack.c.l.b16 %v189
      %v326 = vunpack.c.l.b16 %v190
      %v327 = vunpack.c.l.b16 %v191
      %v328 = vunpack.c.l.b16 %v192
      %v329 = vunpack.c.l.b16 %v193
      %v330 = vunpack.c.l.b16 %v194
      %v331 = vunpack.c.l.b16 %v195
      %v332 = vunpack.c.l.b16 %v196
      %v333 = vunpack.c.l.b16 %v197
      %v334 = vunpack.c.l.b16 %v198
      %v335 = vunpack.c.l.b16 %v199
      %v336 = vunpack.c.l.b16 %v200
      %v337 = vunpack.c.l.b16 %v201
      %v338 = vunpack.c.l.b16 %v202
      %v339 = vunpack.c.l.b16 %v203
      %v340 = vunpack.c.l.b16 %v204
      %v341 = vunpack.c.l.b16 %v205
      %v342 = vunpack.c.l.b16 %v206
      %v343 = vunpack.c.l.b16 %v207
      %v344 = vunpack.c.l.b16 %v208
      %v345 = vunpack.c.l.b16 %v209
      %v346 = vunpack.c.l.b16 %v210
      %v347 = vunpack.c.l.b16 %v211
      %v348 = vunpack.c.l.b16 %v212
      %v349 = vunpack.c.l.b16 %v213
      %v350 = vunpack.c.l.b16 %v214
      %v351 = vunpack.c.l.b16 %v215
      %v352 = vunpack.c.l.b16 %v216
      %v353 = vunpack.c.l.b16 %v217
      %v354 = vunpack.c.l.b16 %v218
      %v355 = vunpack.c.l.b16 %v219
      %v356 = vunpack.c.l.b16 %v220
      %v357 = vunpack.c.l.b16 %v221
      %v358 = vunpack.c.l.b16 %v222
      %v359 = vunpack.c.l.b16 %v223
      %v360 = vunpack.c.l.b16 %v224
      %v361 = vunpack.c.l.b16 %v225
      %v362 = vunpack.c.l.b16 %v226
      %v363 = vunpack.c.l.b16 %v227
      %v364 = vunpack.c.l.b16 %v228
      %v365 = vunpack.c.l.b16 %v229
      %v366 = vunpack.c.l.b16 %v230
      %v367 = vunpack.c.l.b16 %v231
      %v368 = vunpack.c.l.b16 %v232
      %v369 = vunpack.c.l.b16 %v233
      %v370 = vunpack.c.l.b16 %v234
      %v371 = vunpack.c.l.b16 %v235
      %v372 = vunpack.c.l.b16 %v236
      %v373 = vunpack.c.l.b16 %v237
      %v374 = vunpack.c.l.b16 %v238
      %v375 = vunpack.c.l.b16 %v239
      %v376 = vunpack.c.l.b16 %v240
      %v377 = vunpack.c.l.b16 %v241
      %v378 = vunpack.c.l.b16 %v242
      %v379 = vunpack.c.l.b16 %v243
      %v380 = vunpack.c.l.b16 %v244
      %v381 = vunpack.c.l.b16 %v245
      %v382 = vunpack.c.l.b16 %v246
      %v383 = vunpack.c.l.b16 %v247
      %v384 = vunpack.c.l.b16 %v248
      %v385 = vpack.c.b16 %v322, %v321
      %v386 = vpack.c.b16 %v324, %v323
      %v387 = vpack.c.b16 %v326, %v325
      %v388 = vpack.c.b16 %v328, %v327
      %v389 = vpack.c.b16 %v330, %v329
      %v390 = vpack.c.b16 %v332, %v331
      %v391 = vpack.c.b16 %v334, %v333
      %v392 = vpack.c.b16 %v336, %v335
      %v393 = vpack.c.b16 %v338, %v337
      %v394 = vpack.c.b16 %v340, %v339
      %v395 = vpack.c.b16 %v342, %v341
      %v396 = vpack.c.b16 %v344, %v343
      %v397 = vpack.c.b16 %v346, %v345
      %v398 = vpack.c.b16 %v348, %v347
      %v399 = vpack.c.b16 %v350, %v349
      %v400 = vpack.c.b16 %v352, %v351
      %v401 = vpack.c.b16 %v354, %v353
      %v402 = vpack.c.b16 %v356, %v355
      %v403 = vpack.c.b16 %v358, %v357
      %v404 = vpack.c.b16 %v360, %v359
      %v405 = vpack.c.b16 %v362, %v361
      %v406 = vpack.c.b16 %v364, %v363
      %v407 = vpack.c.b16 %v366, %v365
      %v408 = vpack.c.b16 %v368, %v367
      %v409 = vpack.c.b16 %v370, %v369
      %v410 = vpack.c.b16 %v372, %v371
      %v411 = vpack.c.b16 %v374, %v373
      %v412 = vpack.c.b16 %v376, %v375
      %v413 = vpack.c.b16 %v378, %v377
      %v414 = vpack.c.b16 %v380, %v379
      %v415 = vpack.c.b16 %v382, %v381
      %v416 = vpack.c.b16 %v384, %v383
      %v425 = vunpack.c.l.b16 %v249
      %v426 = vunpack.c.l.b16 %v250
      %v427 = vunpack.c.l.b16 %v251
      %v428 = vunpack.c.l.b16 %v252
      %v429 = vunpack.c.l.b16 %v253
      %v430 = vunpack.c.l.b16 %v254
      %v431 = vunpack.c.l.b16 %v255
      %v432 = vunpack.c.l.b16 %v256
      %v433 = vpack.c.b16 %v426, %v425
      %v434 = vpack.c.b16 %v428, %v427
      %v435 = vpack.c.b16 %v430, %v429
      %v436 = vpack.c.b16 %v432, %v431
      %vm441 = vcmask 523264
      %v443 = vsel %vm441, %v385, 0
      %v446 = vsel %vm441, %v386, 0
      %v449 = vsel %vm441, %v387, 0
      %v452 = vsel %vm441, %v388, 0
      %v455 = vsel %vm441, %v389, 0
      %v458 = vsel %vm441, %v390, 0
      %v461 = vsel %vm441, %v391, 0
      %v464 = vsel %vm441, %v392, 0
      %v467 = vsel %vm441, %v393, 0
      %v470 = vsel %vm441, %v394, 0
      %v473 = vsel %vm441, %v395, 0
      %v476 = vsel %vm441, %v396, 0
      %v479 = vsel %vm441, %v397, 0
      %v482 = vsel %vm441, %v398, 0
      %v485 = vsel %vm441, %v399, 0
      %v488 = vsel %vm441, %v400, 0
      %v491 = vsel %vm441, %v401, 0
      %v494 = vsel %vm441, %v402, 0
      %v497 = vsel %vm441, %v403, 0
      %v500 = vsel %vm441, %v404, 0
      %v503 = vsel %vm441, %v405, 0
      %v506 = vsel %vm441, %v406, 0
      %v509 = vsel %vm441, %v407, 0
      %v512 = vsel %vm441, %v408, 0
      %v515 = vsel %vm441, %v409, 0
      %v518 = vsel %vm441, %v410, 0
      %v521 = vsel %vm441, %v411, 0
      %v524 = vsel %vm441, %v412, 0
      %v527 = vsel %vm441, %v413, 0
      %v530 = vsel %vm441, %v414, 0
      %v533 = vsel %vm441, %v415, 0
      %v536 = vsel %vm441, %v416, 0
      %538 = vmatpush.bf16.msra.mxu0 0
      %539 = vmatpush.bf16.msra.mxu0 0
      %540 = vmatpush.bf16.msra.mxu0 0
      %541 = vmatpush.bf16.msra.mxu0 0
      %542 = vmatpush.bf16.msra.mxu0 %v436
      %543 = vmatpush.bf16.msra.mxu0 %v435
      %544 = vmatpush.bf16.msra.mxu0 %v434
      %545 = vmatpush.bf16.msra.mxu0 %v433
      %546 = vmatmul.bf16.gmra.mxu0 %v443
      %v547 = vpop.f32.mrf.mxu0
      %v548 = vadd.f32 0.0, %v547
      %v549 = vpop.f32.mrf.mxu0
      %v550 = vadd.f32 0.0, %v549
      %551 = vmatmul.bf16.gmra.mxu0 %v446
      %v552 = vpop.f32.mrf.mxu0
      %v553 = vadd.f32 0.0, %v552
      %v554 = vpop.f32.mrf.mxu0
      %v555 = vadd.f32 0.0, %v554
      %556 = vmatmul.bf16.gmra.mxu0 %v449
      %v557 = vpop.f32.mrf.mxu0
      %v558 = vadd.f32 0.0, %v557
      %v559 = vpop.f32.mrf.mxu0
      %v560 = vadd.f32 0.0, %v559
      %561 = vmatmul.bf16.gmra.mxu0 %v452
      %v562 = vpop.f32.mrf.mxu0
      %v563 = vadd.f32 0.0, %v562
      %v564 = vpop.f32.mrf.mxu0
      %v565 = vadd.f32 0.0, %v564
      %566 = vmatmul.bf16.gmra.mxu0 %v455
      %v567 = vpop.f32.mrf.mxu0
      %v568 = vadd.f32 0.0, %v567
      %v569 = vpop.f32.mrf.mxu0
      %v570 = vadd.f32 0.0, %v569
      %571 = vmatmul.bf16.gmra.mxu0 %v458
      %v572 = vpop.f32.mrf.mxu0
      %v573 = vadd.f32 0.0, %v572
      %v574 = vpop.f32.mrf.mxu0
      %v575 = vadd.f32 0.0, %v574
      %576 = vmatmul.bf16.gmra.mxu0 %v461
      %v577 = vpop.f32.mrf.mxu0
      %v578 = vadd.f32 0.0, %v577
      %v579 = vpop.f32.mrf.mxu0
      %v580 = vadd.f32 0.0, %v579
      %581 = vmatmul.bf16.gmra.mxu0 %v464
      %v582 = vpop.f32.mrf.mxu0
      %v583 = vadd.f32 0.0, %v582
      %v584 = vpop.f32.mrf.mxu0
      %v585 = vadd.f32 0.0, %v584
      %586 = vmatmul.bf16.gmra.mxu0 %v467
      %v587 = vpop.f32.mrf.mxu0
      %v588 = vadd.f32 0.0, %v587
      %v589 = vpop.f32.mrf.mxu0
      %v590 = vadd.f32 0.0, %v589
      %591 = vmatmul.bf16.gmra.mxu0 %v470
      %v592 = vpop.f32.mrf.mxu0
      %v593 = vadd.f32 0.0, %v592
      %v594 = vpop.f32.mrf.mxu0
      %v595 = vadd.f32 0.0, %v594
      %596 = vmatmul.bf16.gmra.mxu0 %v473
      %v597 = vpop.f32.mrf.mxu0
      %v598 = vadd.f32 0.0, %v597
      %v599 = vpop.f32.mrf.mxu0
      %v600 = vadd.f32 0.0, %v599
      %601 = vmatmul.bf16.gmra.mxu0 %v476
      %v602 = vpop.f32.mrf.mxu0
      %v603 = vadd.f32 0.0, %v602
      %v604 = vpop.f32.mrf.mxu0
      %v605 = vadd.f32 0.0, %v604
      %606 = vmatmul.bf16.gmra.mxu0 %v479
      %v607 = vpop.f32.mrf.mxu0
      %v608 = vadd.f32 0.0, %v607
      %v609 = vpop.f32.mrf.mxu0
      %v610 = vadd.f32 0.0, %v609
      %611 = vmatmul.bf16.gmra.mxu0 %v482
      %v612 = vpop.f32.mrf.mxu0
      %v613 = vadd.f32 0.0, %v612
      %v614 = vpop.f32.mrf.mxu0
      %v615 = vadd.f32 0.0, %v614
      %616 = vmatmul.bf16.gmra.mxu0 %v485
      %v617 = vpop.f32.mrf.mxu0
      %v618 = vadd.f32 0.0, %v617
      %v619 = vpop.f32.mrf.mxu0
      %v620 = vadd.f32 0.0, %v619
      %621 = vmatmul.bf16.gmra.mxu0 %v488
      %v622 = vpop.f32.mrf.mxu0
      %v623 = vadd.f32 0.0, %v622
      %v624 = vpop.f32.mrf.mxu0
      %v625 = vadd.f32 0.0, %v624
      %626 = vmatmul.bf16.gmra.mxu0 %v491
      %v627 = vpop.f32.mrf.mxu0
      %v628 = vadd.f32 0.0, %v627
      %v629 = vpop.f32.mrf.mxu0
      %v630 = vadd.f32 0.0, %v629
      %631 = vmatmul.bf16.gmra.mxu0 %v494
      %v632 = vpop.f32.mrf.mxu0
      %v633 = vadd.f32 0.0, %v632
      %v634 = vpop.f32.mrf.mxu0
      %v635 = vadd.f32 0.0, %v634
      %636 = vmatmul.bf16.gmra.mxu0 %v497
      %v637 = vpop.f32.mrf.mxu0
      %v638 = vadd.f32 0.0, %v637
      %v639 = vpop.f32.mrf.mxu0
      %v640 = vadd.f32 0.0, %v639
      %641 = vmatmul.bf16.gmra.mxu0 %v500
      %v642 = vpop.f32.mrf.mxu0
      %v643 = vadd.f32 0.0, %v642
      %v644 = vpop.f32.mrf.mxu0
      %v645 = vadd.f32 0.0, %v644
      %646 = vmatmul.bf16.gmra.mxu0 %v503
      %v647 = vpop.f32.mrf.mxu0
      %v648 = vadd.f32 0.0, %v647
      %v649 = vpop.f32.mrf.mxu0
      %v650 = vadd.f32 0.0, %v649
      %651 = vmatmul.bf16.gmra.mxu0 %v506
      %v652 = vpop.f32.mrf.mxu0
      %v653 = vadd.f32 0.0, %v652
      %v654 = vpop.f32.mrf.mxu0
      %v655 = vadd.f32 0.0, %v654
      %656 = vmatmul.bf16.gmra.mxu0 %v509
      %v657 = vpop.f32.mrf.mxu0
      %v658 = vadd.f32 0.0, %v657
      %v659 = vpop.f32.mrf.mxu0
      %v660 = vadd.f32 0.0, %v659
      %661 = vmatmul.bf16.gmra.mxu0 %v512
      %v662 = vpop.f32.mrf.mxu0
      %v663 = vadd.f32 0.0, %v662
      %v664 = vpop.f32.mrf.mxu0
      %v665 = vadd.f32 0.0, %v664
      %666 = vmatmul.bf16.gmra.mxu0 %v515
      %v667 = vpop.f32.mrf.mxu0
      %v668 = vadd.f32 0.0, %v667
      %v669 = vpop.f32.mrf.mxu0
      %v670 = vadd.f32 0.0, %v669
      %671 = vmatmul.bf16.gmra.mxu0 %v518
      %v672 = vpop.f32.mrf.mxu0
      %v673 = vadd.f32 0.0, %v672
      %v674 = vpop.f32.mrf.mxu0
      %v675 = vadd.f32 0.0, %v674
      %676 = vmatmul.bf16.gmra.mxu0 %v521
      %v677 = vpop.f32.mrf.mxu0
      %v678 = vadd.f32 0.0, %v677
      %v679 = vpop.f32.mrf.mxu0
      %v680 = vadd.f32 0.0, %v679
      %681 = vmatmul.bf16.gmra.mxu0 %v524
      %v682 = vpop.f32.mrf.mxu0
      %v683 = vadd.f32 0.0, %v682
      %v684 = vpop.f32.mrf.mxu0
      %v685 = vadd.f32 0.0, %v684
      %686 = vmatmul.bf16.gmra.mxu0 %v527
      %v687 = vpop.f32.mrf.mxu0
      %v688 = vadd.f32 0.0, %v687
      %v689 = vpop.f32.mrf.mxu0
      %v690 = vadd.f32 0.0, %v689
      %691 = vmatmul.bf16.gmra.mxu0 %v530
      %v692 = vpop.f32.mrf.mxu0
      %v693 = vadd.f32 0.0, %v692
      %v694 = vpop.f32.mrf.mxu0
      %v695 = vadd.f32 0.0, %v694
      %696 = vmatmul.bf16.gmra.mxu0 %v533
      %v697 = vpop.f32.mrf.mxu0
      %v698 = vadd.f32 0.0, %v697
      %v699 = vpop.f32.mrf.mxu0
      %v700 = vadd.f32 0.0, %v699
      %701 = vmatmul.bf16.gmra.mxu0 %v536
      %v702 = vpop.f32.mrf.mxu0
      %v703 = vadd.f32 0.0, %v702
      %v704 = vpop.f32.mrf.mxu0
      %v705 = vadd.f32 0.0, %v704
      %706 = vdwg.mxu0
      %707 = vst [vmem:[%s182] sm:$0xff] %v548
      %708 = vst [vmem:[%s182 + $0x8] sm:$0xff] %v550
      %709 = vst [vmem:[%s182 + $0x10] sm:$0xff] %v553
      %710 = vst [vmem:[%s182 + $0x18] sm:$0xff] %v555
      %711 = vst [vmem:[%s182 + $0x20] sm:$0xff] %v558
      %712 = vst [vmem:[%s182 + $0x28] sm:$0xff] %v560
      %713 = vst [vmem:[%s182 + $0x30] sm:$0xff] %v563
      %714 = vst [vmem:[%s182 + $0x38] sm:$0xff] %v565
      %715 = vst [vmem:[%s182 + $0x40] sm:$0xff] %v568
      %716 = vst [vmem:[%s182 + $0x48] sm:$0xff] %v570
      %717 = vst [vmem:[%s182 + $0x50] sm:$0xff] %v573
      %718 = vst [vmem:[%s182 + $0x58] sm:$0xff] %v575
      %719 = vst [vmem:[%s182 + $0x60] sm:$0xff] %v578
      %720 = vst [vmem:[%s182 + $0x68] sm:$0xff] %v580
      %721 = vst [vmem:[%s182 + $0x70] sm:$0xff] %v583
      %722 = vst [vmem:[%s182 + $0x78] sm:$0xff] %v585
      %723 = vst [vmem:[%s182 + $0x80] sm:$0xff] %v588
      %724 = vst [vmem:[%s182 + $0x88] sm:$0xff] %v590
      %725 = vst [vmem:[%s182 + $0x90] sm:$0xff] %v593
      %726 = vst [vmem:[%s182 + $0x98] sm:$0xff] %v595
      %727 = vst [vmem:[%s182 + $0xa0] sm:$0xff] %v598
      %728 = vst [vmem:[%s182 + $0xa8] sm:$0xff] %v600
      %729 = vst [vmem:[%s182 + $0xb0] sm:$0xff] %v603
      %730 = vst [vmem:[%s182 + $0xb8] sm:$0xff] %v605
      %731 = vst [vmem:[%s182 + $0xc0] sm:$0xff] %v608
      %732 = vst [vmem:[%s182 + $0xc8] sm:$0xff] %v610
      %733 = vst [vmem:[%s182 + $0xd0] sm:$0xff] %v613
      %734 = vst [vmem:[%s182 + $0xd8] sm:$0xff] %v615
      %735 = vst [vmem:[%s182 + $0xe0] sm:$0xff] %v618
      %736 = vst [vmem:[%s182 + $0xe8] sm:$0xff] %v620
      %737 = vst [vmem:[%s182 + $0xf0] sm:$0xff] %v623
      %738 = vst [vmem:[%s182 + $0xf8] sm:$0xff] %v625
      %739 = vst [vmem:[%s182 + $0x100] sm:$0xff] %v628
      %740 = vst [vmem:[%s182 + $0x108] sm:$0xff] %v630
      %741 = vst [vmem:[%s182 + $0x110] sm:$0xff] %v633
      %742 = vst [vmem:[%s182 + $0x118] sm:$0xff] %v635
      %743 = vst [vmem:[%s182 + $0x120] sm:$0xff] %v638
      %744 = vst [vmem:[%s182 + $0x128] sm:$0xff] %v640
      %745 = vst [vmem:[%s182 + $0x130] sm:$0xff] %v643
      %746 = vst [vmem:[%s182 + $0x138] sm:$0xff] %v645
      %747 = vst [vmem:[%s182 + $0x140] sm:$0xff] %v648
      %748 = vst [vmem:[%s182 + $0x148] sm:$0xff] %v650
      %749 = vst [vmem:[%s182 + $0x150] sm:$0xff] %v653
      %750 = vst [vmem:[%s182 + $0x158] sm:$0xff] %v655
      %751 = vst [vmem:[%s182 + $0x160] sm:$0xff] %v658
      %752 = vst [vmem:[%s182 + $0x168] sm:$0xff] %v660
      %753 = vst [vmem:[%s182 + $0x170] sm:$0xff] %v663
      %754 = vst [vmem:[%s182 + $0x178] sm:$0xff] %v665
      %755 = vst [vmem:[%s182 + $0x180] sm:$0xff] %v668
      %756 = vst [vmem:[%s182 + $0x188] sm:$0xff] %v670
      %757 = vst [vmem:[%s182 + $0x190] sm:$0xff] %v673
      %758 = vst [vmem:[%s182 + $0x198] sm:$0xff] %v675
      %759 = vst [vmem:[%s182 + $0x1a0] sm:$0xff] %v678
      %760 = vst [vmem:[%s182 + $0x1a8] sm:$0xff] %v680
      %761 = vst [vmem:[%s182 + $0x1b0] sm:$0xff] %v683
      %762 = vst [vmem:[%s182 + $0x1b8] sm:$0xff] %v685
      %763 = vst [vmem:[%s182 + $0x1c0] sm:$0xff] %v688
      %764 = vst [vmem:[%s182 + $0x1c8] sm:$0xff] %v690
      %765 = vst [vmem:[%s182 + $0x1d0] sm:$0xff] %v693
      %766 = vst [vmem:[%s182 + $0x1d8] sm:$0xff] %v695
      %767 = vst [vmem:[%s182 + $0x1e0] sm:$0xff] %v698
      %768 = vst [vmem:[%s182 + $0x1e8] sm:$0xff] %v700
      %769 = vst [vmem:[%s182 + $0x1f0] sm:$0xff] %v703
      %770 = vst [vmem:[%s182 + $0x1f8] sm:$0xff] %v705
      %s771 = smul.u32 64, %s17
      %p772 = scmp.lt.s32.totalorder %s771, 255
      %s773 = scalar_select %p772, %s771, 255
      %p774 = scmp.lt.s32.totalorder %s18, 0
      %s775 = scalar_select %p774, %s18, 0
      %s776 = sadd.s32 %s775, %s773
      %s777 = smul.addr %s776, 8
      %s778 = scalar_lea.vmem %s2, %s777
      // Predicated region
      $region29: #{generator_forward.18} parent=27 // pred_check
        %p779 = pneg %p97
      $region30: #{generator_forward.18} parent=27 // pred_check_branch
        %781 = sbr.rel (%p779) target = $region32
      $region31: #{generator_forward.18} parent=27 // pred_region
        %s782 = smul.u32 64, %s17
      $region32: #{generator_forward.18} parent=27 // pred_fallthru
        _
    $region28: #{generator_forward.18} parent=5 // pred_fallthru
      _
    %p783 = scmp.le.s32.totalorder 2, %s8
    // Predicated region
    $region33: #{generator_forward.18} parent=5 // pred_check
      %p784 = pneg %p783
    $region34: #{generator_forward.18} parent=5 // pred_check_branch
      %786 = sbr.rel (%p784) target = $region36
    $region35: #{generator_forward.18} parent=5 // pred_region
      %s787 = ssub.s32 %s8, 2
      // Predicated region
      $region37: #{generator_forward.18} parent=35 // pred_check
        %p788 = pneg %p103
      $region38: #{generator_forward.18} parent=35 // pred_check_branch
        %790 = sbr.rel (%p788) target = $region40
      $region39: #{generator_forward.18} parent=35 // pred_region
        %s791 = smul.u32 64, %s19
        %p792 = scmp.lt.s32.totalorder %s791, 255
        %s793 = scalar_select %p792, %s791, 255
        %p794 = scmp.lt.s32.totalorder %s20, 0
        %s795 = scalar_select %p794, %s20, 0
        %s796 = sadd.s32 %s795, %s793
        %s797 = smul.addr %s796, 8
        %s798 = scalar_lea.vmem %s2, %s797
      $region40: #{generator_forward.18} parent=35 // pred_fallthru
        _
    $region36: #{generator_forward.18} parent=5 // pred_fallthru
      _
  $region6: #{generator_forward.18} parent=0 // loop_footer
    %s12 = sadd.s32 1, %s8
  $region7: #{generator_forward.18} parent=0 // loop_footer_branch
    %7 = sbr.rel target = $region3
  $region8: #{generator_forward.18} parent=0 // loop_exit
    _

// kernel: generator_forward.19
$region0: #{generator_forward.19}
  #allocation0 [shape = 'u32[]', space=smem, size = 0x4, offset = 0x4, fixed_abs, tag = 'smem constant byte address 0x4 - core index']
  #allocation1 [shape = 'u32[72,128]{1,0:T(1,128)}', space=vmem, size = 0x9000, scoped, tag = 'internal scratch']
  %s0 = inlined_call_operand.vmem [shape: f32[192,128], index: 0, kind: input, shape index: {}]
  %s1 = inlined_call_operand.vmem [shape: f32[192,128], index: 1, kind: output, shape index: {}]
  %s2 = sld [smem:[#allocation0]]
  $region14: #{generator_forward.19} parent=0
    _
  %s4 = ssub.s32 1, %s2
  %s5 = scalar_select 0, %s4, %s2
  // Predicated region
  $region2: #{generator_forward.19} parent=0 // pred_check
    _
  $region3: #{generator_forward.19} parent=0 // pred_check_branch
    %7 = sbr.rel (0) target = $region5
  $region4: #{generator_forward.19} parent=0 // pred_region
    _
  $region5: #{generator_forward.19} parent=0 // pred_fallthru
    _
  %v8 = vld [vmem:[%s0] sm:$0xff]
  %v9 = vld [vmem:[%s0 + $0x8] sm:$0xff]
  %v10 = vld [vmem:[%s0 + $0x10] sm:$0xff]
  %v11 = vld [vmem:[%s0 + $0x18] sm:$0xff]
  %v12 = vld [vmem:[%s0 + $0x20] sm:$0xff]
  %v13 = vld [vmem:[%s0 + $0x28] sm:$0xff]
  %v14 = vld [vmem:[%s0 + $0x30] sm:$0xff]
  %v15 = vld [vmem:[%s0 + $0x38] sm:$0xff]
  %v16 = vld [vmem:[%s0 + $0x40] sm:$0xff]
  %v17 = vld [vmem:[%s0 + $0x48] sm:$0xff]
  %v18 = vld [vmem:[%s0 + $0x50] sm:$0xff]
  %v19 = vld [vmem:[%s0 + $0x58] sm:$0xff]
  %v20 = vld [vmem:[%s0 + $0x60] sm:$0xff]
  %v21 = vld [vmem:[%s0 + $0x68] sm:$0xff]
  %v22 = vld [vmem:[%s0 + $0x70] sm:$0xff]
  %v23 = vld [vmem:[%s0 + $0x78] sm:$0xff]
  %v24 = vld [vmem:[%s0 + $0x80] sm:$0xff]
  %v25 = vld [vmem:[%s0 + $0x88] sm:$0xff]
  %v26 = vld [vmem:[%s0 + $0x90] sm:$0xff]
  %v27 = vld [vmem:[%s0 + $0x98] sm:$0xff]
  %v28 = vld [vmem:[%s0 + $0xa0] sm:$0xff]
  %v29 = vld [vmem:[%s0 + $0xa8] sm:$0xff]
  %v30 = vld [vmem:[%s0 + $0xb0] sm:$0xff]
  %v31 = vld [vmem:[%s0 + $0xb8] sm:$0xff]
  %v32 = vtanh.pop %v8
  %v33 = vtanh.pop %v9
  %v34 = vtanh.pop %v10
  %v35 = vtanh.pop %v11
  %v36 = vtanh.pop %v12
  %v37 = vtanh.pop %v13
  %v38 = vtanh.pop %v14
  %v39 = vtanh.pop %v15
  %v40 = vtanh.pop %v16
  %v41 = vtanh.pop %v17
  %v42 = vtanh.pop %v18
  %v43 = vtanh.pop %v19
  %v44 = vtanh.pop %v20
  %v45 = vtanh.pop %v21
  %v46 = vtanh.pop %v22
  %v47 = vtanh.pop %v23
  %v48 = vtanh.pop %v24
  %v49 = vtanh.pop %v25
  %v50 = vtanh.pop %v26
  %v51 = vtanh.pop %v27
  %v52 = vtanh.pop %v28
  %v53 = vtanh.pop %v29
  %v54 = vtanh.pop %v30
  %v55 = vtanh.pop %v31
  %56 = vst [vmem:[%s1] sm:$0xff] %v32
  %57 = vst [vmem:[%s1 + $0x8] sm:$0xff] %v33
  %58 = vst [vmem:[%s1 + $0x10] sm:$0xff] %v34
  %59 = vst [vmem:[%s1 + $0x18] sm:$0xff] %v35
  %60 = vst [vmem:[%s1 + $0x20] sm:$0xff] %v36
  %61 = vst [vmem:[%s1 + $0x28] sm:$0xff] %v37
  %62 = vst [vmem:[%s1 + $0x30] sm:$0xff] %v38
  %63 = vst [vmem:[%s1 + $0x38] sm:$0xff] %v39
  %64 = vst [vmem:[%s1 + $0x40] sm:$0xff] %v40
  %65 = vst [vmem:[%s1 + $0x48] sm:$0xff] %v41
  %66 = vst [vmem:[%s1 + $0x50] sm:$0xff] %v42
  %67 = vst [vmem:[%s1 + $0x58] sm:$0xff] %v43
  %68 = vst [vmem:[%s1 + $0x60] sm:$0xff] %v44
  %69 = vst [vmem:[%s1 + $0x68] sm:$0xff] %v45
  %70 = vst [vmem:[%s1 + $0x70] sm:$0xff] %v46
  %71 = vst [vmem:[%s1 + $0x78] sm:$0xff] %v47
  %72 = vst [vmem:[%s1 + $0x80] sm:$0xff] %v48
  %73 = vst [vmem:[%s1 + $0x88] sm:$0xff] %v49
  %74 = vst [vmem:[%s1 + $0x90] sm:$0xff] %v50
  %75 = vst [vmem:[%s1 + $0x98] sm:$0xff] %v51
  %76 = vst [vmem:[%s1 + $0xa0] sm:$0xff] %v52
  %77 = vst [vmem:[%s1 + $0xa8] sm:$0xff] %v53
  %78 = vst [vmem:[%s1 + $0xb0] sm:$0xff] %v54
  %79 = vst [vmem:[%s1 + $0xb8] sm:$0xff] %v55
  // Predicated region
  $region6: #{generator_forward.19} parent=0 // pred_check
    _
  $region7: #{generator_forward.19} parent=0 // pred_check_branch
    %81 = sbr.rel (0) target = $region9
  $region8: #{generator_forward.19} parent=0 // pred_region
    _
  $region9: #{generator_forward.19} parent=0 // pred_fallthru
    _
  // Predicated region
  $region10: #{generator_forward.19} parent=0 // pred_check
    _
  $region11: #{generator_forward.19} parent=0 // pred_check_branch
    %83 = sbr.rel (0) target = $region13
  $region12: #{generator_forward.19} parent=0 // pred_region
    _
  $region13: #{generator_forward.19} parent=0 // pred_fallthru
    _

</llo_original>
